<compile_context>
chip_gen: v7x
topology: tpu7x:2x2x1
jax: 0.10.0
libtpu: 0.0.40
codegen_flags: <defaults>
</compile_context>

<pallas_src>
import functools

import jax
import jax.numpy as jnp
from jax.experimental import pallas as pl
from jax.experimental.pallas import tpu as pltpu


# ----------------------------------------------------------------------------
# small helpers (wrapper side)
# ----------------------------------------------------------------------------
def _rup(v, m=128):
    return ((v + m - 1) // m) * m


def _pad2(a, rows, cols):
    return jnp.pad(a, ((0, rows - a.shape[0]), (0, cols - a.shape[1])))


def _pad_vec(v, cols):
    v = v.reshape(1, -1).astype(jnp.float32)
    return jnp.pad(v, ((0, 0), (0, cols - v.shape[1])))


def _group_proj(c_real, c_pad, groups):
    """(c_pad, c_pad) 0/1 matrix: 1 iff both channels are real & in same group."""
    idx = jnp.arange(c_pad)
    grp = idx // (c_real // groups)
    valid = idx < c_real
    same = (grp[:, None] == grp[None, :]) & valid[:, None] & valid[None, :]
    return same.astype(jnp.float32)


def _const_index_map(ndim):
    def im(i):
        return (0,) * ndim
    return im


# ----------------------------------------------------------------------------
# Fused Bottleneck kernel (one sample per grid step)
# ----------------------------------------------------------------------------
def _bottleneck_kernel(*refs, H, W, Ho, Wo, Wp, stride, eps, has_ds,
                       inv1, inv2, inv3, r_rows):
    if has_ds:
        (x_ref, xres_ref,
         w1_ref, g1_ref, b1_ref, w2_ref, g2_ref, b2_ref,
         w3_ref, g3_ref, b3_ref,
         wds_ref, gds_ref, bds_ref, gp_p_ref, gp_c_ref,
         o_ref, xp_ref, yp_ref) = refs
    else:
        (x_ref,
         w1_ref, g1_ref, b1_ref, w2_ref, g2_ref, b2_ref,
         w3_ref, g3_ref, b3_ref,
         gp_p_ref, gp_c_ref,
         o_ref, xp_ref, yp_ref) = refs

    def group_norm(y, g_ref, b_ref, gp_ref, inv_cnt):
        # Single-pass statistics: per-channel sum / sum-of-squares, then a tiny
        # (1,C)@(C,C) group-projection matmul both combines the channels of
        # each group and broadcasts the group moments back per channel.
        # Zero-padded channels have zero sums and zero gamma/beta -> stay zero.
        s = jnp.sum(y, axis=0, keepdims=True)
        sq = jnp.sum(y * y, axis=0, keepdims=True)
        mean = jnp.dot(s, gp_ref[...], preferred_element_type=jnp.float32) * inv_cnt
        ex2 = jnp.dot(sq, gp_ref[...], preferred_element_type=jnp.float32) * inv_cnt
        var = ex2 - mean * mean
        return (y - mean) * jax.lax.rsqrt(var + eps) * g_ref[...] + b_ref[...]

    # ---- conv1 (1x1) + GN + ReLU  (bf16 MXU inputs, f32 accumulation) -------
    x = x_ref[0]                                           # (H*W, Cin_p) f32
    y1 = jnp.dot(x.astype(jnp.bfloat16), w1_ref[...],
                 preferred_element_type=jnp.float32)       # (H*W, Pp)
    y1 = jnp.maximum(group_norm(y1, g1_ref, b1_ref, gp_p_ref, inv1), 0.0)

    # ---- stage conv2 input: flattened (H+2)*(W+2) padded grid in VMEM -------
    xp_ref[...] = jnp.zeros_like(xp_ref)                   # zero halo + slack
    for h in range(H):                                     # interior rows
        xp_ref[pl.ds((h + 1) * Wp + 1, W), :] = y1[h * W:(h + 1) * W, :]

    # ---- conv2 (3x3, stride) as 3 fat-K shifted matmuls on the padded grid --
    cmid = w2_ref.shape[-1]
    acc = jnp.zeros((r_rows, cmid), jnp.float32)
    for kh in range(3):
        # the 3 kw taps are merged along the contraction dim (K = 3*C)
        patch = jnp.concatenate(
            [xp_ref[pl.ds(kh * Wp + kw, r_rows), :] for kw in range(3)],
            axis=-1).astype(jnp.bfloat16)                  # (r_rows, 3*Pp)
        acc = acc + jnp.dot(patch, w2_ref[kh],
                            preferred_element_type=jnp.float32)
    yp_ref[...] = acc

    # extract the valid (strided) output rows from the padded grid
    rows = []
    for ho in range(Ho):
        if stride == 1:
            rows.append(yp_ref[pl.ds(ho * Wp, W), :])
        else:
            rows.append(yp_ref[pl.ds(ho * stride * Wp, Wo, stride=stride), :])
    y2 = jnp.concatenate(rows, axis=0)                     # (Ho*Wo, Pp)
    y2 = jnp.maximum(group_norm(y2, g2_ref, b2_ref, gp_p_ref, inv2), 0.0)

    # ---- conv3 (1x1) + GN ----------------------------------------------------
    y3 = jnp.dot(y2.astype(jnp.bfloat16), w3_ref[...],
                 preferred_element_type=jnp.float32)       # (Ho*Wo, Cop)
    y3 = group_norm(y3, g3_ref, b3_ref, gp_c_ref, inv3)

    # ---- shortcut + residual add + ReLU --------------------------------------
    if has_ds:
        sc = jnp.dot(xres_ref[0].astype(jnp.bfloat16), wds_ref[...],
                     preferred_element_type=jnp.float32)
        sc = group_norm(sc, gds_ref, bds_ref, gp_c_ref, inv3)
    else:
        sc = x_ref[0]                                      # identity shortcut
    o_ref[0] = jnp.maximum(y3 + sc, 0.0).astype(o_ref.dtype)


# ----------------------------------------------------------------------------
# Public wrapper (NCHW in / NCHW out); plain-JAX glue = padding & transposes.
# ----------------------------------------------------------------------------
def bottleneck_forward(x_nchw, params, *, planes, stride=1, num_groups=2, eps=1e-5):
    expansion = 4
    x = jnp.transpose(x_nchw, (0, 2, 3, 1)).astype(jnp.float32)   # NCHW -> NHWC
    n, H, W, cin = x.shape
    P = planes
    Co = expansion * planes
    assert P % num_groups == 0 and Co % num_groups == 0
    Ho = (H - 1) // stride + 1
    Wo = (W - 1) // stride + 1
    Hp, Wp = H + 2, W + 2

    Cin_p, Pp, Cop = _rup(cin), _rup(P), _rup(Co)
    has_ds = (stride != 1) or (cin != Co)

    # lane-dense operands (channels zero-padded to a multiple of 128)
    xf = jnp.pad(x, ((0, 0), (0, 0), (0, 0), (0, Cin_p - cin)))
    xf = xf.reshape(n, H * W, Cin_p)

    w1 = _pad2(params["w1"], Cin_p, Pp).astype(jnp.bfloat16)
    w3 = _pad2(params["w3"], Pp, Cop).astype(jnp.bfloat16)
    w2 = params["w2"]                                        # (3, 3, P, P) HWIO
    w2_fat = jnp.stack(
        [jnp.concatenate([_pad2(w2[kh, kw], Pp, Pp) for kw in range(3)], axis=0)
         for kh in range(3)], axis=0).astype(jnp.bfloat16)   # (3, 3*Pp, Pp)

    g1, b1 = _pad_vec(params["g1"], Pp), _pad_vec(params["b1"], Pp)
    g2, b2 = _pad_vec(params["g2"], Pp), _pad_vec(params["b2"], Pp)
    g3, b3 = _pad_vec(params["g3"], Cop), _pad_vec(params["b3"], Cop)
    gp_p = _group_proj(P, Pp, num_groups)
    gp_c = _group_proj(Co, Cop, num_groups)

    # conv2 padded-grid geometry (flattened rows), rounded to sublane multiples
    R = (Ho - 1) * stride * Wp + (Wo - 1) * stride + 1
    r_rows = _rup(R, 8)
    srows = _rup(Hp * Wp, 8) + 8
    assert 2 * Wp + 2 + r_rows <= srows  # all shifted tap slices stay in-bounds

    inv1 = 1.0 / float(H * W * (P // num_groups))
    inv2 = 1.0 / float(Ho * Wo * (P // num_groups))
    inv3 = 1.0 / float(Ho * Wo * (Co // num_groups))

    kernel = functools.partial(
        _bottleneck_kernel, H=H, W=W, Ho=Ho, Wo=Wo, Wp=Wp, stride=stride,
        eps=eps, has_ds=has_ds, inv1=inv1, inv2=inv2, inv3=inv3, r_rows=r_rows)

    in_specs = [pl.BlockSpec((1, H * W, Cin_p), lambda i: (i, 0, 0))]
    args = [xf]
    if has_ds:
        xs = x[:, ::stride, ::stride, :]
        xs = jnp.pad(xs, ((0, 0), (0, 0), (0, 0), (0, Cin_p - cin)))
        xs = xs.reshape(n, Ho * Wo, Cin_p)
        in_specs.append(pl.BlockSpec((1, Ho * Wo, Cin_p), lambda i: (i, 0, 0)))
        args.append(xs)

    consts = [w1, g1, b1, w2_fat, g2, b2, w3, g3, b3]
    if has_ds:
        wds = _pad2(params["wds"], Cin_p, Cop).astype(jnp.bfloat16)
        gds, bds = _pad_vec(params["gds"], Cop), _pad_vec(params["bds"], Cop)
        consts += [wds, gds, bds]
    consts += [gp_p, gp_c]
    for c in consts:
        in_specs.append(pl.BlockSpec(c.shape, _const_index_map(c.ndim)))
        args.append(c)

    out = pl.pallas_call(
        kernel,
        out_shape=jax.ShapeDtypeStruct((n, Ho * Wo, Cop), jnp.float32),
        grid=(n,),
        in_specs=in_specs,
        out_specs=pl.BlockSpec((1, Ho * Wo, Cop), lambda i: (i, 0, 0)),
        scratch_shapes=[
            pltpu.VMEM((srows, Pp), jnp.float32),    # flattened padded conv2 input
            pltpu.VMEM((r_rows, Pp), jnp.float32),   # conv2 padded-grid output
        ],
        compiler_params=pltpu.CompilerParams(
            dimension_semantics=("parallel",),
            vmem_limit_bytes=64 * 1024 * 1024,
        ),
    )(*args)

    out = out[:, :, :Co].reshape(n, Ho, Wo, Co)
    return jnp.transpose(out, (0, 3, 1, 2))                 # NHWC -> NCHW


# ----------------------------------------------------------------------------
# Pure-JAX reference (mirrors the kernel numerics: bf16 matmul operands,
# f32 accumulation / GroupNorm) used to validate the Pallas lowering.
# ----------------------------------------------------------------------------
def _ref_group_norm(y, gamma, beta, num_groups, eps=1e-5):
    n, h, w, c = y.shape
    yr = y.reshape(n, h * w, num_groups, c // num_groups)
    mean = yr.mean(axis=(1, 3), keepdims=True)
    var = ((yr - mean) ** 2).mean(axis=(1, 3), keepdims=True)
    yh = ((yr - mean) / jnp.sqrt(var + eps)).reshape(n, h, w, c)
    return yh * gamma.reshape(1, 1, 1, c) + beta.reshape(1, 1, 1, c)


def _ref_forward(x_nchw, p, *, planes, stride=1):
    hi = jax.lax.Precision.HIGHEST
    bf = lambda a: a.astype(jnp.bfloat16).astype(jnp.float32)
    expansion = 4
    x = jnp.transpose(x_nchw, (0, 2, 3, 1))
    y = jnp.einsum("nhwc,cd->nhwd", bf(x), bf(p["w1"]), precision=hi)
    y = jax.nn.relu(_ref_group_norm(y, p["g1"], p["b1"], 2))
    y = jax.lax.conv_general_dilated(
        bf(y), bf(p["w2"]), (stride, stride), ((1, 1), (1, 1)),
        dimension_numbers=("NHWC", "HWIO", "NHWC"), precision=hi)
    y = jax.nn.relu(_ref_group_norm(y, p["g2"], p["b2"], 2))
    y = jnp.einsum("nhwc,cd->nhwd", bf(y), bf(p["w3"]), precision=hi)
    y = _ref_group_norm(y, p["g3"], p["b3"], 2)
    if stride != 1 or x.shape[-1] != expansion * planes:
        s = x[:, ::stride, ::stride, :]
        s = jnp.einsum("nhwc,cd->nhwd", bf(s), bf(p["wds"]), precision=hi)
        s = _ref_group_norm(s, p["gds"], p["bds"], 2)
    else:
        s = x
    out = jax.nn.relu(y + s)
    return jnp.transpose(out, (0, 3, 1, 2))


if __name__ == "__main__":
    N, Cin, H, W = 2, 4, 16, 16
    planes, stride = 4, 1
    Co = 4 * planes

    key = jax.random.PRNGKey(0)
    k_x, k1, k2, k3, k4 = jax.random.split(key, 5)
    x = jax.random.normal(k_x, (N, Cin, H, W), jnp.float32)

    params = {
        "w1": 0.1 * jax.random.normal(k1, (Cin, planes), jnp.float32),
        "g1": jnp.ones((planes,), jnp.float32),
        "b1": jnp.zeros((planes,), jnp.float32),
        "w2": 0.1 * jax.random.normal(k2, (3, 3, planes, planes), jnp.float32),  # HWIO
        "g2": jnp.ones((planes,), jnp.float32),
        "b2": jnp.zeros((planes,), jnp.float32),
        "w3": 0.1 * jax.random.normal(k3, (planes, Co), jnp.float32),
        "g3": jnp.ones((Co,), jnp.float32),
        "b3": jnp.zeros((Co,), jnp.float32),
        "wds": 0.1 * jax.random.normal(k4, (Cin, Co), jnp.float32),
        "gds": jnp.ones((Co,), jnp.float32),
        "bds": jnp.zeros((Co,), jnp.float32),
    }

    out = bottleneck_forward(x, params, planes=planes, stride=stride)
    out = jax.block_until_ready(out)
    assert out.shape == (N, Co, H, W), out.shape

    ref = jax.block_until_ready(_ref_forward(x, params, planes=planes, stride=stride))
    err = float(jnp.max(jnp.abs(out - ref)))
    assert jnp.allclose(out, ref, atol=2e-2, rtol=2e-2), err

    print("KERNEL_OK")
</pallas_src>

<mosaic_0001>
module attributes {stable_mosaic.version = 11 : i64} {
  func.func @_bottleneck_kernel(%arg0: i32, %arg1: memref<1x256x128xf32, #tpu.memory_space<vmem>>, %arg2: memref<1x256x128xf32, #tpu.memory_space<vmem>>, %arg3: memref<128x128xbf16, #tpu.memory_space<vmem>>, %arg4: memref<1x128xf32, #tpu.memory_space<vmem>>, %arg5: memref<1x128xf32, #tpu.memory_space<vmem>>, %arg6: memref<3x384x128xbf16, #tpu.memory_space<vmem>>, %arg7: memref<1x128xf32, #tpu.memory_space<vmem>>, %arg8: memref<1x128xf32, #tpu.memory_space<vmem>>, %arg9: memref<128x128xbf16, #tpu.memory_space<vmem>>, %arg10: memref<1x128xf32, #tpu.memory_space<vmem>>, %arg11: memref<1x128xf32, #tpu.memory_space<vmem>>, %arg12: memref<128x128xbf16, #tpu.memory_space<vmem>>, %arg13: memref<1x128xf32, #tpu.memory_space<vmem>>, %arg14: memref<1x128xf32, #tpu.memory_space<vmem>>, %arg15: memref<128x128xf32, #tpu.memory_space<vmem>>, %arg16: memref<128x128xf32, #tpu.memory_space<vmem>>, %arg17: memref<1x256x128xf32, #tpu.memory_space<vmem>>, %arg18: memref<336x128xf32, #tpu.memory_space<vmem>>, %arg19: memref<288x128xf32, #tpu.memory_space<vmem>>) attributes {dimension_semantics = [#tpu.dimension_semantics<parallel>], iteration_bounds = array<i64: 2>, scalar_prefetch = 0 : i64, scratch_operands = 2 : i64, tpu.core_type = #tpu.core_type<tc>, window_params = [{transform_indices = @transform_0, window_bounds = array<i64: 1, 256, 128>}, {transform_indices = @transform_1, window_bounds = array<i64: 1, 256, 128>}, {pipeline_mode = #tpu.pipeline_mode<synchronous>, transform_indices = @transform_2, window_bounds = array<i64: 128, 128>}, {pipeline_mode = #tpu.pipeline_mode<synchronous>, transform_indices = @transform_3, window_bounds = array<i64: 1, 128>}, {pipeline_mode = #tpu.pipeline_mode<synchronous>, transform_indices = @transform_4, window_bounds = array<i64: 1, 128>}, {pipeline_mode = #tpu.pipeline_mode<synchronous>, transform_indices = @transform_5, window_bounds = array<i64: 3, 384, 128>}, {pipeline_mode = #tpu.pipeline_mode<synchronous>, transform_indices = @transform_6, window_bounds = array<i64: 1, 128>}, {pipeline_mode = #tpu.pipeline_mode<synchronous>, transform_indices = @transform_7, window_bounds = array<i64: 1, 128>}, {pipeline_mode = #tpu.pipeline_mode<synchronous>, transform_indices = @transform_8, window_bounds = array<i64: 128, 128>}, {pipeline_mode = #tpu.pipeline_mode<synchronous>, transform_indices = @transform_9, window_bounds = array<i64: 1, 128>}, {pipeline_mode = #tpu.pipeline_mode<synchronous>, transform_indices = @transform_10, window_bounds = array<i64: 1, 128>}, {pipeline_mode = #tpu.pipeline_mode<synchronous>, transform_indices = @transform_11, window_bounds = array<i64: 128, 128>}, {pipeline_mode = #tpu.pipeline_mode<synchronous>, transform_indices = @transform_12, window_bounds = array<i64: 1, 128>}, {pipeline_mode = #tpu.pipeline_mode<synchronous>, transform_indices = @transform_13, window_bounds = array<i64: 1, 128>}, {pipeline_mode = #tpu.pipeline_mode<synchronous>, transform_indices = @transform_14, window_bounds = array<i64: 128, 128>}, {pipeline_mode = #tpu.pipeline_mode<synchronous>, transform_indices = @transform_15, window_bounds = array<i64: 128, 128>}, {transform_indices = @transform_16, window_bounds = array<i64: 1, 256, 128>}]} {
    %c0 = arith.constant 0 : index
    %c0_0 = arith.constant 0 : index
    %c0_1 = arith.constant 0 : index
    %0 = vector.load %arg1[%c0, %c0_0, %c0_1] : memref<1x256x128xf32, #tpu.memory_space<vmem>>, vector<1x256x128xf32>
    %1 = vector.shape_cast %0 : vector<1x256x128xf32> to vector<256x128xf32>
    %2 = arith.truncf %1 : vector<256x128xf32> to vector<256x128xbf16>
    %c0_2 = arith.constant 0 : index
    %c0_3 = arith.constant 0 : index
    %3 = vector.load %arg3[%c0_2, %c0_3] : memref<128x128xbf16, #tpu.memory_space<vmem>>, vector<128x128xbf16>
    %cst = arith.constant dense<0.000000e+00> : vector<256x128xf32>
    %4 = tpu.matmul %2, %3, %cst {dimension_numbers = #tpu.dot_dimension_numbers<[1], [0], [0], [1], [0, 0, 1, 1], [], []>} : vector<256x128xbf16>, vector<128x128xbf16>, vector<256x128xf32> -> vector<256x128xf32>
    %cst_4 = arith.constant dense<0.000000e+00> : vector<128xf32>
    %5 = vector.multi_reduction <add>, %4, %cst_4 [0] : vector<256x128xf32> to vector<128xf32>
    %6 = vector.shape_cast %5 : vector<128xf32> to vector<1x128xf32>
    %7 = arith.mulf %4, %4 : vector<256x128xf32>
    %cst_5 = arith.constant dense<0.000000e+00> : vector<128xf32>
    %8 = vector.multi_reduction <add>, %7, %cst_5 [0] : vector<256x128xf32> to vector<128xf32>
    %9 = vector.shape_cast %8 : vector<128xf32> to vector<1x128xf32>
    %c0_6 = arith.constant 0 : index
    %c0_7 = arith.constant 0 : index
    %10 = vector.load %arg15[%c0_6, %c0_7] : memref<128x128xf32, #tpu.memory_space<vmem>>, vector<128x128xf32>
    %cst_8 = arith.constant dense<0.000000e+00> : vector<1x128xf32>
    %11 = tpu.matmul %6, %10, %cst_8 {dimension_numbers = #tpu.dot_dimension_numbers<[1], [0], [0], [1], [0, 0, 1, 1], [], []>} : vector<1x128xf32>, vector<128x128xf32>, vector<1x128xf32> -> vector<1x128xf32>
    %cst_9 = arith.constant 0.001953125 : f32
    %12 = vector.broadcast %cst_9 : f32 to vector<1x128xf32>
    %13 = arith.mulf %11, %12 : vector<1x128xf32>
    %c0_10 = arith.constant 0 : index
    %c0_11 = arith.constant 0 : index
    %14 = vector.load %arg15[%c0_10, %c0_11] : memref<128x128xf32, #tpu.memory_space<vmem>>, vector<128x128xf32>
    %cst_12 = arith.constant dense<0.000000e+00> : vector<1x128xf32>
    %15 = tpu.matmul %9, %14, %cst_12 {dimension_numbers = #tpu.dot_dimension_numbers<[1], [0], [0], [1], [0, 0, 1, 1], [], []>} : vector<1x128xf32>, vector<128x128xf32>, vector<1x128xf32> -> vector<1x128xf32>
    %cst_13 = arith.constant 0.001953125 : f32
    %16 = vector.broadcast %cst_13 : f32 to vector<1x128xf32>
    %17 = arith.mulf %15, %16 : vector<1x128xf32>
    %18 = arith.mulf %13, %13 : vector<1x128xf32>
    %19 = arith.subf %17, %18 : vector<1x128xf32>
    %20 = vector.broadcast %13 : vector<1x128xf32> to vector<256x128xf32>
    %21 = arith.subf %4, %20 : vector<256x128xf32>
    %cst_14 = arith.constant 9.99999974E-6 : f32
    %22 = vector.broadcast %cst_14 : f32 to vector<1x128xf32>
    %23 = arith.addf %19, %22 : vector<1x128xf32>
    %24 = math.rsqrt %23 : vector<1x128xf32>
    %25 = vector.broadcast %24 : vector<1x128xf32> to vector<256x128xf32>
    %26 = arith.mulf %21, %25 : vector<256x128xf32>
    %c0_15 = arith.constant 0 : index
    %c0_16 = arith.constant 0 : index
    %27 = vector.load %arg4[%c0_15, %c0_16] : memref<1x128xf32, #tpu.memory_space<vmem>>, vector<1x128xf32>
    %28 = vector.broadcast %27 : vector<1x128xf32> to vector<256x128xf32>
    %29 = arith.mulf %26, %28 : vector<256x128xf32>
    %c0_17 = arith.constant 0 : index
    %c0_18 = arith.constant 0 : index
    %30 = vector.load %arg5[%c0_17, %c0_18] : memref<1x128xf32, #tpu.memory_space<vmem>>, vector<1x128xf32>
    %31 = vector.broadcast %30 : vector<1x128xf32> to vector<256x128xf32>
    %32 = arith.addf %29, %31 : vector<256x128xf32>
    %cst_19 = arith.constant 0.000000e+00 : f32
    %33 = vector.broadcast %cst_19 : f32 to vector<256x128xf32>
    %34 = arith.maximumf %32, %33 : vector<256x128xf32>
    %cst_20 = arith.constant 0.000000e+00 : f32
    %35 = vector.broadcast %cst_20 : f32 to vector<336x128xf32>
    %c0_21 = arith.constant 0 : index
    %c0_22 = arith.constant 0 : index
    %36 = vector.load %arg18[%c0_21, %c0_22] : memref<336x128xf32, #tpu.memory_space<vmem>>, vector<336x128xf32>
    tpu.vector_store %arg18[%c0_21, %c0_22], %35 {strides = array<i32>} : memref<336x128xf32, #tpu.memory_space<vmem>>, vector<336x128xf32>,
    %37 = vector.extract_strided_slice %34 {offsets = [0, 0], sizes = [16, 128], strides = [1, 1]} : vector<256x128xf32> to vector<16x128xf32>
    %c19 = arith.constant 19 : index
    %c0_23 = arith.constant 0 : index
    %38 = vector.load %arg18[%c19, %c0_23] : memref<336x128xf32, #tpu.memory_space<vmem>>, vector<16x128xf32>
    tpu.vector_store %arg18[%c19, %c0_23], %37 {strides = array<i32>} : memref<336x128xf32, #tpu.memory_space<vmem>>, vector<16x128xf32>,
    %39 = vector.extract_strided_slice %34 {offsets = [16, 0], sizes = [16, 128], strides = [1, 1]} : vector<256x128xf32> to vector<16x128xf32>
    %c37 = arith.constant 37 : index
    %c0_24 = arith.constant 0 : index
    %40 = vector.load %arg18[%c37, %c0_24] : memref<336x128xf32, #tpu.memory_space<vmem>>, vector<16x128xf32>
    tpu.vector_store %arg18[%c37, %c0_24], %39 {strides = array<i32>} : memref<336x128xf32, #tpu.memory_space<vmem>>, vector<16x128xf32>,
    %41 = vector.extract_strided_slice %34 {offsets = [32, 0], sizes = [16, 128], strides = [1, 1]} : vector<256x128xf32> to vector<16x128xf32>
    %c55 = arith.constant 55 : index
    %c0_25 = arith.constant 0 : index
    %42 = vector.load %arg18[%c55, %c0_25] : memref<336x128xf32, #tpu.memory_space<vmem>>, vector<16x128xf32>
    tpu.vector_store %arg18[%c55, %c0_25], %41 {strides = array<i32>} : memref<336x128xf32, #tpu.memory_space<vmem>>, vector<16x128xf32>,
    %43 = vector.extract_strided_slice %34 {offsets = [48, 0], sizes = [16, 128], strides = [1, 1]} : vector<256x128xf32> to vector<16x128xf32>
    %c73 = arith.constant 73 : index
    %c0_26 = arith.constant 0 : index
    %44 = vector.load %arg18[%c73, %c0_26] : memref<336x128xf32, #tpu.memory_space<vmem>>, vector<16x128xf32>
    tpu.vector_store %arg18[%c73, %c0_26], %43 {strides = array<i32>} : memref<336x128xf32, #tpu.memory_space<vmem>>, vector<16x128xf32>,
    %45 = vector.extract_strided_slice %34 {offsets = [64, 0], sizes = [16, 128], strides = [1, 1]} : vector<256x128xf32> to vector<16x128xf32>
    %c91 = arith.constant 91 : index
    %c0_27 = arith.constant 0 : index
    %46 = vector.load %arg18[%c91, %c0_27] : memref<336x128xf32, #tpu.memory_space<vmem>>, vector<16x128xf32>
    tpu.vector_store %arg18[%c91, %c0_27], %45 {strides = array<i32>} : memref<336x128xf32, #tpu.memory_space<vmem>>, vector<16x128xf32>,
    %47 = vector.extract_strided_slice %34 {offsets = [80, 0], sizes = [16, 128], strides = [1, 1]} : vector<256x128xf32> to vector<16x128xf32>
    %c109 = arith.constant 109 : index
    %c0_28 = arith.constant 0 : index
    %48 = vector.load %arg18[%c109, %c0_28] : memref<336x128xf32, #tpu.memory_space<vmem>>, vector<16x128xf32>
    tpu.vector_store %arg18[%c109, %c0_28], %47 {strides = array<i32>} : memref<336x128xf32, #tpu.memory_space<vmem>>, vector<16x128xf32>,
    %49 = vector.extract_strided_slice %34 {offsets = [96, 0], sizes = [16, 128], strides = [1, 1]} : vector<256x128xf32> to vector<16x128xf32>
    %c127 = arith.constant 127 : index
    %c0_29 = arith.constant 0 : index
    %50 = vector.load %arg18[%c127, %c0_29] : memref<336x128xf32, #tpu.memory_space<vmem>>, vector<16x128xf32>
    tpu.vector_store %arg18[%c127, %c0_29], %49 {strides = array<i32>} : memref<336x128xf32, #tpu.memory_space<vmem>>, vector<16x128xf32>,
    %51 = vector.extract_strided_slice %34 {offsets = [112, 0], sizes = [16, 128], strides = [1, 1]} : vector<256x128xf32> to vector<16x128xf32>
    %c145 = arith.constant 145 : index
    %c0_30 = arith.constant 0 : index
    %52 = vector.load %arg18[%c145, %c0_30] : memref<336x128xf32, #tpu.memory_space<vmem>>, vector<16x128xf32>
    tpu.vector_store %arg18[%c145, %c0_30], %51 {strides = array<i32>} : memref<336x128xf32, #tpu.memory_space<vmem>>, vector<16x128xf32>,
    %53 = vector.extract_strided_slice %34 {offsets = [128, 0], sizes = [16, 128], strides = [1, 1]} : vector<256x128xf32> to vector<16x128xf32>
    %c163 = arith.constant 163 : index
    %c0_31 = arith.constant 0 : index
    %54 = vector.load %arg18[%c163, %c0_31] : memref<336x128xf32, #tpu.memory_space<vmem>>, vector<16x128xf32>
    tpu.vector_store %arg18[%c163, %c0_31], %53 {strides = array<i32>} : memref<336x128xf32, #tpu.memory_space<vmem>>, vector<16x128xf32>,
    %55 = vector.extract_strided_slice %34 {offsets = [144, 0], sizes = [16, 128], strides = [1, 1]} : vector<256x128xf32> to vector<16x128xf32>
    %c181 = arith.constant 181 : index
    %c0_32 = arith.constant 0 : index
    %56 = vector.load %arg18[%c181, %c0_32] : memref<336x128xf32, #tpu.memory_space<vmem>>, vector<16x128xf32>
    tpu.vector_store %arg18[%c181, %c0_32], %55 {strides = array<i32>} : memref<336x128xf32, #tpu.memory_space<vmem>>, vector<16x128xf32>,
    %57 = vector.extract_strided_slice %34 {offsets = [160, 0], sizes = [16, 128], strides = [1, 1]} : vector<256x128xf32> to vector<16x128xf32>
    %c199 = arith.constant 199 : index
    %c0_33 = arith.constant 0 : index
    %58 = vector.load %arg18[%c199, %c0_33] : memref<336x128xf32, #tpu.memory_space<vmem>>, vector<16x128xf32>
    tpu.vector_store %arg18[%c199, %c0_33], %57 {strides = array<i32>} : memref<336x128xf32, #tpu.memory_space<vmem>>, vector<16x128xf32>,
    %59 = vector.extract_strided_slice %34 {offsets = [176, 0], sizes = [16, 128], strides = [1, 1]} : vector<256x128xf32> to vector<16x128xf32>
    %c217 = arith.constant 217 : index
    %c0_34 = arith.constant 0 : index
    %60 = vector.load %arg18[%c217, %c0_34] : memref<336x128xf32, #tpu.memory_space<vmem>>, vector<16x128xf32>
    tpu.vector_store %arg18[%c217, %c0_34], %59 {strides = array<i32>} : memref<336x128xf32, #tpu.memory_space<vmem>>, vector<16x128xf32>,
    %61 = vector.extract_strided_slice %34 {offsets = [192, 0], sizes = [16, 128], strides = [1, 1]} : vector<256x128xf32> to vector<16x128xf32>
    %c235 = arith.constant 235 : index
    %c0_35 = arith.constant 0 : index
    %62 = vector.load %arg18[%c235, %c0_35] : memref<336x128xf32, #tpu.memory_space<vmem>>, vector<16x128xf32>
    tpu.vector_store %arg18[%c235, %c0_35], %61 {strides = array<i32>} : memref<336x128xf32, #tpu.memory_space<vmem>>, vector<16x128xf32>,
    %63 = vector.extract_strided_slice %34 {offsets = [208, 0], sizes = [16, 128], strides = [1, 1]} : vector<256x128xf32> to vector<16x128xf32>
    %c253 = arith.constant 253 : index
    %c0_36 = arith.constant 0 : index
    %64 = vector.load %arg18[%c253, %c0_36] : memref<336x128xf32, #tpu.memory_space<vmem>>, vector<16x128xf32>
    tpu.vector_store %arg18[%c253, %c0_36], %63 {strides = array<i32>} : memref<336x128xf32, #tpu.memory_space<vmem>>, vector<16x128xf32>,
    %65 = vector.extract_strided_slice %34 {offsets = [224, 0], sizes = [16, 128], strides = [1, 1]} : vector<256x128xf32> to vector<16x128xf32>
    %c271 = arith.constant 271 : index
    %c0_37 = arith.constant 0 : index
    %66 = vector.load %arg18[%c271, %c0_37] : memref<336x128xf32, #tpu.memory_space<vmem>>, vector<16x128xf32>
    tpu.vector_store %arg18[%c271, %c0_37], %65 {strides = array<i32>} : memref<336x128xf32, #tpu.memory_space<vmem>>, vector<16x128xf32>,
    %67 = vector.extract_strided_slice %34 {offsets = [240, 0], sizes = [16, 128], strides = [1, 1]} : vector<256x128xf32> to vector<16x128xf32>
    %c289 = arith.constant 289 : index
    %c0_38 = arith.constant 0 : index
    %68 = vector.load %arg18[%c289, %c0_38] : memref<336x128xf32, #tpu.memory_space<vmem>>, vector<16x128xf32>
    tpu.vector_store %arg18[%c289, %c0_38], %67 {strides = array<i32>} : memref<336x128xf32, #tpu.memory_space<vmem>>, vector<16x128xf32>,
    %cst_39 = arith.constant 0.000000e+00 : f32
    %69 = vector.broadcast %cst_39 : f32 to vector<288x128xf32>
    %c0_40 = arith.constant 0 : index
    %c0_41 = arith.constant 0 : index
    %70 = vector.load %arg18[%c0_40, %c0_41] : memref<336x128xf32, #tpu.memory_space<vmem>>, vector<288x128xf32>
    %c1 = arith.constant 1 : index
    %c0_42 = arith.constant 0 : index
    %71 = vector.load %arg18[%c1, %c0_42] : memref<336x128xf32, #tpu.memory_space<vmem>>, vector<288x128xf32>
    %c2 = arith.constant 2 : index
    %c0_43 = arith.constant 0 : index
    %72 = vector.load %arg18[%c2, %c0_43] : memref<336x128xf32, #tpu.memory_space<vmem>>, vector<288x128xf32>
    %73 = tpu.concatenate %70, %71, %72 in 1 : vector<288x128xf32>, vector<288x128xf32>, vector<288x128xf32> -> vector<288x384xf32>
    %74 = arith.truncf %73 : vector<288x384xf32> to vector<288x384xbf16>
    %c0_44 = arith.constant 0 : index
    %c0_45 = arith.constant 0 : index
    %c0_46 = arith.constant 0 : index
    %75 = vector.load %arg6[%c0_44, %c0_45, %c0_46] : memref<3x384x128xbf16, #tpu.memory_space<vmem>>, vector<1x384x128xbf16>
    %76 = vector.shape_cast %75 : vector<1x384x128xbf16> to vector<384x128xbf16>
    %cst_47 = arith.constant dense<0.000000e+00> : vector<288x128xf32>
    %77 = tpu.matmul %74, %76, %cst_47 {dimension_numbers = #tpu.dot_dimension_numbers<[1], [0], [0], [1], [0, 0, 1, 1], [], []>} : vector<288x384xbf16>, vector<384x128xbf16>, vector<288x128xf32> -> vector<288x128xf32>
    %78 = arith.addf %69, %77 : vector<288x128xf32>
    %c18 = arith.constant 18 : index
    %c0_48 = arith.constant 0 : index
    %79 = vector.load %arg18[%c18, %c0_48] : memref<336x128xf32, #tpu.memory_space<vmem>>, vector<288x128xf32>
    %c19_49 = arith.constant 19 : index
    %c0_50 = arith.constant 0 : index
    %80 = vector.load %arg18[%c19_49, %c0_50] : memref<336x128xf32, #tpu.memory_space<vmem>>, vector<288x128xf32>
    %c20 = arith.constant 20 : index
    %c0_51 = arith.constant 0 : index
    %81 = vector.load %arg18[%c20, %c0_51] : memref<336x128xf32, #tpu.memory_space<vmem>>, vector<288x128xf32>
    %82 = tpu.concatenate %79, %80, %81 in 1 : vector<288x128xf32>, vector<288x128xf32>, vector<288x128xf32> -> vector<288x384xf32>
    %83 = arith.truncf %82 : vector<288x384xf32> to vector<288x384xbf16>
    %c1_52 = arith.constant 1 : index
    %c0_53 = arith.constant 0 : index
    %c0_54 = arith.constant 0 : index
    %84 = vector.load %arg6[%c1_52, %c0_53, %c0_54] : memref<3x384x128xbf16, #tpu.memory_space<vmem>>, vector<1x384x128xbf16>
    %85 = vector.shape_cast %84 : vector<1x384x128xbf16> to vector<384x128xbf16>
    %cst_55 = arith.constant dense<0.000000e+00> : vector<288x128xf32>
    %86 = tpu.matmul %83, %85, %cst_55 {dimension_numbers = #tpu.dot_dimension_numbers<[1], [0], [0], [1], [0, 0, 1, 1], [], []>} : vector<288x384xbf16>, vector<384x128xbf16>, vector<288x128xf32> -> vector<288x128xf32>
    %87 = arith.addf %78, %86 : vector<288x128xf32>
    %c36 = arith.constant 36 : index
    %c0_56 = arith.constant 0 : index
    %88 = vector.load %arg18[%c36, %c0_56] : memref<336x128xf32, #tpu.memory_space<vmem>>, vector<288x128xf32>
    %c37_57 = arith.constant 37 : index
    %c0_58 = arith.constant 0 : index
    %89 = vector.load %arg18[%c37_57, %c0_58] : memref<336x128xf32, #tpu.memory_space<vmem>>, vector<288x128xf32>
    %c38 = arith.constant 38 : index
    %c0_59 = arith.constant 0 : index
    %90 = vector.load %arg18[%c38, %c0_59] : memref<336x128xf32, #tpu.memory_space<vmem>>, vector<288x128xf32>
    %91 = tpu.concatenate %88, %89, %90 in 1 : vector<288x128xf32>, vector<288x128xf32>, vector<288x128xf32> -> vector<288x384xf32>
    %92 = arith.truncf %91 : vector<288x384xf32> to vector<288x384xbf16>
    %c2_60 = arith.constant 2 : index
    %c0_61 = arith.constant 0 : index
    %c0_62 = arith.constant 0 : index
    %93 = vector.load %arg6[%c2_60, %c0_61, %c0_62] : memref<3x384x128xbf16, #tpu.memory_space<vmem>>, vector<1x384x128xbf16>
    %94 = vector.shape_cast %93 : vector<1x384x128xbf16> to vector<384x128xbf16>
    %cst_63 = arith.constant dense<0.000000e+00> : vector<288x128xf32>
    %95 = tpu.matmul %92, %94, %cst_63 {dimension_numbers = #tpu.dot_dimension_numbers<[1], [0], [0], [1], [0, 0, 1, 1], [], []>} : vector<288x384xbf16>, vector<384x128xbf16>, vector<288x128xf32> -> vector<288x128xf32>
    %96 = arith.addf %87, %95 : vector<288x128xf32>
    %c0_64 = arith.constant 0 : index
    %c0_65 = arith.constant 0 : index
    %97 = vector.load %arg19[%c0_64, %c0_65] : memref<288x128xf32, #tpu.memory_space<vmem>>, vector<288x128xf32>
    tpu.vector_store %arg19[%c0_64, %c0_65], %96 {strides = array<i32>} : memref<288x128xf32, #tpu.memory_space<vmem>>, vector<288x128xf32>,
    %c0_66 = arith.constant 0 : index
    %c0_67 = arith.constant 0 : index
    %98 = vector.load %arg19[%c0_66, %c0_67] : memref<288x128xf32, #tpu.memory_space<vmem>>, vector<16x128xf32>
    %c18_68 = arith.constant 18 : index
    %c0_69 = arith.constant 0 : index
    %99 = vector.load %arg19[%c18_68, %c0_69] : memref<288x128xf32, #tpu.memory_space<vmem>>, vector<16x128xf32>
    %c36_70 = arith.constant 36 : index
    %c0_71 = arith.constant 0 : index
    %100 = vector.load %arg19[%c36_70, %c0_71] : memref<288x128xf32, #tpu.memory_space<vmem>>, vector<16x128xf32>
    %c54 = arith.constant 54 : index
    %c0_72 = arith.constant 0 : index
    %101 = vector.load %arg19[%c54, %c0_72] : memref<288x128xf32, #tpu.memory_space<vmem>>, vector<16x128xf32>
    %c72 = arith.constant 72 : index
    %c0_73 = arith.constant 0 : index
    %102 = vector.load %arg19[%c72, %c0_73] : memref<288x128xf32, #tpu.memory_space<vmem>>, vector<16x128xf32>
    %c90 = arith.constant 90 : index
    %c0_74 = arith.constant 0 : index
    %103 = vector.load %arg19[%c90, %c0_74] : memref<288x128xf32, #tpu.memory_space<vmem>>, vector<16x128xf32>
    %c108 = arith.constant 108 : index
    %c0_75 = arith.constant 0 : index
    %104 = vector.load %arg19[%c108, %c0_75] : memref<288x128xf32, #tpu.memory_space<vmem>>, vector<16x128xf32>
    %c126 = arith.constant 126 : index
    %c0_76 = arith.constant 0 : index
    %105 = vector.load %arg19[%c126, %c0_76] : memref<288x128xf32, #tpu.memory_space<vmem>>, vector<16x128xf32>
    %c144 = arith.constant 144 : index
    %c0_77 = arith.constant 0 : index
    %106 = vector.load %arg19[%c144, %c0_77] : memref<288x128xf32, #tpu.memory_space<vmem>>, vector<16x128xf32>
    %c162 = arith.constant 162 : index
    %c0_78 = arith.constant 0 : index
    %107 = vector.load %arg19[%c162, %c0_78] : memref<288x128xf32, #tpu.memory_space<vmem>>, vector<16x128xf32>
    %c180 = arith.constant 180 : index
    %c0_79 = arith.constant 0 : index
    %108 = vector.load %arg19[%c180, %c0_79] : memref<288x128xf32, #tpu.memory_space<vmem>>, vector<16x128xf32>
    %c198 = arith.constant 198 : index
    %c0_80 = arith.constant 0 : index
    %109 = vector.load %arg19[%c198, %c0_80] : memref<288x128xf32, #tpu.memory_space<vmem>>, vector<16x128xf32>
    %c216 = arith.constant 216 : index
    %c0_81 = arith.constant 0 : index
    %110 = vector.load %arg19[%c216, %c0_81] : memref<288x128xf32, #tpu.memory_space<vmem>>, vector<16x128xf32>
    %c234 = arith.constant 234 : index
    %c0_82 = arith.constant 0 : index
    %111 = vector.load %arg19[%c234, %c0_82] : memref<288x128xf32, #tpu.memory_space<vmem>>, vector<16x128xf32>
    %c252 = arith.constant 252 : index
    %c0_83 = arith.constant 0 : index
    %112 = vector.load %arg19[%c252, %c0_83] : memref<288x128xf32, #tpu.memory_space<vmem>>, vector<16x128xf32>
    %c270 = arith.constant 270 : index
    %c0_84 = arith.constant 0 : index
    %113 = vector.load %arg19[%c270, %c0_84] : memref<288x128xf32, #tpu.memory_space<vmem>>, vector<16x128xf32>
    %114 = tpu.concatenate %98, %99, %100, %101, %102, %103, %104, %105, %106, %107, %108, %109, %110, %111, %112, %113 in 0 : vector<16x128xf32>, vector<16x128xf32>, vector<16x128xf32>, vector<16x128xf32>, vector<16x128xf32>, vector<16x128xf32>, vector<16x128xf32>, vector<16x128xf32>, vector<16x128xf32>, vector<16x128xf32>, vector<16x128xf32>, vector<16x128xf32>, vector<16x128xf32>, vector<16x128xf32>, vector<16x128xf32>, vector<16x128xf32> -> vector<256x128xf32>
    %cst_85 = arith.constant dense<0.000000e+00> : vector<128xf32>
    %115 = vector.multi_reduction <add>, %114, %cst_85 [0] : vector<256x128xf32> to vector<128xf32>
    %116 = vector.shape_cast %115 : vector<128xf32> to vector<1x128xf32>
    %117 = arith.mulf %114, %114 : vector<256x128xf32>
    %cst_86 = arith.constant dense<0.000000e+00> : vector<128xf32>
    %118 = vector.multi_reduction <add>, %117, %cst_86 [0] : vector<256x128xf32> to vector<128xf32>
    %119 = vector.shape_cast %118 : vector<128xf32> to vector<1x128xf32>
    %c0_87 = arith.constant 0 : index
    %c0_88 = arith.constant 0 : index
    %120 = vector.load %arg15[%c0_87, %c0_88] : memref<128x128xf32, #tpu.memory_space<vmem>>, vector<128x128xf32>
    %cst_89 = arith.constant dense<0.000000e+00> : vector<1x128xf32>
    %121 = tpu.matmul %116, %120, %cst_89 {dimension_numbers = #tpu.dot_dimension_numbers<[1], [0], [0], [1], [0, 0, 1, 1], [], []>} : vector<1x128xf32>, vector<128x128xf32>, vector<1x128xf32> -> vector<1x128xf32>
    %cst_90 = arith.constant 0.001953125 : f32
    %122 = vector.broadcast %cst_90 : f32 to vector<1x128xf32>
    %123 = arith.mulf %121, %122 : vector<1x128xf32>
    %c0_91 = arith.constant 0 : index
    %c0_92 = arith.constant 0 : index
    %124 = vector.load %arg15[%c0_91, %c0_92] : memref<128x128xf32, #tpu.memory_space<vmem>>, vector<128x128xf32>
    %cst_93 = arith.constant dense<0.000000e+00> : vector<1x128xf32>
    %125 = tpu.matmul %119, %124, %cst_93 {dimension_numbers = #tpu.dot_dimension_numbers<[1], [0], [0], [1], [0, 0, 1, 1], [], []>} : vector<1x128xf32>, vector<128x128xf32>, vector<1x128xf32> -> vector<1x128xf32>
    %cst_94 = arith.constant 0.001953125 : f32
    %126 = vector.broadcast %cst_94 : f32 to vector<1x128xf32>
    %127 = arith.mulf %125, %126 : vector<1x128xf32>
    %128 = arith.mulf %123, %123 : vector<1x128xf32>
    %129 = arith.subf %127, %128 : vector<1x128xf32>
    %130 = vector.broadcast %123 : vector<1x128xf32> to vector<256x128xf32>
    %131 = arith.subf %114, %130 : vector<256x128xf32>
    %cst_95 = arith.constant 9.99999974E-6 : f32
    %132 = vector.broadcast %cst_95 : f32 to vector<1x128xf32>
    %133 = arith.addf %129, %132 : vector<1x128xf32>
    %134 = math.rsqrt %133 : vector<1x128xf32>
    %135 = vector.broadcast %134 : vector<1x128xf32> to vector<256x128xf32>
    %136 = arith.mulf %131, %135 : vector<256x128xf32>
    %c0_96 = arith.constant 0 : index
    %c0_97 = arith.constant 0 : index
    %137 = vector.load %arg7[%c0_96, %c0_97] : memref<1x128xf32, #tpu.memory_space<vmem>>, vector<1x128xf32>
    %138 = vector.broadcast %137 : vector<1x128xf32> to vector<256x128xf32>
    %139 = arith.mulf %136, %138 : vector<256x128xf32>
    %c0_98 = arith.constant 0 : index
    %c0_99 = arith.constant 0 : index
    %140 = vector.load %arg8[%c0_98, %c0_99] : memref<1x128xf32, #tpu.memory_space<vmem>>, vector<1x128xf32>
    %141 = vector.broadcast %140 : vector<1x128xf32> to vector<256x128xf32>
    %142 = arith.addf %139, %141 : vector<256x128xf32>
    %cst_100 = arith.constant 0.000000e+00 : f32
    %143 = vector.broadcast %cst_100 : f32 to vector<256x128xf32>
    %144 = arith.maximumf %142, %143 : vector<256x128xf32>
    %145 = arith.truncf %144 : vector<256x128xf32> to vector<256x128xbf16>
    %c0_101 = arith.constant 0 : index
    %c0_102 = arith.constant 0 : index
    %146 = vector.load %arg9[%c0_101, %c0_102] : memref<128x128xbf16, #tpu.memory_space<vmem>>, vector<128x128xbf16>
    %cst_103 = arith.constant dense<0.000000e+00> : vector<256x128xf32>
    %147 = tpu.matmul %145, %146, %cst_103 {dimension_numbers = #tpu.dot_dimension_numbers<[1], [0], [0], [1], [0, 0, 1, 1], [], []>} : vector<256x128xbf16>, vector<128x128xbf16>, vector<256x128xf32> -> vector<256x128xf32>
    %cst_104 = arith.constant dense<0.000000e+00> : vector<128xf32>
    %148 = vector.multi_reduction <add>, %147, %cst_104 [0] : vector<256x128xf32> to vector<128xf32>
    %149 = vector.shape_cast %148 : vector<128xf32> to vector<1x128xf32>
    %150 = arith.mulf %147, %147 : vector<256x128xf32>
    %cst_105 = arith.constant dense<0.000000e+00> : vector<128xf32>
    %151 = vector.multi_reduction <add>, %150, %cst_105 [0] : vector<256x128xf32> to vector<128xf32>
    %152 = vector.shape_cast %151 : vector<128xf32> to vector<1x128xf32>
    %c0_106 = arith.constant 0 : index
    %c0_107 = arith.constant 0 : index
    %153 = vector.load %arg16[%c0_106, %c0_107] : memref<128x128xf32, #tpu.memory_space<vmem>>, vector<128x128xf32>
    %cst_108 = arith.constant dense<0.000000e+00> : vector<1x128xf32>
    %154 = tpu.matmul %149, %153, %cst_108 {dimension_numbers = #tpu.dot_dimension_numbers<[1], [0], [0], [1], [0, 0, 1, 1], [], []>} : vector<1x128xf32>, vector<128x128xf32>, vector<1x128xf32> -> vector<1x128xf32>
    %cst_109 = arith.constant 4.8828125E-4 : f32
    %155 = vector.broadcast %cst_109 : f32 to vector<1x128xf32>
    %156 = arith.mulf %154, %155 : vector<1x128xf32>
    %c0_110 = arith.constant 0 : index
    %c0_111 = arith.constant 0 : index
    %157 = vector.load %arg16[%c0_110, %c0_111] : memref<128x128xf32, #tpu.memory_space<vmem>>, vector<128x128xf32>
    %cst_112 = arith.constant dense<0.000000e+00> : vector<1x128xf32>
    %158 = tpu.matmul %152, %157, %cst_112 {dimension_numbers = #tpu.dot_dimension_numbers<[1], [0], [0], [1], [0, 0, 1, 1], [], []>} : vector<1x128xf32>, vector<128x128xf32>, vector<1x128xf32> -> vector<1x128xf32>
    %cst_113 = arith.constant 4.8828125E-4 : f32
    %159 = vector.broadcast %cst_113 : f32 to vector<1x128xf32>
    %160 = arith.mulf %158, %159 : vector<1x128xf32>
    %161 = arith.mulf %156, %156 : vector<1x128xf32>
    %162 = arith.subf %160, %161 : vector<1x128xf32>
    %163 = vector.broadcast %156 : vector<1x128xf32> to vector<256x128xf32>
    %164 = arith.subf %147, %163 : vector<256x128xf32>
    %cst_114 = arith.constant 9.99999974E-6 : f32
    %165 = vector.broadcast %cst_114 : f32 to vector<1x128xf32>
    %166 = arith.addf %162, %165 : vector<1x128xf32>
    %167 = math.rsqrt %166 : vector<1x128xf32>
    %168 = vector.broadcast %167 : vector<1x128xf32> to vector<256x128xf32>
    %169 = arith.mulf %164, %168 : vector<256x128xf32>
    %c0_115 = arith.constant 0 : index
    %c0_116 = arith.constant 0 : index
    %170 = vector.load %arg10[%c0_115, %c0_116] : memref<1x128xf32, #tpu.memory_space<vmem>>, vector<1x128xf32>
    %171 = vector.broadcast %170 : vector<1x128xf32> to vector<256x128xf32>
    %172 = arith.mulf %169, %171 : vector<256x128xf32>
    %c0_117 = arith.constant 0 : index
    %c0_118 = arith.constant 0 : index
    %173 = vector.load %arg11[%c0_117, %c0_118] : memref<1x128xf32, #tpu.memory_space<vmem>>, vector<1x128xf32>
    %174 = vector.broadcast %173 : vector<1x128xf32> to vector<256x128xf32>
    %175 = arith.addf %172, %174 : vector<256x128xf32>
    %c0_119 = arith.constant 0 : index
    %c0_120 = arith.constant 0 : index
    %c0_121 = arith.constant 0 : index
    %176 = vector.load %arg2[%c0_119, %c0_120, %c0_121] : memref<1x256x128xf32, #tpu.memory_space<vmem>>, vector<1x256x128xf32>
    %177 = vector.shape_cast %176 : vector<1x256x128xf32> to vector<256x128xf32>
    %178 = arith.truncf %177 : vector<256x128xf32> to vector<256x128xbf16>
    %c0_122 = arith.constant 0 : index
    %c0_123 = arith.constant 0 : index
    %179 = vector.load %arg12[%c0_122, %c0_123] : memref<128x128xbf16, #tpu.memory_space<vmem>>, vector<128x128xbf16>
    %cst_124 = arith.constant dense<0.000000e+00> : vector<256x128xf32>
    %180 = tpu.matmul %178, %179, %cst_124 {dimension_numbers = #tpu.dot_dimension_numbers<[1], [0], [0], [1], [0, 0, 1, 1], [], []>} : vector<256x128xbf16>, vector<128x128xbf16>, vector<256x128xf32> -> vector<256x128xf32>
    %cst_125 = arith.constant dense<0.000000e+00> : vector<128xf32>
    %181 = vector.multi_reduction <add>, %180, %cst_125 [0] : vector<256x128xf32> to vector<128xf32>
    %182 = vector.shape_cast %181 : vector<128xf32> to vector<1x128xf32>
    %183 = arith.mulf %180, %180 : vector<256x128xf32>
    %cst_126 = arith.constant dense<0.000000e+00> : vector<128xf32>
    %184 = vector.multi_reduction <add>, %183, %cst_126 [0] : vector<256x128xf32> to vector<128xf32>
    %185 = vector.shape_cast %184 : vector<128xf32> to vector<1x128xf32>
    %c0_127 = arith.constant 0 : index
    %c0_128 = arith.constant 0 : index
    %186 = vector.load %arg16[%c0_127, %c0_128] : memref<128x128xf32, #tpu.memory_space<vmem>>, vector<128x128xf32>
    %cst_129 = arith.constant dense<0.000000e+00> : vector<1x128xf32>
    %187 = tpu.matmul %182, %186, %cst_129 {dimension_numbers = #tpu.dot_dimension_numbers<[1], [0], [0], [1], [0, 0, 1, 1], [], []>} : vector<1x128xf32>, vector<128x128xf32>, vector<1x128xf32> -> vector<1x128xf32>
    %cst_130 = arith.constant 4.8828125E-4 : f32
    %188 = vector.broadcast %cst_130 : f32 to vector<1x128xf32>
    %189 = arith.mulf %187, %188 : vector<1x128xf32>
    %c0_131 = arith.constant 0 : index
    %c0_132 = arith.constant 0 : index
    %190 = vector.load %arg16[%c0_131, %c0_132] : memref<128x128xf32, #tpu.memory_space<vmem>>, vector<128x128xf32>
    %cst_133 = arith.constant dense<0.000000e+00> : vector<1x128xf32>
    %191 = tpu.matmul %185, %190, %cst_133 {dimension_numbers = #tpu.dot_dimension_numbers<[1], [0], [0], [1], [0, 0, 1, 1], [], []>} : vector<1x128xf32>, vector<128x128xf32>, vector<1x128xf32> -> vector<1x128xf32>
    %cst_134 = arith.constant 4.8828125E-4 : f32
    %192 = vector.broadcast %cst_134 : f32 to vector<1x128xf32>
    %193 = arith.mulf %191, %192 : vector<1x128xf32>
    %194 = arith.mulf %189, %189 : vector<1x128xf32>
    %195 = arith.subf %193, %194 : vector<1x128xf32>
    %196 = vector.broadcast %189 : vector<1x128xf32> to vector<256x128xf32>
    %197 = arith.subf %180, %196 : vector<256x128xf32>
    %cst_135 = arith.constant 9.99999974E-6 : f32
    %198 = vector.broadcast %cst_135 : f32 to vector<1x128xf32>
    %199 = arith.addf %195, %198 : vector<1x128xf32>
    %200 = math.rsqrt %199 : vector<1x128xf32>
    %201 = vector.broadcast %200 : vector<1x128xf32> to vector<256x128xf32>
    %202 = arith.mulf %197, %201 : vector<256x128xf32>
    %c0_136 = arith.constant 0 : index
    %c0_137 = arith.constant 0 : index
    %203 = vector.load %arg13[%c0_136, %c0_137] : memref<1x128xf32, #tpu.memory_space<vmem>>, vector<1x128xf32>
    %204 = vector.broadcast %203 : vector<1x128xf32> to vector<256x128xf32>
    %205 = arith.mulf %202, %204 : vector<256x128xf32>
    %c0_138 = arith.constant 0 : index
    %c0_139 = arith.constant 0 : index
    %206 = vector.load %arg14[%c0_138, %c0_139] : memref<1x128xf32, #tpu.memory_space<vmem>>, vector<1x128xf32>
    %207 = vector.broadcast %206 : vector<1x128xf32> to vector<256x128xf32>
    %208 = arith.addf %205, %207 : vector<256x128xf32>
    %209 = arith.addf %175, %208 : vector<256x128xf32>
    %cst_140 = arith.constant 0.000000e+00 : f32
    %210 = vector.broadcast %cst_140 : f32 to vector<256x128xf32>
    %211 = arith.maximumf %209, %210 : vector<256x128xf32>
    %c0_141 = arith.constant 0 : index
    %c0_142 = arith.constant 0 : index
    %c0_143 = arith.constant 0 : index
    %212 = vector.load %arg17[%c0_141, %c0_142, %c0_143] : memref<1x256x128xf32, #tpu.memory_space<vmem>>, vector<1x256x128xf32>
    %213 = vector.shape_cast %212 : vector<1x256x128xf32> to vector<256x128xf32>
    %214 = vector.shape_cast %211 : vector<256x128xf32> to vector<1x256x128xf32>
    tpu.vector_store %arg17[%c0_141, %c0_142, %c0_143], %214 {strides = array<i32>} : memref<1x256x128xf32, #tpu.memory_space<vmem>>, vector<1x256x128xf32>,
    return
  }
  func.func @transform_0(%arg0: i32) -> (i32, i32, i32) {
    %c0_i32 = arith.constant 0 : i32
    %c0_i32_0 = arith.constant 0 : i32
    %c0_i32_1 = arith.constant 0 : i32
    return %arg0, %c0_i32, %c0_i32_0 : i32, i32, i32
  }
  func.func @transform_1(%arg0: i32) -> (i32, i32, i32) {
    %c0_i32 = arith.constant 0 : i32
    %c0_i32_0 = arith.constant 0 : i32
    %c0_i32_1 = arith.constant 0 : i32
    return %arg0, %c0_i32, %c0_i32_0 : i32, i32, i32
  }
  func.func @transform_2(%arg0: i32) -> (i32, i32) {
    %c0_i32 = arith.constant 0 : i32
    %c0_i32_0 = arith.constant 0 : i32
    %c0_i32_1 = arith.constant 0 : i32
    return %c0_i32, %c0_i32_0 : i32, i32
  }
  func.func @transform_3(%arg0: i32) -> (i32, i32) {
    %c0_i32 = arith.constant 0 : i32
    %c0_i32_0 = arith.constant 0 : i32
    %c0_i32_1 = arith.constant 0 : i32
    return %c0_i32, %c0_i32_0 : i32, i32
  }
  func.func @transform_4(%arg0: i32) -> (i32, i32) {
    %c0_i32 = arith.constant 0 : i32
    %c0_i32_0 = arith.constant 0 : i32
    %c0_i32_1 = arith.constant 0 : i32
    return %c0_i32, %c0_i32_0 : i32, i32
  }
  func.func @transform_5(%arg0: i32) -> (i32, i32, i32) {
    %c0_i32 = arith.constant 0 : i32
    %c0_i32_0 = arith.constant 0 : i32
    %c0_i32_1 = arith.constant 0 : i32
    %c0_i32_2 = arith.constant 0 : i32
    return %c0_i32, %c0_i32_0, %c0_i32_1 : i32, i32, i32
  }
  func.func @transform_6(%arg0: i32) -> (i32, i32) {
    %c0_i32 = arith.constant 0 : i32
    %c0_i32_0 = arith.constant 0 : i32
    %c0_i32_1 = arith.constant 0 : i32
    return %c0_i32, %c0_i32_0 : i32, i32
  }
  func.func @transform_7(%arg0: i32) -> (i32, i32) {
    %c0_i32 = arith.constant 0 : i32
    %c0_i32_0 = arith.constant 0 : i32
    %c0_i32_1 = arith.constant 0 : i32
    return %c0_i32, %c0_i32_0 : i32, i32
  }
  func.func @transform_8(%arg0: i32) -> (i32, i32) {
    %c0_i32 = arith.constant 0 : i32
    %c0_i32_0 = arith.constant 0 : i32
    %c0_i32_1 = arith.constant 0 : i32
    return %c0_i32, %c0_i32_0 : i32, i32
  }
  func.func @transform_9(%arg0: i32) -> (i32, i32) {
    %c0_i32 = arith.constant 0 : i32
    %c0_i32_0 = arith.constant 0 : i32
    %c0_i32_1 = arith.constant 0 : i32
    return %c0_i32, %c0_i32_0 : i32, i32
  }
  func.func @transform_10(%arg0: i32) -> (i32, i32) {
    %c0_i32 = arith.constant 0 : i32
    %c0_i32_0 = arith.constant 0 : i32
    %c0_i32_1 = arith.constant 0 : i32
    return %c0_i32, %c0_i32_0 : i32, i32
  }
  func.func @transform_11(%arg0: i32) -> (i32, i32) {
    %c0_i32 = arith.constant 0 : i32
    %c0_i32_0 = arith.constant 0 : i32
    %c0_i32_1 = arith.constant 0 : i32
    return %c0_i32, %c0_i32_0 : i32, i32
  }
  func.func @transform_12(%arg0: i32) -> (i32, i32) {
    %c0_i32 = arith.constant 0 : i32
    %c0_i32_0 = arith.constant 0 : i32
    %c0_i32_1 = arith.constant 0 : i32
    return %c0_i32, %c0_i32_0 : i32, i32
  }
  func.func @transform_13(%arg0: i32) -> (i32, i32) {
    %c0_i32 = arith.constant 0 : i32
    %c0_i32_0 = arith.constant 0 : i32
    %c0_i32_1 = arith.constant 0 : i32
    return %c0_i32, %c0_i32_0 : i32, i32
  }
  func.func @transform_14(%arg0: i32) -> (i32, i32) {
    %c0_i32 = arith.constant 0 : i32
    %c0_i32_0 = arith.constant 0 : i32
    %c0_i32_1 = arith.constant 0 : i32
    return %c0_i32, %c0_i32_0 : i32, i32
  }
  func.func @transform_15(%arg0: i32) -> (i32, i32) {
    %c0_i32 = arith.constant 0 : i32
    %c0_i32_0 = arith.constant 0 : i32
    %c0_i32_1 = arith.constant 0 : i32
    return %c0_i32, %c0_i32_0 : i32, i32
  }
  func.func @transform_16(%arg0: i32) -> (i32, i32, i32) {
    %c0_i32 = arith.constant 0 : i32
    %c0_i32_0 = arith.constant 0 : i32
    %c0_i32_1 = arith.constant 0 : i32
    return %arg0, %c0_i32, %c0_i32_0 : i32, i32, i32
  }
}

</mosaic_0001>

<llo_original>
// kernel: tpu_custom_call.1
$region0: #{tpu_custom_call.1}
  #allocation0 [shape = 'u32[]', space=smem, size = 0x4, offset = 0x4, fixed_abs, tag = 'smem constant byte address 0x4 - core index']
  #allocation1 [shape = 'u32[144,128]{1,0:T(1,128)}', space=vmem, size = 0x12000, scoped, tag = 'internal scratch']
  #allocation2 [shape = 'f32[336,128]{1,0:T(8,128)}', space=vmem, size = 0x2a000, scoped, tag = 'scratch operand']
  #allocation3 [shape = 'f32[288,128]{1,0:T(8,128)}', space=vmem, size = 0x24000, scoped, tag = 'scratch operand']
  %s0 = inlined_call_operand.hbm [shape: f32[2,256,128], index: 0, kind: input, shape index: {}]
  %s1 = inlined_call_operand.hbm [shape: f32[2,256,128], index: 1, kind: input, shape index: {}]
  %s2 = inlined_call_operand.hbm [shape: bf16[128,128], index: 2, kind: input, shape index: {}]
  %s3 = inlined_call_operand.hbm [shape: f32[1,128], index: 3, kind: input, shape index: {}]
  %s4 = inlined_call_operand.hbm [shape: f32[1,128], index: 4, kind: input, shape index: {}]
  %s5 = inlined_call_operand.hbm [shape: bf16[3,384,128], index: 5, kind: input, shape index: {}]
  %s6 = inlined_call_operand.hbm [shape: f32[1,128], index: 6, kind: input, shape index: {}]
  %s7 = inlined_call_operand.hbm [shape: f32[1,128], index: 7, kind: input, shape index: {}]
  %s8 = inlined_call_operand.hbm [shape: bf16[128,128], index: 8, kind: input, shape index: {}]
  %s9 = inlined_call_operand.hbm [shape: f32[1,128], index: 9, kind: input, shape index: {}]
  %s10 = inlined_call_operand.hbm [shape: f32[1,128], index: 10, kind: input, shape index: {}]
  %s11 = inlined_call_operand.hbm [shape: bf16[128,128], index: 11, kind: input, shape index: {}]
  %s12 = inlined_call_operand.hbm [shape: f32[1,128], index: 12, kind: input, shape index: {}]
  %s13 = inlined_call_operand.hbm [shape: f32[1,128], index: 13, kind: input, shape index: {}]
  %s14 = inlined_call_operand.hbm [shape: f32[128,128], index: 14, kind: input, shape index: {}]
  %s15 = inlined_call_operand.hbm [shape: f32[128,128], index: 15, kind: input, shape index: {}]
  %s16 = inlined_call_operand.hbm [shape: f32[2,256,128], index: 16, kind: output, shape index: {}]
  %s17 = sld [smem:[#allocation0]]
  $region161: #{tpu_custom_call.1} parent=0
    _
  %s19 = ssub.s32 1, %s17
  %s20 = scalar_select 0, %s19, %s17
  $region1: #{tpu_custom_call.1} parent=0
    #allocation4 [shape = 'u8[262144]{0}', space=vmem, size = 0x40000, scoped, tag = 'input window, operand 0']
    #allocation5 [shape = 's32[2]{0}', space=sflag, size = 0x8, scoped, tag = 'scoped memory for tpu_custom_call.1']
    #allocation6 [shape = 's32[2]{0}', space=sflag, size = 0x8, scoped, tag = 'scoped memory for tpu_custom_call.1']
    #allocation7 [shape = 'u8[262144]{0}', space=vmem, size = 0x40000, scoped, tag = 'input window, operand 1']
    #allocation8 [shape = 's32[2]{0}', space=sflag, size = 0x8, scoped, tag = 'scoped memory for tpu_custom_call.1']
    #allocation9 [shape = 'u8[32768]{0}', space=vmem, size = 0x8000, scoped, tag = 'input window, operand 2, single buffered']
    #allocation10 [shape = 'u8[512]{0}', space=vmem, size = 0x400, scoped, tag = 'input window, operand 3, single buffered']
    #allocation11 [shape = 's32[1]{0}', space=sflag, size = 0x4, scoped, tag = 'scoped memory for tpu_custom_call.1']
    #allocation12 [shape = 'u8[512]{0}', space=vmem, size = 0x400, scoped, tag = 'input window, operand 4, single buffered']
    #allocation13 [shape = 'u8[294912]{0}', space=vmem, size = 0x48000, scoped, tag = 'input window, operand 5, single buffered']
    #allocation14 [shape = 's32[1]{0}', space=sflag, size = 0x4, scoped, tag = 'scoped memory for tpu_custom_call.1']
    #allocation15 [shape = 'u8[512]{0}', space=vmem, size = 0x400, scoped, tag = 'input window, operand 6, single buffered']
    #allocation16 [shape = 'u8[512]{0}', space=vmem, size = 0x400, scoped, tag = 'input window, operand 7, single buffered']
    #allocation17 [shape = 's32[1]{0}', space=sflag, size = 0x4, scoped, tag = 'scoped memory for tpu_custom_call.1']
    #allocation18 [shape = 'u8[32768]{0}', space=vmem, size = 0x8000, scoped, tag = 'input window, operand 8, single buffered']
    #allocation19 [shape = 'u8[512]{0}', space=vmem, size = 0x400, scoped, tag = 'input window, operand 9, single buffered']
    #allocation20 [shape = 's32[1]{0}', space=sflag, size = 0x4, scoped, tag = 'scoped memory for tpu_custom_call.1']
    #allocation21 [shape = 'u8[512]{0}', space=vmem, size = 0x400, scoped, tag = 'input window, operand 10, single buffered']
    #allocation22 [shape = 'u8[32768]{0}', space=vmem, size = 0x8000, scoped, tag = 'input window, operand 11, single buffered']
    #allocation23 [shape = 's32[1]{0}', space=sflag, size = 0x4, scoped, tag = 'scoped memory for tpu_custom_call.1']
    #allocation24 [shape = 'u8[512]{0}', space=vmem, size = 0x400, scoped, tag = 'input window, operand 12, single buffered']
    #allocation25 [shape = 'u8[512]{0}', space=vmem, size = 0x400, scoped, tag = 'input window, operand 13, single buffered']
    #allocation26 [shape = 's32[1]{0}', space=sflag, size = 0x4, scoped, tag = 'scoped memory for tpu_custom_call.1']
    #allocation27 [shape = 'u8[65536]{0}', space=vmem, size = 0x10000, scoped, tag = 'input window, operand 14, single buffered']
    #allocation28 [shape = 'u8[65536]{0}', space=vmem, size = 0x10000, scoped, tag = 'input window, operand 15, single buffered']
    #allocation29 [shape = 's32[1]{0}', space=sflag, size = 0x4, scoped, tag = 'scoped memory for tpu_custom_call.1']
    #allocation30 [shape = 'u8[262144]{0}', space=vmem, size = 0x40000, scoped, tag = 'output window, operand 0']
    %21 = vsyncpa [#allocation5], 0
    %s22 = scalar_lea.sflag [#allocation5], 1
    %23 = vsyncpa %s22, 0
    %24 = vsyncpa [#allocation8], 0
    %s25 = scalar_lea.sflag [#allocation8], 1
    %26 = vsyncpa %s25, 0
    %27 = vsyncpa [#allocation11], 0
    %28 = vsyncpa [#allocation14], 0
    %29 = vsyncpa [#allocation17], 0
    %30 = vsyncpa [#allocation20], 0
    %31 = vsyncpa [#allocation23], 0
    %32 = vsyncpa [#allocation26], 0
    %33 = vsyncpa [#allocation29], 0
    %34 = vsyncpa [#allocation6], 0
    %s35 = scalar_lea.sflag [#allocation6], 1
    %36 = vsyncpa %s35, 0
    loop: start=0, step=1, limit=4
    $region2: #{tpu_custom_call.1} parent=1 // loop_pre_header
      _
    $region3: #{tpu_custom_call.1} parent=1 // loop_header
      %s38 = sphi 0, %s42
      %p39 = scmp.ge.s32.totalorder %s38, 4
      %s48 = sphi 0, %s50
      %s51 = sphi 0, %s48
      %s52 = sphi 0, %s51
      %s68 = sphi 0, %s52
      %s74 = sphi 0, %s76
      %s77 = sphi 0, %s74
      %s78 = sphi 0, %s77
      %s94 = sphi 0, %s78
      %s98 = sphi 0, %s98
      %s100 = sphi 0, %s98
      %s101 = sphi 0, %s100
      %s115 = sphi 0, %s101
      %s119 = sphi 0, %s119
      %s121 = sphi 0, %s119
      %s122 = sphi 0, %s121
      %s136 = sphi 0, %s122
      %s140 = sphi 0, %s140
      %s142 = sphi 0, %s140
      %s143 = sphi 0, %s142
      %s157 = sphi 0, %s143
      %s161 = sphi 0, %s161
      %s163 = sphi 0, %s161
      %s164 = sphi 0, %s163
      %s178 = sphi 0, %s164
      %s182 = sphi 0, %s182
      %s184 = sphi 0, %s182
      %s185 = sphi 0, %s184
      %s199 = sphi 0, %s185
      %s203 = sphi 0, %s203
      %s205 = sphi 0, %s203
      %s206 = sphi 0, %s205
      %s220 = sphi 0, %s206
      %s224 = sphi 0, %s224
      %s226 = sphi 0, %s224
      %s227 = sphi 0, %s226
      %s241 = sphi 0, %s227
      %s245 = sphi 0, %s245
      %s247 = sphi 0, %s245
      %s248 = sphi 0, %s247
      %s262 = sphi 0, %s248
      %s266 = sphi 0, %s266
      %s268 = sphi 0, %s266
      %s269 = sphi 0, %s268
      %s283 = sphi 0, %s269
      %s287 = sphi 0, %s287
      %s289 = sphi 0, %s287
      %s290 = sphi 0, %s289
      %s304 = sphi 0, %s290
      %s308 = sphi 0, %s308
      %s310 = sphi 0, %s308
      %s311 = sphi 0, %s310
      %s325 = sphi 0, %s311
      %s329 = sphi 0, %s329
      %s331 = sphi 0, %s329
      %s332 = sphi 0, %s331
      %s346 = sphi 0, %s332
      %s350 = sphi 0, %s350
      %s352 = sphi 0, %s350
      %s353 = sphi 0, %s352
      %s367 = sphi 0, %s353
      %s371 = sphi 0, %s371
      %s373 = sphi 0, %s371
      %s374 = sphi 0, %s373
      %s388 = sphi 0, %s374
      %s394 = sphi 0, %s396
      %s397 = sphi 0, %s394
      %s398 = sphi 0, %s397
      %s414 = sphi 0, %s398
    $region4: #{tpu_custom_call.1} parent=1 // loop_header_branch
      %41 = sbr.rel (%p39) target = $region8
    $region5: #{tpu_custom_call.1} parent=1 // loop_body
      %s43 = ssub.s32 %s38, 1
      %s44 = ssub.s32 %s38, 2
      %s45 = sadd.s32 %s38, 1
      %s46 = ssub.s32 %s38, %s45
      %p47 = scmp.eq.s32.totalorder %s46, 0
      %s49 = sadd.s32 %s48, 1
      %s50 = scalar_select %p47, %s48, %s49
      %p53 = pneg %p47
      %p54 = scmp.eq.s32.totalorder %s38, 1
      %p55 = por %p53, %p54
      %p56 = scmp.ne.s32.totalorder %s48, %s51
      %p57 = scmp.eq.s32.totalorder %s38, 0
      %p58 = por %p56, %p57
      %p59 = scmp.ne.s32.totalorder %s48, %s51
      %p60 = scmp.eq.s32.totalorder %s43, 1
      %p61 = por %p59, %p60
      %p62 = scmp.ne.s32.totalorder %s51, %s52
      %p63 = scmp.eq.s32.totalorder %s43, 0
      %p64 = por %p62, %p63
      %p65 = scmp.ne.s32.totalorder %s51, %s52
      %p66 = scmp.eq.s32.totalorder %s44, 1
      %p67 = por %p65, %p66
      %p69 = scmp.ne.s32.totalorder %s52, %s68
      %p70 = scmp.eq.s32.totalorder %s44, 0
      %p71 = por %p69, %p70
      %s72 = ssub.s32 %s38, %s45
      %p73 = scmp.eq.s32.totalorder %s72, 0
      %s75 = sadd.s32 %s74, 1
      %s76 = scalar_select %p73, %s74, %s75
      %p79 = pneg %p73
      %p80 = scmp.eq.s32.totalorder %s38, 1
      %p81 = por %p79, %p80
      %p82 = scmp.ne.s32.totalorder %s74, %s77
      %p83 = scmp.eq.s32.totalorder %s38, 0
      %p84 = por %p82, %p83
      %p85 = scmp.ne.s32.totalorder %s74, %s77
      %p86 = scmp.eq.s32.totalorder %s43, 1
      %p87 = por %p85, %p86
      %p88 = scmp.ne.s32.totalorder %s77, %s78
      %p89 = scmp.eq.s32.totalorder %s43, 0
      %p90 = por %p88, %p89
      %p91 = scmp.ne.s32.totalorder %s77, %s78
      %p92 = scmp.eq.s32.totalorder %s44, 1
      %p93 = por %p91, %p92
      %p95 = scmp.ne.s32.totalorder %s78, %s94
      %p96 = scmp.eq.s32.totalorder %s44, 0
      %p97 = por %p95, %p96
      %s99 = sadd.s32 %s98, 1
      %p102 = scmp.eq.s32.totalorder %s38, 1
      %p103 = scmp.ne.s32.totalorder %s98, %s100
      %p104 = scmp.eq.s32.totalorder %s38, 0
      %p105 = por %p103, %p104
      %p106 = scmp.ne.s32.totalorder %s98, %s100
      %p107 = scmp.eq.s32.totalorder %s43, 1
      %p108 = por %p106, %p107
      %p109 = scmp.ne.s32.totalorder %s100, %s101
      %p110 = scmp.eq.s32.totalorder %s43, 0
      %p111 = por %p109, %p110
      %p112 = scmp.ne.s32.totalorder %s100, %s101
      %p113 = scmp.eq.s32.totalorder %s44, 1
      %p114 = por %p112, %p113
      %p116 = scmp.ne.s32.totalorder %s101, %s115
      %p117 = scmp.eq.s32.totalorder %s44, 0
      %p118 = por %p116, %p117
      %s120 = sadd.s32 %s119, 1
      %p123 = scmp.eq.s32.totalorder %s38, 1
      %p124 = scmp.ne.s32.totalorder %s119, %s121
      %p125 = scmp.eq.s32.totalorder %s38, 0
      %p126 = por %p124, %p125
      %p127 = scmp.ne.s32.totalorder %s119, %s121
      %p128 = scmp.eq.s32.totalorder %s43, 1
      %p129 = por %p127, %p128
      %p130 = scmp.ne.s32.totalorder %s121, %s122
      %p131 = scmp.eq.s32.totalorder %s43, 0
      %p132 = por %p130, %p131
      %p133 = scmp.ne.s32.totalorder %s121, %s122
      %p134 = scmp.eq.s32.totalorder %s44, 1
      %p135 = por %p133, %p134
      %p137 = scmp.ne.s32.totalorder %s122, %s136
      %p138 = scmp.eq.s32.totalorder %s44, 0
      %p139 = por %p137, %p138
      %s141 = sadd.s32 %s140, 1
      %p144 = scmp.eq.s32.totalorder %s38, 1
      %p145 = scmp.ne.s32.totalorder %s140, %s142
      %p146 = scmp.eq.s32.totalorder %s38, 0
      %p147 = por %p145, %p146
      %p148 = scmp.ne.s32.totalorder %s140, %s142
      %p149 = scmp.eq.s32.totalorder %s43, 1
      %p150 = por %p148, %p149
      %p151 = scmp.ne.s32.totalorder %s142, %s143
      %p152 = scmp.eq.s32.totalorder %s43, 0
      %p153 = por %p151, %p152
      %p154 = scmp.ne.s32.totalorder %s142, %s143
      %p155 = scmp.eq.s32.totalorder %s44, 1
      %p156 = por %p154, %p155
      %p158 = scmp.ne.s32.totalorder %s143, %s157
      %p159 = scmp.eq.s32.totalorder %s44, 0
      %p160 = por %p158, %p159
      %s162 = sadd.s32 %s161, 1
      %p165 = scmp.eq.s32.totalorder %s38, 1
      %p166 = scmp.ne.s32.totalorder %s161, %s163
      %p167 = scmp.eq.s32.totalorder %s38, 0
      %p168 = por %p166, %p167
      %p169 = scmp.ne.s32.totalorder %s161, %s163
      %p170 = scmp.eq.s32.totalorder %s43, 1
      %p171 = por %p169, %p170
      %p172 = scmp.ne.s32.totalorder %s163, %s164
      %p173 = scmp.eq.s32.totalorder %s43, 0
      %p174 = por %p172, %p173
      %p175 = scmp.ne.s32.totalorder %s163, %s164
      %p176 = scmp.eq.s32.totalorder %s44, 1
      %p177 = por %p175, %p176
      %p179 = scmp.ne.s32.totalorder %s164, %s178
      %p180 = scmp.eq.s32.totalorder %s44, 0
      %p181 = por %p179, %p180
      %s183 = sadd.s32 %s182, 1
      %p186 = scmp.eq.s32.totalorder %s38, 1
      %p187 = scmp.ne.s32.totalorder %s182, %s184
      %p188 = scmp.eq.s32.totalorder %s38, 0
      %p189 = por %p187, %p188
      %p190 = scmp.ne.s32.totalorder %s182, %s184
      %p191 = scmp.eq.s32.totalorder %s43, 1
      %p192 = por %p190, %p191
      %p193 = scmp.ne.s32.totalorder %s184, %s185
      %p194 = scmp.eq.s32.totalorder %s43, 0
      %p195 = por %p193, %p194
      %p196 = scmp.ne.s32.totalorder %s184, %s185
      %p197 = scmp.eq.s32.totalorder %s44, 1
      %p198 = por %p196, %p197
      %p200 = scmp.ne.s32.totalorder %s185, %s199
      %p201 = scmp.eq.s32.totalorder %s44, 0
      %p202 = por %p200, %p201
      %s204 = sadd.s32 %s203, 1
      %p207 = scmp.eq.s32.totalorder %s38, 1
      %p208 = scmp.ne.s32.totalorder %s203, %s205
      %p209 = scmp.eq.s32.totalorder %s38, 0
      %p210 = por %p208, %p209
      %p211 = scmp.ne.s32.totalorder %s203, %s205
      %p212 = scmp.eq.s32.totalorder %s43, 1
      %p213 = por %p211, %p212
      %p214 = scmp.ne.s32.totalorder %s205, %s206
      %p215 = scmp.eq.s32.totalorder %s43, 0
      %p216 = por %p214, %p215
      %p217 = scmp.ne.s32.totalorder %s205, %s206
      %p218 = scmp.eq.s32.totalorder %s44, 1
      %p219 = por %p217, %p218
      %p221 = scmp.ne.s32.totalorder %s206, %s220
      %p222 = scmp.eq.s32.totalorder %s44, 0
      %p223 = por %p221, %p222
      %s225 = sadd.s32 %s224, 1
      %p228 = scmp.eq.s32.totalorder %s38, 1
      %p229 = scmp.ne.s32.totalorder %s224, %s226
      %p230 = scmp.eq.s32.totalorder %s38, 0
      %p231 = por %p229, %p230
      %p232 = scmp.ne.s32.totalorder %s224, %s226
      %p233 = scmp.eq.s32.totalorder %s43, 1
      %p234 = por %p232, %p233
      %p235 = scmp.ne.s32.totalorder %s226, %s227
      %p236 = scmp.eq.s32.totalorder %s43, 0
      %p237 = por %p235, %p236
      %p238 = scmp.ne.s32.totalorder %s226, %s227
      %p239 = scmp.eq.s32.totalorder %s44, 1
      %p240 = por %p238, %p239
      %p242 = scmp.ne.s32.totalorder %s227, %s241
      %p243 = scmp.eq.s32.totalorder %s44, 0
      %p244 = por %p242, %p243
      %s246 = sadd.s32 %s245, 1
      %p249 = scmp.eq.s32.totalorder %s38, 1
      %p250 = scmp.ne.s32.totalorder %s245, %s247
      %p251 = scmp.eq.s32.totalorder %s38, 0
      %p252 = por %p250, %p251
      %p253 = scmp.ne.s32.totalorder %s245, %s247
      %p254 = scmp.eq.s32.totalorder %s43, 1
      %p255 = por %p253, %p254
      %p256 = scmp.ne.s32.totalorder %s247, %s248
      %p257 = scmp.eq.s32.totalorder %s43, 0
      %p258 = por %p256, %p257
      %p259 = scmp.ne.s32.totalorder %s247, %s248
      %p260 = scmp.eq.s32.totalorder %s44, 1
      %p261 = por %p259, %p260
      %p263 = scmp.ne.s32.totalorder %s248, %s262
      %p264 = scmp.eq.s32.totalorder %s44, 0
      %p265 = por %p263, %p264
      %s267 = sadd.s32 %s266, 1
      %p270 = scmp.eq.s32.totalorder %s38, 1
      %p271 = scmp.ne.s32.totalorder %s266, %s268
      %p272 = scmp.eq.s32.totalorder %s38, 0
      %p273 = por %p271, %p272
      %p274 = scmp.ne.s32.totalorder %s266, %s268
      %p275 = scmp.eq.s32.totalorder %s43, 1
      %p276 = por %p274, %p275
      %p277 = scmp.ne.s32.totalorder %s268, %s269
      %p278 = scmp.eq.s32.totalorder %s43, 0
      %p279 = por %p277, %p278
      %p280 = scmp.ne.s32.totalorder %s268, %s269
      %p281 = scmp.eq.s32.totalorder %s44, 1
      %p282 = por %p280, %p281
      %p284 = scmp.ne.s32.totalorder %s269, %s283
      %p285 = scmp.eq.s32.totalorder %s44, 0
      %p286 = por %p284, %p285
      %s288 = sadd.s32 %s287, 1
      %p291 = scmp.eq.s32.totalorder %s38, 1
      %p292 = scmp.ne.s32.totalorder %s287, %s289
      %p293 = scmp.eq.s32.totalorder %s38, 0
      %p294 = por %p292, %p293
      %p295 = scmp.ne.s32.totalorder %s287, %s289
      %p296 = scmp.eq.s32.totalorder %s43, 1
      %p297 = por %p295, %p296
      %p298 = scmp.ne.s32.totalorder %s289, %s290
      %p299 = scmp.eq.s32.totalorder %s43, 0
      %p300 = por %p298, %p299
      %p301 = scmp.ne.s32.totalorder %s289, %s290
      %p302 = scmp.eq.s32.totalorder %s44, 1
      %p303 = por %p301, %p302
      %p305 = scmp.ne.s32.totalorder %s290, %s304
      %p306 = scmp.eq.s32.totalorder %s44, 0
      %p307 = por %p305, %p306
      %s309 = sadd.s32 %s308, 1
      %p312 = scmp.eq.s32.totalorder %s38, 1
      %p313 = scmp.ne.s32.totalorder %s308, %s310
      %p314 = scmp.eq.s32.totalorder %s38, 0
      %p315 = por %p313, %p314
      %p316 = scmp.ne.s32.totalorder %s308, %s310
      %p317 = scmp.eq.s32.totalorder %s43, 1
      %p318 = por %p316, %p317
      %p319 = scmp.ne.s32.totalorder %s310, %s311
      %p320 = scmp.eq.s32.totalorder %s43, 0
      %p321 = por %p319, %p320
      %p322 = scmp.ne.s32.totalorder %s310, %s311
      %p323 = scmp.eq.s32.totalorder %s44, 1
      %p324 = por %p322, %p323
      %p326 = scmp.ne.s32.totalorder %s311, %s325
      %p327 = scmp.eq.s32.totalorder %s44, 0
      %p328 = por %p326, %p327
      %s330 = sadd.s32 %s329, 1
      %p333 = scmp.eq.s32.totalorder %s38, 1
      %p334 = scmp.ne.s32.totalorder %s329, %s331
      %p335 = scmp.eq.s32.totalorder %s38, 0
      %p336 = por %p334, %p335
      %p337 = scmp.ne.s32.totalorder %s329, %s331
      %p338 = scmp.eq.s32.totalorder %s43, 1
      %p339 = por %p337, %p338
      %p340 = scmp.ne.s32.totalorder %s331, %s332
      %p341 = scmp.eq.s32.totalorder %s43, 0
      %p342 = por %p340, %p341
      %p343 = scmp.ne.s32.totalorder %s331, %s332
      %p344 = scmp.eq.s32.totalorder %s44, 1
      %p345 = por %p343, %p344
      %p347 = scmp.ne.s32.totalorder %s332, %s346
      %p348 = scmp.eq.s32.totalorder %s44, 0
      %p349 = por %p347, %p348
      %s351 = sadd.s32 %s350, 1
      %p354 = scmp.eq.s32.totalorder %s38, 1
      %p355 = scmp.ne.s32.totalorder %s350, %s352
      %p356 = scmp.eq.s32.totalorder %s38, 0
      %p357 = por %p355, %p356
      %p358 = scmp.ne.s32.totalorder %s350, %s352
      %p359 = scmp.eq.s32.totalorder %s43, 1
      %p360 = por %p358, %p359
      %p361 = scmp.ne.s32.totalorder %s352, %s353
      %p362 = scmp.eq.s32.totalorder %s43, 0
      %p363 = por %p361, %p362
      %p364 = scmp.ne.s32.totalorder %s352, %s353
      %p365 = scmp.eq.s32.totalorder %s44, 1
      %p366 = por %p364, %p365
      %p368 = scmp.ne.s32.totalorder %s353, %s367
      %p369 = scmp.eq.s32.totalorder %s44, 0
      %p370 = por %p368, %p369
      %s372 = sadd.s32 %s371, 1
      %p375 = scmp.eq.s32.totalorder %s38, 1
      %p376 = scmp.ne.s32.totalorder %s371, %s373
      %p377 = scmp.eq.s32.totalorder %s38, 0
      %p378 = por %p376, %p377
      %p379 = scmp.ne.s32.totalorder %s371, %s373
      %p380 = scmp.eq.s32.totalorder %s43, 1
      %p381 = por %p379, %p380
      %p382 = scmp.ne.s32.totalorder %s373, %s374
      %p383 = scmp.eq.s32.totalorder %s43, 0
      %p384 = por %p382, %p383
      %p385 = scmp.ne.s32.totalorder %s373, %s374
      %p386 = scmp.eq.s32.totalorder %s44, 1
      %p387 = por %p385, %p386
      %p389 = scmp.ne.s32.totalorder %s374, %s388
      %p390 = scmp.eq.s32.totalorder %s44, 0
      %p391 = por %p389, %p390
      %s392 = ssub.s32 %s38, %s45
      %p393 = scmp.eq.s32.totalorder %s392, 0
      %s395 = sadd.s32 %s394, 1
      %s396 = scalar_select %p393, %s394, %s395
      %p399 = pneg %p393
      %p400 = scmp.eq.s32.totalorder %s38, 1
      %p401 = por %p399, %p400
      %p402 = scmp.ne.s32.totalorder %s394, %s397
      %p403 = scmp.eq.s32.totalorder %s38, 0
      %p404 = por %p402, %p403
      %p405 = scmp.ne.s32.totalorder %s394, %s397
      %p406 = scmp.eq.s32.totalorder %s43, 1
      %p407 = por %p405, %p406
      %p408 = scmp.ne.s32.totalorder %s397, %s398
      %p409 = scmp.eq.s32.totalorder %s43, 0
      %p410 = por %p408, %p409
      %p411 = scmp.ne.s32.totalorder %s397, %s398
      %p412 = scmp.eq.s32.totalorder %s44, 1
      %p413 = por %p411, %p412
      %p415 = scmp.ne.s32.totalorder %s398, %s414
      %p416 = scmp.eq.s32.totalorder %s44, 0
      %p417 = por %p415, %p416
      %p418 = scmp.le.s32.totalorder 1, %s38
      %p419 = scmp.lt.s32.totalorder %s38, 3
      %p420 = pnand %p418, %p419
      %p421 = pneg %p420
      // Predicated region
      $region9: #{tpu_custom_call.1} parent=5 // pred_check
        _
      $region10: #{tpu_custom_call.1} parent=5 // pred_check_branch
        %423 = sbr.rel (%p420) target = $region12
      $region11: #{tpu_custom_call.1} parent=5 // pred_region
        %s424 = ssub.s32 %s38, 1
        // Predicated region
        $region13: #{tpu_custom_call.1} parent=11 // pred_check
          %p425 = pneg %p111
        $region14: #{tpu_custom_call.1} parent=11 // pred_check_branch
          %427 = sbr.rel (%p425) target = $region16
        $region15: #{tpu_custom_call.1} parent=11 // pred_region
          %s429 = ssub.s32 1024, 1024
          %430 = vsyncadd [#allocation8], %s429
          %s431 = sshll.u32 [#allocation9], 4
          %s432 = int_to_ptr.vmem [resolvable:$true] %s431
          %437 = dma.hbm_to_vmem [thread:$0]  %s2, 1024, %s432, [#allocation8], 64, 64, 4
        $region16: #{tpu_custom_call.1} parent=11 // pred_fallthru
          _
        // Predicated region
        $region17: #{tpu_custom_call.1} parent=11 // pred_check
          %p438 = pneg %p132
        $region18: #{tpu_custom_call.1} parent=11 // pred_check_branch
          %440 = sbr.rel (%p438) target = $region20
        $region19: #{tpu_custom_call.1} parent=11 // pred_region
          %s442 = ssub.s32 16, 16
          %443 = vsyncadd [#allocation11], %s442
          %s445 = sshll.u32 [#allocation10], 4
          %s446 = int_to_ptr.vmem [resolvable:$true] %s445
          %448 = dma.hbm_to_vmem [thread:$0]  %s3, 16, %s446, [#allocation11]
        $region20: #{tpu_custom_call.1} parent=11 // pred_fallthru
          _
        // Predicated region
        $region21: #{tpu_custom_call.1} parent=11 // pred_check
          %p449 = pneg %p153
        $region22: #{tpu_custom_call.1} parent=11 // pred_check_branch
          %451 = sbr.rel (%p449) target = $region24
        $region23: #{tpu_custom_call.1} parent=11 // pred_region
          %s453 = ssub.s32 16, 16
          %454 = vsyncadd [#allocation11], %s453
          %s456 = sshll.u32 [#allocation12], 4
          %s457 = int_to_ptr.vmem [resolvable:$true] %s456
          %459 = dma.hbm_to_vmem [thread:$0]  %s4, 16, %s457, [#allocation11]
        $region24: #{tpu_custom_call.1} parent=11 // pred_fallthru
          _
        // Predicated region
        $region25: #{tpu_custom_call.1} parent=11 // pred_check
          %p460 = pneg %p174
        $region26: #{tpu_custom_call.1} parent=11 // pred_check_branch
          %462 = sbr.rel (%p460) target = $region28
        $region27: #{tpu_custom_call.1} parent=11 // pred_region
          %s464 = ssub.s32 9216, 9216
          %465 = vsyncadd [#allocation14], %s464
          %s466 = sshll.u32 [#allocation13], 4
          %s467 = int_to_ptr.vmem [resolvable:$true] %s466
          %472 = dma.hbm_to_vmem [thread:$0]  %s5, 9216, %s467, [#allocation14], 64, 64, 4
        $region28: #{tpu_custom_call.1} parent=11 // pred_fallthru
          _
        // Predicated region
        $region29: #{tpu_custom_call.1} parent=11 // pred_check
          %p473 = pneg %p195
        $region30: #{tpu_custom_call.1} parent=11 // pred_check_branch
          %475 = sbr.rel (%p473) target = $region32
        $region31: #{tpu_custom_call.1} parent=11 // pred_region
          %s477 = ssub.s32 16, 16
          %478 = vsyncadd [#allocation14], %s477
          %s480 = sshll.u32 [#allocation15], 4
          %s481 = int_to_ptr.vmem [resolvable:$true] %s480
          %483 = dma.hbm_to_vmem [thread:$0]  %s6, 16, %s481, [#allocation14]
        $region32: #{tpu_custom_call.1} parent=11 // pred_fallthru
          _
        // Predicated region
        $region33: #{tpu_custom_call.1} parent=11 // pred_check
          %p484 = pneg %p216
        $region34: #{tpu_custom_call.1} parent=11 // pred_check_branch
          %486 = sbr.rel (%p484) target = $region36
        $region35: #{tpu_custom_call.1} parent=11 // pred_region
          %s488 = ssub.s32 16, 16
          %489 = vsyncadd [#allocation17], %s488
          %s491 = sshll.u32 [#allocation16], 4
          %s492 = int_to_ptr.vmem [resolvable:$true] %s491
          %494 = dma.hbm_to_vmem [thread:$0]  %s7, 16, %s492, [#allocation17]
        $region36: #{tpu_custom_call.1} parent=11 // pred_fallthru
          _
        // Predicated region
        $region37: #{tpu_custom_call.1} parent=11 // pred_check
          %p495 = pneg %p237
        $region38: #{tpu_custom_call.1} parent=11 // pred_check_branch
          %497 = sbr.rel (%p495) target = $region40
        $region39: #{tpu_custom_call.1} parent=11 // pred_region
          %s499 = ssub.s32 1024, 1024
          %500 = vsyncadd [#allocation17], %s499
          %s501 = sshll.u32 [#allocation18], 4
          %s502 = int_to_ptr.vmem [resolvable:$true] %s501
          %507 = dma.hbm_to_vmem [thread:$0]  %s8, 1024, %s502, [#allocation17], 64, 64, 4
        $region40: #{tpu_custom_call.1} parent=11 // pred_fallthru
          _
        // Predicated region
        $region41: #{tpu_custom_call.1} parent=11 // pred_check
          %p508 = pneg %p258
        $region42: #{tpu_custom_call.1} parent=11 // pred_check_branch
          %510 = sbr.rel (%p508) target = $region44
        $region43: #{tpu_custom_call.1} parent=11 // pred_region
          %s512 = ssub.s32 16, 16
          %513 = vsyncadd [#allocation20], %s512
          %s515 = sshll.u32 [#allocation19], 4
          %s516 = int_to_ptr.vmem [resolvable:$true] %s515
          %518 = dma.hbm_to_vmem [thread:$0]  %s9, 16, %s516, [#allocation20]
        $region44: #{tpu_custom_call.1} parent=11 // pred_fallthru
          _
        // Predicated region
        $region45: #{tpu_custom_call.1} parent=11 // pred_check
          %p519 = pneg %p279
        $region46: #{tpu_custom_call.1} parent=11 // pred_check_branch
          %521 = sbr.rel (%p519) target = $region48
        $region47: #{tpu_custom_call.1} parent=11 // pred_region
          %s523 = ssub.s32 16, 16
          %524 = vsyncadd [#allocation20], %s523
          %s526 = sshll.u32 [#allocation21], 4
          %s527 = int_to_ptr.vmem [resolvable:$true] %s526
          %529 = dma.hbm_to_vmem [thread:$0]  %s10, 16, %s527, [#allocation20]
        $region48: #{tpu_custom_call.1} parent=11 // pred_fallthru
          _
        // Predicated region
        $region49: #{tpu_custom_call.1} parent=11 // pred_check
          %p530 = pneg %p300
        $region50: #{tpu_custom_call.1} parent=11 // pred_check_branch
          %532 = sbr.rel (%p530) target = $region52
        $region51: #{tpu_custom_call.1} parent=11 // pred_region
          %s534 = ssub.s32 1024, 1024
          %535 = vsyncadd [#allocation23], %s534
          %s536 = sshll.u32 [#allocation22], 4
          %s537 = int_to_ptr.vmem [resolvable:$true] %s536
          %542 = dma.hbm_to_vmem [thread:$0]  %s11, 1024, %s537, [#allocation23], 64, 64, 4
        $region52: #{tpu_custom_call.1} parent=11 // pred_fallthru
          _
        // Predicated region
        $region53: #{tpu_custom_call.1} parent=11 // pred_check
          %p543 = pneg %p321
        $region54: #{tpu_custom_call.1} parent=11 // pred_check_branch
          %545 = sbr.rel (%p543) target = $region56
        $region55: #{tpu_custom_call.1} parent=11 // pred_region
          %s547 = ssub.s32 16, 16
          %548 = vsyncadd [#allocation23], %s547
          %s550 = sshll.u32 [#allocation24], 4
          %s551 = int_to_ptr.vmem [resolvable:$true] %s550
          %553 = dma.hbm_to_vmem [thread:$0]  %s12, 16, %s551, [#allocation23]
        $region56: #{tpu_custom_call.1} parent=11 // pred_fallthru
          _
        // Predicated region
        $region57: #{tpu_custom_call.1} parent=11 // pred_check
          %p554 = pneg %p342
        $region58: #{tpu_custom_call.1} parent=11 // pred_check_branch
          %556 = sbr.rel (%p554) target = $region60
        $region59: #{tpu_custom_call.1} parent=11 // pred_region
          %s558 = ssub.s32 16, 16
          %559 = vsyncadd [#allocation26], %s558
          %s561 = sshll.u32 [#allocation25], 4
          %s562 = int_to_ptr.vmem [resolvable:$true] %s561
          %564 = dma.hbm_to_vmem [thread:$0]  %s13, 16, %s562, [#allocation26]
        $region60: #{tpu_custom_call.1} parent=11 // pred_fallthru
          _
        // Predicated region
        $region61: #{tpu_custom_call.1} parent=11 // pred_check
          %p565 = pneg %p363
        $region62: #{tpu_custom_call.1} parent=11 // pred_check_branch
          %567 = sbr.rel (%p565) target = $region64
        $region63: #{tpu_custom_call.1} parent=11 // pred_region
          %s569 = ssub.s32 2048, 2048
          %570 = vsyncadd [#allocation26], %s569
          %s571 = sshll.u32 [#allocation27], 4
          %s572 = int_to_ptr.vmem [resolvable:$true] %s571
          %577 = dma.hbm_to_vmem [thread:$0]  %s14, 2048, %s572, [#allocation26], 128, 128, 8
        $region64: #{tpu_custom_call.1} parent=11 // pred_fallthru
          _
        // Predicated region
        $region65: #{tpu_custom_call.1} parent=11 // pred_check
          %p578 = pneg %p384
        $region66: #{tpu_custom_call.1} parent=11 // pred_check_branch
          %580 = sbr.rel (%p578) target = $region68
        $region67: #{tpu_custom_call.1} parent=11 // pred_region
          %s582 = ssub.s32 2048, 2048
          %583 = vsyncadd [#allocation29], %s582
          %s584 = sshll.u32 [#allocation28], 4
          %s585 = int_to_ptr.vmem [resolvable:$true] %s584
          %590 = dma.hbm_to_vmem [thread:$0]  %s15, 2048, %s585, [#allocation29], 128, 128, 8
        $region68: #{tpu_custom_call.1} parent=11 // pred_fallthru
          _
      $region12: #{tpu_custom_call.1} parent=5 // pred_fallthru
        _
      %p591 = scmp.lt.s32.totalorder %s38, 2
      // Predicated region
      $region69: #{tpu_custom_call.1} parent=5 // pred_check
        %p592 = pneg %p591
      $region70: #{tpu_custom_call.1} parent=5 // pred_check_branch
        %594 = sbr.rel (%p592) target = $region72
      $region71: #{tpu_custom_call.1} parent=5 // pred_region
        // Predicated region
        $region73: #{tpu_custom_call.1} parent=71 // pred_check
          %p595 = pneg %p58
        $region74: #{tpu_custom_call.1} parent=71 // pred_check_branch
          %597 = sbr.rel (%p595) target = $region76
        $region75: #{tpu_custom_call.1} parent=71 // pred_region
          %s598 = sand.u32 %s48, 1
          %s599 = scalar_lea.sflag [#allocation5], %s598
          %s600 = sand.u32 %s48, 1
          %s601 = smul.addr %s600, 256
          %s602 = scalar_lea.vmem [#allocation4], %s601
          %s604 = ssub.s32 4096, 4096
          %605 = vsyncadd %s599, %s604
          %s606 = smul.addr %s38, 32
          %s607 = smul.addr %s606, 128
          %s608 = scalar_lea.hbm %s0, %s607
          %s609 = sshll.u32 %s602, 4
          %s610 = int_to_ptr.vmem [resolvable:$true] %s609
          %615 = dma.hbm_to_vmem [thread:$0]  %s608, 4096, %s610, %s599, 128, 128, 8
        $region76: #{tpu_custom_call.1} parent=71 // pred_fallthru
          _
        // Predicated region
        $region77: #{tpu_custom_call.1} parent=71 // pred_check
          %p616 = pneg %p84
        $region78: #{tpu_custom_call.1} parent=71 // pred_check_branch
          %618 = sbr.rel (%p616) target = $region80
        $region79: #{tpu_custom_call.1} parent=71 // pred_region
          %s619 = sand.u32 %s38, 1
          %s620 = scalar_lea.sflag [#allocation8], %s619
          %s621 = sand.u32 %s74, 1
          %s622 = smul.addr %s621, 256
          %s623 = scalar_lea.vmem [#allocation7], %s622
          %s625 = ssub.s32 4096, 4096
          %626 = vsyncadd %s620, %s625
          %s627 = smul.addr %s38, 32
          %s628 = smul.addr %s627, 128
          %s629 = scalar_lea.hbm %s1, %s628
          %s630 = sshll.u32 %s623, 4
          %s631 = int_to_ptr.vmem [resolvable:$true] %s630
          %636 = dma.hbm_to_vmem [thread:$0]  %s629, 4096, %s631, %s620, 128, 128, 8
        $region80: #{tpu_custom_call.1} parent=71 // pred_fallthru
          _
      $region72: #{tpu_custom_call.1} parent=5 // pred_fallthru
        _
      %p637 = scmp.le.s32.totalorder 1, %s38
      %p638 = scmp.lt.s32.totalorder %s38, 3
      %p639 = pnand %p637, %p638
      %p640 = pneg %p639
      // Predicated region
      $region81: #{tpu_custom_call.1} parent=5 // pred_check
        _
      $region82: #{tpu_custom_call.1} parent=5 // pred_check_branch
        %642 = sbr.rel (%p639) target = $region84
      $region83: #{tpu_custom_call.1} parent=5 // pred_region
        %s643 = ssub.s32 %s38, 1
        %s644 = sand.u32 %s51, 1
        %s645 = scalar_lea.sflag [#allocation5], %s644
        %s646 = sand.u32 %s51, 1
        %s647 = smul.addr %s646, 256
        %s648 = scalar_lea.vmem [#allocation4], %s647
        // Predicated region
        $region85: #{tpu_custom_call.1} parent=83 // pred_check
          %p649 = pneg %p64
        $region86: #{tpu_custom_call.1} parent=83 // pred_check_branch
          %651 = sbr.rel (%p649) target = $region88
        $region87: #{tpu_custom_call.1} parent=83 // pred_region
          %652 = dma.done %s645, 4096
        $region88: #{tpu_custom_call.1} parent=83 // pred_fallthru
          _
        %s653 = sand.u32 %s43, 1
        %s654 = scalar_lea.sflag [#allocation8], %s653
        %s655 = sand.u32 %s77, 1
        %s656 = smul.addr %s655, 256
        %s657 = scalar_lea.vmem [#allocation7], %s656
        // Predicated region
        $region89: #{tpu_custom_call.1} parent=83 // pred_check
          %p658 = pneg %p90
        $region90: #{tpu_custom_call.1} parent=83 // pred_check_branch
          %660 = sbr.rel (%p658) target = $region92
        $region91: #{tpu_custom_call.1} parent=83 // pred_region
          %661 = dma.done %s654, 4096
        $region92: #{tpu_custom_call.1} parent=83 // pred_fallthru
          _
        // Predicated region
        $region93: #{tpu_custom_call.1} parent=83 // pred_check
          %p662 = pneg %p111
        $region94: #{tpu_custom_call.1} parent=83 // pred_check_branch
          %664 = sbr.rel (%p662) target = $region96
        $region95: #{tpu_custom_call.1} parent=83 // pred_region
          %665 = dma.done [#allocation8], 1024
        $region96: #{tpu_custom_call.1} parent=83 // pred_fallthru
          _
        // Predicated region
        $region97: #{tpu_custom_call.1} parent=83 // pred_check
          %p666 = pneg %p132
        $region98: #{tpu_custom_call.1} parent=83 // pred_check_branch
          %668 = sbr.rel (%p666) target = $region100
        $region99: #{tpu_custom_call.1} parent=83 // pred_region
          %669 = dma.done [#allocation11], 16
        $region100: #{tpu_custom_call.1} parent=83 // pred_fallthru
          _
        // Predicated region
        $region101: #{tpu_custom_call.1} parent=83 // pred_check
          %p670 = pneg %p153
        $region102: #{tpu_custom_call.1} parent=83 // pred_check_branch
          %672 = sbr.rel (%p670) target = $region104
        $region103: #{tpu_custom_call.1} parent=83 // pred_region
          %673 = dma.done [#allocation11], 16
        $region104: #{tpu_custom_call.1} parent=83 // pred_fallthru
          _
        // Predicated region
        $region105: #{tpu_custom_call.1} parent=83 // pred_check
          %p674 = pneg %p174
        $region106: #{tpu_custom_call.1} parent=83 // pred_check_branch
          %676 = sbr.rel (%p674) target = $region108
        $region107: #{tpu_custom_call.1} parent=83 // pred_region
          %677 = dma.done [#allocation14], 9216
        $region108: #{tpu_custom_call.1} parent=83 // pred_fallthru
          _
        // Predicated region
        $region109: #{tpu_custom_call.1} parent=83 // pred_check
          %p678 = pneg %p195
        $region110: #{tpu_custom_call.1} parent=83 // pred_check_branch
          %680 = sbr.rel (%p678) target = $region112
        $region111: #{tpu_custom_call.1} parent=83 // pred_region
          %681 = dma.done [#allocation14], 16
        $region112: #{tpu_custom_call.1} parent=83 // pred_fallthru
          _
        // Predicated region
        $region113: #{tpu_custom_call.1} parent=83 // pred_check
          %p682 = pneg %p216
        $region114: #{tpu_custom_call.1} parent=83 // pred_check_branch
          %684 = sbr.rel (%p682) target = $region116
        $region115: #{tpu_custom_call.1} parent=83 // pred_region
          %685 = dma.done [#allocation17], 16
        $region116: #{tpu_custom_call.1} parent=83 // pred_fallthru
          _
        // Predicated region
        $region117: #{tpu_custom_call.1} parent=83 // pred_check
          %p686 = pneg %p237
        $region118: #{tpu_custom_call.1} parent=83 // pred_check_branch
          %688 = sbr.rel (%p686) target = $region120
        $region119: #{tpu_custom_call.1} parent=83 // pred_region
          %689 = dma.done [#allocation17], 1024
        $region120: #{tpu_custom_call.1} parent=83 // pred_fallthru
          _
        // Predicated region
        $region121: #{tpu_custom_call.1} parent=83 // pred_check
          %p690 = pneg %p258
        $region122: #{tpu_custom_call.1} parent=83 // pred_check_branch
          %692 = sbr.rel (%p690) target = $region124
        $region123: #{tpu_custom_call.1} parent=83 // pred_region
          %693 = dma.done [#allocation20], 16
        $region124: #{tpu_custom_call.1} parent=83 // pred_fallthru
          _
        // Predicated region
        $region125: #{tpu_custom_call.1} parent=83 // pred_check
          %p694 = pneg %p279
        $region126: #{tpu_custom_call.1} parent=83 // pred_check_branch
          %696 = sbr.rel (%p694) target = $region128
        $region127: #{tpu_custom_call.1} parent=83 // pred_region
          %697 = dma.done [#allocation20], 16
        $region128: #{tpu_custom_call.1} parent=83 // pred_fallthru
          _
        // Predicated region
        $region129: #{tpu_custom_call.1} parent=83 // pred_check
          %p698 = pneg %p300
        $region130: #{tpu_custom_call.1} parent=83 // pred_check_branch
          %700 = sbr.rel (%p698) target = $region132
        $region131: #{tpu_custom_call.1} parent=83 // pred_region
          %701 = dma.done [#allocation23], 1024
        $region132: #{tpu_custom_call.1} parent=83 // pred_fallthru
          _
        // Predicated region
        $region133: #{tpu_custom_call.1} parent=83 // pred_check
          %p702 = pneg %p321
        $region134: #{tpu_custom_call.1} parent=83 // pred_check_branch
          %704 = sbr.rel (%p702) target = $region136
        $region135: #{tpu_custom_call.1} parent=83 // pred_region
          %705 = dma.done [#allocation23], 16
        $region136: #{tpu_custom_call.1} parent=83 // pred_fallthru
          _
        // Predicated region
        $region137: #{tpu_custom_call.1} parent=83 // pred_check
          %p706 = pneg %p342
        $region138: #{tpu_custom_call.1} parent=83 // pred_check_branch
          %708 = sbr.rel (%p706) target = $region140
        $region139: #{tpu_custom_call.1} parent=83 // pred_region
          %709 = dma.done [#allocation26], 16
        $region140: #{tpu_custom_call.1} parent=83 // pred_fallthru
          _
        // Predicated region
        $region141: #{tpu_custom_call.1} parent=83 // pred_check
          %p710 = pneg %p363
        $region142: #{tpu_custom_call.1} parent=83 // pred_check_branch
          %712 = sbr.rel (%p710) target = $region144
        $region143: #{tpu_custom_call.1} parent=83 // pred_region
          %713 = dma.done [#allocation26], 2048
        $region144: #{tpu_custom_call.1} parent=83 // pred_fallthru
          _
        // Predicated region
        $region145: #{tpu_custom_call.1} parent=83 // pred_check
          %p714 = pneg %p384
        $region146: #{tpu_custom_call.1} parent=83 // pred_check_branch
          %716 = sbr.rel (%p714) target = $region148
        $region147: #{tpu_custom_call.1} parent=83 // pred_region
          %717 = dma.done [#allocation29], 2048
        $region148: #{tpu_custom_call.1} parent=83 // pred_fallthru
          _
        %s718 = sand.u32 %s51, 1
        %s719 = scalar_lea.sflag [#allocation5], %s718
        %s720 = sand.u32 %s51, 1
        %s721 = smul.addr %s720, 256
        %s722 = scalar_lea.vmem [#allocation4], %s721
        %p723 = pneg %p64
        %p724 = pneg %p61
        %s725 = sand.u32 %s43, 1
        %s726 = scalar_lea.sflag [#allocation8], %s725
        %s727 = sand.u32 %s77, 1
        %s728 = smul.addr %s727, 256
        %s729 = scalar_lea.vmem [#allocation7], %s728
        %p730 = pneg %p90
        %p731 = pneg %p87
        %p732 = pneg %p111
        %p733 = pneg %p108
        %p734 = pneg %p132
        %p735 = pneg %p129
        %p736 = pneg %p153
        %p737 = pneg %p150
        %p738 = pneg %p174
        %p739 = pneg %p171
        %p740 = pneg %p195
        %p741 = pneg %p192
        %p742 = pneg %p216
        %p743 = pneg %p213
        %p744 = pneg %p237
        %p745 = pneg %p234
        %p746 = pneg %p258
        %p747 = pneg %p255
        %p748 = pneg %p279
        %p749 = pneg %p276
        %p750 = pneg %p300
        %p751 = pneg %p297
        %p752 = pneg %p321
        %p753 = pneg %p318
        %p754 = pneg %p342
        %p755 = pneg %p339
        %p756 = pneg %p363
        %p757 = pneg %p360
        %p758 = pneg %p384
        %p759 = pneg %p381
        %p760 = pneg %p410
        %p761 = pneg %p407
        %s762 = sand.u32 %s397, 1
        %s763 = scalar_lea.sflag [#allocation6], %s762
        %s764 = sand.u32 %s397, 1
        %s765 = smul.addr %s764, 256
        %s766 = scalar_lea.vmem [#allocation30], %s765
        %v768 = vld [vmem:[%s648] sm:$0xff]
        %v769 = vld [vmem:[%s648 + $0x8] sm:$0xff]
        %v770 = vld [vmem:[%s648 + $0x10] sm:$0xff]
        %v771 = vld [vmem:[%s648 + $0x18] sm:$0xff]
        %v772 = vld [vmem:[%s648 + $0x20] sm:$0xff]
        %v773 = vld [vmem:[%s648 + $0x28] sm:$0xff]
        %v774 = vld [vmem:[%s648 + $0x30] sm:$0xff]
        %v775 = vld [vmem:[%s648 + $0x38] sm:$0xff]
        %v776 = vld [vmem:[%s648 + $0x40] sm:$0xff]
        %v777 = vld [vmem:[%s648 + $0x48] sm:$0xff]
        %v778 = vld [vmem:[%s648 + $0x50] sm:$0xff]
        %v779 = vld [vmem:[%s648 + $0x58] sm:$0xff]
        %v780 = vld [vmem:[%s648 + $0x60] sm:$0xff]
        %v781 = vld [vmem:[%s648 + $0x68] sm:$0xff]
        %v782 = vld [vmem:[%s648 + $0x70] sm:$0xff]
        %v783 = vld [vmem:[%s648 + $0x78] sm:$0xff]
        %v784 = vld [vmem:[%s648 + $0x80] sm:$0xff]
        %v785 = vld [vmem:[%s648 + $0x88] sm:$0xff]
        %v786 = vld [vmem:[%s648 + $0x90] sm:$0xff]
        %v787 = vld [vmem:[%s648 + $0x98] sm:$0xff]
        %v788 = vld [vmem:[%s648 + $0xa0] sm:$0xff]
        %v789 = vld [vmem:[%s648 + $0xa8] sm:$0xff]
        %v790 = vld [vmem:[%s648 + $0xb0] sm:$0xff]
        %v791 = vld [vmem:[%s648 + $0xb8] sm:$0xff]
        %v792 = vld [vmem:[%s648 + $0xc0] sm:$0xff]
        %v793 = vld [vmem:[%s648 + $0xc8] sm:$0xff]
        %v794 = vld [vmem:[%s648 + $0xd0] sm:$0xff]
        %v795 = vld [vmem:[%s648 + $0xd8] sm:$0xff]
        %v796 = vld [vmem:[%s648 + $0xe0] sm:$0xff]
        %v797 = vld [vmem:[%s648 + $0xe8] sm:$0xff]
        %v798 = vld [vmem:[%s648 + $0xf0] sm:$0xff]
        %v799 = vld [vmem:[%s648 + $0xf8] sm:$0xff]
        %v800 = vpack.c.bf16 %v769, %v768
        %v801 = vpack.c.bf16 %v771, %v770
        %v802 = vpack.c.bf16 %v773, %v772
        %v803 = vpack.c.bf16 %v775, %v774
        %v804 = vpack.c.bf16 %v777, %v776
        %v805 = vpack.c.bf16 %v779, %v778
        %v806 = vpack.c.bf16 %v781, %v780
        %v807 = vpack.c.bf16 %v783, %v782
        %v808 = vpack.c.bf16 %v785, %v784
        %v809 = vpack.c.bf16 %v787, %v786
        %v810 = vpack.c.bf16 %v789, %v788
        %v811 = vpack.c.bf16 %v791, %v790
        %v812 = vpack.c.bf16 %v793, %v792
        %v813 = vpack.c.bf16 %v795, %v794
        %v814 = vpack.c.bf16 %v797, %v796
        %v815 = vpack.c.bf16 %v799, %v798
        %v816 = vld [vmem:[#allocation9] sm:$0xf]
        %v817 = vld [vmem:[#allocation9 + $0x4] sm:$0xf]
        %v818 = vld [vmem:[#allocation9 + $0x8] sm:$0xf]
        %v819 = vld [vmem:[#allocation9 + $0xc] sm:$0xf]
        %v820 = vld [vmem:[#allocation9 + $0x10] sm:$0xf]
        %v821 = vld [vmem:[#allocation9 + $0x14] sm:$0xf]
        %v822 = vld [vmem:[#allocation9 + $0x18] sm:$0xf]
        %v823 = vld [vmem:[#allocation9 + $0x1c] sm:$0xf]
        %v824 = vld [vmem:[#allocation9 + $0x20] sm:$0xf]
        %v825 = vld [vmem:[#allocation9 + $0x24] sm:$0xf]
        %v826 = vld [vmem:[#allocation9 + $0x28] sm:$0xf]
        %v827 = vld [vmem:[#allocation9 + $0x2c] sm:$0xf]
        %v828 = vld [vmem:[#allocation9 + $0x30] sm:$0xf]
        %v829 = vld [vmem:[#allocation9 + $0x34] sm:$0xf]
        %v830 = vld [vmem:[#allocation9 + $0x38] sm:$0xf]
        %v831 = vld [vmem:[#allocation9 + $0x3c] sm:$0xf]
        %v848 = vunpack.c.l.b16 %v816
        %v849 = vunpack.c.l.b16 %v817
        %v850 = vunpack.c.l.b16 %v818
        %v851 = vunpack.c.l.b16 %v819
        %v852 = vunpack.c.l.b16 %v820
        %v853 = vunpack.c.l.b16 %v821
        %v854 = vunpack.c.l.b16 %v822
        %v855 = vunpack.c.l.b16 %v823
        %v856 = vunpack.c.l.b16 %v824
        %v857 = vunpack.c.l.b16 %v825
        %v858 = vunpack.c.l.b16 %v826
        %v859 = vunpack.c.l.b16 %v827
        %v860 = vunpack.c.l.b16 %v828
        %v861 = vunpack.c.l.b16 %v829
        %v862 = vunpack.c.l.b16 %v830
        %v863 = vunpack.c.l.b16 %v831
        %v864 = vpack.c.b16 %v849, %v848
        %v865 = vpack.c.b16 %v851, %v850
        %v866 = vpack.c.b16 %v853, %v852
        %v867 = vpack.c.b16 %v855, %v854
        %v868 = vpack.c.b16 %v857, %v856
        %v869 = vpack.c.b16 %v859, %v858
        %v870 = vpack.c.b16 %v861, %v860
        %v871 = vpack.c.b16 %v863, %v862
        %880 = vmatprep.subr.bf16.mxu0 0
        %881 = vmatpush1.bf16.msra.mxu0 %v864
        %882 = vmatprep.subr.bf16.mxu0 0
        %883 = vmatpush1.bf16.msra.mxu0 %v865
        %884 = vmatprep.subr.bf16.mxu0 0
        %885 = vmatpush1.bf16.msra.mxu0 %v866
        %886 = vmatprep.subr.bf16.mxu0 0
        %887 = vmatpush1.bf16.msra.mxu0 %v867
        %888 = vmatprep.subr.bf16.mxu0 0
        %889 = vmatpush1.bf16.msra.mxu0 %v868
        %890 = vmatprep.subr.bf16.mxu0 0
        %891 = vmatpush1.bf16.msra.mxu0 %v869
        %892 = vmatprep.subr.bf16.mxu0 0
        %893 = vmatpush1.bf16.msra.mxu0 %v870
        %894 = vmatprep.subr.bf16.mxu0 0
        %895 = vmatpush1.bf16.msra.mxu0 %v871
        %896 = vmatprep.subr.bf16.mxu0 0
        %897 = vmatpush1.bf16.msra.mxu0 0
        %898 = vmatprep.subr.bf16.mxu0 0
        %899 = vmatpush1.bf16.msra.mxu0 0
        %900 = vmatprep.subr.bf16.mxu0 0
        %901 = vmatpush1.bf16.msra.mxu0 0
        %902 = vmatprep.subr.bf16.mxu0 0
        %903 = vmatpush1.bf16.msra.mxu0 0
        %904 = vmatprep.subr.bf16.mxu0 0
        %905 = vmatpush1.bf16.msra.mxu0 0
        %906 = vmatprep.subr.bf16.mxu0 0
        %907 = vmatpush1.bf16.msra.mxu0 0
        %908 = vmatprep.subr.bf16.mxu0 0
        %909 = vmatpush1.bf16.msra.mxu0 0
        %910 = vmatprep.subr.bf16.mxu0 0
        %911 = vmatpush1.bf16.msra.mxu0 0
        %912 = vmatprep.mubr.bf16.mxu0 0
        %913 = vmatmul.mubr.bf16.gmra.mrb[0].mxu0 %v800
        %v914 = vpop.f32.mrb[0].mxu0
        %v915 = vadd.f32 0.0, %v914
        %v916 = vpop.f32.mrb[0].mxu0
        %v917 = vpop.f32.mrb[0].mxu0
        %v918 = vadd.f32 0.0, %v917
        %v919 = vpop.f32.mrb[0].mxu0
        %920 = vmatprep.mubr.bf16.mxu0 0
        %921 = vmatmul.mubr.bf16.gmra.mrb[0].mxu0 %v801
        %v922 = vpop.f32.mrb[0].mxu0
        %v923 = vadd.f32 0.0, %v922
        %v924 = vpop.f32.mrb[0].mxu0
        %v925 = vpop.f32.mrb[0].mxu0
        %v926 = vadd.f32 0.0, %v925
        %v927 = vpop.f32.mrb[0].mxu0
        %928 = vmatprep.mubr.bf16.mxu0 0
        %929 = vmatmul.mubr.bf16.gmra.mrb[0].mxu0 %v802
        %v930 = vpop.f32.mrb[0].mxu0
        %v931 = vadd.f32 0.0, %v930
        %v932 = vpop.f32.mrb[0].mxu0
        %v933 = vpop.f32.mrb[0].mxu0
        %v934 = vadd.f32 0.0, %v933
        %v935 = vpop.f32.mrb[0].mxu0
        %936 = vmatprep.mubr.bf16.mxu0 0
        %937 = vmatmul.mubr.bf16.gmra.mrb[0].mxu0 %v803
        %v938 = vpop.f32.mrb[0].mxu0
        %v939 = vadd.f32 0.0, %v938
        %v940 = vpop.f32.mrb[0].mxu0
        %v941 = vpop.f32.mrb[0].mxu0
        %v942 = vadd.f32 0.0, %v941
        %v943 = vpop.f32.mrb[0].mxu0
        %944 = vmatprep.mubr.bf16.mxu0 0
        %945 = vmatmul.mubr.bf16.gmra.mrb[0].mxu0 %v804
        %v946 = vpop.f32.mrb[0].mxu0
        %v947 = vadd.f32 0.0, %v946
        %v948 = vpop.f32.mrb[0].mxu0
        %v949 = vpop.f32.mrb[0].mxu0
        %v950 = vadd.f32 0.0, %v949
        %v951 = vpop.f32.mrb[0].mxu0
        %952 = vmatprep.mubr.bf16.mxu0 0
        %953 = vmatmul.mubr.bf16.gmra.mrb[0].mxu0 %v805
        %v954 = vpop.f32.mrb[0].mxu0
        %v955 = vadd.f32 0.0, %v954
        %v956 = vpop.f32.mrb[0].mxu0
        %v957 = vpop.f32.mrb[0].mxu0
        %v958 = vadd.f32 0.0, %v957
        %v959 = vpop.f32.mrb[0].mxu0
        %960 = vmatprep.mubr.bf16.mxu0 0
        %961 = vmatmul.mubr.bf16.gmra.mrb[0].mxu0 %v806
        %v962 = vpop.f32.mrb[0].mxu0
        %v963 = vadd.f32 0.0, %v962
        %v964 = vpop.f32.mrb[0].mxu0
        %v965 = vpop.f32.mrb[0].mxu0
        %v966 = vadd.f32 0.0, %v965
        %v967 = vpop.f32.mrb[0].mxu0
        %968 = vmatprep.mubr.bf16.mxu0 0
        %969 = vmatmul.mubr.bf16.gmra.mrb[0].mxu0 %v807
        %v970 = vpop.f32.mrb[0].mxu0
        %v971 = vadd.f32 0.0, %v970
        %v972 = vpop.f32.mrb[0].mxu0
        %v973 = vpop.f32.mrb[0].mxu0
        %v974 = vadd.f32 0.0, %v973
        %v975 = vpop.f32.mrb[0].mxu0
        %976 = vmatprep.mubr.bf16.mxu0 0
        %977 = vmatmul.mubr.bf16.gmra.mrb[0].mxu0 %v808
        %v978 = vpop.f32.mrb[0].mxu0
        %v979 = vadd.f32 0.0, %v978
        %v980 = vpop.f32.mrb[0].mxu0
        %v981 = vpop.f32.mrb[0].mxu0
        %v982 = vadd.f32 0.0, %v981
        %v983 = vpop.f32.mrb[0].mxu0
        %984 = vmatprep.mubr.bf16.mxu0 0
        %985 = vmatmul.mubr.bf16.gmra.mrb[0].mxu0 %v809
        %v986 = vpop.f32.mrb[0].mxu0
        %v987 = vadd.f32 0.0, %v986
        %v988 = vpop.f32.mrb[0].mxu0
        %v989 = vpop.f32.mrb[0].mxu0
        %v990 = vadd.f32 0.0, %v989
        %v991 = vpop.f32.mrb[0].mxu0
        %992 = vmatprep.mubr.bf16.mxu0 0
        %993 = vmatmul.mubr.bf16.gmra.mrb[0].mxu0 %v810
        %v994 = vpop.f32.mrb[0].mxu0
        %v995 = vadd.f32 0.0, %v994
        %v996 = vpop.f32.mrb[0].mxu0
        %v997 = vpop.f32.mrb[0].mxu0
        %v998 = vadd.f32 0.0, %v997
        %v999 = vpop.f32.mrb[0].mxu0
        %1000 = vmatprep.mubr.bf16.mxu0 0
        %1001 = vmatmul.mubr.bf16.gmra.mrb[0].mxu0 %v811
        %v1002 = vpop.f32.mrb[0].mxu0
        %v1003 = vadd.f32 0.0, %v1002
        %v1004 = vpop.f32.mrb[0].mxu0
        %v1005 = vpop.f32.mrb[0].mxu0
        %v1006 = vadd.f32 0.0, %v1005
        %v1007 = vpop.f32.mrb[0].mxu0
        %1008 = vmatprep.mubr.bf16.mxu0 0
        %1009 = vmatmul.mubr.bf16.gmra.mrb[0].mxu0 %v812
        %v1010 = vpop.f32.mrb[0].mxu0
        %v1011 = vadd.f32 0.0, %v1010
        %v1012 = vpop.f32.mrb[0].mxu0
        %v1013 = vpop.f32.mrb[0].mxu0
        %v1014 = vadd.f32 0.0, %v1013
        %v1015 = vpop.f32.mrb[0].mxu0
        %1016 = vmatprep.mubr.bf16.mxu0 0
        %1017 = vmatmul.mubr.bf16.gmra.mrb[0].mxu0 %v813
        %v1018 = vpop.f32.mrb[0].mxu0
        %v1019 = vadd.f32 0.0, %v1018
        %v1020 = vpop.f32.mrb[0].mxu0
        %v1021 = vpop.f32.mrb[0].mxu0
        %v1022 = vadd.f32 0.0, %v1021
        %v1023 = vpop.f32.mrb[0].mxu0
        %1024 = vmatprep.mubr.bf16.mxu0 0
        %1025 = vmatmul.mubr.bf16.gmra.mrb[0].mxu0 %v814
        %v1026 = vpop.f32.mrb[0].mxu0
        %v1027 = vadd.f32 0.0, %v1026
        %v1028 = vpop.f32.mrb[0].mxu0
        %v1029 = vpop.f32.mrb[0].mxu0
        %v1030 = vadd.f32 0.0, %v1029
        %v1031 = vpop.f32.mrb[0].mxu0
        %1032 = vmatprep.mubr.bf16.mxu0 0
        %1033 = vmatmul.mubr.bf16.gmra.mrb[0].mxu0 %v815
        %v1034 = vpop.f32.mrb[0].mxu0
        %v1035 = vadd.f32 0.0, %v1034
        %v1036 = vpop.f32.mrb[0].mxu0
        %v1037 = vpop.f32.mrb[0].mxu0
        %v1038 = vadd.f32 0.0, %v1037
        %v1039 = vpop.f32.mrb[0].mxu0
        %1040 = vdwg.mxu0
        %v1041 = vadd.f32 %v915, %v918
        %v1042 = vadd.f32 %v1041, %v923
        %v1043 = vadd.f32 %v1042, %v926
        %v1044 = vadd.f32 %v1043, %v931
        %v1045 = vadd.f32 %v1044, %v934
        %v1046 = vadd.f32 %v1045, %v939
        %v1047 = vadd.f32 %v1046, %v942
        %v1048 = vadd.f32 %v1047, %v947
        %v1049 = vadd.f32 %v1048, %v950
        %v1050 = vadd.f32 %v1049, %v955
        %v1051 = vadd.f32 %v1050, %v958
        %v1052 = vadd.f32 %v1051, %v963
        %v1053 = vadd.f32 %v1052, %v966
        %v1054 = vadd.f32 %v1053, %v971
        %v1055 = vadd.f32 %v1054, %v974
        %v1056 = vadd.f32 %v1055, %v979
        %v1057 = vadd.f32 %v1056, %v982
        %v1058 = vadd.f32 %v1057, %v987
        %v1059 = vadd.f32 %v1058, %v990
        %v1060 = vadd.f32 %v1059, %v995
        %v1061 = vadd.f32 %v1060, %v998
        %v1062 = vadd.f32 %v1061, %v1003
        %v1063 = vadd.f32 %v1062, %v1006
        %v1064 = vadd.f32 %v1063, %v1011
        %v1065 = vadd.f32 %v1064, %v1014
        %v1066 = vadd.f32 %v1065, %v1019
        %v1067 = vadd.f32 %v1066, %v1022
        %v1068 = vadd.f32 %v1067, %v1027
        %v1069 = vadd.f32 %v1068, %v1030
        %v1070 = vadd.f32 %v1069, %v1035
        %v1071 = vadd.f32 %v1070, %v1038
        %v1072 = vrot.slane %v1071, 4
        %v1073 = vadd.f32 %v1071, %v1072
        %v1074 = vrot.slane %v1073, 2
        %v1075 = vadd.f32 %v1073, %v1074
        %v1076 = vrot.slane %v1075, 1
        %v1077 = vadd.f32 %v1075, %v1076
        %v1078 = vmul.f32 %v915, %v915
        %v1079 = vmul.f32 %v918, %v918
        %v1080 = vmul.f32 %v923, %v923
        %v1081 = vmul.f32 %v926, %v926
        %v1082 = vmul.f32 %v931, %v931
        %v1083 = vmul.f32 %v934, %v934
        %v1084 = vmul.f32 %v939, %v939
        %v1085 = vmul.f32 %v942, %v942
        %v1086 = vmul.f32 %v947, %v947
        %v1087 = vmul.f32 %v950, %v950
        %v1088 = vmul.f32 %v955, %v955
        %v1089 = vmul.f32 %v958, %v958
        %v1090 = vmul.f32 %v963, %v963
        %v1091 = vmul.f32 %v966, %v966
        %v1092 = vmul.f32 %v971, %v971
        %v1093 = vmul.f32 %v974, %v974
        %v1094 = vmul.f32 %v979, %v979
        %v1095 = vmul.f32 %v982, %v982
        %v1096 = vmul.f32 %v987, %v987
        %v1097 = vmul.f32 %v990, %v990
        %v1098 = vmul.f32 %v995, %v995
        %v1099 = vmul.f32 %v998, %v998
        %v1100 = vmul.f32 %v1003, %v1003
        %v1101 = vmul.f32 %v1006, %v1006
        %v1102 = vmul.f32 %v1011, %v1011
        %v1103 = vmul.f32 %v1014, %v1014
        %v1104 = vmul.f32 %v1019, %v1019
        %v1105 = vmul.f32 %v1022, %v1022
        %v1106 = vmul.f32 %v1027, %v1027
        %v1107 = vmul.f32 %v1030, %v1030
        %v1108 = vmul.f32 %v1035, %v1035
        %v1109 = vmul.f32 %v1038, %v1038
        %v1110 = vadd.f32 %v1078, %v1079
        %v1111 = vadd.f32 %v1110, %v1080
        %v1112 = vadd.f32 %v1111, %v1081
        %v1113 = vadd.f32 %v1112, %v1082
        %v1114 = vadd.f32 %v1113, %v1083
        %v1115 = vadd.f32 %v1114, %v1084
        %v1116 = vadd.f32 %v1115, %v1085
        %v1117 = vadd.f32 %v1116, %v1086
        %v1118 = vadd.f32 %v1117, %v1087
        %v1119 = vadd.f32 %v1118, %v1088
        %v1120 = vadd.f32 %v1119, %v1089
        %v1121 = vadd.f32 %v1120, %v1090
        %v1122 = vadd.f32 %v1121, %v1091
        %v1123 = vadd.f32 %v1122, %v1092
        %v1124 = vadd.f32 %v1123, %v1093
        %v1125 = vadd.f32 %v1124, %v1094
        %v1126 = vadd.f32 %v1125, %v1095
        %v1127 = vadd.f32 %v1126, %v1096
        %v1128 = vadd.f32 %v1127, %v1097
        %v1129 = vadd.f32 %v1128, %v1098
        %v1130 = vadd.f32 %v1129, %v1099
        %v1131 = vadd.f32 %v1130, %v1100
        %v1132 = vadd.f32 %v1131, %v1101
        %v1133 = vadd.f32 %v1132, %v1102
        %v1134 = vadd.f32 %v1133, %v1103
        %v1135 = vadd.f32 %v1134, %v1104
        %v1136 = vadd.f32 %v1135, %v1105
        %v1137 = vadd.f32 %v1136, %v1106
        %v1138 = vadd.f32 %v1137, %v1107
        %v1139 = vadd.f32 %v1138, %v1108
        %v1140 = vadd.f32 %v1139, %v1109
        %v1141 = vrot.slane %v1140, 4
        %v1142 = vadd.f32 %v1140, %v1141
        %v1143 = vrot.slane %v1142, 2
        %v1144 = vadd.f32 %v1142, %v1143
        %v1145 = vrot.slane %v1144, 1
        %v1146 = vadd.f32 %v1144, %v1145
        %v1147 = vld [vmem:[#allocation27] sm:$0xff]
        %v1148 = vld [vmem:[#allocation27 + $0x8] sm:$0xff]
        %v1149 = vld [vmem:[#allocation27 + $0x10] sm:$0xff]
        %v1150 = vld [vmem:[#allocation27 + $0x18] sm:$0xff]
        %v1151 = vld [vmem:[#allocation27 + $0x20] sm:$0xff]
        %v1152 = vld [vmem:[#allocation27 + $0x28] sm:$0xff]
        %v1153 = vld [vmem:[#allocation27 + $0x30] sm:$0xff]
        %v1154 = vld [vmem:[#allocation27 + $0x38] sm:$0xff]
        %v1155 = vld [vmem:[#allocation27 + $0x40] sm:$0xff]
        %v1156 = vld [vmem:[#allocation27 + $0x48] sm:$0xff]
        %v1157 = vld [vmem:[#allocation27 + $0x50] sm:$0xff]
        %v1158 = vld [vmem:[#allocation27 + $0x58] sm:$0xff]
        %v1159 = vld [vmem:[#allocation27 + $0x60] sm:$0xff]
        %v1160 = vld [vmem:[#allocation27 + $0x68] sm:$0xff]
        %v1161 = vld [vmem:[#allocation27 + $0x70] sm:$0xff]
        %v1162 = vld [vmem:[#allocation27 + $0x78] sm:$0xff]
        %1163 = vmatprep.subr.mxu0 0.0
        %1164 = vmatpush1.msra.mxu0 %v1147
        %1165 = vmatprep.subr.mxu0 0.0
        %1166 = vmatpush1.msra.mxu0 %v1148
        %1167 = vmatprep.subr.mxu0 0.0
        %1168 = vmatpush1.msra.mxu0 %v1149
        %1169 = vmatprep.subr.mxu0 0.0
        %1170 = vmatpush1.msra.mxu0 %v1150
        %1171 = vmatprep.subr.mxu0 0.0
        %1172 = vmatpush1.msra.mxu0 %v1151
        %1173 = vmatprep.subr.mxu0 0.0
        %1174 = vmatpush1.msra.mxu0 %v1152
        %1175 = vmatprep.subr.mxu0 0.0
        %1176 = vmatpush1.msra.mxu0 %v1153
        %1177 = vmatprep.subr.mxu0 0.0
        %1178 = vmatpush1.msra.mxu0 %v1154
        %1179 = vmatprep.subr.mxu0 0.0
        %1180 = vmatpush1.msra.mxu0 %v1155
        %1181 = vmatprep.subr.mxu0 0.0
        %1182 = vmatpush1.msra.mxu0 %v1156
        %1183 = vmatprep.subr.mxu0 0.0
        %1184 = vmatpush1.msra.mxu0 %v1157
        %1185 = vmatprep.subr.mxu0 0.0
        %1186 = vmatpush1.msra.mxu0 %v1158
        %1187 = vmatprep.subr.mxu0 0.0
        %1188 = vmatpush1.msra.mxu0 %v1159
        %1189 = vmatprep.subr.mxu0 0.0
        %1190 = vmatpush1.msra.mxu0 %v1160
        %1191 = vmatprep.subr.mxu0 0.0
        %1192 = vmatpush1.msra.mxu0 %v1161
        %1193 = vmatprep.subr.mxu0 0.0
        %1194 = vmatpush1.msra.mxu0 %v1162
        %1195 = vmatprep.subr.mxu0 0.0
        %1196 = vmatpush1.msra.mxu0 0.0
        %1197 = vmatprep.subr.mxu0 0.0
        %1198 = vmatpush1.msra.mxu0 0.0
        %1199 = vmatprep.subr.mxu0 0.0
        %1200 = vmatpush1.msra.mxu0 0.0
        %1201 = vmatprep.subr.mxu0 0.0
        %1202 = vmatpush1.msra.mxu0 0.0
        %1203 = vmatprep.subr.mxu0 0.0
        %1204 = vmatpush1.msra.mxu0 0.0
        %1205 = vmatprep.subr.mxu0 0.0
        %1206 = vmatpush1.msra.mxu0 0.0
        %1207 = vmatprep.subr.mxu0 0.0
        %1208 = vmatpush1.msra.mxu0 0.0
        %1209 = vmatprep.subr.mxu0 0.0
        %1210 = vmatpush1.msra.mxu0 0.0
        %1211 = vmatprep.subr.mxu0 0.0
        %1212 = vmatpush1.msra.mxu0 0.0
        %1213 = vmatprep.subr.mxu0 0.0
        %1214 = vmatpush1.msra.mxu0 0.0
        %1215 = vmatprep.subr.mxu0 0.0
        %1216 = vmatpush1.msra.mxu0 0.0
        %1217 = vmatprep.subr.mxu0 0.0
        %1218 = vmatpush1.msra.mxu0 0.0
        %1219 = vmatprep.subr.mxu0 0.0
        %1220 = vmatpush1.msra.mxu0 0.0
        %1221 = vmatprep.subr.mxu0 0.0
        %1222 = vmatpush1.msra.mxu0 0.0
        %1223 = vmatprep.subr.mxu0 0.0
        %1224 = vmatpush1.msra.mxu0 0.0
        %1225 = vmatprep.subr.mxu0 0.0
        %1226 = vmatpush1.msra.mxu0 0.0
        %1227 = vmatprep.mubr.f32.mxu0 0.0
        %1228 = vmatmul.mubr.f32.gmra.mrb[0].mxu0 %v1077
        %v1229 = vpop.f32.mrb[0].mxu0
        %v1230 = vadd.f32 0.0, %v1229
        %v1231 = vpop.f32.mrb[0].mxu0
        %1232 = vdwg.mxu0
        %v1233 = vmul.f32 %v1230, 0.001953125
        %1234 = vmatprep.subr.mxu0 0.0
        %1235 = vmatpush1.msra.mxu0 %v1147
        %1236 = vmatprep.subr.mxu0 0.0
        %1237 = vmatpush1.msra.mxu0 %v1148
        %1238 = vmatprep.subr.mxu0 0.0
        %1239 = vmatpush1.msra.mxu0 %v1149
        %1240 = vmatprep.subr.mxu0 0.0
        %1241 = vmatpush1.msra.mxu0 %v1150
        %1242 = vmatprep.subr.mxu0 0.0
        %1243 = vmatpush1.msra.mxu0 %v1151
        %1244 = vmatprep.subr.mxu0 0.0
        %1245 = vmatpush1.msra.mxu0 %v1152
        %1246 = vmatprep.subr.mxu0 0.0
        %1247 = vmatpush1.msra.mxu0 %v1153
        %1248 = vmatprep.subr.mxu0 0.0
        %1249 = vmatpush1.msra.mxu0 %v1154
        %1250 = vmatprep.subr.mxu0 0.0
        %1251 = vmatpush1.msra.mxu0 %v1155
        %1252 = vmatprep.subr.mxu0 0.0
        %1253 = vmatpush1.msra.mxu0 %v1156
        %1254 = vmatprep.subr.mxu0 0.0
        %1255 = vmatpush1.msra.mxu0 %v1157
        %1256 = vmatprep.subr.mxu0 0.0
        %1257 = vmatpush1.msra.mxu0 %v1158
        %1258 = vmatprep.subr.mxu0 0.0
        %1259 = vmatpush1.msra.mxu0 %v1159
        %1260 = vmatprep.subr.mxu0 0.0
        %1261 = vmatpush1.msra.mxu0 %v1160
        %1262 = vmatprep.subr.mxu0 0.0
        %1263 = vmatpush1.msra.mxu0 %v1161
        %1264 = vmatprep.subr.mxu0 0.0
        %1265 = vmatpush1.msra.mxu0 %v1162
        %1266 = vmatprep.subr.mxu0 0.0
        %1267 = vmatpush1.msra.mxu0 0.0
        %1268 = vmatprep.subr.mxu0 0.0
        %1269 = vmatpush1.msra.mxu0 0.0
        %1270 = vmatprep.subr.mxu0 0.0
        %1271 = vmatpush1.msra.mxu0 0.0
        %1272 = vmatprep.subr.mxu0 0.0
        %1273 = vmatpush1.msra.mxu0 0.0
        %1274 = vmatprep.subr.mxu0 0.0
        %1275 = vmatpush1.msra.mxu0 0.0
        %1276 = vmatprep.subr.mxu0 0.0
        %1277 = vmatpush1.msra.mxu0 0.0
        %1278 = vmatprep.subr.mxu0 0.0
        %1279 = vmatpush1.msra.mxu0 0.0
        %1280 = vmatprep.subr.mxu0 0.0
        %1281 = vmatpush1.msra.mxu0 0.0
        %1282 = vmatprep.subr.mxu0 0.0
        %1283 = vmatpush1.msra.mxu0 0.0
        %1284 = vmatprep.subr.mxu0 0.0
        %1285 = vmatpush1.msra.mxu0 0.0
        %1286 = vmatprep.subr.mxu0 0.0
        %1287 = vmatpush1.msra.mxu0 0.0
        %1288 = vmatprep.subr.mxu0 0.0
        %1289 = vmatpush1.msra.mxu0 0.0
        %1290 = vmatprep.subr.mxu0 0.0
        %1291 = vmatpush1.msra.mxu0 0.0
        %1292 = vmatprep.subr.mxu0 0.0
        %1293 = vmatpush1.msra.mxu0 0.0
        %1294 = vmatprep.subr.mxu0 0.0
        %1295 = vmatpush1.msra.mxu0 0.0
        %1296 = vmatprep.subr.mxu0 0.0
        %1297 = vmatpush1.msra.mxu0 0.0
        %1298 = vmatprep.mubr.f32.mxu0 0.0
        %1299 = vmatmul.mubr.f32.gmra.mrb[0].mxu0 %v1146
        %v1300 = vpop.f32.mrb[0].mxu0
        %v1301 = vadd.f32 0.0, %v1300
        %v1302 = vpop.f32.mrb[0].mxu0
        %1303 = vdwg.mxu0
        %v1304 = vmul.f32 %v1301, 0.001953125
        %v1305 = vmul.f32 %v1233, %v1233
        %v1306 = vsub.f32 %v1304, %v1305
        %v1307 = vlaneseq
        %v1308 = vshrl.u32 %v1307, 7
        %v1309 = vsub.s32 0, %v1308
        %v1310 = vrot.slane %v1233, %v1309
        %v1311 = vsub.f32 %v915, %v1310
        %v1312 = vsub.f32 %v918, %v1310
        %v1313 = vsub.f32 %v923, %v1310
        %v1314 = vsub.f32 %v926, %v1310
        %v1315 = vsub.f32 %v931, %v1310
        %v1316 = vsub.f32 %v934, %v1310
        %v1317 = vsub.f32 %v939, %v1310
        %v1318 = vsub.f32 %v942, %v1310
        %v1319 = vsub.f32 %v947, %v1310
        %v1320 = vsub.f32 %v950, %v1310
        %v1321 = vsub.f32 %v955, %v1310
        %v1322 = vsub.f32 %v958, %v1310
        %v1323 = vsub.f32 %v963, %v1310
        %v1324 = vsub.f32 %v966, %v1310
        %v1325 = vsub.f32 %v971, %v1310
        %v1326 = vsub.f32 %v974, %v1310
        %v1327 = vsub.f32 %v979, %v1310
        %v1328 = vsub.f32 %v982, %v1310
        %v1329 = vsub.f32 %v987, %v1310
        %v1330 = vsub.f32 %v990, %v1310
        %v1331 = vsub.f32 %v995, %v1310
        %v1332 = vsub.f32 %v998, %v1310
        %v1333 = vsub.f32 %v1003, %v1310
        %v1334 = vsub.f32 %v1006, %v1310
        %v1335 = vsub.f32 %v1011, %v1310
        %v1336 = vsub.f32 %v1014, %v1310
        %v1337 = vsub.f32 %v1019, %v1310
        %v1338 = vsub.f32 %v1022, %v1310
        %v1339 = vsub.f32 %v1027, %v1310
        %v1340 = vsub.f32 %v1030, %v1310
        %v1341 = vsub.f32 %v1035, %v1310
        %v1342 = vsub.f32 %v1038, %v1310
        %v1343 = vadd.f32 %v1306, 1e-05
        %v1344 = vrsqrt.pop %v1343
        %v1345 = vlaneseq
        %v1346 = vshrl.u32 %v1345, 7
        %v1347 = vsub.s32 0, %v1346
        %v1348 = vrot.slane %v1344, %v1347
        %v1349 = vmul.f32 %v1311, %v1348
        %v1350 = vmul.f32 %v1312, %v1348
        %v1351 = vmul.f32 %v1313, %v1348
        %v1352 = vmul.f32 %v1314, %v1348
        %v1353 = vmul.f32 %v1315, %v1348
        %v1354 = vmul.f32 %v1316, %v1348
        %v1355 = vmul.f32 %v1317, %v1348
        %v1356 = vmul.f32 %v1318, %v1348
        %v1357 = vmul.f32 %v1319, %v1348
        %v1358 = vmul.f32 %v1320, %v1348
        %v1359 = vmul.f32 %v1321, %v1348
        %v1360 = vmul.f32 %v1322, %v1348
        %v1361 = vmul.f32 %v1323, %v1348
        %v1362 = vmul.f32 %v1324, %v1348
        %v1363 = vmul.f32 %v1325, %v1348
        %v1364 = vmul.f32 %v1326, %v1348
        %v1365 = vmul.f32 %v1327, %v1348
        %v1366 = vmul.f32 %v1328, %v1348
        %v1367 = vmul.f32 %v1329, %v1348
        %v1368 = vmul.f32 %v1330, %v1348
        %v1369 = vmul.f32 %v1331, %v1348
        %v1370 = vmul.f32 %v1332, %v1348
        %v1371 = vmul.f32 %v1333, %v1348
        %v1372 = vmul.f32 %v1334, %v1348
        %v1373 = vmul.f32 %v1335, %v1348
        %v1374 = vmul.f32 %v1336, %v1348
        %v1375 = vmul.f32 %v1337, %v1348
        %v1376 = vmul.f32 %v1338, %v1348
        %v1377 = vmul.f32 %v1339, %v1348
        %v1378 = vmul.f32 %v1340, %v1348
        %v1379 = vmul.f32 %v1341, %v1348
        %v1380 = vmul.f32 %v1342, %v1348
        %v1381 = vld [vmem:[#allocation10] sm:$0x1]
        %v1383 = vlaneseq
        %v1384 = vshrl.u32 %v1383, 7
        %v1385 = vsub.s32 0, %v1384
        %v1386 = vrot.slane %v1381, %v1385
        %v1388 = vmul.f32 %v1349, %v1386
        %v1389 = vmul.f32 %v1350, %v1386
        %v1390 = vmul.f32 %v1351, %v1386
        %v1391 = vmul.f32 %v1352, %v1386
        %v1392 = vmul.f32 %v1353, %v1386
        %v1393 = vmul.f32 %v1354, %v1386
        %v1394 = vmul.f32 %v1355, %v1386
        %v1395 = vmul.f32 %v1356, %v1386
        %v1396 = vmul.f32 %v1357, %v1386
        %v1397 = vmul.f32 %v1358, %v1386
        %v1398 = vmul.f32 %v1359, %v1386
        %v1399 = vmul.f32 %v1360, %v1386
        %v1400 = vmul.f32 %v1361, %v1386
        %v1401 = vmul.f32 %v1362, %v1386
        %v1402 = vmul.f32 %v1363, %v1386
        %v1403 = vmul.f32 %v1364, %v1386
        %v1404 = vmul.f32 %v1365, %v1386
        %v1405 = vmul.f32 %v1366, %v1386
        %v1406 = vmul.f32 %v1367, %v1386
        %v1407 = vmul.f32 %v1368, %v1386
        %v1408 = vmul.f32 %v1369, %v1386
        %v1409 = vmul.f32 %v1370, %v1386
        %v1410 = vmul.f32 %v1371, %v1386
        %v1411 = vmul.f32 %v1372, %v1386
        %v1412 = vmul.f32 %v1373, %v1386
        %v1413 = vmul.f32 %v1374, %v1386
        %v1414 = vmul.f32 %v1375, %v1386
        %v1415 = vmul.f32 %v1376, %v1386
        %v1416 = vmul.f32 %v1377, %v1386
        %v1417 = vmul.f32 %v1378, %v1386
        %v1418 = vmul.f32 %v1379, %v1386
        %v1419 = vmul.f32 %v1380, %v1386
        %v1420 = vld [vmem:[#allocation12] sm:$0x1]
        %v1422 = vlaneseq
        %v1423 = vshrl.u32 %v1422, 7
        %v1424 = vsub.s32 0, %v1423
        %v1425 = vrot.slane %v1420, %v1424
        %v1427 = vadd.f32 %v1388, %v1425
        %v1428 = vadd.f32 %v1389, %v1425
        %v1429 = vadd.f32 %v1390, %v1425
        %v1430 = vadd.f32 %v1391, %v1425
        %v1431 = vadd.f32 %v1392, %v1425
        %v1432 = vadd.f32 %v1393, %v1425
        %v1433 = vadd.f32 %v1394, %v1425
        %v1434 = vadd.f32 %v1395, %v1425
        %v1435 = vadd.f32 %v1396, %v1425
        %v1436 = vadd.f32 %v1397, %v1425
        %v1437 = vadd.f32 %v1398, %v1425
        %v1438 = vadd.f32 %v1399, %v1425
        %v1439 = vadd.f32 %v1400, %v1425
        %v1440 = vadd.f32 %v1401, %v1425
        %v1441 = vadd.f32 %v1402, %v1425
        %v1442 = vadd.f32 %v1403, %v1425
        %v1443 = vadd.f32 %v1404, %v1425
        %v1444 = vadd.f32 %v1405, %v1425
        %v1445 = vadd.f32 %v1406, %v1425
        %v1446 = vadd.f32 %v1407, %v1425
        %v1447 = vadd.f32 %v1408, %v1425
        %v1448 = vadd.f32 %v1409, %v1425
        %v1449 = vadd.f32 %v1410, %v1425
        %v1450 = vadd.f32 %v1411, %v1425
        %v1451 = vadd.f32 %v1412, %v1425
        %v1452 = vadd.f32 %v1413, %v1425
        %v1453 = vadd.f32 %v1414, %v1425
        %v1454 = vadd.f32 %v1415, %v1425
        %v1455 = vadd.f32 %v1416, %v1425
        %v1456 = vadd.f32 %v1417, %v1425
        %v1457 = vadd.f32 %v1418, %v1425
        %v1458 = vadd.f32 %v1419, %v1425
        %v1459 = vmax.f32 %v1427, 0.0
        %v1460 = vmax.f32 %v1428, 0.0
        %v1461 = vmax.f32 %v1429, 0.0
        %v1462 = vmax.f32 %v1430, 0.0
        %v1463 = vmax.f32 %v1431, 0.0
        %v1464 = vmax.f32 %v1432, 0.0
        %v1465 = vmax.f32 %v1433, 0.0
        %v1466 = vmax.f32 %v1434, 0.0
        %v1467 = vmax.f32 %v1435, 0.0
        %v1468 = vmax.f32 %v1436, 0.0
        %v1469 = vmax.f32 %v1437, 0.0
        %v1470 = vmax.f32 %v1438, 0.0
        %v1471 = vmax.f32 %v1439, 0.0
        %v1472 = vmax.f32 %v1440, 0.0
        %v1473 = vmax.f32 %v1441, 0.0
        %v1474 = vmax.f32 %v1442, 0.0
        %v1475 = vmax.f32 %v1443, 0.0
        %v1476 = vmax.f32 %v1444, 0.0
        %v1477 = vmax.f32 %v1445, 0.0
        %v1478 = vmax.f32 %v1446, 0.0
        %v1479 = vmax.f32 %v1447, 0.0
        %v1480 = vmax.f32 %v1448, 0.0
        %v1481 = vmax.f32 %v1449, 0.0
        %v1482 = vmax.f32 %v1450, 0.0
        %v1483 = vmax.f32 %v1451, 0.0
        %v1484 = vmax.f32 %v1452, 0.0
        %v1485 = vmax.f32 %v1453, 0.0
        %v1486 = vmax.f32 %v1454, 0.0
        %v1487 = vmax.f32 %v1455, 0.0
        %v1488 = vmax.f32 %v1456, 0.0
        %v1489 = vmax.f32 %v1457, 0.0
        %v1490 = vmax.f32 %v1458, 0.0
        %1491 = vst [vmem:[#allocation2] sm:$0xff] 0.0
        %1492 = vst [vmem:[#allocation2 + $0x8] sm:$0xff] 0.0
        %1493 = vst [vmem:[#allocation2 + $0x10] sm:$0xff] 0.0
        %1494 = vst [vmem:[#allocation2 + $0x18] sm:$0xff] 0.0
        %1495 = vst [vmem:[#allocation2 + $0x20] sm:$0xff] 0.0
        %1496 = vst [vmem:[#allocation2 + $0x28] sm:$0xff] 0.0
        %1497 = vst [vmem:[#allocation2 + $0x30] sm:$0xff] 0.0
        %1498 = vst [vmem:[#allocation2 + $0x38] sm:$0xff] 0.0
        %1499 = vst [vmem:[#allocation2 + $0x40] sm:$0xff] 0.0
        %1500 = vst [vmem:[#allocation2 + $0x48] sm:$0xff] 0.0
        %1501 = vst [vmem:[#allocation2 + $0x50] sm:$0xff] 0.0
        %1502 = vst [vmem:[#allocation2 + $0x58] sm:$0xff] 0.0
        %1503 = vst [vmem:[#allocation2 + $0x60] sm:$0xff] 0.0
        %1504 = vst [vmem:[#allocation2 + $0x68] sm:$0xff] 0.0
        %1505 = vst [vmem:[#allocation2 + $0x70] sm:$0xff] 0.0
        %1506 = vst [vmem:[#allocation2 + $0x78] sm:$0xff] 0.0
        %1507 = vst [vmem:[#allocation2 + $0x80] sm:$0xff] 0.0
        %1508 = vst [vmem:[#allocation2 + $0x88] sm:$0xff] 0.0
        %1509 = vst [vmem:[#allocation2 + $0x90] sm:$0xff] 0.0
        %1510 = vst [vmem:[#allocation2 + $0x98] sm:$0xff] 0.0
        %1511 = vst [vmem:[#allocation2 + $0xa0] sm:$0xff] 0.0
        %1512 = vst [vmem:[#allocation2 + $0xa8] sm:$0xff] 0.0
        %1513 = vst [vmem:[#allocation2 + $0xb0] sm:$0xff] 0.0
        %1514 = vst [vmem:[#allocation2 + $0xb8] sm:$0xff] 0.0
        %1515 = vst [vmem:[#allocation2 + $0xc0] sm:$0xff] 0.0
        %1516 = vst [vmem:[#allocation2 + $0xc8] sm:$0xff] 0.0
        %1517 = vst [vmem:[#allocation2 + $0xd0] sm:$0xff] 0.0
        %1518 = vst [vmem:[#allocation2 + $0xd8] sm:$0xff] 0.0
        %1519 = vst [vmem:[#allocation2 + $0xe0] sm:$0xff] 0.0
        %1520 = vst [vmem:[#allocation2 + $0xe8] sm:$0xff] 0.0
        %1521 = vst [vmem:[#allocation2 + $0xf0] sm:$0xff] 0.0
        %1522 = vst [vmem:[#allocation2 + $0xf8] sm:$0xff] 0.0
        %1523 = vst [vmem:[#allocation2 + $0x100] sm:$0xff] 0.0
        %1524 = vst [vmem:[#allocation2 + $0x108] sm:$0xff] 0.0
        %1525 = vst [vmem:[#allocation2 + $0x110] sm:$0xff] 0.0
        %1526 = vst [vmem:[#allocation2 + $0x118] sm:$0xff] 0.0
        %1527 = vst [vmem:[#allocation2 + $0x120] sm:$0xff] 0.0
        %1528 = vst [vmem:[#allocation2 + $0x128] sm:$0xff] 0.0
        %1529 = vst [vmem:[#allocation2 + $0x130] sm:$0xff] 0.0
        %1530 = vst [vmem:[#allocation2 + $0x138] sm:$0xff] 0.0
        %1531 = vst [vmem:[#allocation2 + $0x140] sm:$0xff] 0.0
        %1532 = vst [vmem:[#allocation2 + $0x148] sm:$0xff] 0.0
        %1533 = vst [vmem:[#allocation2 + $0x13] sm:$0xff] %v1459
        %1534 = vst [vmem:[#allocation2 + $0x1b] sm:$0xff] %v1460
        %1535 = vst [vmem:[#allocation2 + $0x25] sm:$0xff] %v1461
        %1536 = vst [vmem:[#allocation2 + $0x2d] sm:$0xff] %v1462
        %1537 = vst [vmem:[#allocation2 + $0x37] sm:$0xff] %v1463
        %1538 = vst [vmem:[#allocation2 + $0x3f] sm:$0xff] %v1464
        %1539 = vst [vmem:[#allocation2 + $0x49] sm:$0xff] %v1465
        %1540 = vst [vmem:[#allocation2 + $0x51] sm:$0xff] %v1466
        %1541 = vst [vmem:[#allocation2 + $0x5b] sm:$0xff] %v1467
        %1542 = vst [vmem:[#allocation2 + $0x63] sm:$0xff] %v1468
        %1543 = vst [vmem:[#allocation2 + $0x6d] sm:$0xff] %v1469
        %1544 = vst [vmem:[#allocation2 + $0x75] sm:$0xff] %v1470
        %1545 = vst [vmem:[#allocation2 + $0x7f] sm:$0xff] %v1471
        %1546 = vst [vmem:[#allocation2 + $0x87] sm:$0xff] %v1472
        %1547 = vst [vmem:[#allocation2 + $0x91] sm:$0xff] %v1473
        %1548 = vst [vmem:[#allocation2 + $0x99] sm:$0xff] %v1474
        %1549 = vst [vmem:[#allocation2 + $0xa3] sm:$0xff] %v1475
        %1550 = vst [vmem:[#allocation2 + $0xab] sm:$0xff] %v1476
        %1551 = vst [vmem:[#allocation2 + $0xb5] sm:$0xff] %v1477
        %1552 = vst [vmem:[#allocation2 + $0xbd] sm:$0xff] %v1478
        %1553 = vst [vmem:[#allocation2 + $0xc7] sm:$0xff] %v1479
        %1554 = vst [vmem:[#allocation2 + $0xcf] sm:$0xff] %v1480
        %1555 = vst [vmem:[#allocation2 + $0xd9] sm:$0xff] %v1481
        %1556 = vst [vmem:[#allocation2 + $0xe1] sm:$0xff] %v1482
        %1557 = vst [vmem:[#allocation2 + $0xeb] sm:$0xff] %v1483
        %1558 = vst [vmem:[#allocation2 + $0xf3] sm:$0xff] %v1484
        %1559 = vst [vmem:[#allocation2 + $0xfd] sm:$0xff] %v1485
        %1560 = vst [vmem:[#allocation2 + $0x105] sm:$0xff] %v1486
        %1561 = vst [vmem:[#allocation2 + $0x10f] sm:$0xff] %v1487
        %1562 = vst [vmem:[#allocation2 + $0x117] sm:$0xff] %v1488
        %1563 = vst [vmem:[#allocation2 + $0x121] sm:$0xff] %v1489
        %1564 = vst [vmem:[#allocation2 + $0x129] sm:$0xff] %v1490
        %v1565 = vld [vmem:[#allocation2] sm:$0xff]
        %v1566 = vld [vmem:[#allocation2 + $0x8] sm:$0xff]
        %v1567 = vld [vmem:[#allocation2 + $0x10] sm:$0xff]
        %v1568 = vld [vmem:[#allocation2 + $0x18] sm:$0xff]
        %v1569 = vld [vmem:[#allocation2 + $0x20] sm:$0xff]
        %v1570 = vld [vmem:[#allocation2 + $0x28] sm:$0xff]
        %v1571 = vld [vmem:[#allocation2 + $0x30] sm:$0xff]
        %v1572 = vld [vmem:[#allocation2 + $0x38] sm:$0xff]
        %v1573 = vld [vmem:[#allocation2 + $0x40] sm:$0xff]
        %v1574 = vld [vmem:[#allocation2 + $0x48] sm:$0xff]
        %v1575 = vld [vmem:[#allocation2 + $0x50] sm:$0xff]
        %v1576 = vld [vmem:[#allocation2 + $0x58] sm:$0xff]
        %v1577 = vld [vmem:[#allocation2 + $0x60] sm:$0xff]
        %v1578 = vld [vmem:[#allocation2 + $0x68] sm:$0xff]
        %v1579 = vld [vmem:[#allocation2 + $0x70] sm:$0xff]
        %v1580 = vld [vmem:[#allocation2 + $0x78] sm:$0xff]
        %v1581 = vld [vmem:[#allocation2 + $0x80] sm:$0xff]
        %v1582 = vld [vmem:[#allocation2 + $0x88] sm:$0xff]
        %v1583 = vld [vmem:[#allocation2 + $0x90] sm:$0xff]
        %v1584 = vld [vmem:[#allocation2 + $0x98] sm:$0xff]
        %v1585 = vld [vmem:[#allocation2 + $0xa0] sm:$0xff]
        %v1586 = vld [vmem:[#allocation2 + $0xa8] sm:$0xff]
        %v1587 = vld [vmem:[#allocation2 + $0xb0] sm:$0xff]
        %v1588 = vld [vmem:[#allocation2 + $0xb8] sm:$0xff]
        %v1589 = vld [vmem:[#allocation2 + $0xc0] sm:$0xff]
        %v1590 = vld [vmem:[#allocation2 + $0xc8] sm:$0xff]
        %v1591 = vld [vmem:[#allocation2 + $0xd0] sm:$0xff]
        %v1592 = vld [vmem:[#allocation2 + $0xd8] sm:$0xff]
        %v1593 = vld [vmem:[#allocation2 + $0xe0] sm:$0xff]
        %v1594 = vld [vmem:[#allocation2 + $0xe8] sm:$0xff]
        %v1595 = vld [vmem:[#allocation2 + $0xf0] sm:$0xff]
        %v1596 = vld [vmem:[#allocation2 + $0xf8] sm:$0xff]
        %v1597 = vld [vmem:[#allocation2 + $0x100] sm:$0xff]
        %v1598 = vld [vmem:[#allocation2 + $0x108] sm:$0xff]
        %v1599 = vld [vmem:[#allocation2 + $0x110] sm:$0xff]
        %v1600 = vld [vmem:[#allocation2 + $0x118] sm:$0xff]
        %v1601 = vld [vmem:[#allocation2 + $0x1] sm:$0xff]
        %v1602 = vld [vmem:[#allocation2 + $0x9] sm:$0xff]
        %v1603 = vld [vmem:[#allocation2 + $0x11] sm:$0xff]
        %v1604 = vld [vmem:[#allocation2 + $0x19] sm:$0xff]
        %v1605 = vld [vmem:[#allocation2 + $0x21] sm:$0xff]
        %v1606 = vld [vmem:[#allocation2 + $0x29] sm:$0xff]
        %v1607 = vld [vmem:[#allocation2 + $0x31] sm:$0xff]
        %v1608 = vld [vmem:[#allocation2 + $0x39] sm:$0xff]
        %v1609 = vld [vmem:[#allocation2 + $0x41] sm:$0xff]
        %v1610 = vld [vmem:[#allocation2 + $0x49] sm:$0xff]
        %v1611 = vld [vmem:[#allocation2 + $0x51] sm:$0xff]
        %v1612 = vld [vmem:[#allocation2 + $0x59] sm:$0xff]
        %v1613 = vld [vmem:[#allocation2 + $0x61] sm:$0xff]
        %v1614 = vld [vmem:[#allocation2 + $0x69] sm:$0xff]
        %v1615 = vld [vmem:[#allocation2 + $0x71] sm:$0xff]
        %v1616 = vld [vmem:[#allocation2 + $0x79] sm:$0xff]
        %v1617 = vld [vmem:[#allocation2 + $0x81] sm:$0xff]
        %v1618 = vld [vmem:[#allocation2 + $0x89] sm:$0xff]
        %v1619 = vld [vmem:[#allocation2 + $0x91] sm:$0xff]
        %v1620 = vld [vmem:[#allocation2 + $0x99] sm:$0xff]
        %v1621 = vld [vmem:[#allocation2 + $0xa1] sm:$0xff]
        %v1622 = vld [vmem:[#allocation2 + $0xa9] sm:$0xff]
        %v1623 = vld [vmem:[#allocation2 + $0xb1] sm:$0xff]
        %v1624 = vld [vmem:[#allocation2 + $0xb9] sm:$0xff]
        %v1625 = vld [vmem:[#allocation2 + $0xc1] sm:$0xff]
        %v1626 = vld [vmem:[#allocation2 + $0xc9] sm:$0xff]
        %v1627 = vld [vmem:[#allocation2 + $0xd1] sm:$0xff]
        %v1628 = vld [vmem:[#allocation2 + $0xd9] sm:$0xff]
        %v1629 = vld [vmem:[#allocation2 + $0xe1] sm:$0xff]
        %v1630 = vld [vmem:[#allocation2 + $0xe9] sm:$0xff]
        %v1631 = vld [vmem:[#allocation2 + $0xf1] sm:$0xff]
        %v1632 = vld [vmem:[#allocation2 + $0xf9] sm:$0xff]
        %v1633 = vld [vmem:[#allocation2 + $0x101] sm:$0xff]
        %v1634 = vld [vmem:[#allocation2 + $0x109] sm:$0xff]
        %v1635 = vld [vmem:[#allocation2 + $0x111] sm:$0xff]
        %v1636 = vld [vmem:[#allocation2 + $0x119] sm:$0xff]
        %v1637 = vld [vmem:[#allocation2 + $0x2] sm:$0xff]
        %v1638 = vld [vmem:[#allocation2 + $0xa] sm:$0xff]
        %v1639 = vld [vmem:[#allocation2 + $0x12] sm:$0xff]
        %v1640 = vld [vmem:[#allocation2 + $0x1a] sm:$0xff]
        %v1641 = vld [vmem:[#allocation2 + $0x22] sm:$0xff]
        %v1642 = vld [vmem:[#allocation2 + $0x2a] sm:$0xff]
        %v1643 = vld [vmem:[#allocation2 + $0x32] sm:$0xff]
        %v1644 = vld [vmem:[#allocation2 + $0x3a] sm:$0xff]
        %v1645 = vld [vmem:[#allocation2 + $0x42] sm:$0xff]
        %v1646 = vld [vmem:[#allocation2 + $0x4a] sm:$0xff]
        %v1647 = vld [vmem:[#allocation2 + $0x52] sm:$0xff]
        %v1648 = vld [vmem:[#allocation2 + $0x5a] sm:$0xff]
        %v1649 = vld [vmem:[#allocation2 + $0x62] sm:$0xff]
        %v1650 = vld [vmem:[#allocation2 + $0x6a] sm:$0xff]
        %v1651 = vld [vmem:[#allocation2 + $0x72] sm:$0xff]
        %v1652 = vld [vmem:[#allocation2 + $0x7a] sm:$0xff]
        %v1653 = vld [vmem:[#allocation2 + $0x82] sm:$0xff]
        %v1654 = vld [vmem:[#allocation2 + $0x8a] sm:$0xff]
        %v1655 = vld [vmem:[#allocation2 + $0x92] sm:$0xff]
        %v1656 = vld [vmem:[#allocation2 + $0x9a] sm:$0xff]
        %v1657 = vld [vmem:[#allocation2 + $0xa2] sm:$0xff]
        %v1658 = vld [vmem:[#allocation2 + $0xaa] sm:$0xff]
        %v1659 = vld [vmem:[#allocation2 + $0xb2] sm:$0xff]
        %v1660 = vld [vmem:[#allocation2 + $0xba] sm:$0xff]
        %v1661 = vld [vmem:[#allocation2 + $0xc2] sm:$0xff]
        %v1662 = vld [vmem:[#allocation2 + $0xca] sm:$0xff]
        %v1663 = vld [vmem:[#allocation2 + $0xd2] sm:$0xff]
        %v1664 = vld [vmem:[#allocation2 + $0xda] sm:$0xff]
        %v1665 = vld [vmem:[#allocation2 + $0xe2] sm:$0xff]
        %v1666 = vld [vmem:[#allocation2 + $0xea] sm:$0xff]
        %v1667 = vld [vmem:[#allocation2 + $0xf2] sm:$0xff]
        %v1668 = vld [vmem:[#allocation2 + $0xfa] sm:$0xff]
        %v1669 = vld [vmem:[#allocation2 + $0x102] sm:$0xff]
        %v1670 = vld [vmem:[#allocation2 + $0x10a] sm:$0xff]
        %v1671 = vld [vmem:[#allocation2 + $0x112] sm:$0xff]
        %v1672 = vld [vmem:[#allocation2 + $0x11a] sm:$0xff]
        %v1673 = vpack.c.bf16 %v1566, %v1565
        %v1674 = vpack.c.bf16 %v1602, %v1601
        %v1675 = vpack.c.bf16 %v1638, %v1637
        %v1676 = vpack.c.bf16 %v1568, %v1567
        %v1677 = vpack.c.bf16 %v1604, %v1603
        %v1678 = vpack.c.bf16 %v1640, %v1639
        %v1679 = vpack.c.bf16 %v1570, %v1569
        %v1680 = vpack.c.bf16 %v1606, %v1605
        %v1681 = vpack.c.bf16 %v1642, %v1641
        %v1682 = vpack.c.bf16 %v1572, %v1571
        %v1683 = vpack.c.bf16 %v1608, %v1607
        %v1684 = vpack.c.bf16 %v1644, %v1643
        %v1685 = vpack.c.bf16 %v1574, %v1573
        %v1686 = vpack.c.bf16 %v1610, %v1609
        %v1687 = vpack.c.bf16 %v1646, %v1645
        %v1688 = vpack.c.bf16 %v1576, %v1575
        %v1689 = vpack.c.bf16 %v1612, %v1611
        %v1690 = vpack.c.bf16 %v1648, %v1647
        %v1691 = vpack.c.bf16 %v1578, %v1577
        %v1692 = vpack.c.bf16 %v1614, %v1613
        %v1693 = vpack.c.bf16 %v1650, %v1649
        %v1694 = vpack.c.bf16 %v1580, %v1579
        %v1695 = vpack.c.bf16 %v1616, %v1615
        %v1696 = vpack.c.bf16 %v1652, %v1651
        %v1697 = vpack.c.bf16 %v1582, %v1581
        %v1698 = vpack.c.bf16 %v1618, %v1617
        %v1699 = vpack.c.bf16 %v1654, %v1653
        %v1700 = vpack.c.bf16 %v1584, %v1583
        %v1701 = vpack.c.bf16 %v1620, %v1619
        %v1702 = vpack.c.bf16 %v1656, %v1655
        %v1703 = vpack.c.bf16 %v1586, %v1585
        %v1704 = vpack.c.bf16 %v1622, %v1621
        %v1705 = vpack.c.bf16 %v1658, %v1657
        %v1706 = vpack.c.bf16 %v1588, %v1587
        %v1707 = vpack.c.bf16 %v1624, %v1623
        %v1708 = vpack.c.bf16 %v1660, %v1659
        %v1709 = vpack.c.bf16 %v1590, %v1589
        %v1710 = vpack.c.bf16 %v1626, %v1625
        %v1711 = vpack.c.bf16 %v1662, %v1661
        %v1712 = vpack.c.bf16 %v1592, %v1591
        %v1713 = vpack.c.bf16 %v1628, %v1627
        %v1714 = vpack.c.bf16 %v1664, %v1663
        %v1715 = vpack.c.bf16 %v1594, %v1593
        %v1716 = vpack.c.bf16 %v1630, %v1629
        %v1717 = vpack.c.bf16 %v1666, %v1665
        %v1718 = vpack.c.bf16 %v1596, %v1595
        %v1719 = vpack.c.bf16 %v1632, %v1631
        %v1720 = vpack.c.bf16 %v1668, %v1667
        %v1721 = vpack.c.bf16 %v1598, %v1597
        %v1722 = vpack.c.bf16 %v1634, %v1633
        %v1723 = vpack.c.bf16 %v1670, %v1669
        %v1724 = vpack.c.bf16 %v1600, %v1599
        %v1725 = vpack.c.bf16 %v1636, %v1635
        %v1726 = vpack.c.bf16 %v1672, %v1671
        %v1727 = vld [vmem:[#allocation13] sm:$0xf]
        %v1728 = vld [vmem:[#allocation13 + $0x4] sm:$0xf]
        %v1729 = vld [vmem:[#allocation13 + $0x8] sm:$0xf]
        %v1730 = vld [vmem:[#allocation13 + $0xc] sm:$0xf]
        %v1731 = vld [vmem:[#allocation13 + $0x10] sm:$0xf]
        %v1732 = vld [vmem:[#allocation13 + $0x14] sm:$0xf]
        %v1733 = vld [vmem:[#allocation13 + $0x18] sm:$0xf]
        %v1734 = vld [vmem:[#allocation13 + $0x1c] sm:$0xf]
        %v1735 = vld [vmem:[#allocation13 + $0x20] sm:$0xf]
        %v1736 = vld [vmem:[#allocation13 + $0x24] sm:$0xf]
        %v1737 = vld [vmem:[#allocation13 + $0x28] sm:$0xf]
        %v1738 = vld [vmem:[#allocation13 + $0x2c] sm:$0xf]
        %v1739 = vld [vmem:[#allocation13 + $0x30] sm:$0xf]
        %v1740 = vld [vmem:[#allocation13 + $0x34] sm:$0xf]
        %v1741 = vld [vmem:[#allocation13 + $0x38] sm:$0xf]
        %v1742 = vld [vmem:[#allocation13 + $0x3c] sm:$0xf]
        %v1743 = vld [vmem:[#allocation13 + $0x40] sm:$0xf]
        %v1744 = vld [vmem:[#allocation13 + $0x44] sm:$0xf]
        %v1745 = vld [vmem:[#allocation13 + $0x48] sm:$0xf]
        %v1746 = vld [vmem:[#allocation13 + $0x4c] sm:$0xf]
        %v1747 = vld [vmem:[#allocation13 + $0x50] sm:$0xf]
        %v1748 = vld [vmem:[#allocation13 + $0x54] sm:$0xf]
        %v1749 = vld [vmem:[#allocation13 + $0x58] sm:$0xf]
        %v1750 = vld [vmem:[#allocation13 + $0x5c] sm:$0xf]
        %v1751 = vld [vmem:[#allocation13 + $0x60] sm:$0xf]
        %v1752 = vld [vmem:[#allocation13 + $0x64] sm:$0xf]
        %v1753 = vld [vmem:[#allocation13 + $0x68] sm:$0xf]
        %v1754 = vld [vmem:[#allocation13 + $0x6c] sm:$0xf]
        %v1755 = vld [vmem:[#allocation13 + $0x70] sm:$0xf]
        %v1756 = vld [vmem:[#allocation13 + $0x74] sm:$0xf]
        %v1757 = vld [vmem:[#allocation13 + $0x78] sm:$0xf]
        %v1758 = vld [vmem:[#allocation13 + $0x7c] sm:$0xf]
        %v1759 = vld [vmem:[#allocation13 + $0x80] sm:$0xf]
        %v1760 = vld [vmem:[#allocation13 + $0x84] sm:$0xf]
        %v1761 = vld [vmem:[#allocation13 + $0x88] sm:$0xf]
        %v1762 = vld [vmem:[#allocation13 + $0x8c] sm:$0xf]
        %v1763 = vld [vmem:[#allocation13 + $0x90] sm:$0xf]
        %v1764 = vld [vmem:[#allocation13 + $0x94] sm:$0xf]
        %v1765 = vld [vmem:[#allocation13 + $0x98] sm:$0xf]
        %v1766 = vld [vmem:[#allocation13 + $0x9c] sm:$0xf]
        %v1767 = vld [vmem:[#allocation13 + $0xa0] sm:$0xf]
        %v1768 = vld [vmem:[#allocation13 + $0xa4] sm:$0xf]
        %v1769 = vld [vmem:[#allocation13 + $0xa8] sm:$0xf]
        %v1770 = vld [vmem:[#allocation13 + $0xac] sm:$0xf]
        %v1771 = vld [vmem:[#allocation13 + $0xb0] sm:$0xf]
        %v1772 = vld [vmem:[#allocation13 + $0xb4] sm:$0xf]
        %v1773 = vld [vmem:[#allocation13 + $0xb8] sm:$0xf]
        %v1774 = vld [vmem:[#allocation13 + $0xbc] sm:$0xf]
        %v1775 = vld [vmem:[#allocation2 + $0x122] sm:$0xff]
        %v1776 = vld [vmem:[#allocation2 + $0x12a] sm:$0xff]
        %v1777 = vld [vmem:[#allocation2 + $0x13] sm:$0xff]
        %v1778 = vld [vmem:[#allocation2 + $0x1b] sm:$0xff]
        %v1779 = vld [vmem:[#allocation2 + $0x23] sm:$0xff]
        %v1780 = vld [vmem:[#allocation2 + $0x2b] sm:$0xff]
        %v1781 = vld [vmem:[#allocation2 + $0x33] sm:$0xff]
        %v1782 = vld [vmem:[#allocation2 + $0x3b] sm:$0xff]
        %v1783 = vld [vmem:[#allocation2 + $0x43] sm:$0xff]
        %v1784 = vld [vmem:[#allocation2 + $0x4b] sm:$0xff]
        %v1785 = vld [vmem:[#allocation2 + $0x53] sm:$0xff]
        %v1786 = vld [vmem:[#allocation2 + $0x5b] sm:$0xff]
        %v1787 = vld [vmem:[#allocation2 + $0x63] sm:$0xff]
        %v1788 = vld [vmem:[#allocation2 + $0x6b] sm:$0xff]
        %v1789 = vld [vmem:[#allocation2 + $0x73] sm:$0xff]
        %v1790 = vld [vmem:[#allocation2 + $0x7b] sm:$0xff]
        %v1791 = vld [vmem:[#allocation2 + $0x83] sm:$0xff]
        %v1792 = vld [vmem:[#allocation2 + $0x8b] sm:$0xff]
        %v1793 = vld [vmem:[#allocation2 + $0x93] sm:$0xff]
        %v1794 = vld [vmem:[#allocation2 + $0x9b] sm:$0xff]
        %v1795 = vld [vmem:[#allocation2 + $0xa3] sm:$0xff]
        %v1796 = vld [vmem:[#allocation2 + $0xab] sm:$0xff]
        %v1797 = vld [vmem:[#allocation2 + $0xb3] sm:$0xff]
        %v1798 = vld [vmem:[#allocation2 + $0xbb] sm:$0xff]
        %v1799 = vld [vmem:[#allocation2 + $0xc3] sm:$0xff]
        %v1800 = vld [vmem:[#allocation2 + $0xcb] sm:$0xff]
        %v1801 = vld [vmem:[#allocation2 + $0xd3] sm:$0xff]
        %v1802 = vld [vmem:[#allocation2 + $0xdb] sm:$0xff]
        %v1803 = vld [vmem:[#allocation2 + $0xe3] sm:$0xff]
        %v1804 = vld [vmem:[#allocation2 + $0xeb] sm:$0xff]
        %v1805 = vld [vmem:[#allocation2 + $0xf3] sm:$0xff]
        %v1806 = vld [vmem:[#allocation2 + $0xfb] sm:$0xff]
        %v1807 = vld [vmem:[#allocation2 + $0x103] sm:$0xff]
        %v1808 = vld [vmem:[#allocation2 + $0x10b] sm:$0xff]
        %v1809 = vld [vmem:[#allocation2 + $0x113] sm:$0xff]
        %v1810 = vld [vmem:[#allocation2 + $0x11b] sm:$0xff]
        %v1811 = vld [vmem:[#allocation2 + $0x123] sm:$0xff]
        %v1812 = vld [vmem:[#allocation2 + $0x12b] sm:$0xff]
        %v1813 = vld [vmem:[#allocation2 + $0x14] sm:$0xff]
        %v1814 = vld [vmem:[#allocation2 + $0x1c] sm:$0xff]
        %v1815 = vld [vmem:[#allocation2 + $0x24] sm:$0xff]
        %v1816 = vld [vmem:[#allocation2 + $0x2c] sm:$0xff]
        %v1817 = vld [vmem:[#allocation2 + $0x34] sm:$0xff]
        %v1818 = vld [vmem:[#allocation2 + $0x3c] sm:$0xff]
        %v1819 = vld [vmem:[#allocation2 + $0x44] sm:$0xff]
        %v1820 = vld [vmem:[#allocation2 + $0x4c] sm:$0xff]
        %v1821 = vld [vmem:[#allocation2 + $0x54] sm:$0xff]
        %v1822 = vld [vmem:[#allocation2 + $0x5c] sm:$0xff]
        %v1823 = vld [vmem:[#allocation2 + $0x64] sm:$0xff]
        %v1824 = vld [vmem:[#allocation2 + $0x6c] sm:$0xff]
        %v1825 = vld [vmem:[#allocation2 + $0x74] sm:$0xff]
        %v1826 = vld [vmem:[#allocation2 + $0x7c] sm:$0xff]
        %v1827 = vld [vmem:[#allocation2 + $0x84] sm:$0xff]
        %v1828 = vld [vmem:[#allocation2 + $0x8c] sm:$0xff]
        %v1829 = vld [vmem:[#allocation2 + $0x94] sm:$0xff]
        %v1830 = vld [vmem:[#allocation2 + $0x9c] sm:$0xff]
        %v1831 = vld [vmem:[#allocation2 + $0xa4] sm:$0xff]
        %v1832 = vld [vmem:[#allocation2 + $0xac] sm:$0xff]
        %v1833 = vld [vmem:[#allocation2 + $0xb4] sm:$0xff]
        %v1834 = vld [vmem:[#allocation2 + $0xbc] sm:$0xff]
        %v1835 = vld [vmem:[#allocation2 + $0xc4] sm:$0xff]
        %v1836 = vld [vmem:[#allocation2 + $0xcc] sm:$0xff]
        %v1837 = vld [vmem:[#allocation2 + $0xd4] sm:$0xff]
        %v1838 = vld [vmem:[#allocation2 + $0xdc] sm:$0xff]
        %v1839 = vld [vmem:[#allocation2 + $0xe4] sm:$0xff]
        %v1840 = vld [vmem:[#allocation2 + $0xec] sm:$0xff]
        %v1841 = vld [vmem:[#allocation2 + $0xf4] sm:$0xff]
        %v1842 = vld [vmem:[#allocation2 + $0xfc] sm:$0xff]
        %v1843 = vld [vmem:[#allocation2 + $0x104] sm:$0xff]
        %v1844 = vld [vmem:[#allocation2 + $0x10c] sm:$0xff]
        %v1845 = vld [vmem:[#allocation2 + $0x114] sm:$0xff]
        %v1846 = vld [vmem:[#allocation2 + $0x11c] sm:$0xff]
        %v1847 = vld [vmem:[#allocation2 + $0x124] sm:$0xff]
        %v1848 = vld [vmem:[#allocation2 + $0x12c] sm:$0xff]
        %v1849 = vpack.c.bf16 %v1778, %v1777
        %v1850 = vpack.c.bf16 %v1814, %v1813
        %v1851 = vpack.c.bf16 %v1780, %v1779
        %v1852 = vpack.c.bf16 %v1816, %v1815
        %v1853 = vpack.c.bf16 %v1782, %v1781
        %v1854 = vpack.c.bf16 %v1818, %v1817
        %v1855 = vpack.c.bf16 %v1784, %v1783
        %v1856 = vpack.c.bf16 %v1820, %v1819
        %v1857 = vpack.c.bf16 %v1786, %v1785
        %v1858 = vpack.c.bf16 %v1822, %v1821
        %v1859 = vpack.c.bf16 %v1788, %v1787
        %v1860 = vpack.c.bf16 %v1824, %v1823
        %v1861 = vpack.c.bf16 %v1790, %v1789
        %v1862 = vpack.c.bf16 %v1826, %v1825
        %v1863 = vpack.c.bf16 %v1792, %v1791
        %v1864 = vpack.c.bf16 %v1828, %v1827
        %v1865 = vpack.c.bf16 %v1794, %v1793
        %v1866 = vpack.c.bf16 %v1830, %v1829
        %v1867 = vpack.c.bf16 %v1796, %v1795
        %v1868 = vpack.c.bf16 %v1832, %v1831
        %v1869 = vpack.c.bf16 %v1798, %v1797
        %v1870 = vpack.c.bf16 %v1834, %v1833
        %v1871 = vpack.c.bf16 %v1800, %v1799
        %v1872 = vpack.c.bf16 %v1836, %v1835
        %v1873 = vpack.c.bf16 %v1802, %v1801
        %v1874 = vpack.c.bf16 %v1838, %v1837
        %v1875 = vpack.c.bf16 %v1804, %v1803
        %v1876 = vpack.c.bf16 %v1840, %v1839
        %v1877 = vpack.c.bf16 %v1806, %v1805
        %v1878 = vpack.c.bf16 %v1842, %v1841
        %v1879 = vpack.c.bf16 %v1808, %v1807
        %v1880 = vpack.c.bf16 %v1844, %v1843
        %v1881 = vpack.c.bf16 %v1810, %v1809
        %v1882 = vpack.c.bf16 %v1846, %v1845
        %v1883 = vpack.c.bf16 %v1776, %v1775
        %v1884 = vpack.c.bf16 %v1812, %v1811
        %v1885 = vpack.c.bf16 %v1848, %v1847
        %s1886 = scalar_lea.vmem [#allocation13], 192
        %v1887 = vld [vmem:[%s1886] sm:$0xf]
        %v1888 = vld [vmem:[%s1886 + $0x4] sm:$0xf]
        %v1889 = vld [vmem:[%s1886 + $0x8] sm:$0xf]
        %v1890 = vld [vmem:[%s1886 + $0xc] sm:$0xf]
        %v1891 = vld [vmem:[%s1886 + $0x10] sm:$0xf]
        %v1892 = vld [vmem:[%s1886 + $0x14] sm:$0xf]
        %v1893 = vld [vmem:[%s1886 + $0x18] sm:$0xf]
        %v1894 = vld [vmem:[%s1886 + $0x1c] sm:$0xf]
        %v1895 = vld [vmem:[%s1886 + $0x20] sm:$0xf]
        %v1896 = vld [vmem:[%s1886 + $0x24] sm:$0xf]
        %v1897 = vld [vmem:[%s1886 + $0x28] sm:$0xf]
        %v1898 = vld [vmem:[%s1886 + $0x2c] sm:$0xf]
        %v1899 = vld [vmem:[%s1886 + $0x30] sm:$0xf]
        %v1900 = vld [vmem:[%s1886 + $0x34] sm:$0xf]
        %v1901 = vld [vmem:[%s1886 + $0x38] sm:$0xf]
        %v1902 = vld [vmem:[%s1886 + $0x3c] sm:$0xf]
        %v1903 = vld [vmem:[%s1886 + $0x40] sm:$0xf]
        %v1904 = vld [vmem:[%s1886 + $0x44] sm:$0xf]
        %v1905 = vld [vmem:[%s1886 + $0x48] sm:$0xf]
        %v1906 = vld [vmem:[%s1886 + $0x4c] sm:$0xf]
        %v1907 = vld [vmem:[%s1886 + $0x50] sm:$0xf]
        %v1908 = vld [vmem:[%s1886 + $0x54] sm:$0xf]
        %v1909 = vld [vmem:[%s1886 + $0x58] sm:$0xf]
        %v1910 = vld [vmem:[%s1886 + $0x5c] sm:$0xf]
        %v1911 = vld [vmem:[%s1886 + $0x60] sm:$0xf]
        %v1912 = vld [vmem:[%s1886 + $0x64] sm:$0xf]
        %v1913 = vld [vmem:[%s1886 + $0x68] sm:$0xf]
        %v1914 = vld [vmem:[%s1886 + $0x6c] sm:$0xf]
        %v1915 = vld [vmem:[%s1886 + $0x70] sm:$0xf]
        %v1916 = vld [vmem:[%s1886 + $0x74] sm:$0xf]
        %v1917 = vld [vmem:[%s1886 + $0x78] sm:$0xf]
        %v1918 = vld [vmem:[%s1886 + $0x7c] sm:$0xf]
        %v1919 = vld [vmem:[%s1886 + $0x80] sm:$0xf]
        %v1920 = vld [vmem:[%s1886 + $0x84] sm:$0xf]
        %v1921 = vld [vmem:[%s1886 + $0x88] sm:$0xf]
        %v1922 = vld [vmem:[%s1886 + $0x8c] sm:$0xf]
        %v1923 = vld [vmem:[%s1886 + $0x90] sm:$0xf]
        %v1924 = vld [vmem:[%s1886 + $0x94] sm:$0xf]
        %v1925 = vld [vmem:[%s1886 + $0x98] sm:$0xf]
        %v1926 = vld [vmem:[%s1886 + $0x9c] sm:$0xf]
        %v1927 = vld [vmem:[%s1886 + $0xa0] sm:$0xf]
        %v1928 = vld [vmem:[%s1886 + $0xa4] sm:$0xf]
        %v1929 = vld [vmem:[%s1886 + $0xa8] sm:$0xf]
        %v1930 = vld [vmem:[%s1886 + $0xac] sm:$0xf]
        %v1931 = vld [vmem:[%s1886 + $0xb0] sm:$0xf]
        %v1932 = vld [vmem:[%s1886 + $0xb4] sm:$0xf]
        %v1933 = vld [vmem:[%s1886 + $0xb8] sm:$0xf]
        %v1934 = vld [vmem:[%s1886 + $0xbc] sm:$0xf]
        %v1983 = vunpack.c.l.b16 %v1887
        %v1984 = vunpack.c.l.b16 %v1888
        %v1985 = vunpack.c.l.b16 %v1889
        %v1986 = vunpack.c.l.b16 %v1890
        %v1987 = vunpack.c.l.b16 %v1891
        %v1988 = vunpack.c.l.b16 %v1892
        %v1989 = vunpack.c.l.b16 %v1893
        %v1990 = vunpack.c.l.b16 %v1894
        %v1991 = vunpack.c.l.b16 %v1895
        %v1992 = vunpack.c.l.b16 %v1896
        %v1993 = vunpack.c.l.b16 %v1897
        %v1994 = vunpack.c.l.b16 %v1898
        %v1995 = vunpack.c.l.b16 %v1899
        %v1996 = vunpack.c.l.b16 %v1900
        %v1997 = vunpack.c.l.b16 %v1901
        %v1998 = vunpack.c.l.b16 %v1902
        %v1999 = vunpack.c.l.b16 %v1903
        %v2000 = vunpack.c.l.b16 %v1904
        %v2001 = vunpack.c.l.b16 %v1905
        %v2002 = vunpack.c.l.b16 %v1906
        %v2003 = vunpack.c.l.b16 %v1907
        %v2004 = vunpack.c.l.b16 %v1908
        %v2005 = vunpack.c.l.b16 %v1909
        %v2006 = vunpack.c.l.b16 %v1910
        %v2007 = vunpack.c.l.b16 %v1911
        %v2008 = vunpack.c.l.b16 %v1912
        %v2009 = vunpack.c.l.b16 %v1913
        %v2010 = vunpack.c.l.b16 %v1914
        %v2011 = vunpack.c.l.b16 %v1915
        %v2012 = vunpack.c.l.b16 %v1916
        %v2013 = vunpack.c.l.b16 %v1917
        %v2014 = vunpack.c.l.b16 %v1918
        %v2015 = vunpack.c.l.b16 %v1919
        %v2016 = vunpack.c.l.b16 %v1920
        %v2017 = vunpack.c.l.b16 %v1921
        %v2018 = vunpack.c.l.b16 %v1922
        %v2019 = vunpack.c.l.b16 %v1923
        %v2020 = vunpack.c.l.b16 %v1924
        %v2021 = vunpack.c.l.b16 %v1925
        %v2022 = vunpack.c.l.b16 %v1926
        %v2023 = vunpack.c.l.b16 %v1927
        %v2024 = vunpack.c.l.b16 %v1928
        %v2025 = vunpack.c.l.b16 %v1929
        %v2026 = vunpack.c.l.b16 %v1930
        %v2027 = vunpack.c.l.b16 %v1931
        %v2028 = vunpack.c.l.b16 %v1932
        %v2029 = vunpack.c.l.b16 %v1933
        %v2030 = vunpack.c.l.b16 %v1934
        %v2031 = vpack.c.b16 %v1984, %v1983
        %v2032 = vpack.c.b16 %v1986, %v1985
        %v2033 = vpack.c.b16 %v1988, %v1987
        %v2034 = vpack.c.b16 %v1990, %v1989
        %v2035 = vpack.c.b16 %v1992, %v1991
        %v2036 = vpack.c.b16 %v1994, %v1993
        %v2037 = vpack.c.b16 %v1996, %v1995
        %v2038 = vpack.c.b16 %v1998, %v1997
        %v2039 = vpack.c.b16 %v2000, %v1999
        %v2040 = vpack.c.b16 %v2002, %v2001
        %v2041 = vpack.c.b16 %v2004, %v2003
        %v2042 = vpack.c.b16 %v2006, %v2005
        %v2043 = vpack.c.b16 %v2008, %v2007
        %v2044 = vpack.c.b16 %v2010, %v2009
        %v2045 = vpack.c.b16 %v2012, %v2011
        %v2046 = vpack.c.b16 %v2014, %v2013
        %v2047 = vpack.c.b16 %v2016, %v2015
        %v2048 = vpack.c.b16 %v2018, %v2017
        %v2049 = vpack.c.b16 %v2020, %v2019
        %v2050 = vpack.c.b16 %v2022, %v2021
        %v2051 = vpack.c.b16 %v2024, %v2023
        %v2052 = vpack.c.b16 %v2026, %v2025
        %v2053 = vpack.c.b16 %v2028, %v2027
        %v2054 = vpack.c.b16 %v2030, %v2029
        %2079 = vmatprep.subr.bf16.mxu0 0
        %2080 = vmatpush1.bf16.msra.mxu0 %v2031
        %2081 = vmatprep.subr.bf16.mxu0 0
        %2082 = vmatpush1.bf16.msra.mxu0 %v2032
        %2083 = vmatprep.subr.bf16.mxu0 0
        %2084 = vmatpush1.bf16.msra.mxu0 %v2033
        %2085 = vmatprep.subr.bf16.mxu0 0
        %2086 = vmatpush1.bf16.msra.mxu0 %v2034
        %2087 = vmatprep.subr.bf16.mxu0 0
        %2088 = vmatpush1.bf16.msra.mxu0 %v2035
        %2089 = vmatprep.subr.bf16.mxu0 0
        %2090 = vmatpush1.bf16.msra.mxu0 %v2036
        %2091 = vmatprep.subr.bf16.mxu0 0
        %2092 = vmatpush1.bf16.msra.mxu0 %v2037
        %2093 = vmatprep.subr.bf16.mxu0 0
        %2094 = vmatpush1.bf16.msra.mxu0 %v2038
        %2095 = vmatprep.subr.bf16.mxu0 0
        %2096 = vmatpush1.bf16.msra.mxu0 %v2039
        %2097 = vmatprep.subr.bf16.mxu0 0
        %2098 = vmatpush1.bf16.msra.mxu0 %v2040
        %2099 = vmatprep.subr.bf16.mxu0 0
        %2100 = vmatpush1.bf16.msra.mxu0 %v2041
        %2101 = vmatprep.subr.bf16.mxu0 0
        %2102 = vmatpush1.bf16.msra.mxu0 %v2042
        %2103 = vmatprep.subr.bf16.mxu0 0
        %2104 = vmatpush1.bf16.msra.mxu0 %v2043
        %2105 = vmatprep.subr.bf16.mxu0 0
        %2106 = vmatpush1.bf16.msra.mxu0 %v2044
        %2107 = vmatprep.subr.bf16.mxu0 0
        %2108 = vmatpush1.bf16.msra.mxu0 %v2045
        %2109 = vmatprep.subr.bf16.mxu0 0
        %2110 = vmatpush1.bf16.msra.mxu0 %v2046
        %2111 = vmatprep.mubr.bf16.mxu0 %v1849
        %2112 = vmatmul.mubr.bf16.gmra.mrb[0].mxu0 %v1678
        %v2113 = vpop.f32.mrb[0].mxu0
        %v2114 = vadd.f32 0.0, %v2113
        %v2115 = vpop.f32.mrb[0].mxu0
        %v2116 = vpop.f32.mrb[0].mxu0
        %v2117 = vadd.f32 0.0, %v2116
        %v2118 = vpop.f32.mrb[0].mxu0
        %2119 = vmatprep.mubr.bf16.mxu0 %v1851
        %2120 = vmatmul.mubr.bf16.gmra.mrb[0].mxu0 %v1681
        %v2121 = vpop.f32.mrb[0].mxu0
        %v2122 = vadd.f32 0.0, %v2121
        %v2123 = vpop.f32.mrb[0].mxu0
        %v2124 = vpop.f32.mrb[0].mxu0
        %v2125 = vadd.f32 0.0, %v2124
        %v2126 = vpop.f32.mrb[0].mxu0
        %2127 = vmatprep.mubr.bf16.mxu0 %v1853
        %2128 = vmatmul.mubr.bf16.gmra.mrb[0].mxu0 %v1684
        %v2129 = vpop.f32.mrb[0].mxu0
        %v2130 = vadd.f32 0.0, %v2129
        %v2131 = vpop.f32.mrb[0].mxu0
        %v2132 = vpop.f32.mrb[0].mxu0
        %v2133 = vadd.f32 0.0, %v2132
        %v2134 = vpop.f32.mrb[0].mxu0
        %2135 = vmatprep.mubr.bf16.mxu0 %v1855
        %2136 = vmatmul.mubr.bf16.gmra.mrb[0].mxu0 %v1687
        %v2137 = vpop.f32.mrb[0].mxu0
        %v2138 = vadd.f32 0.0, %v2137
        %v2139 = vpop.f32.mrb[0].mxu0
        %v2140 = vpop.f32.mrb[0].mxu0
        %v2141 = vadd.f32 0.0, %v2140
        %v2142 = vpop.f32.mrb[0].mxu0
        %2143 = vmatprep.mubr.bf16.mxu0 %v1857
        %2144 = vmatmul.mubr.bf16.gmra.mrb[0].mxu0 %v1690
        %v2145 = vpop.f32.mrb[0].mxu0
        %v2146 = vadd.f32 0.0, %v2145
        %v2147 = vpop.f32.mrb[0].mxu0
        %v2148 = vpop.f32.mrb[0].mxu0
        %v2149 = vadd.f32 0.0, %v2148
        %v2150 = vpop.f32.mrb[0].mxu0
        %2151 = vmatprep.mubr.bf16.mxu0 %v1859
        %2152 = vmatmul.mubr.bf16.gmra.mrb[0].mxu0 %v1693
        %v2153 = vpop.f32.mrb[0].mxu0
        %v2154 = vadd.f32 0.0, %v2153
        %v2155 = vpop.f32.mrb[0].mxu0
        %v2156 = vpop.f32.mrb[0].mxu0
        %v2157 = vadd.f32 0.0, %v2156
        %v2158 = vpop.f32.mrb[0].mxu0
        %2159 = vmatprep.mubr.bf16.mxu0 %v1861
        %2160 = vmatmul.mubr.bf16.gmra.mrb[0].mxu0 %v1696
        %v2161 = vpop.f32.mrb[0].mxu0
        %v2162 = vadd.f32 0.0, %v2161
        %v2163 = vpop.f32.mrb[0].mxu0
        %v2164 = vpop.f32.mrb[0].mxu0
        %v2165 = vadd.f32 0.0, %v2164
        %v2166 = vpop.f32.mrb[0].mxu0
        %2167 = vmatprep.mubr.bf16.mxu0 %v1863
        %2168 = vmatmul.mubr.bf16.gmra.mrb[0].mxu0 %v1699
        %v2169 = vpop.f32.mrb[0].mxu0
        %v2170 = vadd.f32 0.0, %v2169
        %v2171 = vpop.f32.mrb[0].mxu0
        %v2172 = vpop.f32.mrb[0].mxu0
        %v2173 = vadd.f32 0.0, %v2172
        %v2174 = vpop.f32.mrb[0].mxu0
        %2175 = vmatprep.mubr.bf16.mxu0 %v1865
        %2176 = vmatmul.mubr.bf16.gmra.mrb[0].mxu0 %v1702
        %v2177 = vpop.f32.mrb[0].mxu0
        %v2178 = vadd.f32 0.0, %v2177
        %v2179 = vpop.f32.mrb[0].mxu0
        %v2180 = vpop.f32.mrb[0].mxu0
        %v2181 = vadd.f32 0.0, %v2180
        %v2182 = vpop.f32.mrb[0].mxu0
        %2183 = vmatprep.mubr.bf16.mxu0 %v1867
        %2184 = vmatmul.mubr.bf16.gmra.mrb[0].mxu0 %v1705
        %v2185 = vpop.f32.mrb[0].mxu0
        %v2186 = vadd.f32 0.0, %v2185
        %v2187 = vpop.f32.mrb[0].mxu0
        %v2188 = vpop.f32.mrb[0].mxu0
        %v2189 = vadd.f32 0.0, %v2188
        %v2190 = vpop.f32.mrb[0].mxu0
        %2191 = vmatprep.mubr.bf16.mxu0 %v1869
        %2192 = vmatmul.mubr.bf16.gmra.mrb[0].mxu0 %v1708
        %v2193 = vpop.f32.mrb[0].mxu0
        %v2194 = vadd.f32 0.0, %v2193
        %v2195 = vpop.f32.mrb[0].mxu0
        %v2196 = vpop.f32.mrb[0].mxu0
        %v2197 = vadd.f32 0.0, %v2196
        %v2198 = vpop.f32.mrb[0].mxu0
        %2199 = vmatprep.mubr.bf16.mxu0 %v1871
        %2200 = vmatmul.mubr.bf16.gmra.mrb[0].mxu0 %v1711
        %v2201 = vpop.f32.mrb[0].mxu0
        %v2202 = vadd.f32 0.0, %v2201
        %v2203 = vpop.f32.mrb[0].mxu0
        %v2204 = vpop.f32.mrb[0].mxu0
        %v2205 = vadd.f32 0.0, %v2204
        %v2206 = vpop.f32.mrb[0].mxu0
        %2207 = vmatprep.mubr.bf16.mxu0 %v1873
        %2208 = vmatmul.mubr.bf16.gmra.mrb[0].mxu0 %v1714
        %v2209 = vpop.f32.mrb[0].mxu0
        %v2210 = vadd.f32 0.0, %v2209
        %v2211 = vpop.f32.mrb[0].mxu0
        %v2212 = vpop.f32.mrb[0].mxu0
        %v2213 = vadd.f32 0.0, %v2212
        %v2214 = vpop.f32.mrb[0].mxu0
        %2215 = vmatprep.mubr.bf16.mxu0 %v1875
        %2216 = vmatmul.mubr.bf16.gmra.mrb[0].mxu0 %v1717
        %v2217 = vpop.f32.mrb[0].mxu0
        %v2218 = vadd.f32 0.0, %v2217
        %v2219 = vpop.f32.mrb[0].mxu0
        %v2220 = vpop.f32.mrb[0].mxu0
        %v2221 = vadd.f32 0.0, %v2220
        %v2222 = vpop.f32.mrb[0].mxu0
        %2223 = vmatprep.mubr.bf16.mxu0 %v1877
        %2224 = vmatmul.mubr.bf16.gmra.mrb[0].mxu0 %v1720
        %v2225 = vpop.f32.mrb[0].mxu0
        %v2226 = vadd.f32 0.0, %v2225
        %v2227 = vpop.f32.mrb[0].mxu0
        %v2228 = vpop.f32.mrb[0].mxu0
        %v2229 = vadd.f32 0.0, %v2228
        %v2230 = vpop.f32.mrb[0].mxu0
        %2231 = vmatprep.mubr.bf16.mxu0 %v1879
        %2232 = vmatmul.mubr.bf16.gmra.mrb[0].mxu0 %v1723
        %v2233 = vpop.f32.mrb[0].mxu0
        %v2234 = vadd.f32 0.0, %v2233
        %v2235 = vpop.f32.mrb[0].mxu0
        %v2236 = vpop.f32.mrb[0].mxu0
        %v2237 = vadd.f32 0.0, %v2236
        %v2238 = vpop.f32.mrb[0].mxu0
        %2239 = vmatprep.mubr.bf16.mxu0 %v1881
        %2240 = vmatmul.mubr.bf16.gmra.mrb[0].mxu0 %v1726
        %v2241 = vpop.f32.mrb[0].mxu0
        %v2242 = vadd.f32 0.0, %v2241
        %v2243 = vpop.f32.mrb[0].mxu0
        %v2244 = vpop.f32.mrb[0].mxu0
        %v2245 = vadd.f32 0.0, %v2244
        %v2246 = vpop.f32.mrb[0].mxu0
        %2247 = vmatprep.mubr.bf16.mxu0 %v1884
        %2248 = vmatmul.mubr.bf16.gmra.mrb[0].mxu0 %v1883
        %v2249 = vpop.f32.mrb[0].mxu0
        %v2250 = vadd.f32 0.0, %v2249
        %v2251 = vpop.f32.mrb[0].mxu0
        %v2252 = vpop.f32.mrb[0].mxu0
        %v2253 = vadd.f32 0.0, %v2252
        %v2254 = vpop.f32.mrb[0].mxu0
        %2255 = vdwg.mxu0
        %2256 = vmatprep.subr.bf16.mxu0 0
        %2257 = vmatpush1.bf16.msra.mxu0 %v2047
        %2258 = vmatprep.subr.bf16.mxu0 0
        %2259 = vmatpush1.bf16.msra.mxu0 %v2048
        %2260 = vmatprep.subr.bf16.mxu0 0
        %2261 = vmatpush1.bf16.msra.mxu0 %v2049
        %2262 = vmatprep.subr.bf16.mxu0 0
        %2263 = vmatpush1.bf16.msra.mxu0 %v2050
        %2264 = vmatprep.subr.bf16.mxu0 0
        %2265 = vmatpush1.bf16.msra.mxu0 %v2051
        %2266 = vmatprep.subr.bf16.mxu0 0
        %2267 = vmatpush1.bf16.msra.mxu0 %v2052
        %2268 = vmatprep.subr.bf16.mxu0 0
        %2269 = vmatpush1.bf16.msra.mxu0 %v2053
        %2270 = vmatprep.subr.bf16.mxu0 0
        %2271 = vmatpush1.bf16.msra.mxu0 %v2054
        %2272 = vmatprep.subr.bf16.mxu0 0
        %2273 = vmatpush1.bf16.msra.mxu0 0
        %2274 = vmatprep.subr.bf16.mxu0 0
        %2275 = vmatpush1.bf16.msra.mxu0 0
        %2276 = vmatprep.subr.bf16.mxu0 0
        %2277 = vmatpush1.bf16.msra.mxu0 0
        %2278 = vmatprep.subr.bf16.mxu0 0
        %2279 = vmatpush1.bf16.msra.mxu0 0
        %2280 = vmatprep.subr.bf16.mxu0 0
        %2281 = vmatpush1.bf16.msra.mxu0 0
        %2282 = vmatprep.subr.bf16.mxu0 0
        %2283 = vmatpush1.bf16.msra.mxu0 0
        %2284 = vmatprep.subr.bf16.mxu0 0
        %2285 = vmatpush1.bf16.msra.mxu0 0
        %2286 = vmatprep.subr.bf16.mxu0 0
        %2287 = vmatpush1.bf16.msra.mxu0 0
        %2288 = vmatprep.mubr.bf16.mxu0 0
        %2289 = vmatmul.mubr.bf16.gmra.mrb[0].mxu0 %v1850
        %v2290 = vpop.f32.mrb[0].mxu0
        %v2291 = vadd.f32 %v2114, %v2290
        %v2292 = vpop.f32.mrb[0].mxu0
        %v2293 = vpop.f32.mrb[0].mxu0
        %v2294 = vadd.f32 %v2117, %v2293
        %v2295 = vpop.f32.mrb[0].mxu0
        %2296 = vmatprep.mubr.bf16.mxu0 0
        %2297 = vmatmul.mubr.bf16.gmra.mrb[0].mxu0 %v1852
        %v2298 = vpop.f32.mrb[0].mxu0
        %v2299 = vadd.f32 %v2122, %v2298
        %v2300 = vpop.f32.mrb[0].mxu0
        %v2301 = vpop.f32.mrb[0].mxu0
        %v2302 = vadd.f32 %v2125, %v2301
        %v2303 = vpop.f32.mrb[0].mxu0
        %2304 = vmatprep.mubr.bf16.mxu0 0
        %2305 = vmatmul.mubr.bf16.gmra.mrb[0].mxu0 %v1854
        %v2306 = vpop.f32.mrb[0].mxu0
        %v2307 = vadd.f32 %v2130, %v2306
        %v2308 = vpop.f32.mrb[0].mxu0
        %v2309 = vpop.f32.mrb[0].mxu0
        %v2310 = vadd.f32 %v2133, %v2309
        %v2311 = vpop.f32.mrb[0].mxu0
        %2312 = vmatprep.mubr.bf16.mxu0 0
        %2313 = vmatmul.mubr.bf16.gmra.mrb[0].mxu0 %v1856
        %v2314 = vpop.f32.mrb[0].mxu0
        %v2315 = vadd.f32 %v2138, %v2314
        %v2316 = vpop.f32.mrb[0].mxu0
        %v2317 = vpop.f32.mrb[0].mxu0
        %v2318 = vadd.f32 %v2141, %v2317
        %v2319 = vpop.f32.mrb[0].mxu0
        %2320 = vmatprep.mubr.bf16.mxu0 0
        %2321 = vmatmul.mubr.bf16.gmra.mrb[0].mxu0 %v1858
        %v2322 = vpop.f32.mrb[0].mxu0
        %v2323 = vadd.f32 %v2146, %v2322
        %v2324 = vpop.f32.mrb[0].mxu0
        %v2325 = vpop.f32.mrb[0].mxu0
        %v2326 = vadd.f32 %v2149, %v2325
        %v2327 = vpop.f32.mrb[0].mxu0
        %2328 = vmatprep.mubr.bf16.mxu0 0
        %2329 = vmatmul.mubr.bf16.gmra.mrb[0].mxu0 %v1860
        %v2330 = vpop.f32.mrb[0].mxu0
        %v2331 = vadd.f32 %v2154, %v2330
        %v2332 = vpop.f32.mrb[0].mxu0
        %v2333 = vpop.f32.mrb[0].mxu0
        %v2334 = vadd.f32 %v2157, %v2333
        %v2335 = vpop.f32.mrb[0].mxu0
        %2336 = vmatprep.mubr.bf16.mxu0 0
        %2337 = vmatmul.mubr.bf16.gmra.mrb[0].mxu0 %v1862
        %v2338 = vpop.f32.mrb[0].mxu0
        %v2339 = vadd.f32 %v2162, %v2338
        %v2340 = vpop.f32.mrb[0].mxu0
        %v2341 = vpop.f32.mrb[0].mxu0
        %v2342 = vadd.f32 %v2165, %v2341
        %v2343 = vpop.f32.mrb[0].mxu0
        %2344 = vmatprep.mubr.bf16.mxu0 0
        %2345 = vmatmul.mubr.bf16.gmra.mrb[0].mxu0 %v1864
        %v2346 = vpop.f32.mrb[0].mxu0
        %v2347 = vadd.f32 %v2170, %v2346
        %v2348 = vpop.f32.mrb[0].mxu0
        %v2349 = vpop.f32.mrb[0].mxu0
        %v2350 = vadd.f32 %v2173, %v2349
        %v2351 = vpop.f32.mrb[0].mxu0
        %2352 = vmatprep.mubr.bf16.mxu0 0
        %2353 = vmatmul.mubr.bf16.gmra.mrb[0].mxu0 %v1866
        %v2354 = vpop.f32.mrb[0].mxu0
        %v2355 = vadd.f32 %v2178, %v2354
        %v2356 = vpop.f32.mrb[0].mxu0
        %v2357 = vpop.f32.mrb[0].mxu0
        %v2358 = vadd.f32 %v2181, %v2357
        %v2359 = vpop.f32.mrb[0].mxu0
        %2360 = vmatprep.mubr.bf16.mxu0 0
        %2361 = vmatmul.mubr.bf16.gmra.mrb[0].mxu0 %v1868
        %v2362 = vpop.f32.mrb[0].mxu0
        %v2363 = vadd.f32 %v2186, %v2362
        %v2364 = vpop.f32.mrb[0].mxu0
        %v2365 = vpop.f32.mrb[0].mxu0
        %v2366 = vadd.f32 %v2189, %v2365
        %v2367 = vpop.f32.mrb[0].mxu0
        %2368 = vmatprep.mubr.bf16.mxu0 0
        %2369 = vmatmul.mubr.bf16.gmra.mrb[0].mxu0 %v1870
        %v2370 = vpop.f32.mrb[0].mxu0
        %v2371 = vadd.f32 %v2194, %v2370
        %v2372 = vpop.f32.mrb[0].mxu0
        %v2373 = vpop.f32.mrb[0].mxu0
        %v2374 = vadd.f32 %v2197, %v2373
        %v2375 = vpop.f32.mrb[0].mxu0
        %2376 = vmatprep.mubr.bf16.mxu0 0
        %2377 = vmatmul.mubr.bf16.gmra.mrb[0].mxu0 %v1872
        %v2378 = vpop.f32.mrb[0].mxu0
        %v2379 = vadd.f32 %v2202, %v2378
        %v2380 = vpop.f32.mrb[0].mxu0
        %v2381 = vpop.f32.mrb[0].mxu0
        %v2382 = vadd.f32 %v2205, %v2381
        %v2383 = vpop.f32.mrb[0].mxu0
        %2384 = vmatprep.mubr.bf16.mxu0 0
        %2385 = vmatmul.mubr.bf16.gmra.mrb[0].mxu0 %v1874
        %v2386 = vpop.f32.mrb[0].mxu0
        %v2387 = vadd.f32 %v2210, %v2386
        %v2388 = vpop.f32.mrb[0].mxu0
        %v2389 = vpop.f32.mrb[0].mxu0
        %v2390 = vadd.f32 %v2213, %v2389
        %v2391 = vpop.f32.mrb[0].mxu0
        %2392 = vmatprep.mubr.bf16.mxu0 0
        %2393 = vmatmul.mubr.bf16.gmra.mrb[0].mxu0 %v1876
        %v2394 = vpop.f32.mrb[0].mxu0
        %v2395 = vadd.f32 %v2218, %v2394
        %v2396 = vpop.f32.mrb[0].mxu0
        %v2397 = vpop.f32.mrb[0].mxu0
        %v2398 = vadd.f32 %v2221, %v2397
        %v2399 = vpop.f32.mrb[0].mxu0
        %2400 = vmatprep.mubr.bf16.mxu0 0
        %2401 = vmatmul.mubr.bf16.gmra.mrb[0].mxu0 %v1878
        %v2402 = vpop.f32.mrb[0].mxu0
        %v2403 = vadd.f32 %v2226, %v2402
        %v2404 = vpop.f32.mrb[0].mxu0
        %v2405 = vpop.f32.mrb[0].mxu0
        %v2406 = vadd.f32 %v2229, %v2405
        %v2407 = vpop.f32.mrb[0].mxu0
        %2408 = vmatprep.mubr.bf16.mxu0 0
        %2409 = vmatmul.mubr.bf16.gmra.mrb[0].mxu0 %v1880
        %v2410 = vpop.f32.mrb[0].mxu0
        %v2411 = vadd.f32 %v2234, %v2410
        %v2412 = vpop.f32.mrb[0].mxu0
        %v2413 = vpop.f32.mrb[0].mxu0
        %v2414 = vadd.f32 %v2237, %v2413
        %v2415 = vpop.f32.mrb[0].mxu0
        %2416 = vmatprep.mubr.bf16.mxu0 0
        %2417 = vmatmul.mubr.bf16.gmra.mrb[0].mxu0 %v1882
        %v2418 = vpop.f32.mrb[0].mxu0
        %v2419 = vadd.f32 %v2242, %v2418
        %v2420 = vpop.f32.mrb[0].mxu0
        %v2421 = vpop.f32.mrb[0].mxu0
        %v2422 = vadd.f32 %v2245, %v2421
        %v2423 = vpop.f32.mrb[0].mxu0
        %2424 = vmatprep.mubr.bf16.mxu0 0
        %2425 = vmatmul.mubr.bf16.gmra.mrb[0].mxu0 %v1885
        %v2426 = vpop.f32.mrb[0].mxu0
        %v2427 = vadd.f32 %v2250, %v2426
        %v2428 = vpop.f32.mrb[0].mxu0
        %v2429 = vpop.f32.mrb[0].mxu0
        %v2430 = vadd.f32 %v2253, %v2429
        %v2431 = vpop.f32.mrb[0].mxu0
        %2432 = vdwg.mxu0
        %v2481 = vunpack.c.l.b16 %v1727
        %v2482 = vunpack.c.l.b16 %v1728
        %v2483 = vunpack.c.l.b16 %v1729
        %v2484 = vunpack.c.l.b16 %v1730
        %v2485 = vunpack.c.l.b16 %v1731
        %v2486 = vunpack.c.l.b16 %v1732
        %v2487 = vunpack.c.l.b16 %v1733
        %v2488 = vunpack.c.l.b16 %v1734
        %v2489 = vunpack.c.l.b16 %v1735
        %v2490 = vunpack.c.l.b16 %v1736
        %v2491 = vunpack.c.l.b16 %v1737
        %v2492 = vunpack.c.l.b16 %v1738
        %v2493 = vunpack.c.l.b16 %v1739
        %v2494 = vunpack.c.l.b16 %v1740
        %v2495 = vunpack.c.l.b16 %v1741
        %v2496 = vunpack.c.l.b16 %v1742
        %v2497 = vunpack.c.l.b16 %v1743
        %v2498 = vunpack.c.l.b16 %v1744
        %v2499 = vunpack.c.l.b16 %v1745
        %v2500 = vunpack.c.l.b16 %v1746
        %v2501 = vunpack.c.l.b16 %v1747
        %v2502 = vunpack.c.l.b16 %v1748
        %v2503 = vunpack.c.l.b16 %v1749
        %v2504 = vunpack.c.l.b16 %v1750
        %v2505 = vunpack.c.l.b16 %v1751
        %v2506 = vunpack.c.l.b16 %v1752
        %v2507 = vunpack.c.l.b16 %v1753
        %v2508 = vunpack.c.l.b16 %v1754
        %v2509 = vunpack.c.l.b16 %v1755
        %v2510 = vunpack.c.l.b16 %v1756
        %v2511 = vunpack.c.l.b16 %v1757
        %v2512 = vunpack.c.l.b16 %v1758
        %v2513 = vunpack.c.l.b16 %v1759
        %v2514 = vunpack.c.l.b16 %v1760
        %v2515 = vunpack.c.l.b16 %v1761
        %v2516 = vunpack.c.l.b16 %v1762
        %v2517 = vunpack.c.l.b16 %v1763
        %v2518 = vunpack.c.l.b16 %v1764
        %v2519 = vunpack.c.l.b16 %v1765
        %v2520 = vunpack.c.l.b16 %v1766
        %v2521 = vunpack.c.l.b16 %v1767
        %v2522 = vunpack.c.l.b16 %v1768
        %v2523 = vunpack.c.l.b16 %v1769
        %v2524 = vunpack.c.l.b16 %v1770
        %v2525 = vunpack.c.l.b16 %v1771
        %v2526 = vunpack.c.l.b16 %v1772
        %v2527 = vunpack.c.l.b16 %v1773
        %v2528 = vunpack.c.l.b16 %v1774
        %v2529 = vpack.c.b16 %v2482, %v2481
        %v2530 = vpack.c.b16 %v2484, %v2483
        %v2531 = vpack.c.b16 %v2486, %v2485
        %v2532 = vpack.c.b16 %v2488, %v2487
        %v2533 = vpack.c.b16 %v2490, %v2489
        %v2534 = vpack.c.b16 %v2492, %v2491
        %v2535 = vpack.c.b16 %v2494, %v2493
        %v2536 = vpack.c.b16 %v2496, %v2495
        %v2537 = vpack.c.b16 %v2498, %v2497
        %v2538 = vpack.c.b16 %v2500, %v2499
        %v2539 = vpack.c.b16 %v2502, %v2501
        %v2540 = vpack.c.b16 %v2504, %v2503
        %v2541 = vpack.c.b16 %v2506, %v2505
        %v2542 = vpack.c.b16 %v2508, %v2507
        %v2543 = vpack.c.b16 %v2510, %v2509
        %v2544 = vpack.c.b16 %v2512, %v2511
        %v2545 = vpack.c.b16 %v2514, %v2513
        %v2546 = vpack.c.b16 %v2516, %v2515
        %v2547 = vpack.c.b16 %v2518, %v2517
        %v2548 = vpack.c.b16 %v2520, %v2519
        %v2549 = vpack.c.b16 %v2522, %v2521
        %v2550 = vpack.c.b16 %v2524, %v2523
        %v2551 = vpack.c.b16 %v2526, %v2525
        %v2552 = vpack.c.b16 %v2528, %v2527
        %2577 = vmatprep.subr.bf16.mxu0 0
        %2578 = vmatpush1.bf16.msra.mxu0 %v2529
        %2579 = vmatprep.subr.bf16.mxu0 0
        %2580 = vmatpush1.bf16.msra.mxu0 %v2530
        %2581 = vmatprep.subr.bf16.mxu0 0
        %2582 = vmatpush1.bf16.msra.mxu0 %v2531
        %2583 = vmatprep.subr.bf16.mxu0 0
        %2584 = vmatpush1.bf16.msra.mxu0 %v2532
        %2585 = vmatprep.subr.bf16.mxu0 0
        %2586 = vmatpush1.bf16.msra.mxu0 %v2533
        %2587 = vmatprep.subr.bf16.mxu0 0
        %2588 = vmatpush1.bf16.msra.mxu0 %v2534
        %2589 = vmatprep.subr.bf16.mxu0 0
        %2590 = vmatpush1.bf16.msra.mxu0 %v2535
        %2591 = vmatprep.subr.bf16.mxu0 0
        %2592 = vmatpush1.bf16.msra.mxu0 %v2536
        %2593 = vmatprep.subr.bf16.mxu0 0
        %2594 = vmatpush1.bf16.msra.mxu0 %v2537
        %2595 = vmatprep.subr.bf16.mxu0 0
        %2596 = vmatpush1.bf16.msra.mxu0 %v2538
        %2597 = vmatprep.subr.bf16.mxu0 0
        %2598 = vmatpush1.bf16.msra.mxu0 %v2539
        %2599 = vmatprep.subr.bf16.mxu0 0
        %2600 = vmatpush1.bf16.msra.mxu0 %v2540
        %2601 = vmatprep.subr.bf16.mxu0 0
        %2602 = vmatpush1.bf16.msra.mxu0 %v2541
        %2603 = vmatprep.subr.bf16.mxu0 0
        %2604 = vmatpush1.bf16.msra.mxu0 %v2542
        %2605 = vmatprep.subr.bf16.mxu0 0
        %2606 = vmatpush1.bf16.msra.mxu0 %v2543
        %2607 = vmatprep.subr.bf16.mxu0 0
        %2608 = vmatpush1.bf16.msra.mxu0 %v2544
        %2609 = vmatprep.mubr.bf16.mxu0 %v1674
        %2610 = vmatmul.mubr.bf16.gmra.mrb[0].mxu0 %v1673
        %v2611 = vpop.f32.mrb[0].mxu0
        %v2612 = vadd.f32 %v2291, %v2611
        %v2613 = vpop.f32.mrb[0].mxu0
        %v2614 = vpop.f32.mrb[0].mxu0
        %v2615 = vadd.f32 %v2294, %v2614
        %v2616 = vpop.f32.mrb[0].mxu0
        %2617 = vmatprep.mubr.bf16.mxu0 %v1677
        %2618 = vmatmul.mubr.bf16.gmra.mrb[0].mxu0 %v1676
        %v2619 = vpop.f32.mrb[0].mxu0
        %v2620 = vadd.f32 %v2299, %v2619
        %v2621 = vpop.f32.mrb[0].mxu0
        %v2622 = vpop.f32.mrb[0].mxu0
        %v2623 = vadd.f32 %v2302, %v2622
        %v2624 = vpop.f32.mrb[0].mxu0
        %2625 = vmatprep.mubr.bf16.mxu0 %v1680
        %2626 = vmatmul.mubr.bf16.gmra.mrb[0].mxu0 %v1679
        %v2627 = vpop.f32.mrb[0].mxu0
        %v2628 = vadd.f32 %v2307, %v2627
        %v2629 = vpop.f32.mrb[0].mxu0
        %v2630 = vpop.f32.mrb[0].mxu0
        %v2631 = vadd.f32 %v2310, %v2630
        %v2632 = vpop.f32.mrb[0].mxu0
        %2633 = vmatprep.mubr.bf16.mxu0 %v1683
        %2634 = vmatmul.mubr.bf16.gmra.mrb[0].mxu0 %v1682
        %v2635 = vpop.f32.mrb[0].mxu0
        %v2636 = vadd.f32 %v2315, %v2635
        %v2637 = vpop.f32.mrb[0].mxu0
        %v2638 = vpop.f32.mrb[0].mxu0
        %v2639 = vadd.f32 %v2318, %v2638
        %v2640 = vpop.f32.mrb[0].mxu0
        %2641 = vmatprep.mubr.bf16.mxu0 %v1686
        %2642 = vmatmul.mubr.bf16.gmra.mrb[0].mxu0 %v1685
        %v2643 = vpop.f32.mrb[0].mxu0
        %v2644 = vadd.f32 %v2323, %v2643
        %v2645 = vpop.f32.mrb[0].mxu0
        %v2646 = vpop.f32.mrb[0].mxu0
        %v2647 = vadd.f32 %v2326, %v2646
        %v2648 = vpop.f32.mrb[0].mxu0
        %2649 = vmatprep.mubr.bf16.mxu0 %v1689
        %2650 = vmatmul.mubr.bf16.gmra.mrb[0].mxu0 %v1688
        %v2651 = vpop.f32.mrb[0].mxu0
        %v2652 = vadd.f32 %v2331, %v2651
        %v2653 = vpop.f32.mrb[0].mxu0
        %v2654 = vpop.f32.mrb[0].mxu0
        %v2655 = vadd.f32 %v2334, %v2654
        %v2656 = vpop.f32.mrb[0].mxu0
        %2657 = vmatprep.mubr.bf16.mxu0 %v1692
        %2658 = vmatmul.mubr.bf16.gmra.mrb[0].mxu0 %v1691
        %v2659 = vpop.f32.mrb[0].mxu0
        %v2660 = vadd.f32 %v2339, %v2659
        %v2661 = vpop.f32.mrb[0].mxu0
        %v2662 = vpop.f32.mrb[0].mxu0
        %v2663 = vadd.f32 %v2342, %v2662
        %v2664 = vpop.f32.mrb[0].mxu0
        %2665 = vmatprep.mubr.bf16.mxu0 %v1695
        %2666 = vmatmul.mubr.bf16.gmra.mrb[0].mxu0 %v1694
        %v2667 = vpop.f32.mrb[0].mxu0
        %v2668 = vadd.f32 %v2347, %v2667
        %v2669 = vpop.f32.mrb[0].mxu0
        %v2670 = vpop.f32.mrb[0].mxu0
        %v2671 = vadd.f32 %v2350, %v2670
        %v2672 = vpop.f32.mrb[0].mxu0
        %2673 = vmatprep.mubr.bf16.mxu0 %v1698
        %2674 = vmatmul.mubr.bf16.gmra.mrb[0].mxu0 %v1697
        %v2675 = vpop.f32.mrb[0].mxu0
        %v2676 = vadd.f32 %v2355, %v2675
        %v2677 = vpop.f32.mrb[0].mxu0
        %v2678 = vpop.f32.mrb[0].mxu0
        %v2679 = vadd.f32 %v2358, %v2678
        %v2680 = vpop.f32.mrb[0].mxu0
        %2681 = vmatprep.mubr.bf16.mxu0 %v1701
        %2682 = vmatmul.mubr.bf16.gmra.mrb[0].mxu0 %v1700
        %v2683 = vpop.f32.mrb[0].mxu0
        %v2684 = vadd.f32 %v2363, %v2683
        %v2685 = vpop.f32.mrb[0].mxu0
        %v2686 = vpop.f32.mrb[0].mxu0
        %v2687 = vadd.f32 %v2366, %v2686
        %v2688 = vpop.f32.mrb[0].mxu0
        %2689 = vmatprep.mubr.bf16.mxu0 %v1704
        %2690 = vmatmul.mubr.bf16.gmra.mrb[0].mxu0 %v1703
        %v2691 = vpop.f32.mrb[0].mxu0
        %v2692 = vadd.f32 %v2371, %v2691
        %v2693 = vpop.f32.mrb[0].mxu0
        %v2694 = vpop.f32.mrb[0].mxu0
        %v2695 = vadd.f32 %v2374, %v2694
        %v2696 = vpop.f32.mrb[0].mxu0
        %2697 = vmatprep.mubr.bf16.mxu0 %v1707
        %2698 = vmatmul.mubr.bf16.gmra.mrb[0].mxu0 %v1706
        %v2699 = vpop.f32.mrb[0].mxu0
        %v2700 = vadd.f32 %v2379, %v2699
        %v2701 = vpop.f32.mrb[0].mxu0
        %v2702 = vpop.f32.mrb[0].mxu0
        %v2703 = vadd.f32 %v2382, %v2702
        %v2704 = vpop.f32.mrb[0].mxu0
        %2705 = vmatprep.mubr.bf16.mxu0 %v1710
        %2706 = vmatmul.mubr.bf16.gmra.mrb[0].mxu0 %v1709
        %v2707 = vpop.f32.mrb[0].mxu0
        %v2708 = vadd.f32 %v2387, %v2707
        %v2709 = vpop.f32.mrb[0].mxu0
        %v2710 = vpop.f32.mrb[0].mxu0
        %v2711 = vadd.f32 %v2390, %v2710
        %v2712 = vpop.f32.mrb[0].mxu0
        %2713 = vmatprep.mubr.bf16.mxu0 %v1713
        %2714 = vmatmul.mubr.bf16.gmra.mrb[0].mxu0 %v1712
        %v2715 = vpop.f32.mrb[0].mxu0
        %v2716 = vadd.f32 %v2395, %v2715
        %v2717 = vpop.f32.mrb[0].mxu0
        %v2718 = vpop.f32.mrb[0].mxu0
        %v2719 = vadd.f32 %v2398, %v2718
        %v2720 = vpop.f32.mrb[0].mxu0
        %2721 = vmatprep.mubr.bf16.mxu0 %v1716
        %2722 = vmatmul.mubr.bf16.gmra.mrb[0].mxu0 %v1715
        %v2723 = vpop.f32.mrb[0].mxu0
        %v2724 = vadd.f32 %v2403, %v2723
        %v2725 = vpop.f32.mrb[0].mxu0
        %v2726 = vpop.f32.mrb[0].mxu0
        %v2727 = vadd.f32 %v2406, %v2726
        %v2728 = vpop.f32.mrb[0].mxu0
        %2729 = vmatprep.mubr.bf16.mxu0 %v1719
        %2730 = vmatmul.mubr.bf16.gmra.mrb[0].mxu0 %v1718
        %v2731 = vpop.f32.mrb[0].mxu0
        %v2732 = vadd.f32 %v2411, %v2731
        %v2733 = vpop.f32.mrb[0].mxu0
        %v2734 = vpop.f32.mrb[0].mxu0
        %v2735 = vadd.f32 %v2414, %v2734
        %v2736 = vpop.f32.mrb[0].mxu0
        %2737 = vmatprep.mubr.bf16.mxu0 %v1722
        %2738 = vmatmul.mubr.bf16.gmra.mrb[0].mxu0 %v1721
        %v2739 = vpop.f32.mrb[0].mxu0
        %v2740 = vadd.f32 %v2419, %v2739
        %v2741 = vpop.f32.mrb[0].mxu0
        %v2742 = vpop.f32.mrb[0].mxu0
        %v2743 = vadd.f32 %v2422, %v2742
        %v2744 = vpop.f32.mrb[0].mxu0
        %2745 = vmatprep.mubr.bf16.mxu0 %v1725
        %2746 = vmatmul.mubr.bf16.gmra.mrb[0].mxu0 %v1724
        %v2747 = vpop.f32.mrb[0].mxu0
        %v2748 = vadd.f32 %v2427, %v2747
        %v2749 = vpop.f32.mrb[0].mxu0
        %v2750 = vpop.f32.mrb[0].mxu0
        %v2751 = vadd.f32 %v2430, %v2750
        %v2752 = vpop.f32.mrb[0].mxu0
        %2753 = vdwg.mxu0
        %2754 = vmatprep.subr.bf16.mxu0 0
        %2755 = vmatpush1.bf16.msra.mxu0 %v2545
        %2756 = vmatprep.subr.bf16.mxu0 0
        %2757 = vmatpush1.bf16.msra.mxu0 %v2546
        %2758 = vmatprep.subr.bf16.mxu0 0
        %2759 = vmatpush1.bf16.msra.mxu0 %v2547
        %2760 = vmatprep.subr.bf16.mxu0 0
        %2761 = vmatpush1.bf16.msra.mxu0 %v2548
        %2762 = vmatprep.subr.bf16.mxu0 0
        %2763 = vmatpush1.bf16.msra.mxu0 %v2549
        %2764 = vmatprep.subr.bf16.mxu0 0
        %2765 = vmatpush1.bf16.msra.mxu0 %v2550
        %2766 = vmatprep.subr.bf16.mxu0 0
        %2767 = vmatpush1.bf16.msra.mxu0 %v2551
        %2768 = vmatprep.subr.bf16.mxu0 0
        %2769 = vmatpush1.bf16.msra.mxu0 %v2552
        %2770 = vmatprep.subr.bf16.mxu0 0
        %2771 = vmatpush1.bf16.msra.mxu0 0
        %2772 = vmatprep.subr.bf16.mxu0 0
        %2773 = vmatpush1.bf16.msra.mxu0 0
        %2774 = vmatprep.subr.bf16.mxu0 0
        %2775 = vmatpush1.bf16.msra.mxu0 0
        %2776 = vmatprep.subr.bf16.mxu0 0
        %2777 = vmatpush1.bf16.msra.mxu0 0
        %2778 = vmatprep.subr.bf16.mxu0 0
        %2779 = vmatpush1.bf16.msra.mxu0 0
        %2780 = vmatprep.subr.bf16.mxu0 0
        %2781 = vmatpush1.bf16.msra.mxu0 0
        %2782 = vmatprep.subr.bf16.mxu0 0
        %2783 = vmatpush1.bf16.msra.mxu0 0
        %2784 = vmatprep.subr.bf16.mxu0 0
        %2785 = vmatpush1.bf16.msra.mxu0 0
        %2786 = vmatprep.mubr.bf16.mxu0 0
        %2787 = vmatmul.mubr.bf16.gmra.mrb[0].mxu0 %v1675
        %v2788 = vpop.f32.mrb[0].mxu0
        %v2789 = vadd.f32 %v2612, %v2788
        %v2790 = vpop.f32.mrb[0].mxu0
        %v2791 = vpop.f32.mrb[0].mxu0
        %v2792 = vadd.f32 %v2615, %v2791
        %v2793 = vpop.f32.mrb[0].mxu0
        %2794 = vmatprep.mubr.bf16.mxu0 0
        %2795 = vmatmul.mubr.bf16.gmra.mrb[0].mxu0 %v1678
        %v2796 = vpop.f32.mrb[0].mxu0
        %v2797 = vadd.f32 %v2620, %v2796
        %v2798 = vpop.f32.mrb[0].mxu0
        %v2799 = vpop.f32.mrb[0].mxu0
        %v2800 = vadd.f32 %v2623, %v2799
        %v2801 = vpop.f32.mrb[0].mxu0
        %2802 = vmatprep.mubr.bf16.mxu0 0
        %2803 = vmatmul.mubr.bf16.gmra.mrb[0].mxu0 %v1681
        %v2804 = vpop.f32.mrb[0].mxu0
        %v2805 = vadd.f32 %v2628, %v2804
        %v2806 = vpop.f32.mrb[0].mxu0
        %v2807 = vpop.f32.mrb[0].mxu0
        %v2808 = vadd.f32 %v2631, %v2807
        %v2809 = vpop.f32.mrb[0].mxu0
        %2810 = vmatprep.mubr.bf16.mxu0 0
        %2811 = vmatmul.mubr.bf16.gmra.mrb[0].mxu0 %v1684
        %v2812 = vpop.f32.mrb[0].mxu0
        %v2813 = vadd.f32 %v2636, %v2812
        %v2814 = vpop.f32.mrb[0].mxu0
        %v2815 = vpop.f32.mrb[0].mxu0
        %v2816 = vadd.f32 %v2639, %v2815
        %v2817 = vpop.f32.mrb[0].mxu0
        %2818 = vmatprep.mubr.bf16.mxu0 0
        %2819 = vmatmul.mubr.bf16.gmra.mrb[0].mxu0 %v1687
        %v2820 = vpop.f32.mrb[0].mxu0
        %v2821 = vadd.f32 %v2644, %v2820
        %v2822 = vpop.f32.mrb[0].mxu0
        %v2823 = vpop.f32.mrb[0].mxu0
        %v2824 = vadd.f32 %v2647, %v2823
        %v2825 = vpop.f32.mrb[0].mxu0
        %2826 = vmatprep.mubr.bf16.mxu0 0
        %2827 = vmatmul.mubr.bf16.gmra.mrb[0].mxu0 %v1690
        %v2828 = vpop.f32.mrb[0].mxu0
        %v2829 = vadd.f32 %v2652, %v2828
        %v2830 = vpop.f32.mrb[0].mxu0
        %v2831 = vpop.f32.mrb[0].mxu0
        %v2832 = vadd.f32 %v2655, %v2831
        %v2833 = vpop.f32.mrb[0].mxu0
        %2834 = vmatprep.mubr.bf16.mxu0 0
        %2835 = vmatmul.mubr.bf16.gmra.mrb[0].mxu0 %v1693
        %v2836 = vpop.f32.mrb[0].mxu0
        %v2837 = vadd.f32 %v2660, %v2836
        %v2838 = vpop.f32.mrb[0].mxu0
        %v2839 = vpop.f32.mrb[0].mxu0
        %v2840 = vadd.f32 %v2663, %v2839
        %v2841 = vpop.f32.mrb[0].mxu0
        %2842 = vmatprep.mubr.bf16.mxu0 0
        %2843 = vmatmul.mubr.bf16.gmra.mrb[0].mxu0 %v1696
        %v2844 = vpop.f32.mrb[0].mxu0
        %v2845 = vadd.f32 %v2668, %v2844
        %v2846 = vpop.f32.mrb[0].mxu0
        %v2847 = vpop.f32.mrb[0].mxu0
        %v2848 = vadd.f32 %v2671, %v2847
        %v2849 = vpop.f32.mrb[0].mxu0
        %2850 = vmatprep.mubr.bf16.mxu0 0
        %2851 = vmatmul.mubr.bf16.gmra.mrb[0].mxu0 %v1699
        %v2852 = vpop.f32.mrb[0].mxu0
        %v2853 = vadd.f32 %v2676, %v2852
        %v2854 = vpop.f32.mrb[0].mxu0
        %v2855 = vpop.f32.mrb[0].mxu0
        %v2856 = vadd.f32 %v2679, %v2855
        %v2857 = vpop.f32.mrb[0].mxu0
        %2858 = vmatprep.mubr.bf16.mxu0 0
        %2859 = vmatmul.mubr.bf16.gmra.mrb[0].mxu0 %v1702
        %v2860 = vpop.f32.mrb[0].mxu0
        %v2861 = vadd.f32 %v2684, %v2860
        %v2862 = vpop.f32.mrb[0].mxu0
        %v2863 = vpop.f32.mrb[0].mxu0
        %v2864 = vadd.f32 %v2687, %v2863
        %v2865 = vpop.f32.mrb[0].mxu0
        %2866 = vmatprep.mubr.bf16.mxu0 0
        %2867 = vmatmul.mubr.bf16.gmra.mrb[0].mxu0 %v1705
        %v2868 = vpop.f32.mrb[0].mxu0
        %v2869 = vadd.f32 %v2692, %v2868
        %v2870 = vpop.f32.mrb[0].mxu0
        %v2871 = vpop.f32.mrb[0].mxu0
        %v2872 = vadd.f32 %v2695, %v2871
        %v2873 = vpop.f32.mrb[0].mxu0
        %2874 = vmatprep.mubr.bf16.mxu0 0
        %2875 = vmatmul.mubr.bf16.gmra.mrb[0].mxu0 %v1708
        %v2876 = vpop.f32.mrb[0].mxu0
        %v2877 = vadd.f32 %v2700, %v2876
        %v2878 = vpop.f32.mrb[0].mxu0
        %v2879 = vpop.f32.mrb[0].mxu0
        %v2880 = vadd.f32 %v2703, %v2879
        %v2881 = vpop.f32.mrb[0].mxu0
        %2882 = vmatprep.mubr.bf16.mxu0 0
        %2883 = vmatmul.mubr.bf16.gmra.mrb[0].mxu0 %v1711
        %v2884 = vpop.f32.mrb[0].mxu0
        %v2885 = vadd.f32 %v2708, %v2884
        %v2886 = vpop.f32.mrb[0].mxu0
        %v2887 = vpop.f32.mrb[0].mxu0
        %v2888 = vadd.f32 %v2711, %v2887
        %v2889 = vpop.f32.mrb[0].mxu0
        %2890 = vmatprep.mubr.bf16.mxu0 0
        %2891 = vmatmul.mubr.bf16.gmra.mrb[0].mxu0 %v1714
        %v2892 = vpop.f32.mrb[0].mxu0
        %v2893 = vadd.f32 %v2716, %v2892
        %v2894 = vpop.f32.mrb[0].mxu0
        %v2895 = vpop.f32.mrb[0].mxu0
        %v2896 = vadd.f32 %v2719, %v2895
        %v2897 = vpop.f32.mrb[0].mxu0
        %2898 = vmatprep.mubr.bf16.mxu0 0
        %2899 = vmatmul.mubr.bf16.gmra.mrb[0].mxu0 %v1717
        %v2900 = vpop.f32.mrb[0].mxu0
        %v2901 = vadd.f32 %v2724, %v2900
        %v2902 = vpop.f32.mrb[0].mxu0
        %v2903 = vpop.f32.mrb[0].mxu0
        %v2904 = vadd.f32 %v2727, %v2903
        %v2905 = vpop.f32.mrb[0].mxu0
        %2906 = vmatprep.mubr.bf16.mxu0 0
        %2907 = vmatmul.mubr.bf16.gmra.mrb[0].mxu0 %v1720
        %v2908 = vpop.f32.mrb[0].mxu0
        %v2909 = vadd.f32 %v2732, %v2908
        %v2910 = vpop.f32.mrb[0].mxu0
        %v2911 = vpop.f32.mrb[0].mxu0
        %v2912 = vadd.f32 %v2735, %v2911
        %v2913 = vpop.f32.mrb[0].mxu0
        %2914 = vmatprep.mubr.bf16.mxu0 0
        %2915 = vmatmul.mubr.bf16.gmra.mrb[0].mxu0 %v1723
        %v2916 = vpop.f32.mrb[0].mxu0
        %v2917 = vadd.f32 %v2740, %v2916
        %v2918 = vpop.f32.mrb[0].mxu0
        %v2919 = vpop.f32.mrb[0].mxu0
        %v2920 = vadd.f32 %v2743, %v2919
        %v2921 = vpop.f32.mrb[0].mxu0
        %2922 = vmatprep.mubr.bf16.mxu0 0
        %2923 = vmatmul.mubr.bf16.gmra.mrb[0].mxu0 %v1726
        %v2924 = vpop.f32.mrb[0].mxu0
        %v2925 = vadd.f32 %v2748, %v2924
        %v2926 = vpop.f32.mrb[0].mxu0
        %v2927 = vpop.f32.mrb[0].mxu0
        %v2928 = vadd.f32 %v2751, %v2927
        %v2929 = vpop.f32.mrb[0].mxu0
        %2930 = vdwg.mxu0
        %v2931 = vld [vmem:[#allocation2 + $0x24] sm:$0xff]
        %v2932 = vld [vmem:[#allocation2 + $0x2c] sm:$0xff]
        %v2933 = vld [vmem:[#allocation2 + $0x34] sm:$0xff]
        %v2934 = vld [vmem:[#allocation2 + $0x3c] sm:$0xff]
        %v2935 = vld [vmem:[#allocation2 + $0x44] sm:$0xff]
        %v2936 = vld [vmem:[#allocation2 + $0x4c] sm:$0xff]
        %v2937 = vld [vmem:[#allocation2 + $0x54] sm:$0xff]
        %v2938 = vld [vmem:[#allocation2 + $0x5c] sm:$0xff]
        %v2939 = vld [vmem:[#allocation2 + $0x64] sm:$0xff]
        %v2940 = vld [vmem:[#allocation2 + $0x6c] sm:$0xff]
        %v2941 = vld [vmem:[#allocation2 + $0x74] sm:$0xff]
        %v2942 = vld [vmem:[#allocation2 + $0x7c] sm:$0xff]
        %v2943 = vld [vmem:[#allocation2 + $0x84] sm:$0xff]
        %v2944 = vld [vmem:[#allocation2 + $0x8c] sm:$0xff]
        %v2945 = vld [vmem:[#allocation2 + $0x94] sm:$0xff]
        %v2946 = vld [vmem:[#allocation2 + $0x9c] sm:$0xff]
        %v2947 = vld [vmem:[#allocation2 + $0xa4] sm:$0xff]
        %v2948 = vld [vmem:[#allocation2 + $0xac] sm:$0xff]
        %v2949 = vld [vmem:[#allocation2 + $0xb4] sm:$0xff]
        %v2950 = vld [vmem:[#allocation2 + $0xbc] sm:$0xff]
        %v2951 = vld [vmem:[#allocation2 + $0xc4] sm:$0xff]
        %v2952 = vld [vmem:[#allocation2 + $0xcc] sm:$0xff]
        %v2953 = vld [vmem:[#allocation2 + $0xd4] sm:$0xff]
        %v2954 = vld [vmem:[#allocation2 + $0xdc] sm:$0xff]
        %v2955 = vld [vmem:[#allocation2 + $0xe4] sm:$0xff]
        %v2956 = vld [vmem:[#allocation2 + $0xec] sm:$0xff]
        %v2957 = vld [vmem:[#allocation2 + $0xf4] sm:$0xff]
        %v2958 = vld [vmem:[#allocation2 + $0xfc] sm:$0xff]
        %v2959 = vld [vmem:[#allocation2 + $0x104] sm:$0xff]
        %v2960 = vld [vmem:[#allocation2 + $0x10c] sm:$0xff]
        %v2961 = vld [vmem:[#allocation2 + $0x114] sm:$0xff]
        %v2962 = vld [vmem:[#allocation2 + $0x11c] sm:$0xff]
        %v2963 = vld [vmem:[#allocation2 + $0x124] sm:$0xff]
        %v2964 = vld [vmem:[#allocation2 + $0x12c] sm:$0xff]
        %v2965 = vld [vmem:[#allocation2 + $0x134] sm:$0xff]
        %v2966 = vld [vmem:[#allocation2 + $0x13c] sm:$0xff]
        %v2967 = vld [vmem:[#allocation2 + $0x25] sm:$0xff]
        %v2968 = vld [vmem:[#allocation2 + $0x2d] sm:$0xff]
        %v2969 = vld [vmem:[#allocation2 + $0x35] sm:$0xff]
        %v2970 = vld [vmem:[#allocation2 + $0x3d] sm:$0xff]
        %v2971 = vld [vmem:[#allocation2 + $0x45] sm:$0xff]
        %v2972 = vld [vmem:[#allocation2 + $0x4d] sm:$0xff]
        %v2973 = vld [vmem:[#allocation2 + $0x55] sm:$0xff]
        %v2974 = vld [vmem:[#allocation2 + $0x5d] sm:$0xff]
        %v2975 = vld [vmem:[#allocation2 + $0x65] sm:$0xff]
        %v2976 = vld [vmem:[#allocation2 + $0x6d] sm:$0xff]
        %v2977 = vld [vmem:[#allocation2 + $0x75] sm:$0xff]
        %v2978 = vld [vmem:[#allocation2 + $0x7d] sm:$0xff]
        %v2979 = vld [vmem:[#allocation2 + $0x85] sm:$0xff]
        %v2980 = vld [vmem:[#allocation2 + $0x8d] sm:$0xff]
        %v2981 = vld [vmem:[#allocation2 + $0x95] sm:$0xff]
        %v2982 = vld [vmem:[#allocation2 + $0x9d] sm:$0xff]
        %v2983 = vld [vmem:[#allocation2 + $0xa5] sm:$0xff]
        %v2984 = vld [vmem:[#allocation2 + $0xad] sm:$0xff]
        %v2985 = vld [vmem:[#allocation2 + $0xb5] sm:$0xff]
        %v2986 = vld [vmem:[#allocation2 + $0xbd] sm:$0xff]
        %v2987 = vld [vmem:[#allocation2 + $0xc5] sm:$0xff]
        %v2988 = vld [vmem:[#allocation2 + $0xcd] sm:$0xff]
        %v2989 = vld [vmem:[#allocation2 + $0xd5] sm:$0xff]
        %v2990 = vld [vmem:[#allocation2 + $0xdd] sm:$0xff]
        %v2991 = vld [vmem:[#allocation2 + $0xe5] sm:$0xff]
        %v2992 = vld [vmem:[#allocation2 + $0xed] sm:$0xff]
        %v2993 = vld [vmem:[#allocation2 + $0xf5] sm:$0xff]
        %v2994 = vld [vmem:[#allocation2 + $0xfd] sm:$0xff]
        %v2995 = vld [vmem:[#allocation2 + $0x105] sm:$0xff]
        %v2996 = vld [vmem:[#allocation2 + $0x10d] sm:$0xff]
        %v2997 = vld [vmem:[#allocation2 + $0x115] sm:$0xff]
        %v2998 = vld [vmem:[#allocation2 + $0x11d] sm:$0xff]
        %v2999 = vld [vmem:[#allocation2 + $0x125] sm:$0xff]
        %v3000 = vld [vmem:[#allocation2 + $0x12d] sm:$0xff]
        %v3001 = vld [vmem:[#allocation2 + $0x135] sm:$0xff]
        %v3002 = vld [vmem:[#allocation2 + $0x13d] sm:$0xff]
        %v3003 = vld [vmem:[#allocation2 + $0x26] sm:$0xff]
        %v3004 = vld [vmem:[#allocation2 + $0x2e] sm:$0xff]
        %v3005 = vld [vmem:[#allocation2 + $0x36] sm:$0xff]
        %v3006 = vld [vmem:[#allocation2 + $0x3e] sm:$0xff]
        %v3007 = vld [vmem:[#allocation2 + $0x46] sm:$0xff]
        %v3008 = vld [vmem:[#allocation2 + $0x4e] sm:$0xff]
        %v3009 = vld [vmem:[#allocation2 + $0x56] sm:$0xff]
        %v3010 = vld [vmem:[#allocation2 + $0x5e] sm:$0xff]
        %v3011 = vld [vmem:[#allocation2 + $0x66] sm:$0xff]
        %v3012 = vld [vmem:[#allocation2 + $0x6e] sm:$0xff]
        %v3013 = vld [vmem:[#allocation2 + $0x76] sm:$0xff]
        %v3014 = vld [vmem:[#allocation2 + $0x7e] sm:$0xff]
        %v3015 = vld [vmem:[#allocation2 + $0x86] sm:$0xff]
        %v3016 = vld [vmem:[#allocation2 + $0x8e] sm:$0xff]
        %v3017 = vld [vmem:[#allocation2 + $0x96] sm:$0xff]
        %v3018 = vld [vmem:[#allocation2 + $0x9e] sm:$0xff]
        %v3019 = vld [vmem:[#allocation2 + $0xa6] sm:$0xff]
        %v3020 = vld [vmem:[#allocation2 + $0xae] sm:$0xff]
        %v3021 = vld [vmem:[#allocation2 + $0xb6] sm:$0xff]
        %v3022 = vld [vmem:[#allocation2 + $0xbe] sm:$0xff]
        %v3023 = vld [vmem:[#allocation2 + $0xc6] sm:$0xff]
        %v3024 = vld [vmem:[#allocation2 + $0xce] sm:$0xff]
        %v3025 = vld [vmem:[#allocation2 + $0xd6] sm:$0xff]
        %v3026 = vld [vmem:[#allocation2 + $0xde] sm:$0xff]
        %v3027 = vld [vmem:[#allocation2 + $0xe6] sm:$0xff]
        %v3028 = vld [vmem:[#allocation2 + $0xee] sm:$0xff]
        %v3029 = vld [vmem:[#allocation2 + $0xf6] sm:$0xff]
        %v3030 = vld [vmem:[#allocation2 + $0xfe] sm:$0xff]
        %v3031 = vld [vmem:[#allocation2 + $0x106] sm:$0xff]
        %v3032 = vld [vmem:[#allocation2 + $0x10e] sm:$0xff]
        %v3033 = vld [vmem:[#allocation2 + $0x116] sm:$0xff]
        %v3034 = vld [vmem:[#allocation2 + $0x11e] sm:$0xff]
        %v3035 = vld [vmem:[#allocation2 + $0x126] sm:$0xff]
        %v3036 = vld [vmem:[#allocation2 + $0x12e] sm:$0xff]
        %v3037 = vld [vmem:[#allocation2 + $0x136] sm:$0xff]
        %v3038 = vld [vmem:[#allocation2 + $0x13e] sm:$0xff]
        %v3039 = vpack.c.bf16 %v2932, %v2931
        %v3040 = vpack.c.bf16 %v2968, %v2967
        %v3041 = vpack.c.bf16 %v3004, %v3003
        %v3042 = vpack.c.bf16 %v2934, %v2933
        %v3043 = vpack.c.bf16 %v2970, %v2969
        %v3044 = vpack.c.bf16 %v3006, %v3005
        %v3045 = vpack.c.bf16 %v2936, %v2935
        %v3046 = vpack.c.bf16 %v2972, %v2971
        %v3047 = vpack.c.bf16 %v3008, %v3007
        %v3048 = vpack.c.bf16 %v2938, %v2937
        %v3049 = vpack.c.bf16 %v2974, %v2973
        %v3050 = vpack.c.bf16 %v3010, %v3009
        %v3051 = vpack.c.bf16 %v2940, %v2939
        %v3052 = vpack.c.bf16 %v2976, %v2975
        %v3053 = vpack.c.bf16 %v3012, %v3011
        %v3054 = vpack.c.bf16 %v2942, %v2941
        %v3055 = vpack.c.bf16 %v2978, %v2977
        %v3056 = vpack.c.bf16 %v3014, %v3013
        %v3057 = vpack.c.bf16 %v2944, %v2943
        %v3058 = vpack.c.bf16 %v2980, %v2979
        %v3059 = vpack.c.bf16 %v3016, %v3015
        %v3060 = vpack.c.bf16 %v2946, %v2945
        %v3061 = vpack.c.bf16 %v2982, %v2981
        %v3062 = vpack.c.bf16 %v3018, %v3017
        %v3063 = vpack.c.bf16 %v2948, %v2947
        %v3064 = vpack.c.bf16 %v2984, %v2983
        %v3065 = vpack.c.bf16 %v3020, %v3019
        %v3066 = vpack.c.bf16 %v2950, %v2949
        %v3067 = vpack.c.bf16 %v2986, %v2985
        %v3068 = vpack.c.bf16 %v3022, %v3021
        %v3069 = vpack.c.bf16 %v2952, %v2951
        %v3070 = vpack.c.bf16 %v2988, %v2987
        %v3071 = vpack.c.bf16 %v3024, %v3023
        %v3072 = vpack.c.bf16 %v2954, %v2953
        %v3073 = vpack.c.bf16 %v2990, %v2989
        %v3074 = vpack.c.bf16 %v3026, %v3025
        %v3075 = vpack.c.bf16 %v2956, %v2955
        %v3076 = vpack.c.bf16 %v2992, %v2991
        %v3077 = vpack.c.bf16 %v3028, %v3027
        %v3078 = vpack.c.bf16 %v2958, %v2957
        %v3079 = vpack.c.bf16 %v2994, %v2993
        %v3080 = vpack.c.bf16 %v3030, %v3029
        %v3081 = vpack.c.bf16 %v2960, %v2959
        %v3082 = vpack.c.bf16 %v2996, %v2995
        %v3083 = vpack.c.bf16 %v3032, %v3031
        %v3084 = vpack.c.bf16 %v2962, %v2961
        %v3085 = vpack.c.bf16 %v2998, %v2997
        %v3086 = vpack.c.bf16 %v3034, %v3033
        %v3087 = vpack.c.bf16 %v2964, %v2963
        %v3088 = vpack.c.bf16 %v3000, %v2999
        %v3089 = vpack.c.bf16 %v3036, %v3035
        %v3090 = vpack.c.bf16 %v2966, %v2965
        %v3091 = vpack.c.bf16 %v3002, %v3001
        %v3092 = vpack.c.bf16 %v3038, %v3037
        %s3093 = scalar_lea.vmem [#allocation13], 384
        %v3094 = vld [vmem:[%s3093] sm:$0xf]
        %v3095 = vld [vmem:[%s3093 + $0x4] sm:$0xf]
        %v3096 = vld [vmem:[%s3093 + $0x8] sm:$0xf]
        %v3097 = vld [vmem:[%s3093 + $0xc] sm:$0xf]
        %v3098 = vld [vmem:[%s3093 + $0x10] sm:$0xf]
        %v3099 = vld [vmem:[%s3093 + $0x14] sm:$0xf]
        %v3100 = vld [vmem:[%s3093 + $0x18] sm:$0xf]
        %v3101 = vld [vmem:[%s3093 + $0x1c] sm:$0xf]
        %v3102 = vld [vmem:[%s3093 + $0x20] sm:$0xf]
        %v3103 = vld [vmem:[%s3093 + $0x24] sm:$0xf]
        %v3104 = vld [vmem:[%s3093 + $0x28] sm:$0xf]
        %v3105 = vld [vmem:[%s3093 + $0x2c] sm:$0xf]
        %v3106 = vld [vmem:[%s3093 + $0x30] sm:$0xf]
        %v3107 = vld [vmem:[%s3093 + $0x34] sm:$0xf]
        %v3108 = vld [vmem:[%s3093 + $0x38] sm:$0xf]
        %v3109 = vld [vmem:[%s3093 + $0x3c] sm:$0xf]
        %v3110 = vld [vmem:[%s3093 + $0x40] sm:$0xf]
        %v3111 = vld [vmem:[%s3093 + $0x44] sm:$0xf]
        %v3112 = vld [vmem:[%s3093 + $0x48] sm:$0xf]
        %v3113 = vld [vmem:[%s3093 + $0x4c] sm:$0xf]
        %v3114 = vld [vmem:[%s3093 + $0x50] sm:$0xf]
        %v3115 = vld [vmem:[%s3093 + $0x54] sm:$0xf]
        %v3116 = vld [vmem:[%s3093 + $0x58] sm:$0xf]
        %v3117 = vld [vmem:[%s3093 + $0x5c] sm:$0xf]
        %v3118 = vld [vmem:[%s3093 + $0x60] sm:$0xf]
        %v3119 = vld [vmem:[%s3093 + $0x64] sm:$0xf]
        %v3120 = vld [vmem:[%s3093 + $0x68] sm:$0xf]
        %v3121 = vld [vmem:[%s3093 + $0x6c] sm:$0xf]
        %v3122 = vld [vmem:[%s3093 + $0x70] sm:$0xf]
        %v3123 = vld [vmem:[%s3093 + $0x74] sm:$0xf]
        %v3124 = vld [vmem:[%s3093 + $0x78] sm:$0xf]
        %v3125 = vld [vmem:[%s3093 + $0x7c] sm:$0xf]
        %v3126 = vld [vmem:[%s3093 + $0x80] sm:$0xf]
        %v3127 = vld [vmem:[%s3093 + $0x84] sm:$0xf]
        %v3128 = vld [vmem:[%s3093 + $0x88] sm:$0xf]
        %v3129 = vld [vmem:[%s3093 + $0x8c] sm:$0xf]
        %v3130 = vld [vmem:[%s3093 + $0x90] sm:$0xf]
        %v3131 = vld [vmem:[%s3093 + $0x94] sm:$0xf]
        %v3132 = vld [vmem:[%s3093 + $0x98] sm:$0xf]
        %v3133 = vld [vmem:[%s3093 + $0x9c] sm:$0xf]
        %v3134 = vld [vmem:[%s3093 + $0xa0] sm:$0xf]
        %v3135 = vld [vmem:[%s3093 + $0xa4] sm:$0xf]
        %v3136 = vld [vmem:[%s3093 + $0xa8] sm:$0xf]
        %v3137 = vld [vmem:[%s3093 + $0xac] sm:$0xf]
        %v3138 = vld [vmem:[%s3093 + $0xb0] sm:$0xf]
        %v3139 = vld [vmem:[%s3093 + $0xb4] sm:$0xf]
        %v3140 = vld [vmem:[%s3093 + $0xb8] sm:$0xf]
        %v3141 = vld [vmem:[%s3093 + $0xbc] sm:$0xf]
        %v3190 = vunpack.c.l.b16 %v3094
        %v3191 = vunpack.c.l.b16 %v3095
        %v3192 = vunpack.c.l.b16 %v3096
        %v3193 = vunpack.c.l.b16 %v3097
        %v3194 = vunpack.c.l.b16 %v3098
        %v3195 = vunpack.c.l.b16 %v3099
        %v3196 = vunpack.c.l.b16 %v3100
        %v3197 = vunpack.c.l.b16 %v3101
        %v3198 = vunpack.c.l.b16 %v3102
        %v3199 = vunpack.c.l.b16 %v3103
        %v3200 = vunpack.c.l.b16 %v3104
        %v3201 = vunpack.c.l.b16 %v3105
        %v3202 = vunpack.c.l.b16 %v3106
        %v3203 = vunpack.c.l.b16 %v3107
        %v3204 = vunpack.c.l.b16 %v3108
        %v3205 = vunpack.c.l.b16 %v3109
        %v3206 = vunpack.c.l.b16 %v3110
        %v3207 = vunpack.c.l.b16 %v3111
        %v3208 = vunpack.c.l.b16 %v3112
        %v3209 = vunpack.c.l.b16 %v3113
        %v3210 = vunpack.c.l.b16 %v3114
        %v3211 = vunpack.c.l.b16 %v3115
        %v3212 = vunpack.c.l.b16 %v3116
        %v3213 = vunpack.c.l.b16 %v3117
        %v3214 = vunpack.c.l.b16 %v3118
        %v3215 = vunpack.c.l.b16 %v3119
        %v3216 = vunpack.c.l.b16 %v3120
        %v3217 = vunpack.c.l.b16 %v3121
        %v3218 = vunpack.c.l.b16 %v3122
        %v3219 = vunpack.c.l.b16 %v3123
        %v3220 = vunpack.c.l.b16 %v3124
        %v3221 = vunpack.c.l.b16 %v3125
        %v3222 = vunpack.c.l.b16 %v3126
        %v3223 = vunpack.c.l.b16 %v3127
        %v3224 = vunpack.c.l.b16 %v3128
        %v3225 = vunpack.c.l.b16 %v3129
        %v3226 = vunpack.c.l.b16 %v3130
        %v3227 = vunpack.c.l.b16 %v3131
        %v3228 = vunpack.c.l.b16 %v3132
        %v3229 = vunpack.c.l.b16 %v3133
        %v3230 = vunpack.c.l.b16 %v3134
        %v3231 = vunpack.c.l.b16 %v3135
        %v3232 = vunpack.c.l.b16 %v3136
        %v3233 = vunpack.c.l.b16 %v3137
        %v3234 = vunpack.c.l.b16 %v3138
        %v3235 = vunpack.c.l.b16 %v3139
        %v3236 = vunpack.c.l.b16 %v3140
        %v3237 = vunpack.c.l.b16 %v3141
        %v3238 = vpack.c.b16 %v3191, %v3190
        %v3239 = vpack.c.b16 %v3193, %v3192
        %v3240 = vpack.c.b16 %v3195, %v3194
        %v3241 = vpack.c.b16 %v3197, %v3196
        %v3242 = vpack.c.b16 %v3199, %v3198
        %v3243 = vpack.c.b16 %v3201, %v3200
        %v3244 = vpack.c.b16 %v3203, %v3202
        %v3245 = vpack.c.b16 %v3205, %v3204
        %v3246 = vpack.c.b16 %v3207, %v3206
        %v3247 = vpack.c.b16 %v3209, %v3208
        %v3248 = vpack.c.b16 %v3211, %v3210
        %v3249 = vpack.c.b16 %v3213, %v3212
        %v3250 = vpack.c.b16 %v3215, %v3214
        %v3251 = vpack.c.b16 %v3217, %v3216
        %v3252 = vpack.c.b16 %v3219, %v3218
        %v3253 = vpack.c.b16 %v3221, %v3220
        %v3254 = vpack.c.b16 %v3223, %v3222
        %v3255 = vpack.c.b16 %v3225, %v3224
        %v3256 = vpack.c.b16 %v3227, %v3226
        %v3257 = vpack.c.b16 %v3229, %v3228
        %v3258 = vpack.c.b16 %v3231, %v3230
        %v3259 = vpack.c.b16 %v3233, %v3232
        %v3260 = vpack.c.b16 %v3235, %v3234
        %v3261 = vpack.c.b16 %v3237, %v3236
        %3286 = vmatprep.subr.bf16.mxu0 0
        %3287 = vmatpush1.bf16.msra.mxu0 %v3238
        %3288 = vmatprep.subr.bf16.mxu0 0
        %3289 = vmatpush1.bf16.msra.mxu0 %v3239
        %3290 = vmatprep.subr.bf16.mxu0 0
        %3291 = vmatpush1.bf16.msra.mxu0 %v3240
        %3292 = vmatprep.subr.bf16.mxu0 0
        %3293 = vmatpush1.bf16.msra.mxu0 %v3241
        %3294 = vmatprep.subr.bf16.mxu0 0
        %3295 = vmatpush1.bf16.msra.mxu0 %v3242
        %3296 = vmatprep.subr.bf16.mxu0 0
        %3297 = vmatpush1.bf16.msra.mxu0 %v3243
        %3298 = vmatprep.subr.bf16.mxu0 0
        %3299 = vmatpush1.bf16.msra.mxu0 %v3244
        %3300 = vmatprep.subr.bf16.mxu0 0
        %3301 = vmatpush1.bf16.msra.mxu0 %v3245
        %3302 = vmatprep.subr.bf16.mxu0 0
        %3303 = vmatpush1.bf16.msra.mxu0 %v3246
        %3304 = vmatprep.subr.bf16.mxu0 0
        %3305 = vmatpush1.bf16.msra.mxu0 %v3247
        %3306 = vmatprep.subr.bf16.mxu0 0
        %3307 = vmatpush1.bf16.msra.mxu0 %v3248
        %3308 = vmatprep.subr.bf16.mxu0 0
        %3309 = vmatpush1.bf16.msra.mxu0 %v3249
        %3310 = vmatprep.subr.bf16.mxu0 0
        %3311 = vmatpush1.bf16.msra.mxu0 %v3250
        %3312 = vmatprep.subr.bf16.mxu0 0
        %3313 = vmatpush1.bf16.msra.mxu0 %v3251
        %3314 = vmatprep.subr.bf16.mxu0 0
        %3315 = vmatpush1.bf16.msra.mxu0 %v3252
        %3316 = vmatprep.subr.bf16.mxu0 0
        %3317 = vmatpush1.bf16.msra.mxu0 %v3253
        %3318 = vmatprep.mubr.bf16.mxu0 %v3040
        %3319 = vmatmul.mubr.bf16.gmra.mrb[0].mxu0 %v3039
        %v3320 = vpop.f32.mrb[0].mxu0
        %v3321 = vadd.f32 0.0, %v3320
        %v3322 = vpop.f32.mrb[0].mxu0
        %v3323 = vpop.f32.mrb[0].mxu0
        %v3324 = vadd.f32 0.0, %v3323
        %v3325 = vpop.f32.mrb[0].mxu0
        %3326 = vmatprep.mubr.bf16.mxu0 %v3043
        %3327 = vmatmul.mubr.bf16.gmra.mrb[0].mxu0 %v3042
        %v3328 = vpop.f32.mrb[0].mxu0
        %v3329 = vadd.f32 0.0, %v3328
        %v3330 = vpop.f32.mrb[0].mxu0
        %v3331 = vpop.f32.mrb[0].mxu0
        %v3332 = vadd.f32 0.0, %v3331
        %v3333 = vpop.f32.mrb[0].mxu0
        %3334 = vmatprep.mubr.bf16.mxu0 %v3046
        %3335 = vmatmul.mubr.bf16.gmra.mrb[0].mxu0 %v3045
        %v3336 = vpop.f32.mrb[0].mxu0
        %v3337 = vadd.f32 0.0, %v3336
        %v3338 = vpop.f32.mrb[0].mxu0
        %v3339 = vpop.f32.mrb[0].mxu0
        %v3340 = vadd.f32 0.0, %v3339
        %v3341 = vpop.f32.mrb[0].mxu0
        %3342 = vmatprep.mubr.bf16.mxu0 %v3049
        %3343 = vmatmul.mubr.bf16.gmra.mrb[0].mxu0 %v3048
        %v3344 = vpop.f32.mrb[0].mxu0
        %v3345 = vadd.f32 0.0, %v3344
        %v3346 = vpop.f32.mrb[0].mxu0
        %v3347 = vpop.f32.mrb[0].mxu0
        %v3348 = vadd.f32 0.0, %v3347
        %v3349 = vpop.f32.mrb[0].mxu0
        %3350 = vmatprep.mubr.bf16.mxu0 %v3052
        %3351 = vmatmul.mubr.bf16.gmra.mrb[0].mxu0 %v3051
        %v3352 = vpop.f32.mrb[0].mxu0
        %v3353 = vadd.f32 0.0, %v3352
        %v3354 = vpop.f32.mrb[0].mxu0
        %v3355 = vpop.f32.mrb[0].mxu0
        %v3356 = vadd.f32 0.0, %v3355
        %v3357 = vpop.f32.mrb[0].mxu0
        %3358 = vmatprep.mubr.bf16.mxu0 %v3055
        %3359 = vmatmul.mubr.bf16.gmra.mrb[0].mxu0 %v3054
        %v3360 = vpop.f32.mrb[0].mxu0
        %v3361 = vadd.f32 0.0, %v3360
        %v3362 = vpop.f32.mrb[0].mxu0
        %v3363 = vpop.f32.mrb[0].mxu0
        %v3364 = vadd.f32 0.0, %v3363
        %v3365 = vpop.f32.mrb[0].mxu0
        %3366 = vmatprep.mubr.bf16.mxu0 %v3058
        %3367 = vmatmul.mubr.bf16.gmra.mrb[0].mxu0 %v3057
        %v3368 = vpop.f32.mrb[0].mxu0
        %v3369 = vadd.f32 0.0, %v3368
        %v3370 = vpop.f32.mrb[0].mxu0
        %v3371 = vpop.f32.mrb[0].mxu0
        %v3372 = vadd.f32 0.0, %v3371
        %v3373 = vpop.f32.mrb[0].mxu0
        %3374 = vmatprep.mubr.bf16.mxu0 %v3061
        %3375 = vmatmul.mubr.bf16.gmra.mrb[0].mxu0 %v3060
        %v3376 = vpop.f32.mrb[0].mxu0
        %v3377 = vadd.f32 0.0, %v3376
        %v3378 = vpop.f32.mrb[0].mxu0
        %v3379 = vpop.f32.mrb[0].mxu0
        %v3380 = vadd.f32 0.0, %v3379
        %v3381 = vpop.f32.mrb[0].mxu0
        %3382 = vmatprep.mubr.bf16.mxu0 %v3064
        %3383 = vmatmul.mubr.bf16.gmra.mrb[0].mxu0 %v3063
        %v3384 = vpop.f32.mrb[0].mxu0
        %v3385 = vadd.f32 0.0, %v3384
        %v3386 = vpop.f32.mrb[0].mxu0
        %v3387 = vpop.f32.mrb[0].mxu0
        %v3388 = vadd.f32 0.0, %v3387
        %v3389 = vpop.f32.mrb[0].mxu0
        %3390 = vmatprep.mubr.bf16.mxu0 %v3067
        %3391 = vmatmul.mubr.bf16.gmra.mrb[0].mxu0 %v3066
        %v3392 = vpop.f32.mrb[0].mxu0
        %v3393 = vadd.f32 0.0, %v3392
        %v3394 = vpop.f32.mrb[0].mxu0
        %v3395 = vpop.f32.mrb[0].mxu0
        %v3396 = vadd.f32 0.0, %v3395
        %v3397 = vpop.f32.mrb[0].mxu0
        %3398 = vmatprep.mubr.bf16.mxu0 %v3070
        %3399 = vmatmul.mubr.bf16.gmra.mrb[0].mxu0 %v3069
        %v3400 = vpop.f32.mrb[0].mxu0
        %v3401 = vadd.f32 0.0, %v3400
        %v3402 = vpop.f32.mrb[0].mxu0
        %v3403 = vpop.f32.mrb[0].mxu0
        %v3404 = vadd.f32 0.0, %v3403
        %v3405 = vpop.f32.mrb[0].mxu0
        %3406 = vmatprep.mubr.bf16.mxu0 %v3073
        %3407 = vmatmul.mubr.bf16.gmra.mrb[0].mxu0 %v3072
        %v3408 = vpop.f32.mrb[0].mxu0
        %v3409 = vadd.f32 0.0, %v3408
        %v3410 = vpop.f32.mrb[0].mxu0
        %v3411 = vpop.f32.mrb[0].mxu0
        %v3412 = vadd.f32 0.0, %v3411
        %v3413 = vpop.f32.mrb[0].mxu0
        %3414 = vmatprep.mubr.bf16.mxu0 %v3076
        %3415 = vmatmul.mubr.bf16.gmra.mrb[0].mxu0 %v3075
        %v3416 = vpop.f32.mrb[0].mxu0
        %v3417 = vadd.f32 0.0, %v3416
        %v3418 = vpop.f32.mrb[0].mxu0
        %v3419 = vpop.f32.mrb[0].mxu0
        %v3420 = vadd.f32 0.0, %v3419
        %v3421 = vpop.f32.mrb[0].mxu0
        %3422 = vmatprep.mubr.bf16.mxu0 %v3079
        %3423 = vmatmul.mubr.bf16.gmra.mrb[0].mxu0 %v3078
        %v3424 = vpop.f32.mrb[0].mxu0
        %v3425 = vadd.f32 0.0, %v3424
        %v3426 = vpop.f32.mrb[0].mxu0
        %v3427 = vpop.f32.mrb[0].mxu0
        %v3428 = vadd.f32 0.0, %v3427
        %v3429 = vpop.f32.mrb[0].mxu0
        %3430 = vmatprep.mubr.bf16.mxu0 %v3082
        %3431 = vmatmul.mubr.bf16.gmra.mrb[0].mxu0 %v3081
        %v3432 = vpop.f32.mrb[0].mxu0
        %v3433 = vadd.f32 0.0, %v3432
        %v3434 = vpop.f32.mrb[0].mxu0
        %v3435 = vpop.f32.mrb[0].mxu0
        %v3436 = vadd.f32 0.0, %v3435
        %v3437 = vpop.f32.mrb[0].mxu0
        %3438 = vmatprep.mubr.bf16.mxu0 %v3085
        %3439 = vmatmul.mubr.bf16.gmra.mrb[0].mxu0 %v3084
        %v3440 = vpop.f32.mrb[0].mxu0
        %v3441 = vadd.f32 0.0, %v3440
        %v3442 = vpop.f32.mrb[0].mxu0
        %v3443 = vpop.f32.mrb[0].mxu0
        %v3444 = vadd.f32 0.0, %v3443
        %v3445 = vpop.f32.mrb[0].mxu0
        %3446 = vmatprep.mubr.bf16.mxu0 %v3088
        %3447 = vmatmul.mubr.bf16.gmra.mrb[0].mxu0 %v3087
        %v3448 = vpop.f32.mrb[0].mxu0
        %v3449 = vadd.f32 0.0, %v3448
        %v3450 = vpop.f32.mrb[0].mxu0
        %v3451 = vpop.f32.mrb[0].mxu0
        %v3452 = vadd.f32 0.0, %v3451
        %v3453 = vpop.f32.mrb[0].mxu0
        %3454 = vmatprep.mubr.bf16.mxu0 %v3091
        %3455 = vmatmul.mubr.bf16.gmra.mrb[0].mxu0 %v3090
        %v3456 = vpop.f32.mrb[0].mxu0
        %v3457 = vadd.f32 0.0, %v3456
        %v3458 = vpop.f32.mrb[0].mxu0
        %v3459 = vpop.f32.mrb[0].mxu0
        %v3460 = vadd.f32 0.0, %v3459
        %v3461 = vpop.f32.mrb[0].mxu0
        %3462 = vdwg.mxu0
        %3463 = vmatprep.subr.bf16.mxu0 0
        %3464 = vmatpush1.bf16.msra.mxu0 %v3254
        %3465 = vmatprep.subr.bf16.mxu0 0
        %3466 = vmatpush1.bf16.msra.mxu0 %v3255
        %3467 = vmatprep.subr.bf16.mxu0 0
        %3468 = vmatpush1.bf16.msra.mxu0 %v3256
        %3469 = vmatprep.subr.bf16.mxu0 0
        %3470 = vmatpush1.bf16.msra.mxu0 %v3257
        %3471 = vmatprep.subr.bf16.mxu0 0
        %3472 = vmatpush1.bf16.msra.mxu0 %v3258
        %3473 = vmatprep.subr.bf16.mxu0 0
        %3474 = vmatpush1.bf16.msra.mxu0 %v3259
        %3475 = vmatprep.subr.bf16.mxu0 0
        %3476 = vmatpush1.bf16.msra.mxu0 %v3260
        %3477 = vmatprep.subr.bf16.mxu0 0
        %3478 = vmatpush1.bf16.msra.mxu0 %v3261
        %3479 = vmatprep.subr.bf16.mxu0 0
        %3480 = vmatpush1.bf16.msra.mxu0 0
        %3481 = vmatprep.subr.bf16.mxu0 0
        %3482 = vmatpush1.bf16.msra.mxu0 0
        %3483 = vmatprep.subr.bf16.mxu0 0
        %3484 = vmatpush1.bf16.msra.mxu0 0
        %3485 = vmatprep.subr.bf16.mxu0 0
        %3486 = vmatpush1.bf16.msra.mxu0 0
        %3487 = vmatprep.subr.bf16.mxu0 0
        %3488 = vmatpush1.bf16.msra.mxu0 0
        %3489 = vmatprep.subr.bf16.mxu0 0
        %3490 = vmatpush1.bf16.msra.mxu0 0
        %3491 = vmatprep.subr.bf16.mxu0 0
        %3492 = vmatpush1.bf16.msra.mxu0 0
        %3493 = vmatprep.subr.bf16.mxu0 0
        %3494 = vmatpush1.bf16.msra.mxu0 0
        %3495 = vmatprep.mubr.bf16.mxu0 0
        %3496 = vmatmul.mubr.bf16.gmra.mrb[0].mxu0 %v3041
        %v3497 = vpop.f32.mrb[0].mxu0
        %v3498 = vadd.f32 %v3321, %v3497
        %v3499 = vpop.f32.mrb[0].mxu0
        %v3500 = vpop.f32.mrb[0].mxu0
        %v3501 = vadd.f32 %v3324, %v3500
        %v3502 = vpop.f32.mrb[0].mxu0
        %3503 = vmatprep.mubr.bf16.mxu0 0
        %3504 = vmatmul.mubr.bf16.gmra.mrb[0].mxu0 %v3044
        %v3505 = vpop.f32.mrb[0].mxu0
        %v3506 = vadd.f32 %v3329, %v3505
        %v3507 = vpop.f32.mrb[0].mxu0
        %v3508 = vpop.f32.mrb[0].mxu0
        %v3509 = vadd.f32 %v3332, %v3508
        %v3510 = vpop.f32.mrb[0].mxu0
        %3511 = vmatprep.mubr.bf16.mxu0 0
        %3512 = vmatmul.mubr.bf16.gmra.mrb[0].mxu0 %v3047
        %v3513 = vpop.f32.mrb[0].mxu0
        %v3514 = vadd.f32 %v3337, %v3513
        %v3515 = vpop.f32.mrb[0].mxu0
        %v3516 = vpop.f32.mrb[0].mxu0
        %v3517 = vadd.f32 %v3340, %v3516
        %v3518 = vpop.f32.mrb[0].mxu0
        %3519 = vmatprep.mubr.bf16.mxu0 0
        %3520 = vmatmul.mubr.bf16.gmra.mrb[0].mxu0 %v3050
        %v3521 = vpop.f32.mrb[0].mxu0
        %v3522 = vadd.f32 %v3345, %v3521
        %v3523 = vpop.f32.mrb[0].mxu0
        %v3524 = vpop.f32.mrb[0].mxu0
        %v3525 = vadd.f32 %v3348, %v3524
        %v3526 = vpop.f32.mrb[0].mxu0
        %3527 = vmatprep.mubr.bf16.mxu0 0
        %3528 = vmatmul.mubr.bf16.gmra.mrb[0].mxu0 %v3053
        %v3529 = vpop.f32.mrb[0].mxu0
        %v3530 = vadd.f32 %v3353, %v3529
        %v3531 = vpop.f32.mrb[0].mxu0
        %v3532 = vpop.f32.mrb[0].mxu0
        %v3533 = vadd.f32 %v3356, %v3532
        %v3534 = vpop.f32.mrb[0].mxu0
        %3535 = vmatprep.mubr.bf16.mxu0 0
        %3536 = vmatmul.mubr.bf16.gmra.mrb[0].mxu0 %v3056
        %v3537 = vpop.f32.mrb[0].mxu0
        %v3538 = vadd.f32 %v3361, %v3537
        %v3539 = vpop.f32.mrb[0].mxu0
        %v3540 = vpop.f32.mrb[0].mxu0
        %v3541 = vadd.f32 %v3364, %v3540
        %v3542 = vpop.f32.mrb[0].mxu0
        %3543 = vmatprep.mubr.bf16.mxu0 0
        %3544 = vmatmul.mubr.bf16.gmra.mrb[0].mxu0 %v3059
        %v3545 = vpop.f32.mrb[0].mxu0
        %v3546 = vadd.f32 %v3369, %v3545
        %v3547 = vpop.f32.mrb[0].mxu0
        %v3548 = vpop.f32.mrb[0].mxu0
        %v3549 = vadd.f32 %v3372, %v3548
        %v3550 = vpop.f32.mrb[0].mxu0
        %3551 = vmatprep.mubr.bf16.mxu0 0
        %3552 = vmatmul.mubr.bf16.gmra.mrb[0].mxu0 %v3062
        %v3553 = vpop.f32.mrb[0].mxu0
        %v3554 = vadd.f32 %v3377, %v3553
        %v3555 = vpop.f32.mrb[0].mxu0
        %v3556 = vpop.f32.mrb[0].mxu0
        %v3557 = vadd.f32 %v3380, %v3556
        %v3558 = vpop.f32.mrb[0].mxu0
        %3559 = vmatprep.mubr.bf16.mxu0 0
        %3560 = vmatmul.mubr.bf16.gmra.mrb[0].mxu0 %v3065
        %v3561 = vpop.f32.mrb[0].mxu0
        %v3562 = vadd.f32 %v3385, %v3561
        %v3563 = vpop.f32.mrb[0].mxu0
        %v3564 = vpop.f32.mrb[0].mxu0
        %v3565 = vadd.f32 %v3388, %v3564
        %v3566 = vpop.f32.mrb[0].mxu0
        %3567 = vmatprep.mubr.bf16.mxu0 0
        %3568 = vmatmul.mubr.bf16.gmra.mrb[0].mxu0 %v3068
        %v3569 = vpop.f32.mrb[0].mxu0
        %v3570 = vadd.f32 %v3393, %v3569
        %v3571 = vpop.f32.mrb[0].mxu0
        %v3572 = vpop.f32.mrb[0].mxu0
        %v3573 = vadd.f32 %v3396, %v3572
        %v3574 = vpop.f32.mrb[0].mxu0
        %3575 = vmatprep.mubr.bf16.mxu0 0
        %3576 = vmatmul.mubr.bf16.gmra.mrb[0].mxu0 %v3071
        %v3577 = vpop.f32.mrb[0].mxu0
        %v3578 = vadd.f32 %v3401, %v3577
        %v3579 = vpop.f32.mrb[0].mxu0
        %v3580 = vpop.f32.mrb[0].mxu0
        %v3581 = vadd.f32 %v3404, %v3580
        %v3582 = vpop.f32.mrb[0].mxu0
        %3583 = vmatprep.mubr.bf16.mxu0 0
        %3584 = vmatmul.mubr.bf16.gmra.mrb[0].mxu0 %v3074
        %v3585 = vpop.f32.mrb[0].mxu0
        %v3586 = vadd.f32 %v3409, %v3585
        %v3587 = vpop.f32.mrb[0].mxu0
        %v3588 = vpop.f32.mrb[0].mxu0
        %v3589 = vadd.f32 %v3412, %v3588
        %v3590 = vpop.f32.mrb[0].mxu0
        %3591 = vmatprep.mubr.bf16.mxu0 0
        %3592 = vmatmul.mubr.bf16.gmra.mrb[0].mxu0 %v3077
        %v3593 = vpop.f32.mrb[0].mxu0
        %v3594 = vadd.f32 %v3417, %v3593
        %v3595 = vpop.f32.mrb[0].mxu0
        %v3596 = vpop.f32.mrb[0].mxu0
        %v3597 = vadd.f32 %v3420, %v3596
        %v3598 = vpop.f32.mrb[0].mxu0
        %3599 = vmatprep.mubr.bf16.mxu0 0
        %3600 = vmatmul.mubr.bf16.gmra.mrb[0].mxu0 %v3080
        %v3601 = vpop.f32.mrb[0].mxu0
        %v3602 = vadd.f32 %v3425, %v3601
        %v3603 = vpop.f32.mrb[0].mxu0
        %v3604 = vpop.f32.mrb[0].mxu0
        %v3605 = vadd.f32 %v3428, %v3604
        %v3606 = vpop.f32.mrb[0].mxu0
        %3607 = vmatprep.mubr.bf16.mxu0 0
        %3608 = vmatmul.mubr.bf16.gmra.mrb[0].mxu0 %v3083
        %v3609 = vpop.f32.mrb[0].mxu0
        %v3610 = vadd.f32 %v3433, %v3609
        %v3611 = vpop.f32.mrb[0].mxu0
        %v3612 = vpop.f32.mrb[0].mxu0
        %v3613 = vadd.f32 %v3436, %v3612
        %v3614 = vpop.f32.mrb[0].mxu0
        %3615 = vmatprep.mubr.bf16.mxu0 0
        %3616 = vmatmul.mubr.bf16.gmra.mrb[0].mxu0 %v3086
        %v3617 = vpop.f32.mrb[0].mxu0
        %v3618 = vadd.f32 %v3441, %v3617
        %v3619 = vpop.f32.mrb[0].mxu0
        %v3620 = vpop.f32.mrb[0].mxu0
        %v3621 = vadd.f32 %v3444, %v3620
        %v3622 = vpop.f32.mrb[0].mxu0
        %3623 = vmatprep.mubr.bf16.mxu0 0
        %3624 = vmatmul.mubr.bf16.gmra.mrb[0].mxu0 %v3089
        %v3625 = vpop.f32.mrb[0].mxu0
        %v3626 = vadd.f32 %v3449, %v3625
        %v3627 = vpop.f32.mrb[0].mxu0
        %v3628 = vpop.f32.mrb[0].mxu0
        %v3629 = vadd.f32 %v3452, %v3628
        %v3630 = vpop.f32.mrb[0].mxu0
        %3631 = vmatprep.mubr.bf16.mxu0 0
        %3632 = vmatmul.mubr.bf16.gmra.mrb[0].mxu0 %v3092
        %v3633 = vpop.f32.mrb[0].mxu0
        %v3634 = vadd.f32 %v3457, %v3633
        %v3635 = vpop.f32.mrb[0].mxu0
        %v3636 = vpop.f32.mrb[0].mxu0
        %v3637 = vadd.f32 %v3460, %v3636
        %v3638 = vpop.f32.mrb[0].mxu0
        %3639 = vdwg.mxu0
        %v3640 = vadd.f32 %v2789, %v3498
        %v3641 = vadd.f32 %v2792, %v3501
        %v3642 = vadd.f32 %v2797, %v3506
        %v3643 = vadd.f32 %v2800, %v3509
        %v3644 = vadd.f32 %v2805, %v3514
        %v3645 = vadd.f32 %v2808, %v3517
        %v3646 = vadd.f32 %v2813, %v3522
        %v3647 = vadd.f32 %v2816, %v3525
        %v3648 = vadd.f32 %v2821, %v3530
        %v3649 = vadd.f32 %v2824, %v3533
        %v3650 = vadd.f32 %v2829, %v3538
        %v3651 = vadd.f32 %v2832, %v3541
        %v3652 = vadd.f32 %v2837, %v3546
        %v3653 = vadd.f32 %v2840, %v3549
        %v3654 = vadd.f32 %v2845, %v3554
        %v3655 = vadd.f32 %v2848, %v3557
        %v3656 = vadd.f32 %v2853, %v3562
        %v3657 = vadd.f32 %v2856, %v3565
        %v3658 = vadd.f32 %v2861, %v3570
        %v3659 = vadd.f32 %v2864, %v3573
        %v3660 = vadd.f32 %v2869, %v3578
        %v3661 = vadd.f32 %v2872, %v3581
        %v3662 = vadd.f32 %v2877, %v3586
        %v3663 = vadd.f32 %v2880, %v3589
        %v3664 = vadd.f32 %v2885, %v3594
        %v3665 = vadd.f32 %v2888, %v3597
        %v3666 = vadd.f32 %v2893, %v3602
        %v3667 = vadd.f32 %v2896, %v3605
        %v3668 = vadd.f32 %v2901, %v3610
        %v3669 = vadd.f32 %v2904, %v3613
        %v3670 = vadd.f32 %v2909, %v3618
        %v3671 = vadd.f32 %v2912, %v3621
        %v3672 = vadd.f32 %v2917, %v3626
        %v3673 = vadd.f32 %v2920, %v3629
        %v3674 = vadd.f32 %v2925, %v3634
        %v3675 = vadd.f32 %v2928, %v3637
        %3676 = vst [vmem:[#allocation3] sm:$0xff] %v3640
        %3677 = vst [vmem:[#allocation3 + $0x8] sm:$0xff] %v3641
        %3678 = vst [vmem:[#allocation3 + $0x10] sm:$0xff] %v3642
        %3679 = vst [vmem:[#allocation3 + $0x18] sm:$0xff] %v3643
        %3680 = vst [vmem:[#allocation3 + $0x20] sm:$0xff] %v3644
        %3681 = vst [vmem:[#allocation3 + $0x28] sm:$0xff] %v3645
        %3682 = vst [vmem:[#allocation3 + $0x30] sm:$0xff] %v3646
        %3683 = vst [vmem:[#allocation3 + $0x38] sm:$0xff] %v3647
        %3684 = vst [vmem:[#allocation3 + $0x40] sm:$0xff] %v3648
        %3685 = vst [vmem:[#allocation3 + $0x48] sm:$0xff] %v3649
        %3686 = vst [vmem:[#allocation3 + $0x50] sm:$0xff] %v3650
        %3687 = vst [vmem:[#allocation3 + $0x58] sm:$0xff] %v3651
        %3688 = vst [vmem:[#allocation3 + $0x60] sm:$0xff] %v3652
        %3689 = vst [vmem:[#allocation3 + $0x68] sm:$0xff] %v3653
        %3690 = vst [vmem:[#allocation3 + $0x70] sm:$0xff] %v3654
        %3691 = vst [vmem:[#allocation3 + $0x78] sm:$0xff] %v3655
        %3692 = vst [vmem:[#allocation3 + $0x80] sm:$0xff] %v3656
        %3693 = vst [vmem:[#allocation3 + $0x88] sm:$0xff] %v3657
        %3694 = vst [vmem:[#allocation3 + $0x90] sm:$0xff] %v3658
        %3695 = vst [vmem:[#allocation3 + $0x98] sm:$0xff] %v3659
        %3696 = vst [vmem:[#allocation3 + $0xa0] sm:$0xff] %v3660
        %3697 = vst [vmem:[#allocation3 + $0xa8] sm:$0xff] %v3661
        %3698 = vst [vmem:[#allocation3 + $0xb0] sm:$0xff] %v3662
        %3699 = vst [vmem:[#allocation3 + $0xb8] sm:$0xff] %v3663
        %3700 = vst [vmem:[#allocation3 + $0xc0] sm:$0xff] %v3664
        %3701 = vst [vmem:[#allocation3 + $0xc8] sm:$0xff] %v3665
        %3702 = vst [vmem:[#allocation3 + $0xd0] sm:$0xff] %v3666
        %3703 = vst [vmem:[#allocation3 + $0xd8] sm:$0xff] %v3667
        %3704 = vst [vmem:[#allocation3 + $0xe0] sm:$0xff] %v3668
        %3705 = vst [vmem:[#allocation3 + $0xe8] sm:$0xff] %v3669
        %3706 = vst [vmem:[#allocation3 + $0xf0] sm:$0xff] %v3670
        %3707 = vst [vmem:[#allocation3 + $0xf8] sm:$0xff] %v3671
        %3708 = vst [vmem:[#allocation3 + $0x100] sm:$0xff] %v3672
        %3709 = vst [vmem:[#allocation3 + $0x108] sm:$0xff] %v3673
        %3710 = vst [vmem:[#allocation3 + $0x110] sm:$0xff] %v3674
        %3711 = vst [vmem:[#allocation3 + $0x118] sm:$0xff] %v3675
        %v3712 = vld [vmem:[#allocation3] sm:$0xff]
        %v3713 = vld [vmem:[#allocation3 + $0x8] sm:$0xff]
        %v3714 = vld [vmem:[#allocation3 + $0x12] sm:$0xff]
        %v3715 = vld [vmem:[#allocation3 + $0x1a] sm:$0xff]
        %v3716 = vld [vmem:[#allocation3 + $0x24] sm:$0xff]
        %v3717 = vld [vmem:[#allocation3 + $0x2c] sm:$0xff]
        %v3718 = vld [vmem:[#allocation3 + $0x36] sm:$0xff]
        %v3719 = vld [vmem:[#allocation3 + $0x3e] sm:$0xff]
        %v3720 = vld [vmem:[#allocation3 + $0x48] sm:$0xff]
        %v3721 = vld [vmem:[#allocation3 + $0x50] sm:$0xff]
        %v3722 = vld [vmem:[#allocation3 + $0x5a] sm:$0xff]
        %v3723 = vld [vmem:[#allocation3 + $0x62] sm:$0xff]
        %v3724 = vld [vmem:[#allocation3 + $0x6c] sm:$0xff]
        %v3725 = vld [vmem:[#allocation3 + $0x74] sm:$0xff]
        %v3726 = vld [vmem:[#allocation3 + $0x7e] sm:$0xff]
        %v3727 = vld [vmem:[#allocation3 + $0x86] sm:$0xff]
        %v3728 = vld [vmem:[#allocation3 + $0x90] sm:$0xff]
        %v3729 = vld [vmem:[#allocation3 + $0x98] sm:$0xff]
        %v3730 = vld [vmem:[#allocation3 + $0xa2] sm:$0xff]
        %v3731 = vld [vmem:[#allocation3 + $0xaa] sm:$0xff]
        %v3732 = vld [vmem:[#allocation3 + $0xb4] sm:$0xff]
        %v3733 = vld [vmem:[#allocation3 + $0xbc] sm:$0xff]
        %v3734 = vld [vmem:[#allocation3 + $0xc6] sm:$0xff]
        %v3735 = vld [vmem:[#allocation3 + $0xce] sm:$0xff]
        %v3736 = vld [vmem:[#allocation3 + $0xd8] sm:$0xff]
        %v3737 = vld [vmem:[#allocation3 + $0xe0] sm:$0xff]
        %v3738 = vld [vmem:[#allocation3 + $0xea] sm:$0xff]
        %v3739 = vld [vmem:[#allocation3 + $0xf2] sm:$0xff]
        %v3740 = vld [vmem:[#allocation3 + $0xfc] sm:$0xff]
        %v3741 = vld [vmem:[#allocation3 + $0x104] sm:$0xff]
        %v3742 = vld [vmem:[#allocation3 + $0x10e] sm:$0xff]
        %v3743 = vld [vmem:[#allocation3 + $0x116] sm:$0xff]
        %v3744 = vadd.f32 %v3712, %v3713
        %v3745 = vadd.f32 %v3744, %v3714
        %v3746 = vadd.f32 %v3745, %v3715
        %v3747 = vadd.f32 %v3746, %v3716
        %v3748 = vadd.f32 %v3747, %v3717
        %v3749 = vadd.f32 %v3748, %v3718
        %v3750 = vadd.f32 %v3749, %v3719
        %v3751 = vadd.f32 %v3750, %v3720
        %v3752 = vadd.f32 %v3751, %v3721
        %v3753 = vadd.f32 %v3752, %v3722
        %v3754 = vadd.f32 %v3753, %v3723
        %v3755 = vadd.f32 %v3754, %v3724
        %v3756 = vadd.f32 %v3755, %v3725
        %v3757 = vadd.f32 %v3756, %v3726
        %v3758 = vadd.f32 %v3757, %v3727
        %v3759 = vadd.f32 %v3758, %v3728
        %v3760 = vadd.f32 %v3759, %v3729
        %v3761 = vadd.f32 %v3760, %v3730
        %v3762 = vadd.f32 %v3761, %v3731
        %v3763 = vadd.f32 %v3762, %v3732
        %v3764 = vadd.f32 %v3763, %v3733
        %v3765 = vadd.f32 %v3764, %v3734
        %v3766 = vadd.f32 %v3765, %v3735
        %v3767 = vadd.f32 %v3766, %v3736
        %v3768 = vadd.f32 %v3767, %v3737
        %v3769 = vadd.f32 %v3768, %v3738
        %v3770 = vadd.f32 %v3769, %v3739
        %v3771 = vadd.f32 %v3770, %v3740
        %v3772 = vadd.f32 %v3771, %v3741
        %v3773 = vadd.f32 %v3772, %v3742
        %v3774 = vadd.f32 %v3773, %v3743
        %v3775 = vrot.slane %v3774, 4
        %v3776 = vadd.f32 %v3774, %v3775
        %v3777 = vrot.slane %v3776, 2
        %v3778 = vadd.f32 %v3776, %v3777
        %v3779 = vrot.slane %v3778, 1
        %v3780 = vadd.f32 %v3778, %v3779
        %v3781 = vmul.f32 %v3712, %v3712
        %v3782 = vmul.f32 %v3713, %v3713
        %v3783 = vmul.f32 %v3714, %v3714
        %v3784 = vmul.f32 %v3715, %v3715
        %v3785 = vmul.f32 %v3716, %v3716
        %v3786 = vmul.f32 %v3717, %v3717
        %v3787 = vmul.f32 %v3718, %v3718
        %v3788 = vmul.f32 %v3719, %v3719
        %v3789 = vmul.f32 %v3720, %v3720
        %v3790 = vmul.f32 %v3721, %v3721
        %v3791 = vmul.f32 %v3722, %v3722
        %v3792 = vmul.f32 %v3723, %v3723
        %v3793 = vmul.f32 %v3724, %v3724
        %v3794 = vmul.f32 %v3725, %v3725
        %v3795 = vmul.f32 %v3726, %v3726
        %v3796 = vmul.f32 %v3727, %v3727
        %v3797 = vmul.f32 %v3728, %v3728
        %v3798 = vmul.f32 %v3729, %v3729
        %v3799 = vmul.f32 %v3730, %v3730
        %v3800 = vmul.f32 %v3731, %v3731
        %v3801 = vmul.f32 %v3732, %v3732
        %v3802 = vmul.f32 %v3733, %v3733
        %v3803 = vmul.f32 %v3734, %v3734
        %v3804 = vmul.f32 %v3735, %v3735
        %v3805 = vmul.f32 %v3736, %v3736
        %v3806 = vmul.f32 %v3737, %v3737
        %v3807 = vmul.f32 %v3738, %v3738
        %v3808 = vmul.f32 %v3739, %v3739
        %v3809 = vmul.f32 %v3740, %v3740
        %v3810 = vmul.f32 %v3741, %v3741
        %v3811 = vmul.f32 %v3742, %v3742
        %v3812 = vmul.f32 %v3743, %v3743
        %v3813 = vadd.f32 %v3781, %v3782
        %v3814 = vadd.f32 %v3813, %v3783
        %v3815 = vadd.f32 %v3814, %v3784
        %v3816 = vadd.f32 %v3815, %v3785
        %v3817 = vadd.f32 %v3816, %v3786
        %v3818 = vadd.f32 %v3817, %v3787
        %v3819 = vadd.f32 %v3818, %v3788
        %v3820 = vadd.f32 %v3819, %v3789
        %v3821 = vadd.f32 %v3820, %v3790
        %v3822 = vadd.f32 %v3821, %v3791
        %v3823 = vadd.f32 %v3822, %v3792
        %v3824 = vadd.f32 %v3823, %v3793
        %v3825 = vadd.f32 %v3824, %v3794
        %v3826 = vadd.f32 %v3825, %v3795
        %v3827 = vadd.f32 %v3826, %v3796
        %v3828 = vadd.f32 %v3827, %v3797
        %v3829 = vadd.f32 %v3828, %v3798
        %v3830 = vadd.f32 %v3829, %v3799
        %v3831 = vadd.f32 %v3830, %v3800
        %v3832 = vadd.f32 %v3831, %v3801
        %v3833 = vadd.f32 %v3832, %v3802
        %v3834 = vadd.f32 %v3833, %v3803
        %v3835 = vadd.f32 %v3834, %v3804
        %v3836 = vadd.f32 %v3835, %v3805
        %v3837 = vadd.f32 %v3836, %v3806
        %v3838 = vadd.f32 %v3837, %v3807
        %v3839 = vadd.f32 %v3838, %v3808
        %v3840 = vadd.f32 %v3839, %v3809
        %v3841 = vadd.f32 %v3840, %v3810
        %v3842 = vadd.f32 %v3841, %v3811
        %v3843 = vadd.f32 %v3842, %v3812
        %v3844 = vrot.slane %v3843, 4
        %v3845 = vadd.f32 %v3843, %v3844
        %v3846 = vrot.slane %v3845, 2
        %v3847 = vadd.f32 %v3845, %v3846
        %v3848 = vrot.slane %v3847, 1
        %v3849 = vadd.f32 %v3847, %v3848
        %v3850 = vld [vmem:[#allocation27] sm:$0xff]
        %v3851 = vld [vmem:[#allocation27 + $0x8] sm:$0xff]
        %v3852 = vld [vmem:[#allocation27 + $0x10] sm:$0xff]
        %v3853 = vld [vmem:[#allocation27 + $0x18] sm:$0xff]
        %v3854 = vld [vmem:[#allocation27 + $0x20] sm:$0xff]
        %v3855 = vld [vmem:[#allocation27 + $0x28] sm:$0xff]
        %v3856 = vld [vmem:[#allocation27 + $0x30] sm:$0xff]
        %v3857 = vld [vmem:[#allocation27 + $0x38] sm:$0xff]
        %v3858 = vld [vmem:[#allocation27 + $0x40] sm:$0xff]
        %v3859 = vld [vmem:[#allocation27 + $0x48] sm:$0xff]
        %v3860 = vld [vmem:[#allocation27 + $0x50] sm:$0xff]
        %v3861 = vld [vmem:[#allocation27 + $0x58] sm:$0xff]
        %v3862 = vld [vmem:[#allocation27 + $0x60] sm:$0xff]
        %v3863 = vld [vmem:[#allocation27 + $0x68] sm:$0xff]
        %v3864 = vld [vmem:[#allocation27 + $0x70] sm:$0xff]
        %v3865 = vld [vmem:[#allocation27 + $0x78] sm:$0xff]
        %3866 = vmatprep.subr.mxu0 0.0
        %3867 = vmatpush1.msra.mxu0 %v3850
        %3868 = vmatprep.subr.mxu0 0.0
        %3869 = vmatpush1.msra.mxu0 %v3851
        %3870 = vmatprep.subr.mxu0 0.0
        %3871 = vmatpush1.msra.mxu0 %v3852
        %3872 = vmatprep.subr.mxu0 0.0
        %3873 = vmatpush1.msra.mxu0 %v3853
        %3874 = vmatprep.subr.mxu0 0.0
        %3875 = vmatpush1.msra.mxu0 %v3854
        %3876 = vmatprep.subr.mxu0 0.0
        %3877 = vmatpush1.msra.mxu0 %v3855
        %3878 = vmatprep.subr.mxu0 0.0
        %3879 = vmatpush1.msra.mxu0 %v3856
        %3880 = vmatprep.subr.mxu0 0.0
        %3881 = vmatpush1.msra.mxu0 %v3857
        %3882 = vmatprep.subr.mxu0 0.0
        %3883 = vmatpush1.msra.mxu0 %v3858
        %3884 = vmatprep.subr.mxu0 0.0
        %3885 = vmatpush1.msra.mxu0 %v3859
        %3886 = vmatprep.subr.mxu0 0.0
        %3887 = vmatpush1.msra.mxu0 %v3860
        %3888 = vmatprep.subr.mxu0 0.0
        %3889 = vmatpush1.msra.mxu0 %v3861
        %3890 = vmatprep.subr.mxu0 0.0
        %3891 = vmatpush1.msra.mxu0 %v3862
        %3892 = vmatprep.subr.mxu0 0.0
        %3893 = vmatpush1.msra.mxu0 %v3863
        %3894 = vmatprep.subr.mxu0 0.0
        %3895 = vmatpush1.msra.mxu0 %v3864
        %3896 = vmatprep.subr.mxu0 0.0
        %3897 = vmatpush1.msra.mxu0 %v3865
        %3898 = vmatprep.subr.mxu0 0.0
        %3899 = vmatpush1.msra.mxu0 0.0
        %3900 = vmatprep.subr.mxu0 0.0
        %3901 = vmatpush1.msra.mxu0 0.0
        %3902 = vmatprep.subr.mxu0 0.0
        %3903 = vmatpush1.msra.mxu0 0.0
        %3904 = vmatprep.subr.mxu0 0.0
        %3905 = vmatpush1.msra.mxu0 0.0
        %3906 = vmatprep.subr.mxu0 0.0
        %3907 = vmatpush1.msra.mxu0 0.0
        %3908 = vmatprep.subr.mxu0 0.0
        %3909 = vmatpush1.msra.mxu0 0.0
        %3910 = vmatprep.subr.mxu0 0.0
        %3911 = vmatpush1.msra.mxu0 0.0
        %3912 = vmatprep.subr.mxu0 0.0
        %3913 = vmatpush1.msra.mxu0 0.0
        %3914 = vmatprep.subr.mxu0 0.0
        %3915 = vmatpush1.msra.mxu0 0.0
        %3916 = vmatprep.subr.mxu0 0.0
        %3917 = vmatpush1.msra.mxu0 0.0
        %3918 = vmatprep.subr.mxu0 0.0
        %3919 = vmatpush1.msra.mxu0 0.0
        %3920 = vmatprep.subr.mxu0 0.0
        %3921 = vmatpush1.msra.mxu0 0.0
        %3922 = vmatprep.subr.mxu0 0.0
        %3923 = vmatpush1.msra.mxu0 0.0
        %3924 = vmatprep.subr.mxu0 0.0
        %3925 = vmatpush1.msra.mxu0 0.0
        %3926 = vmatprep.subr.mxu0 0.0
        %3927 = vmatpush1.msra.mxu0 0.0
        %3928 = vmatprep.subr.mxu0 0.0
        %3929 = vmatpush1.msra.mxu0 0.0
        %3930 = vmatprep.mubr.f32.mxu0 0.0
        %3931 = vmatmul.mubr.f32.gmra.mrb[0].mxu0 %v3780
        %v3932 = vpop.f32.mrb[0].mxu0
        %v3933 = vadd.f32 0.0, %v3932
        %v3934 = vpop.f32.mrb[0].mxu0
        %3935 = vdwg.mxu0
        %v3936 = vmul.f32 %v3933, 0.001953125
        %3937 = vmatprep.subr.mxu0 0.0
        %3938 = vmatpush1.msra.mxu0 %v3850
        %3939 = vmatprep.subr.mxu0 0.0
        %3940 = vmatpush1.msra.mxu0 %v3851
        %3941 = vmatprep.subr.mxu0 0.0
        %3942 = vmatpush1.msra.mxu0 %v3852
        %3943 = vmatprep.subr.mxu0 0.0
        %3944 = vmatpush1.msra.mxu0 %v3853
        %3945 = vmatprep.subr.mxu0 0.0
        %3946 = vmatpush1.msra.mxu0 %v3854
        %3947 = vmatprep.subr.mxu0 0.0
        %3948 = vmatpush1.msra.mxu0 %v3855
        %3949 = vmatprep.subr.mxu0 0.0
        %3950 = vmatpush1.msra.mxu0 %v3856
        %3951 = vmatprep.subr.mxu0 0.0
        %3952 = vmatpush1.msra.mxu0 %v3857
        %3953 = vmatprep.subr.mxu0 0.0
        %3954 = vmatpush1.msra.mxu0 %v3858
        %3955 = vmatprep.subr.mxu0 0.0
        %3956 = vmatpush1.msra.mxu0 %v3859
        %3957 = vmatprep.subr.mxu0 0.0
        %3958 = vmatpush1.msra.mxu0 %v3860
        %3959 = vmatprep.subr.mxu0 0.0
        %3960 = vmatpush1.msra.mxu0 %v3861
        %3961 = vmatprep.subr.mxu0 0.0
        %3962 = vmatpush1.msra.mxu0 %v3862
        %3963 = vmatprep.subr.mxu0 0.0
        %3964 = vmatpush1.msra.mxu0 %v3863
        %3965 = vmatprep.subr.mxu0 0.0
        %3966 = vmatpush1.msra.mxu0 %v3864
        %3967 = vmatprep.subr.mxu0 0.0
        %3968 = vmatpush1.msra.mxu0 %v3865
        %3969 = vmatprep.subr.mxu0 0.0
        %3970 = vmatpush1.msra.mxu0 0.0
        %3971 = vmatprep.subr.mxu0 0.0
        %3972 = vmatpush1.msra.mxu0 0.0
        %3973 = vmatprep.subr.mxu0 0.0
        %3974 = vmatpush1.msra.mxu0 0.0
        %3975 = vmatprep.subr.mxu0 0.0
        %3976 = vmatpush1.msra.mxu0 0.0
        %3977 = vmatprep.subr.mxu0 0.0
        %3978 = vmatpush1.msra.mxu0 0.0
        %3979 = vmatprep.subr.mxu0 0.0
        %3980 = vmatpush1.msra.mxu0 0.0
        %3981 = vmatprep.subr.mxu0 0.0
        %3982 = vmatpush1.msra.mxu0 0.0
        %3983 = vmatprep.subr.mxu0 0.0
        %3984 = vmatpush1.msra.mxu0 0.0
        %3985 = vmatprep.subr.mxu0 0.0
        %3986 = vmatpush1.msra.mxu0 0.0
        %3987 = vmatprep.subr.mxu0 0.0
        %3988 = vmatpush1.msra.mxu0 0.0
        %3989 = vmatprep.subr.mxu0 0.0
        %3990 = vmatpush1.msra.mxu0 0.0
        %3991 = vmatprep.subr.mxu0 0.0
        %3992 = vmatpush1.msra.mxu0 0.0
        %3993 = vmatprep.subr.mxu0 0.0
        %3994 = vmatpush1.msra.mxu0 0.0
        %3995 = vmatprep.subr.mxu0 0.0
        %3996 = vmatpush1.msra.mxu0 0.0
        %3997 = vmatprep.subr.mxu0 0.0
        %3998 = vmatpush1.msra.mxu0 0.0
        %3999 = vmatprep.subr.mxu0 0.0
        %4000 = vmatpush1.msra.mxu0 0.0
        %4001 = vmatprep.mubr.f32.mxu0 0.0
        %4002 = vmatmul.mubr.f32.gmra.mrb[0].mxu0 %v3849
        %v4003 = vpop.f32.mrb[0].mxu0
        %v4004 = vadd.f32 0.0, %v4003
        %v4005 = vpop.f32.mrb[0].mxu0
        %4006 = vdwg.mxu0
        %v4007 = vmul.f32 %v4004, 0.001953125
        %v4008 = vmul.f32 %v3936, %v3936
        %v4009 = vsub.f32 %v4007, %v4008
        %v4010 = vlaneseq
        %v4011 = vshrl.u32 %v4010, 7
        %v4012 = vsub.s32 0, %v4011
        %v4013 = vrot.slane %v3936, %v4012
        %v4014 = vsub.f32 %v3712, %v4013
        %v4015 = vsub.f32 %v3713, %v4013
        %v4016 = vsub.f32 %v3714, %v4013
        %v4017 = vsub.f32 %v3715, %v4013
        %v4018 = vsub.f32 %v3716, %v4013
        %v4019 = vsub.f32 %v3717, %v4013
        %v4020 = vsub.f32 %v3718, %v4013
        %v4021 = vsub.f32 %v3719, %v4013
        %v4022 = vsub.f32 %v3720, %v4013
        %v4023 = vsub.f32 %v3721, %v4013
        %v4024 = vsub.f32 %v3722, %v4013
        %v4025 = vsub.f32 %v3723, %v4013
        %v4026 = vsub.f32 %v3724, %v4013
        %v4027 = vsub.f32 %v3725, %v4013
        %v4028 = vsub.f32 %v3726, %v4013
        %v4029 = vsub.f32 %v3727, %v4013
        %v4030 = vsub.f32 %v3728, %v4013
        %v4031 = vsub.f32 %v3729, %v4013
        %v4032 = vsub.f32 %v3730, %v4013
        %v4033 = vsub.f32 %v3731, %v4013
        %v4034 = vsub.f32 %v3732, %v4013
        %v4035 = vsub.f32 %v3733, %v4013
        %v4036 = vsub.f32 %v3734, %v4013
        %v4037 = vsub.f32 %v3735, %v4013
        %v4038 = vsub.f32 %v3736, %v4013
        %v4039 = vsub.f32 %v3737, %v4013
        %v4040 = vsub.f32 %v3738, %v4013
        %v4041 = vsub.f32 %v3739, %v4013
        %v4042 = vsub.f32 %v3740, %v4013
        %v4043 = vsub.f32 %v3741, %v4013
        %v4044 = vsub.f32 %v3742, %v4013
        %v4045 = vsub.f32 %v3743, %v4013
        %v4046 = vadd.f32 %v4009, 1e-05
        %v4047 = vrsqrt.pop %v4046
        %v4048 = vlaneseq
        %v4049 = vshrl.u32 %v4048, 7
        %v4050 = vsub.s32 0, %v4049
        %v4051 = vrot.slane %v4047, %v4050
        %v4052 = vmul.f32 %v4014, %v4051
        %v4053 = vmul.f32 %v4015, %v4051
        %v4054 = vmul.f32 %v4016, %v4051
        %v4055 = vmul.f32 %v4017, %v4051
        %v4056 = vmul.f32 %v4018, %v4051
        %v4057 = vmul.f32 %v4019, %v4051
        %v4058 = vmul.f32 %v4020, %v4051
        %v4059 = vmul.f32 %v4021, %v4051
        %v4060 = vmul.f32 %v4022, %v4051
        %v4061 = vmul.f32 %v4023, %v4051
        %v4062 = vmul.f32 %v4024, %v4051
        %v4063 = vmul.f32 %v4025, %v4051
        %v4064 = vmul.f32 %v4026, %v4051
        %v4065 = vmul.f32 %v4027, %v4051
        %v4066 = vmul.f32 %v4028, %v4051
        %v4067 = vmul.f32 %v4029, %v4051
        %v4068 = vmul.f32 %v4030, %v4051
        %v4069 = vmul.f32 %v4031, %v4051
        %v4070 = vmul.f32 %v4032, %v4051
        %v4071 = vmul.f32 %v4033, %v4051
        %v4072 = vmul.f32 %v4034, %v4051
        %v4073 = vmul.f32 %v4035, %v4051
        %v4074 = vmul.f32 %v4036, %v4051
        %v4075 = vmul.f32 %v4037, %v4051
        %v4076 = vmul.f32 %v4038, %v4051
        %v4077 = vmul.f32 %v4039, %v4051
        %v4078 = vmul.f32 %v4040, %v4051
        %v4079 = vmul.f32 %v4041, %v4051
        %v4080 = vmul.f32 %v4042, %v4051
        %v4081 = vmul.f32 %v4043, %v4051
        %v4082 = vmul.f32 %v4044, %v4051
        %v4083 = vmul.f32 %v4045, %v4051
        %v4084 = vld [vmem:[#allocation15] sm:$0x1]
        %v4086 = vlaneseq
        %v4087 = vshrl.u32 %v4086, 7
        %v4088 = vsub.s32 0, %v4087
        %v4089 = vrot.slane %v4084, %v4088
        %v4091 = vmul.f32 %v4052, %v4089
        %v4092 = vmul.f32 %v4053, %v4089
        %v4093 = vmul.f32 %v4054, %v4089
        %v4094 = vmul.f32 %v4055, %v4089
        %v4095 = vmul.f32 %v4056, %v4089
        %v4096 = vmul.f32 %v4057, %v4089
        %v4097 = vmul.f32 %v4058, %v4089
        %v4098 = vmul.f32 %v4059, %v4089
        %v4099 = vmul.f32 %v4060, %v4089
        %v4100 = vmul.f32 %v4061, %v4089
        %v4101 = vmul.f32 %v4062, %v4089
        %v4102 = vmul.f32 %v4063, %v4089
        %v4103 = vmul.f32 %v4064, %v4089
        %v4104 = vmul.f32 %v4065, %v4089
        %v4105 = vmul.f32 %v4066, %v4089
        %v4106 = vmul.f32 %v4067, %v4089
        %v4107 = vmul.f32 %v4068, %v4089
        %v4108 = vmul.f32 %v4069, %v4089
        %v4109 = vmul.f32 %v4070, %v4089
        %v4110 = vmul.f32 %v4071, %v4089
        %v4111 = vmul.f32 %v4072, %v4089
        %v4112 = vmul.f32 %v4073, %v4089
        %v4113 = vmul.f32 %v4074, %v4089
        %v4114 = vmul.f32 %v4075, %v4089
        %v4115 = vmul.f32 %v4076, %v4089
        %v4116 = vmul.f32 %v4077, %v4089
        %v4117 = vmul.f32 %v4078, %v4089
        %v4118 = vmul.f32 %v4079, %v4089
        %v4119 = vmul.f32 %v4080, %v4089
        %v4120 = vmul.f32 %v4081, %v4089
        %v4121 = vmul.f32 %v4082, %v4089
        %v4122 = vmul.f32 %v4083, %v4089
        %v4123 = vld [vmem:[#allocation16] sm:$0x1]
        %v4125 = vlaneseq
        %v4126 = vshrl.u32 %v4125, 7
        %v4127 = vsub.s32 0, %v4126
        %v4128 = vrot.slane %v4123, %v4127
        %v4130 = vadd.f32 %v4091, %v4128
        %v4131 = vadd.f32 %v4092, %v4128
        %v4132 = vadd.f32 %v4093, %v4128
        %v4133 = vadd.f32 %v4094, %v4128
        %v4134 = vadd.f32 %v4095, %v4128
        %v4135 = vadd.f32 %v4096, %v4128
        %v4136 = vadd.f32 %v4097, %v4128
        %v4137 = vadd.f32 %v4098, %v4128
        %v4138 = vadd.f32 %v4099, %v4128
        %v4139 = vadd.f32 %v4100, %v4128
        %v4140 = vadd.f32 %v4101, %v4128
        %v4141 = vadd.f32 %v4102, %v4128
        %v4142 = vadd.f32 %v4103, %v4128
        %v4143 = vadd.f32 %v4104, %v4128
        %v4144 = vadd.f32 %v4105, %v4128
        %v4145 = vadd.f32 %v4106, %v4128
        %v4146 = vadd.f32 %v4107, %v4128
        %v4147 = vadd.f32 %v4108, %v4128
        %v4148 = vadd.f32 %v4109, %v4128
        %v4149 = vadd.f32 %v4110, %v4128
        %v4150 = vadd.f32 %v4111, %v4128
        %v4151 = vadd.f32 %v4112, %v4128
        %v4152 = vadd.f32 %v4113, %v4128
        %v4153 = vadd.f32 %v4114, %v4128
        %v4154 = vadd.f32 %v4115, %v4128
        %v4155 = vadd.f32 %v4116, %v4128
        %v4156 = vadd.f32 %v4117, %v4128
        %v4157 = vadd.f32 %v4118, %v4128
        %v4158 = vadd.f32 %v4119, %v4128
        %v4159 = vadd.f32 %v4120, %v4128
        %v4160 = vadd.f32 %v4121, %v4128
        %v4161 = vadd.f32 %v4122, %v4128
        %v4162 = vmax.f32 %v4130, 0.0
        %v4163 = vmax.f32 %v4131, 0.0
        %v4164 = vmax.f32 %v4132, 0.0
        %v4165 = vmax.f32 %v4133, 0.0
        %v4166 = vmax.f32 %v4134, 0.0
        %v4167 = vmax.f32 %v4135, 0.0
        %v4168 = vmax.f32 %v4136, 0.0
        %v4169 = vmax.f32 %v4137, 0.0
        %v4170 = vmax.f32 %v4138, 0.0
        %v4171 = vmax.f32 %v4139, 0.0
        %v4172 = vmax.f32 %v4140, 0.0
        %v4173 = vmax.f32 %v4141, 0.0
        %v4174 = vmax.f32 %v4142, 0.0
        %v4175 = vmax.f32 %v4143, 0.0
        %v4176 = vmax.f32 %v4144, 0.0
        %v4177 = vmax.f32 %v4145, 0.0
        %v4178 = vmax.f32 %v4146, 0.0
        %v4179 = vmax.f32 %v4147, 0.0
        %v4180 = vmax.f32 %v4148, 0.0
        %v4181 = vmax.f32 %v4149, 0.0
        %v4182 = vmax.f32 %v4150, 0.0
        %v4183 = vmax.f32 %v4151, 0.0
        %v4184 = vmax.f32 %v4152, 0.0
        %v4185 = vmax.f32 %v4153, 0.0
        %v4186 = vmax.f32 %v4154, 0.0
        %v4187 = vmax.f32 %v4155, 0.0
        %v4188 = vmax.f32 %v4156, 0.0
        %v4189 = vmax.f32 %v4157, 0.0
        %v4190 = vmax.f32 %v4158, 0.0
        %v4191 = vmax.f32 %v4159, 0.0
        %v4192 = vmax.f32 %v4160, 0.0
        %v4193 = vmax.f32 %v4161, 0.0
        %v4194 = vpack.c.bf16 %v4163, %v4162
        %v4195 = vpack.c.bf16 %v4165, %v4164
        %v4196 = vpack.c.bf16 %v4167, %v4166
        %v4197 = vpack.c.bf16 %v4169, %v4168
        %v4198 = vpack.c.bf16 %v4171, %v4170
        %v4199 = vpack.c.bf16 %v4173, %v4172
        %v4200 = vpack.c.bf16 %v4175, %v4174
        %v4201 = vpack.c.bf16 %v4177, %v4176
        %v4202 = vpack.c.bf16 %v4179, %v4178
        %v4203 = vpack.c.bf16 %v4181, %v4180
        %v4204 = vpack.c.bf16 %v4183, %v4182
        %v4205 = vpack.c.bf16 %v4185, %v4184
        %v4206 = vpack.c.bf16 %v4187, %v4186
        %v4207 = vpack.c.bf16 %v4189, %v4188
        %v4208 = vpack.c.bf16 %v4191, %v4190
        %v4209 = vpack.c.bf16 %v4193, %v4192
        %v4210 = vld [vmem:[#allocation18] sm:$0xf]
        %v4211 = vld [vmem:[#allocation18 + $0x4] sm:$0xf]
        %v4212 = vld [vmem:[#allocation18 + $0x8] sm:$0xf]
        %v4213 = vld [vmem:[#allocation18 + $0xc] sm:$0xf]
        %v4214 = vld [vmem:[#allocation18 + $0x10] sm:$0xf]
        %v4215 = vld [vmem:[#allocation18 + $0x14] sm:$0xf]
        %v4216 = vld [vmem:[#allocation18 + $0x18] sm:$0xf]
        %v4217 = vld [vmem:[#allocation18 + $0x1c] sm:$0xf]
        %v4218 = vld [vmem:[#allocation18 + $0x20] sm:$0xf]
        %v4219 = vld [vmem:[#allocation18 + $0x24] sm:$0xf]
        %v4220 = vld [vmem:[#allocation18 + $0x28] sm:$0xf]
        %v4221 = vld [vmem:[#allocation18 + $0x2c] sm:$0xf]
        %v4222 = vld [vmem:[#allocation18 + $0x30] sm:$0xf]
        %v4223 = vld [vmem:[#allocation18 + $0x34] sm:$0xf]
        %v4224 = vld [vmem:[#allocation18 + $0x38] sm:$0xf]
        %v4225 = vld [vmem:[#allocation18 + $0x3c] sm:$0xf]
        %v4242 = vunpack.c.l.b16 %v4210
        %v4243 = vunpack.c.l.b16 %v4211
        %v4244 = vunpack.c.l.b16 %v4212
        %v4245 = vunpack.c.l.b16 %v4213
        %v4246 = vunpack.c.l.b16 %v4214
        %v4247 = vunpack.c.l.b16 %v4215
        %v4248 = vunpack.c.l.b16 %v4216
        %v4249 = vunpack.c.l.b16 %v4217
        %v4250 = vunpack.c.l.b16 %v4218
        %v4251 = vunpack.c.l.b16 %v4219
        %v4252 = vunpack.c.l.b16 %v4220
        %v4253 = vunpack.c.l.b16 %v4221
        %v4254 = vunpack.c.l.b16 %v4222
        %v4255 = vunpack.c.l.b16 %v4223
        %v4256 = vunpack.c.l.b16 %v4224
        %v4257 = vunpack.c.l.b16 %v4225
        %v4258 = vpack.c.b16 %v4243, %v4242
        %v4259 = vpack.c.b16 %v4245, %v4244
        %v4260 = vpack.c.b16 %v4247, %v4246
        %v4261 = vpack.c.b16 %v4249, %v4248
        %v4262 = vpack.c.b16 %v4251, %v4250
        %v4263 = vpack.c.b16 %v4253, %v4252
        %v4264 = vpack.c.b16 %v4255, %v4254
        %v4265 = vpack.c.b16 %v4257, %v4256
        %4274 = vmatprep.subr.bf16.mxu0 0
        %4275 = vmatpush1.bf16.msra.mxu0 %v4258
        %4276 = vmatprep.subr.bf16.mxu0 0
        %4277 = vmatpush1.bf16.msra.mxu0 %v4259
        %4278 = vmatprep.subr.bf16.mxu0 0
        %4279 = vmatpush1.bf16.msra.mxu0 %v4260
        %4280 = vmatprep.subr.bf16.mxu0 0
        %4281 = vmatpush1.bf16.msra.mxu0 %v4261
        %4282 = vmatprep.subr.bf16.mxu0 0
        %4283 = vmatpush1.bf16.msra.mxu0 %v4262
        %4284 = vmatprep.subr.bf16.mxu0 0
        %4285 = vmatpush1.bf16.msra.mxu0 %v4263
        %4286 = vmatprep.subr.bf16.mxu0 0
        %4287 = vmatpush1.bf16.msra.mxu0 %v4264
        %4288 = vmatprep.subr.bf16.mxu0 0
        %4289 = vmatpush1.bf16.msra.mxu0 %v4265
        %4290 = vmatprep.subr.bf16.mxu0 0
        %4291 = vmatpush1.bf16.msra.mxu0 0
        %4292 = vmatprep.subr.bf16.mxu0 0
        %4293 = vmatpush1.bf16.msra.mxu0 0
        %4294 = vmatprep.subr.bf16.mxu0 0
        %4295 = vmatpush1.bf16.msra.mxu0 0
        %4296 = vmatprep.subr.bf16.mxu0 0
        %4297 = vmatpush1.bf16.msra.mxu0 0
        %4298 = vmatprep.subr.bf16.mxu0 0
        %4299 = vmatpush1.bf16.msra.mxu0 0
        %4300 = vmatprep.subr.bf16.mxu0 0
        %4301 = vmatpush1.bf16.msra.mxu0 0
        %4302 = vmatprep.subr.bf16.mxu0 0
        %4303 = vmatpush1.bf16.msra.mxu0 0
        %4304 = vmatprep.subr.bf16.mxu0 0
        %4305 = vmatpush1.bf16.msra.mxu0 0
        %4306 = vmatprep.mubr.bf16.mxu0 0
        %4307 = vmatmul.mubr.bf16.gmra.mrb[0].mxu0 %v4194
        %v4308 = vpop.f32.mrb[0].mxu0
        %v4309 = vadd.f32 0.0, %v4308
        %v4310 = vpop.f32.mrb[0].mxu0
        %v4311 = vpop.f32.mrb[0].mxu0
        %v4312 = vadd.f32 0.0, %v4311
        %v4313 = vpop.f32.mrb[0].mxu0
        %4314 = vmatprep.mubr.bf16.mxu0 0
        %4315 = vmatmul.mubr.bf16.gmra.mrb[0].mxu0 %v4195
        %v4316 = vpop.f32.mrb[0].mxu0
        %v4317 = vadd.f32 0.0, %v4316
        %v4318 = vpop.f32.mrb[0].mxu0
        %v4319 = vpop.f32.mrb[0].mxu0
        %v4320 = vadd.f32 0.0, %v4319
        %v4321 = vpop.f32.mrb[0].mxu0
        %4322 = vmatprep.mubr.bf16.mxu0 0
        %4323 = vmatmul.mubr.bf16.gmra.mrb[0].mxu0 %v4196
        %v4324 = vpop.f32.mrb[0].mxu0
        %v4325 = vadd.f32 0.0, %v4324
        %v4326 = vpop.f32.mrb[0].mxu0
        %v4327 = vpop.f32.mrb[0].mxu0
        %v4328 = vadd.f32 0.0, %v4327
        %v4329 = vpop.f32.mrb[0].mxu0
        %4330 = vmatprep.mubr.bf16.mxu0 0
        %4331 = vmatmul.mubr.bf16.gmra.mrb[0].mxu0 %v4197
        %v4332 = vpop.f32.mrb[0].mxu0
        %v4333 = vadd.f32 0.0, %v4332
        %v4334 = vpop.f32.mrb[0].mxu0
        %v4335 = vpop.f32.mrb[0].mxu0
        %v4336 = vadd.f32 0.0, %v4335
        %v4337 = vpop.f32.mrb[0].mxu0
        %4338 = vmatprep.mubr.bf16.mxu0 0
        %4339 = vmatmul.mubr.bf16.gmra.mrb[0].mxu0 %v4198
        %v4340 = vpop.f32.mrb[0].mxu0
        %v4341 = vadd.f32 0.0, %v4340
        %v4342 = vpop.f32.mrb[0].mxu0
        %v4343 = vpop.f32.mrb[0].mxu0
        %v4344 = vadd.f32 0.0, %v4343
        %v4345 = vpop.f32.mrb[0].mxu0
        %4346 = vmatprep.mubr.bf16.mxu0 0
        %4347 = vmatmul.mubr.bf16.gmra.mrb[0].mxu0 %v4199
        %v4348 = vpop.f32.mrb[0].mxu0
        %v4349 = vadd.f32 0.0, %v4348
        %v4350 = vpop.f32.mrb[0].mxu0
        %v4351 = vpop.f32.mrb[0].mxu0
        %v4352 = vadd.f32 0.0, %v4351
        %v4353 = vpop.f32.mrb[0].mxu0
        %4354 = vmatprep.mubr.bf16.mxu0 0
        %4355 = vmatmul.mubr.bf16.gmra.mrb[0].mxu0 %v4200
        %v4356 = vpop.f32.mrb[0].mxu0
        %v4357 = vadd.f32 0.0, %v4356
        %v4358 = vpop.f32.mrb[0].mxu0
        %v4359 = vpop.f32.mrb[0].mxu0
        %v4360 = vadd.f32 0.0, %v4359
        %v4361 = vpop.f32.mrb[0].mxu0
        %4362 = vmatprep.mubr.bf16.mxu0 0
        %4363 = vmatmul.mubr.bf16.gmra.mrb[0].mxu0 %v4201
        %v4364 = vpop.f32.mrb[0].mxu0
        %v4365 = vadd.f32 0.0, %v4364
        %v4366 = vpop.f32.mrb[0].mxu0
        %v4367 = vpop.f32.mrb[0].mxu0
        %v4368 = vadd.f32 0.0, %v4367
        %v4369 = vpop.f32.mrb[0].mxu0
        %4370 = vmatprep.mubr.bf16.mxu0 0
        %4371 = vmatmul.mubr.bf16.gmra.mrb[0].mxu0 %v4202
        %v4372 = vpop.f32.mrb[0].mxu0
        %v4373 = vadd.f32 0.0, %v4372
        %v4374 = vpop.f32.mrb[0].mxu0
        %v4375 = vpop.f32.mrb[0].mxu0
        %v4376 = vadd.f32 0.0, %v4375
        %v4377 = vpop.f32.mrb[0].mxu0
        %4378 = vmatprep.mubr.bf16.mxu0 0
        %4379 = vmatmul.mubr.bf16.gmra.mrb[0].mxu0 %v4203
        %v4380 = vpop.f32.mrb[0].mxu0
        %v4381 = vadd.f32 0.0, %v4380
        %v4382 = vpop.f32.mrb[0].mxu0
        %v4383 = vpop.f32.mrb[0].mxu0
        %v4384 = vadd.f32 0.0, %v4383
        %v4385 = vpop.f32.mrb[0].mxu0
        %4386 = vmatprep.mubr.bf16.mxu0 0
        %4387 = vmatmul.mubr.bf16.gmra.mrb[0].mxu0 %v4204
        %v4388 = vpop.f32.mrb[0].mxu0
        %v4389 = vadd.f32 0.0, %v4388
        %v4390 = vpop.f32.mrb[0].mxu0
        %v4391 = vpop.f32.mrb[0].mxu0
        %v4392 = vadd.f32 0.0, %v4391
        %v4393 = vpop.f32.mrb[0].mxu0
        %4394 = vmatprep.mubr.bf16.mxu0 0
        %4395 = vmatmul.mubr.bf16.gmra.mrb[0].mxu0 %v4205
        %v4396 = vpop.f32.mrb[0].mxu0
        %v4397 = vadd.f32 0.0, %v4396
        %v4398 = vpop.f32.mrb[0].mxu0
        %v4399 = vpop.f32.mrb[0].mxu0
        %v4400 = vadd.f32 0.0, %v4399
        %v4401 = vpop.f32.mrb[0].mxu0
        %4402 = vmatprep.mubr.bf16.mxu0 0
        %4403 = vmatmul.mubr.bf16.gmra.mrb[0].mxu0 %v4206
        %v4404 = vpop.f32.mrb[0].mxu0
        %v4405 = vadd.f32 0.0, %v4404
        %v4406 = vpop.f32.mrb[0].mxu0
        %v4407 = vpop.f32.mrb[0].mxu0
        %v4408 = vadd.f32 0.0, %v4407
        %v4409 = vpop.f32.mrb[0].mxu0
        %4410 = vmatprep.mubr.bf16.mxu0 0
        %4411 = vmatmul.mubr.bf16.gmra.mrb[0].mxu0 %v4207
        %v4412 = vpop.f32.mrb[0].mxu0
        %v4413 = vadd.f32 0.0, %v4412
        %v4414 = vpop.f32.mrb[0].mxu0
        %v4415 = vpop.f32.mrb[0].mxu0
        %v4416 = vadd.f32 0.0, %v4415
        %v4417 = vpop.f32.mrb[0].mxu0
        %4418 = vmatprep.mubr.bf16.mxu0 0
        %4419 = vmatmul.mubr.bf16.gmra.mrb[0].mxu0 %v4208
        %v4420 = vpop.f32.mrb[0].mxu0
        %v4421 = vadd.f32 0.0, %v4420
        %v4422 = vpop.f32.mrb[0].mxu0
        %v4423 = vpop.f32.mrb[0].mxu0
        %v4424 = vadd.f32 0.0, %v4423
        %v4425 = vpop.f32.mrb[0].mxu0
        %4426 = vmatprep.mubr.bf16.mxu0 0
        %4427 = vmatmul.mubr.bf16.gmra.mrb[0].mxu0 %v4209
        %v4428 = vpop.f32.mrb[0].mxu0
        %v4429 = vadd.f32 0.0, %v4428
        %v4430 = vpop.f32.mrb[0].mxu0
        %v4431 = vpop.f32.mrb[0].mxu0
        %v4432 = vadd.f32 0.0, %v4431
        %v4433 = vpop.f32.mrb[0].mxu0
        %4434 = vdwg.mxu0
        %v4435 = vadd.f32 %v4309, %v4312
        %v4436 = vadd.f32 %v4435, %v4317
        %v4437 = vadd.f32 %v4436, %v4320
        %v4438 = vadd.f32 %v4437, %v4325
        %v4439 = vadd.f32 %v4438, %v4328
        %v4440 = vadd.f32 %v4439, %v4333
        %v4441 = vadd.f32 %v4440, %v4336
        %v4442 = vadd.f32 %v4441, %v4341
        %v4443 = vadd.f32 %v4442, %v4344
        %v4444 = vadd.f32 %v4443, %v4349
        %v4445 = vadd.f32 %v4444, %v4352
        %v4446 = vadd.f32 %v4445, %v4357
        %v4447 = vadd.f32 %v4446, %v4360
        %v4448 = vadd.f32 %v4447, %v4365
        %v4449 = vadd.f32 %v4448, %v4368
        %v4450 = vadd.f32 %v4449, %v4373
        %v4451 = vadd.f32 %v4450, %v4376
        %v4452 = vadd.f32 %v4451, %v4381
        %v4453 = vadd.f32 %v4452, %v4384
        %v4454 = vadd.f32 %v4453, %v4389
        %v4455 = vadd.f32 %v4454, %v4392
        %v4456 = vadd.f32 %v4455, %v4397
        %v4457 = vadd.f32 %v4456, %v4400
        %v4458 = vadd.f32 %v4457, %v4405
        %v4459 = vadd.f32 %v4458, %v4408
        %v4460 = vadd.f32 %v4459, %v4413
        %v4461 = vadd.f32 %v4460, %v4416
        %v4462 = vadd.f32 %v4461, %v4421
        %v4463 = vadd.f32 %v4462, %v4424
        %v4464 = vadd.f32 %v4463, %v4429
        %v4465 = vadd.f32 %v4464, %v4432
        %v4466 = vrot.slane %v4465, 4
        %v4467 = vadd.f32 %v4465, %v4466
        %v4468 = vrot.slane %v4467, 2
        %v4469 = vadd.f32 %v4467, %v4468
        %v4470 = vrot.slane %v4469, 1
        %v4471 = vadd.f32 %v4469, %v4470
        %v4472 = vmul.f32 %v4309, %v4309
        %v4473 = vmul.f32 %v4312, %v4312
        %v4474 = vmul.f32 %v4317, %v4317
        %v4475 = vmul.f32 %v4320, %v4320
        %v4476 = vmul.f32 %v4325, %v4325
        %v4477 = vmul.f32 %v4328, %v4328
        %v4478 = vmul.f32 %v4333, %v4333
        %v4479 = vmul.f32 %v4336, %v4336
        %v4480 = vmul.f32 %v4341, %v4341
        %v4481 = vmul.f32 %v4344, %v4344
        %v4482 = vmul.f32 %v4349, %v4349
        %v4483 = vmul.f32 %v4352, %v4352
        %v4484 = vmul.f32 %v4357, %v4357
        %v4485 = vmul.f32 %v4360, %v4360
        %v4486 = vmul.f32 %v4365, %v4365
        %v4487 = vmul.f32 %v4368, %v4368
        %v4488 = vmul.f32 %v4373, %v4373
        %v4489 = vmul.f32 %v4376, %v4376
        %v4490 = vmul.f32 %v4381, %v4381
        %v4491 = vmul.f32 %v4384, %v4384
        %v4492 = vmul.f32 %v4389, %v4389
        %v4493 = vmul.f32 %v4392, %v4392
        %v4494 = vmul.f32 %v4397, %v4397
        %v4495 = vmul.f32 %v4400, %v4400
        %v4496 = vmul.f32 %v4405, %v4405
        %v4497 = vmul.f32 %v4408, %v4408
        %v4498 = vmul.f32 %v4413, %v4413
        %v4499 = vmul.f32 %v4416, %v4416
        %v4500 = vmul.f32 %v4421, %v4421
        %v4501 = vmul.f32 %v4424, %v4424
        %v4502 = vmul.f32 %v4429, %v4429
        %v4503 = vmul.f32 %v4432, %v4432
        %v4504 = vadd.f32 %v4472, %v4473
        %v4505 = vadd.f32 %v4504, %v4474
        %v4506 = vadd.f32 %v4505, %v4475
        %v4507 = vadd.f32 %v4506, %v4476
        %v4508 = vadd.f32 %v4507, %v4477
        %v4509 = vadd.f32 %v4508, %v4478
        %v4510 = vadd.f32 %v4509, %v4479
        %v4511 = vadd.f32 %v4510, %v4480
        %v4512 = vadd.f32 %v4511, %v4481
        %v4513 = vadd.f32 %v4512, %v4482
        %v4514 = vadd.f32 %v4513, %v4483
        %v4515 = vadd.f32 %v4514, %v4484
        %v4516 = vadd.f32 %v4515, %v4485
        %v4517 = vadd.f32 %v4516, %v4486
        %v4518 = vadd.f32 %v4517, %v4487
        %v4519 = vadd.f32 %v4518, %v4488
        %v4520 = vadd.f32 %v4519, %v4489
        %v4521 = vadd.f32 %v4520, %v4490
        %v4522 = vadd.f32 %v4521, %v4491
        %v4523 = vadd.f32 %v4522, %v4492
        %v4524 = vadd.f32 %v4523, %v4493
        %v4525 = vadd.f32 %v4524, %v4494
        %v4526 = vadd.f32 %v4525, %v4495
        %v4527 = vadd.f32 %v4526, %v4496
        %v4528 = vadd.f32 %v4527, %v4497
        %v4529 = vadd.f32 %v4528, %v4498
        %v4530 = vadd.f32 %v4529, %v4499
        %v4531 = vadd.f32 %v4530, %v4500
        %v4532 = vadd.f32 %v4531, %v4501
        %v4533 = vadd.f32 %v4532, %v4502
        %v4534 = vadd.f32 %v4533, %v4503
        %v4535 = vrot.slane %v4534, 4
        %v4536 = vadd.f32 %v4534, %v4535
        %v4537 = vrot.slane %v4536, 2
        %v4538 = vadd.f32 %v4536, %v4537
        %v4539 = vrot.slane %v4538, 1
        %v4540 = vadd.f32 %v4538, %v4539
        %v4541 = vld [vmem:[#allocation28] sm:$0xff]
        %v4542 = vld [vmem:[#allocation28 + $0x8] sm:$0xff]
        %v4543 = vld [vmem:[#allocation28 + $0x10] sm:$0xff]
        %v4544 = vld [vmem:[#allocation28 + $0x18] sm:$0xff]
        %v4545 = vld [vmem:[#allocation28 + $0x20] sm:$0xff]
        %v4546 = vld [vmem:[#allocation28 + $0x28] sm:$0xff]
        %v4547 = vld [vmem:[#allocation28 + $0x30] sm:$0xff]
        %v4548 = vld [vmem:[#allocation28 + $0x38] sm:$0xff]
        %v4549 = vld [vmem:[#allocation28 + $0x40] sm:$0xff]
        %v4550 = vld [vmem:[#allocation28 + $0x48] sm:$0xff]
        %v4551 = vld [vmem:[#allocation28 + $0x50] sm:$0xff]
        %v4552 = vld [vmem:[#allocation28 + $0x58] sm:$0xff]
        %v4553 = vld [vmem:[#allocation28 + $0x60] sm:$0xff]
        %v4554 = vld [vmem:[#allocation28 + $0x68] sm:$0xff]
        %v4555 = vld [vmem:[#allocation28 + $0x70] sm:$0xff]
        %v4556 = vld [vmem:[#allocation28 + $0x78] sm:$0xff]
        %4557 = vmatprep.subr.mxu0 0.0
        %4558 = vmatpush1.msra.mxu0 %v4541
        %4559 = vmatprep.subr.mxu0 0.0
        %4560 = vmatpush1.msra.mxu0 %v4542
        %4561 = vmatprep.subr.mxu0 0.0
        %4562 = vmatpush1.msra.mxu0 %v4543
        %4563 = vmatprep.subr.mxu0 0.0
        %4564 = vmatpush1.msra.mxu0 %v4544
        %4565 = vmatprep.subr.mxu0 0.0
        %4566 = vmatpush1.msra.mxu0 %v4545
        %4567 = vmatprep.subr.mxu0 0.0
        %4568 = vmatpush1.msra.mxu0 %v4546
        %4569 = vmatprep.subr.mxu0 0.0
        %4570 = vmatpush1.msra.mxu0 %v4547
        %4571 = vmatprep.subr.mxu0 0.0
        %4572 = vmatpush1.msra.mxu0 %v4548
        %4573 = vmatprep.subr.mxu0 0.0
        %4574 = vmatpush1.msra.mxu0 %v4549
        %4575 = vmatprep.subr.mxu0 0.0
        %4576 = vmatpush1.msra.mxu0 %v4550
        %4577 = vmatprep.subr.mxu0 0.0
        %4578 = vmatpush1.msra.mxu0 %v4551
        %4579 = vmatprep.subr.mxu0 0.0
        %4580 = vmatpush1.msra.mxu0 %v4552
        %4581 = vmatprep.subr.mxu0 0.0
        %4582 = vmatpush1.msra.mxu0 %v4553
        %4583 = vmatprep.subr.mxu0 0.0
        %4584 = vmatpush1.msra.mxu0 %v4554
        %4585 = vmatprep.subr.mxu0 0.0
        %4586 = vmatpush1.msra.mxu0 %v4555
        %4587 = vmatprep.subr.mxu0 0.0
        %4588 = vmatpush1.msra.mxu0 %v4556
        %4589 = vmatprep.subr.mxu0 0.0
        %4590 = vmatpush1.msra.mxu0 0.0
        %4591 = vmatprep.subr.mxu0 0.0
        %4592 = vmatpush1.msra.mxu0 0.0
        %4593 = vmatprep.subr.mxu0 0.0
        %4594 = vmatpush1.msra.mxu0 0.0
        %4595 = vmatprep.subr.mxu0 0.0
        %4596 = vmatpush1.msra.mxu0 0.0
        %4597 = vmatprep.subr.mxu0 0.0
        %4598 = vmatpush1.msra.mxu0 0.0
        %4599 = vmatprep.subr.mxu0 0.0
        %4600 = vmatpush1.msra.mxu0 0.0
        %4601 = vmatprep.subr.mxu0 0.0
        %4602 = vmatpush1.msra.mxu0 0.0
        %4603 = vmatprep.subr.mxu0 0.0
        %4604 = vmatpush1.msra.mxu0 0.0
        %4605 = vmatprep.subr.mxu0 0.0
        %4606 = vmatpush1.msra.mxu0 0.0
        %4607 = vmatprep.subr.mxu0 0.0
        %4608 = vmatpush1.msra.mxu0 0.0
        %4609 = vmatprep.subr.mxu0 0.0
        %4610 = vmatpush1.msra.mxu0 0.0
        %4611 = vmatprep.subr.mxu0 0.0
        %4612 = vmatpush1.msra.mxu0 0.0
        %4613 = vmatprep.subr.mxu0 0.0
        %4614 = vmatpush1.msra.mxu0 0.0
        %4615 = vmatprep.subr.mxu0 0.0
        %4616 = vmatpush1.msra.mxu0 0.0
        %4617 = vmatprep.subr.mxu0 0.0
        %4618 = vmatpush1.msra.mxu0 0.0
        %4619 = vmatprep.subr.mxu0 0.0
        %4620 = vmatpush1.msra.mxu0 0.0
        %4621 = vmatprep.mubr.f32.mxu0 0.0
        %4622 = vmatmul.mubr.f32.gmra.mrb[0].mxu0 %v4471
        %v4623 = vpop.f32.mrb[0].mxu0
        %v4624 = vadd.f32 0.0, %v4623
        %v4625 = vpop.f32.mrb[0].mxu0
        %4626 = vdwg.mxu0
        %v4627 = vmul.f32 %v4624, 0.00048828125
        %4628 = vmatprep.subr.mxu0 0.0
        %4629 = vmatpush1.msra.mxu0 %v4541
        %4630 = vmatprep.subr.mxu0 0.0
        %4631 = vmatpush1.msra.mxu0 %v4542
        %4632 = vmatprep.subr.mxu0 0.0
        %4633 = vmatpush1.msra.mxu0 %v4543
        %4634 = vmatprep.subr.mxu0 0.0
        %4635 = vmatpush1.msra.mxu0 %v4544
        %4636 = vmatprep.subr.mxu0 0.0
        %4637 = vmatpush1.msra.mxu0 %v4545
        %4638 = vmatprep.subr.mxu0 0.0
        %4639 = vmatpush1.msra.mxu0 %v4546
        %4640 = vmatprep.subr.mxu0 0.0
        %4641 = vmatpush1.msra.mxu0 %v4547
        %4642 = vmatprep.subr.mxu0 0.0
        %4643 = vmatpush1.msra.mxu0 %v4548
        %4644 = vmatprep.subr.mxu0 0.0
        %4645 = vmatpush1.msra.mxu0 %v4549
        %4646 = vmatprep.subr.mxu0 0.0
        %4647 = vmatpush1.msra.mxu0 %v4550
        %4648 = vmatprep.subr.mxu0 0.0
        %4649 = vmatpush1.msra.mxu0 %v4551
        %4650 = vmatprep.subr.mxu0 0.0
        %4651 = vmatpush1.msra.mxu0 %v4552
        %4652 = vmatprep.subr.mxu0 0.0
        %4653 = vmatpush1.msra.mxu0 %v4553
        %4654 = vmatprep.subr.mxu0 0.0
        %4655 = vmatpush1.msra.mxu0 %v4554
        %4656 = vmatprep.subr.mxu0 0.0
        %4657 = vmatpush1.msra.mxu0 %v4555
        %4658 = vmatprep.subr.mxu0 0.0
        %4659 = vmatpush1.msra.mxu0 %v4556
        %4660 = vmatprep.subr.mxu0 0.0
        %4661 = vmatpush1.msra.mxu0 0.0
        %4662 = vmatprep.subr.mxu0 0.0
        %4663 = vmatpush1.msra.mxu0 0.0
        %4664 = vmatprep.subr.mxu0 0.0
        %4665 = vmatpush1.msra.mxu0 0.0
        %4666 = vmatprep.subr.mxu0 0.0
        %4667 = vmatpush1.msra.mxu0 0.0
        %4668 = vmatprep.subr.mxu0 0.0
        %4669 = vmatpush1.msra.mxu0 0.0
        %4670 = vmatprep.subr.mxu0 0.0
        %4671 = vmatpush1.msra.mxu0 0.0
        %4672 = vmatprep.subr.mxu0 0.0
        %4673 = vmatpush1.msra.mxu0 0.0
        %4674 = vmatprep.subr.mxu0 0.0
        %4675 = vmatpush1.msra.mxu0 0.0
        %4676 = vmatprep.subr.mxu0 0.0
        %4677 = vmatpush1.msra.mxu0 0.0
        %4678 = vmatprep.subr.mxu0 0.0
        %4679 = vmatpush1.msra.mxu0 0.0
        %4680 = vmatprep.subr.mxu0 0.0
        %4681 = vmatpush1.msra.mxu0 0.0
        %4682 = vmatprep.subr.mxu0 0.0
        %4683 = vmatpush1.msra.mxu0 0.0
        %4684 = vmatprep.subr.mxu0 0.0
        %4685 = vmatpush1.msra.mxu0 0.0
        %4686 = vmatprep.subr.mxu0 0.0
        %4687 = vmatpush1.msra.mxu0 0.0
        %4688 = vmatprep.subr.mxu0 0.0
        %4689 = vmatpush1.msra.mxu0 0.0
        %4690 = vmatprep.subr.mxu0 0.0
        %4691 = vmatpush1.msra.mxu0 0.0
        %4692 = vmatprep.mubr.f32.mxu0 0.0
        %4693 = vmatmul.mubr.f32.gmra.mrb[0].mxu0 %v4540
        %v4694 = vpop.f32.mrb[0].mxu0
        %v4695 = vadd.f32 0.0, %v4694
        %v4696 = vpop.f32.mrb[0].mxu0
        %4697 = vdwg.mxu0
        %v4698 = vmul.f32 %v4695, 0.00048828125
        %v4699 = vmul.f32 %v4627, %v4627
        %v4700 = vsub.f32 %v4698, %v4699
        %v4701 = vlaneseq
        %v4702 = vshrl.u32 %v4701, 7
        %v4703 = vsub.s32 0, %v4702
        %v4704 = vrot.slane %v4627, %v4703
        %v4705 = vsub.f32 %v4309, %v4704
        %v4706 = vsub.f32 %v4312, %v4704
        %v4707 = vsub.f32 %v4317, %v4704
        %v4708 = vsub.f32 %v4320, %v4704
        %v4709 = vsub.f32 %v4325, %v4704
        %v4710 = vsub.f32 %v4328, %v4704
        %v4711 = vsub.f32 %v4333, %v4704
        %v4712 = vsub.f32 %v4336, %v4704
        %v4713 = vsub.f32 %v4341, %v4704
        %v4714 = vsub.f32 %v4344, %v4704
        %v4715 = vsub.f32 %v4349, %v4704
        %v4716 = vsub.f32 %v4352, %v4704
        %v4717 = vsub.f32 %v4357, %v4704
        %v4718 = vsub.f32 %v4360, %v4704
        %v4719 = vsub.f32 %v4365, %v4704
        %v4720 = vsub.f32 %v4368, %v4704
        %v4721 = vsub.f32 %v4373, %v4704
        %v4722 = vsub.f32 %v4376, %v4704
        %v4723 = vsub.f32 %v4381, %v4704
        %v4724 = vsub.f32 %v4384, %v4704
        %v4725 = vsub.f32 %v4389, %v4704
        %v4726 = vsub.f32 %v4392, %v4704
        %v4727 = vsub.f32 %v4397, %v4704
        %v4728 = vsub.f32 %v4400, %v4704
        %v4729 = vsub.f32 %v4405, %v4704
        %v4730 = vsub.f32 %v4408, %v4704
        %v4731 = vsub.f32 %v4413, %v4704
        %v4732 = vsub.f32 %v4416, %v4704
        %v4733 = vsub.f32 %v4421, %v4704
        %v4734 = vsub.f32 %v4424, %v4704
        %v4735 = vsub.f32 %v4429, %v4704
        %v4736 = vsub.f32 %v4432, %v4704
        %v4737 = vadd.f32 %v4700, 1e-05
        %v4738 = vrsqrt.pop %v4737
        %v4739 = vlaneseq
        %v4740 = vshrl.u32 %v4739, 7
        %v4741 = vsub.s32 0, %v4740
        %v4742 = vrot.slane %v4738, %v4741
        %v4743 = vmul.f32 %v4705, %v4742
        %v4744 = vmul.f32 %v4706, %v4742
        %v4745 = vmul.f32 %v4707, %v4742
        %v4746 = vmul.f32 %v4708, %v4742
        %v4747 = vmul.f32 %v4709, %v4742
        %v4748 = vmul.f32 %v4710, %v4742
        %v4749 = vmul.f32 %v4711, %v4742
        %v4750 = vmul.f32 %v4712, %v4742
        %v4751 = vmul.f32 %v4713, %v4742
        %v4752 = vmul.f32 %v4714, %v4742
        %v4753 = vmul.f32 %v4715, %v4742
        %v4754 = vmul.f32 %v4716, %v4742
        %v4755 = vmul.f32 %v4717, %v4742
        %v4756 = vmul.f32 %v4718, %v4742
        %v4757 = vmul.f32 %v4719, %v4742
        %v4758 = vmul.f32 %v4720, %v4742
        %v4759 = vmul.f32 %v4721, %v4742
        %v4760 = vmul.f32 %v4722, %v4742
        %v4761 = vmul.f32 %v4723, %v4742
        %v4762 = vmul.f32 %v4724, %v4742
        %v4763 = vmul.f32 %v4725, %v4742
        %v4764 = vmul.f32 %v4726, %v4742
        %v4765 = vmul.f32 %v4727, %v4742
        %v4766 = vmul.f32 %v4728, %v4742
        %v4767 = vmul.f32 %v4729, %v4742
        %v4768 = vmul.f32 %v4730, %v4742
        %v4769 = vmul.f32 %v4731, %v4742
        %v4770 = vmul.f32 %v4732, %v4742
        %v4771 = vmul.f32 %v4733, %v4742
        %v4772 = vmul.f32 %v4734, %v4742
        %v4773 = vmul.f32 %v4735, %v4742
        %v4774 = vmul.f32 %v4736, %v4742
        %v4775 = vld [vmem:[#allocation19] sm:$0x1]
        %v4777 = vlaneseq
        %v4778 = vshrl.u32 %v4777, 7
        %v4779 = vsub.s32 0, %v4778
        %v4780 = vrot.slane %v4775, %v4779
        %v4782 = vmul.f32 %v4743, %v4780
        %v4783 = vmul.f32 %v4744, %v4780
        %v4784 = vmul.f32 %v4745, %v4780
        %v4785 = vmul.f32 %v4746, %v4780
        %v4786 = vmul.f32 %v4747, %v4780
        %v4787 = vmul.f32 %v4748, %v4780
        %v4788 = vmul.f32 %v4749, %v4780
        %v4789 = vmul.f32 %v4750, %v4780
        %v4790 = vmul.f32 %v4751, %v4780
        %v4791 = vmul.f32 %v4752, %v4780
        %v4792 = vmul.f32 %v4753, %v4780
        %v4793 = vmul.f32 %v4754, %v4780
        %v4794 = vmul.f32 %v4755, %v4780
        %v4795 = vmul.f32 %v4756, %v4780
        %v4796 = vmul.f32 %v4757, %v4780
        %v4797 = vmul.f32 %v4758, %v4780
        %v4798 = vmul.f32 %v4759, %v4780
        %v4799 = vmul.f32 %v4760, %v4780
        %v4800 = vmul.f32 %v4761, %v4780
        %v4801 = vmul.f32 %v4762, %v4780
        %v4802 = vmul.f32 %v4763, %v4780
        %v4803 = vmul.f32 %v4764, %v4780
        %v4804 = vmul.f32 %v4765, %v4780
        %v4805 = vmul.f32 %v4766, %v4780
        %v4806 = vmul.f32 %v4767, %v4780
        %v4807 = vmul.f32 %v4768, %v4780
        %v4808 = vmul.f32 %v4769, %v4780
        %v4809 = vmul.f32 %v4770, %v4780
        %v4810 = vmul.f32 %v4771, %v4780
        %v4811 = vmul.f32 %v4772, %v4780
        %v4812 = vmul.f32 %v4773, %v4780
        %v4813 = vmul.f32 %v4774, %v4780
        %v4814 = vld [vmem:[#allocation21] sm:$0x1]
        %v4816 = vlaneseq
        %v4817 = vshrl.u32 %v4816, 7
        %v4818 = vsub.s32 0, %v4817
        %v4819 = vrot.slane %v4814, %v4818
        %v4821 = vadd.f32 %v4782, %v4819
        %v4822 = vadd.f32 %v4783, %v4819
        %v4823 = vadd.f32 %v4784, %v4819
        %v4824 = vadd.f32 %v4785, %v4819
        %v4825 = vadd.f32 %v4786, %v4819
        %v4826 = vadd.f32 %v4787, %v4819
        %v4827 = vadd.f32 %v4788, %v4819
        %v4828 = vadd.f32 %v4789, %v4819
        %v4829 = vadd.f32 %v4790, %v4819
        %v4830 = vadd.f32 %v4791, %v4819
        %v4831 = vadd.f32 %v4792, %v4819
        %v4832 = vadd.f32 %v4793, %v4819
        %v4833 = vadd.f32 %v4794, %v4819
        %v4834 = vadd.f32 %v4795, %v4819
        %v4835 = vadd.f32 %v4796, %v4819
        %v4836 = vadd.f32 %v4797, %v4819
        %v4837 = vadd.f32 %v4798, %v4819
        %v4838 = vadd.f32 %v4799, %v4819
        %v4839 = vadd.f32 %v4800, %v4819
        %v4840 = vadd.f32 %v4801, %v4819
        %v4841 = vadd.f32 %v4802, %v4819
        %v4842 = vadd.f32 %v4803, %v4819
        %v4843 = vadd.f32 %v4804, %v4819
        %v4844 = vadd.f32 %v4805, %v4819
        %v4845 = vadd.f32 %v4806, %v4819
        %v4846 = vadd.f32 %v4807, %v4819
        %v4847 = vadd.f32 %v4808, %v4819
        %v4848 = vadd.f32 %v4809, %v4819
        %v4849 = vadd.f32 %v4810, %v4819
        %v4850 = vadd.f32 %v4811, %v4819
        %v4851 = vadd.f32 %v4812, %v4819
        %v4852 = vadd.f32 %v4813, %v4819
        %v4853 = vld [vmem:[%s657] sm:$0xff]
        %v4854 = vld [vmem:[%s657 + $0x8] sm:$0xff]
        %v4855 = vld [vmem:[%s657 + $0x10] sm:$0xff]
        %v4856 = vld [vmem:[%s657 + $0x18] sm:$0xff]
        %v4857 = vld [vmem:[%s657 + $0x20] sm:$0xff]
        %v4858 = vld [vmem:[%s657 + $0x28] sm:$0xff]
        %v4859 = vld [vmem:[%s657 + $0x30] sm:$0xff]
        %v4860 = vld [vmem:[%s657 + $0x38] sm:$0xff]
        %v4861 = vld [vmem:[%s657 + $0x40] sm:$0xff]
        %v4862 = vld [vmem:[%s657 + $0x48] sm:$0xff]
        %v4863 = vld [vmem:[%s657 + $0x50] sm:$0xff]
        %v4864 = vld [vmem:[%s657 + $0x58] sm:$0xff]
        %v4865 = vld [vmem:[%s657 + $0x60] sm:$0xff]
        %v4866 = vld [vmem:[%s657 + $0x68] sm:$0xff]
        %v4867 = vld [vmem:[%s657 + $0x70] sm:$0xff]
        %v4868 = vld [vmem:[%s657 + $0x78] sm:$0xff]
        %v4869 = vld [vmem:[%s657 + $0x80] sm:$0xff]
        %v4870 = vld [vmem:[%s657 + $0x88] sm:$0xff]
        %v4871 = vld [vmem:[%s657 + $0x90] sm:$0xff]
        %v4872 = vld [vmem:[%s657 + $0x98] sm:$0xff]
        %v4873 = vld [vmem:[%s657 + $0xa0] sm:$0xff]
        %v4874 = vld [vmem:[%s657 + $0xa8] sm:$0xff]
        %v4875 = vld [vmem:[%s657 + $0xb0] sm:$0xff]
        %v4876 = vld [vmem:[%s657 + $0xb8] sm:$0xff]
        %v4877 = vld [vmem:[%s657 + $0xc0] sm:$0xff]
        %v4878 = vld [vmem:[%s657 + $0xc8] sm:$0xff]
        %v4879 = vld [vmem:[%s657 + $0xd0] sm:$0xff]
        %v4880 = vld [vmem:[%s657 + $0xd8] sm:$0xff]
        %v4881 = vld [vmem:[%s657 + $0xe0] sm:$0xff]
        %v4882 = vld [vmem:[%s657 + $0xe8] sm:$0xff]
        %v4883 = vld [vmem:[%s657 + $0xf0] sm:$0xff]
        %v4884 = vld [vmem:[%s657 + $0xf8] sm:$0xff]
        %v4885 = vpack.c.bf16 %v4854, %v4853
        %v4886 = vpack.c.bf16 %v4856, %v4855
        %v4887 = vpack.c.bf16 %v4858, %v4857
        %v4888 = vpack.c.bf16 %v4860, %v4859
        %v4889 = vpack.c.bf16 %v4862, %v4861
        %v4890 = vpack.c.bf16 %v4864, %v4863
        %v4891 = vpack.c.bf16 %v4866, %v4865
        %v4892 = vpack.c.bf16 %v4868, %v4867
        %v4893 = vpack.c.bf16 %v4870, %v4869
        %v4894 = vpack.c.bf16 %v4872, %v4871
        %v4895 = vpack.c.bf16 %v4874, %v4873
        %v4896 = vpack.c.bf16 %v4876, %v4875
        %v4897 = vpack.c.bf16 %v4878, %v4877
        %v4898 = vpack.c.bf16 %v4880, %v4879
        %v4899 = vpack.c.bf16 %v4882, %v4881
        %v4900 = vpack.c.bf16 %v4884, %v4883
        %v4901 = vld [vmem:[#allocation22] sm:$0xf]
        %v4902 = vld [vmem:[#allocation22 + $0x4] sm:$0xf]
        %v4903 = vld [vmem:[#allocation22 + $0x8] sm:$0xf]
        %v4904 = vld [vmem:[#allocation22 + $0xc] sm:$0xf]
        %v4905 = vld [vmem:[#allocation22 + $0x10] sm:$0xf]
        %v4906 = vld [vmem:[#allocation22 + $0x14] sm:$0xf]
        %v4907 = vld [vmem:[#allocation22 + $0x18] sm:$0xf]
        %v4908 = vld [vmem:[#allocation22 + $0x1c] sm:$0xf]
        %v4909 = vld [vmem:[#allocation22 + $0x20] sm:$0xf]
        %v4910 = vld [vmem:[#allocation22 + $0x24] sm:$0xf]
        %v4911 = vld [vmem:[#allocation22 + $0x28] sm:$0xf]
        %v4912 = vld [vmem:[#allocation22 + $0x2c] sm:$0xf]
        %v4913 = vld [vmem:[#allocation22 + $0x30] sm:$0xf]
        %v4914 = vld [vmem:[#allocation22 + $0x34] sm:$0xf]
        %v4915 = vld [vmem:[#allocation22 + $0x38] sm:$0xf]
        %v4916 = vld [vmem:[#allocation22 + $0x3c] sm:$0xf]
        %v4933 = vunpack.c.l.b16 %v4901
        %v4934 = vunpack.c.l.b16 %v4902
        %v4935 = vunpack.c.l.b16 %v4903
        %v4936 = vunpack.c.l.b16 %v4904
        %v4937 = vunpack.c.l.b16 %v4905
        %v4938 = vunpack.c.l.b16 %v4906
        %v4939 = vunpack.c.l.b16 %v4907
        %v4940 = vunpack.c.l.b16 %v4908
        %v4941 = vunpack.c.l.b16 %v4909
        %v4942 = vunpack.c.l.b16 %v4910
        %v4943 = vunpack.c.l.b16 %v4911
        %v4944 = vunpack.c.l.b16 %v4912
        %v4945 = vunpack.c.l.b16 %v4913
        %v4946 = vunpack.c.l.b16 %v4914
        %v4947 = vunpack.c.l.b16 %v4915
        %v4948 = vunpack.c.l.b16 %v4916
        %v4949 = vpack.c.b16 %v4934, %v4933
        %v4950 = vpack.c.b16 %v4936, %v4935
        %v4951 = vpack.c.b16 %v4938, %v4937
        %v4952 = vpack.c.b16 %v4940, %v4939
        %v4953 = vpack.c.b16 %v4942, %v4941
        %v4954 = vpack.c.b16 %v4944, %v4943
        %v4955 = vpack.c.b16 %v4946, %v4945
        %v4956 = vpack.c.b16 %v4948, %v4947
        %4965 = vmatprep.subr.bf16.mxu0 0
        %4966 = vmatpush1.bf16.msra.mxu0 %v4949
        %4967 = vmatprep.subr.bf16.mxu0 0
        %4968 = vmatpush1.bf16.msra.mxu0 %v4950
        %4969 = vmatprep.subr.bf16.mxu0 0
        %4970 = vmatpush1.bf16.msra.mxu0 %v4951
        %4971 = vmatprep.subr.bf16.mxu0 0
        %4972 = vmatpush1.bf16.msra.mxu0 %v4952
        %4973 = vmatprep.subr.bf16.mxu0 0
        %4974 = vmatpush1.bf16.msra.mxu0 %v4953
        %4975 = vmatprep.subr.bf16.mxu0 0
        %4976 = vmatpush1.bf16.msra.mxu0 %v4954
        %4977 = vmatprep.subr.bf16.mxu0 0
        %4978 = vmatpush1.bf16.msra.mxu0 %v4955
        %4979 = vmatprep.subr.bf16.mxu0 0
        %4980 = vmatpush1.bf16.msra.mxu0 %v4956
        %4981 = vmatprep.subr.bf16.mxu0 0
        %4982 = vmatpush1.bf16.msra.mxu0 0
        %4983 = vmatprep.subr.bf16.mxu0 0
        %4984 = vmatpush1.bf16.msra.mxu0 0
        %4985 = vmatprep.subr.bf16.mxu0 0
        %4986 = vmatpush1.bf16.msra.mxu0 0
        %4987 = vmatprep.subr.bf16.mxu0 0
        %4988 = vmatpush1.bf16.msra.mxu0 0
        %4989 = vmatprep.subr.bf16.mxu0 0
        %4990 = vmatpush1.bf16.msra.mxu0 0
        %4991 = vmatprep.subr.bf16.mxu0 0
        %4992 = vmatpush1.bf16.msra.mxu0 0
        %4993 = vmatprep.subr.bf16.mxu0 0
        %4994 = vmatpush1.bf16.msra.mxu0 0
        %4995 = vmatprep.subr.bf16.mxu0 0
        %4996 = vmatpush1.bf16.msra.mxu0 0
        %4997 = vmatprep.mubr.bf16.mxu0 0
        %4998 = vmatmul.mubr.bf16.gmra.mrb[0].mxu0 %v4885
        %v4999 = vpop.f32.mrb[0].mxu0
        %v5000 = vadd.f32 0.0, %v4999
        %v5001 = vpop.f32.mrb[0].mxu0
        %v5002 = vpop.f32.mrb[0].mxu0
        %v5003 = vadd.f32 0.0, %v5002
        %v5004 = vpop.f32.mrb[0].mxu0
        %5005 = vmatprep.mubr.bf16.mxu0 0
        %5006 = vmatmul.mubr.bf16.gmra.mrb[0].mxu0 %v4886
        %v5007 = vpop.f32.mrb[0].mxu0
        %v5008 = vadd.f32 0.0, %v5007
        %v5009 = vpop.f32.mrb[0].mxu0
        %v5010 = vpop.f32.mrb[0].mxu0
        %v5011 = vadd.f32 0.0, %v5010
        %v5012 = vpop.f32.mrb[0].mxu0
        %5013 = vmatprep.mubr.bf16.mxu0 0
        %5014 = vmatmul.mubr.bf16.gmra.mrb[0].mxu0 %v4887
        %v5015 = vpop.f32.mrb[0].mxu0
        %v5016 = vadd.f32 0.0, %v5015
        %v5017 = vpop.f32.mrb[0].mxu0
        %v5018 = vpop.f32.mrb[0].mxu0
        %v5019 = vadd.f32 0.0, %v5018
        %v5020 = vpop.f32.mrb[0].mxu0
        %5021 = vmatprep.mubr.bf16.mxu0 0
        %5022 = vmatmul.mubr.bf16.gmra.mrb[0].mxu0 %v4888
        %v5023 = vpop.f32.mrb[0].mxu0
        %v5024 = vadd.f32 0.0, %v5023
        %v5025 = vpop.f32.mrb[0].mxu0
        %v5026 = vpop.f32.mrb[0].mxu0
        %v5027 = vadd.f32 0.0, %v5026
        %v5028 = vpop.f32.mrb[0].mxu0
        %5029 = vmatprep.mubr.bf16.mxu0 0
        %5030 = vmatmul.mubr.bf16.gmra.mrb[0].mxu0 %v4889
        %v5031 = vpop.f32.mrb[0].mxu0
        %v5032 = vadd.f32 0.0, %v5031
        %v5033 = vpop.f32.mrb[0].mxu0
        %v5034 = vpop.f32.mrb[0].mxu0
        %v5035 = vadd.f32 0.0, %v5034
        %v5036 = vpop.f32.mrb[0].mxu0
        %5037 = vmatprep.mubr.bf16.mxu0 0
        %5038 = vmatmul.mubr.bf16.gmra.mrb[0].mxu0 %v4890
        %v5039 = vpop.f32.mrb[0].mxu0
        %v5040 = vadd.f32 0.0, %v5039
        %v5041 = vpop.f32.mrb[0].mxu0
        %v5042 = vpop.f32.mrb[0].mxu0
        %v5043 = vadd.f32 0.0, %v5042
        %v5044 = vpop.f32.mrb[0].mxu0
        %5045 = vmatprep.mubr.bf16.mxu0 0
        %5046 = vmatmul.mubr.bf16.gmra.mrb[0].mxu0 %v4891
        %v5047 = vpop.f32.mrb[0].mxu0
        %v5048 = vadd.f32 0.0, %v5047
        %v5049 = vpop.f32.mrb[0].mxu0
        %v5050 = vpop.f32.mrb[0].mxu0
        %v5051 = vadd.f32 0.0, %v5050
        %v5052 = vpop.f32.mrb[0].mxu0
        %5053 = vmatprep.mubr.bf16.mxu0 0
        %5054 = vmatmul.mubr.bf16.gmra.mrb[0].mxu0 %v4892
        %v5055 = vpop.f32.mrb[0].mxu0
        %v5056 = vadd.f32 0.0, %v5055
        %v5057 = vpop.f32.mrb[0].mxu0
        %v5058 = vpop.f32.mrb[0].mxu0
        %v5059 = vadd.f32 0.0, %v5058
        %v5060 = vpop.f32.mrb[0].mxu0
        %5061 = vmatprep.mubr.bf16.mxu0 0
        %5062 = vmatmul.mubr.bf16.gmra.mrb[0].mxu0 %v4893
        %v5063 = vpop.f32.mrb[0].mxu0
        %v5064 = vadd.f32 0.0, %v5063
        %v5065 = vpop.f32.mrb[0].mxu0
        %v5066 = vpop.f32.mrb[0].mxu0
        %v5067 = vadd.f32 0.0, %v5066
        %v5068 = vpop.f32.mrb[0].mxu0
        %5069 = vmatprep.mubr.bf16.mxu0 0
        %5070 = vmatmul.mubr.bf16.gmra.mrb[0].mxu0 %v4894
        %v5071 = vpop.f32.mrb[0].mxu0
        %v5072 = vadd.f32 0.0, %v5071
        %v5073 = vpop.f32.mrb[0].mxu0
        %v5074 = vpop.f32.mrb[0].mxu0
        %v5075 = vadd.f32 0.0, %v5074
        %v5076 = vpop.f32.mrb[0].mxu0
        %5077 = vmatprep.mubr.bf16.mxu0 0
        %5078 = vmatmul.mubr.bf16.gmra.mrb[0].mxu0 %v4895
        %v5079 = vpop.f32.mrb[0].mxu0
        %v5080 = vadd.f32 0.0, %v5079
        %v5081 = vpop.f32.mrb[0].mxu0
        %v5082 = vpop.f32.mrb[0].mxu0
        %v5083 = vadd.f32 0.0, %v5082
        %v5084 = vpop.f32.mrb[0].mxu0
        %5085 = vmatprep.mubr.bf16.mxu0 0
        %5086 = vmatmul.mubr.bf16.gmra.mrb[0].mxu0 %v4896
        %v5087 = vpop.f32.mrb[0].mxu0
        %v5088 = vadd.f32 0.0, %v5087
        %v5089 = vpop.f32.mrb[0].mxu0
        %v5090 = vpop.f32.mrb[0].mxu0
        %v5091 = vadd.f32 0.0, %v5090
        %v5092 = vpop.f32.mrb[0].mxu0
        %5093 = vmatprep.mubr.bf16.mxu0 0
        %5094 = vmatmul.mubr.bf16.gmra.mrb[0].mxu0 %v4897
        %v5095 = vpop.f32.mrb[0].mxu0
        %v5096 = vadd.f32 0.0, %v5095
        %v5097 = vpop.f32.mrb[0].mxu0
        %v5098 = vpop.f32.mrb[0].mxu0
        %v5099 = vadd.f32 0.0, %v5098
        %v5100 = vpop.f32.mrb[0].mxu0
        %5101 = vmatprep.mubr.bf16.mxu0 0
        %5102 = vmatmul.mubr.bf16.gmra.mrb[0].mxu0 %v4898
        %v5103 = vpop.f32.mrb[0].mxu0
        %v5104 = vadd.f32 0.0, %v5103
        %v5105 = vpop.f32.mrb[0].mxu0
        %v5106 = vpop.f32.mrb[0].mxu0
        %v5107 = vadd.f32 0.0, %v5106
        %v5108 = vpop.f32.mrb[0].mxu0
        %5109 = vmatprep.mubr.bf16.mxu0 0
        %5110 = vmatmul.mubr.bf16.gmra.mrb[0].mxu0 %v4899
        %v5111 = vpop.f32.mrb[0].mxu0
        %v5112 = vadd.f32 0.0, %v5111
        %v5113 = vpop.f32.mrb[0].mxu0
        %v5114 = vpop.f32.mrb[0].mxu0
        %v5115 = vadd.f32 0.0, %v5114
        %v5116 = vpop.f32.mrb[0].mxu0
        %5117 = vmatprep.mubr.bf16.mxu0 0
        %5118 = vmatmul.mubr.bf16.gmra.mrb[0].mxu0 %v4900
        %v5119 = vpop.f32.mrb[0].mxu0
        %v5120 = vadd.f32 0.0, %v5119
        %v5121 = vpop.f32.mrb[0].mxu0
        %v5122 = vpop.f32.mrb[0].mxu0
        %v5123 = vadd.f32 0.0, %v5122
        %v5124 = vpop.f32.mrb[0].mxu0
        %5125 = vdwg.mxu0
        %v5126 = vadd.f32 %v5000, %v5003
        %v5127 = vadd.f32 %v5126, %v5008
        %v5128 = vadd.f32 %v5127, %v5011
        %v5129 = vadd.f32 %v5128, %v5016
        %v5130 = vadd.f32 %v5129, %v5019
        %v5131 = vadd.f32 %v5130, %v5024
        %v5132 = vadd.f32 %v5131, %v5027
        %v5133 = vadd.f32 %v5132, %v5032
        %v5134 = vadd.f32 %v5133, %v5035
        %v5135 = vadd.f32 %v5134, %v5040
        %v5136 = vadd.f32 %v5135, %v5043
        %v5137 = vadd.f32 %v5136, %v5048
        %v5138 = vadd.f32 %v5137, %v5051
        %v5139 = vadd.f32 %v5138, %v5056
        %v5140 = vadd.f32 %v5139, %v5059
        %v5141 = vadd.f32 %v5140, %v5064
        %v5142 = vadd.f32 %v5141, %v5067
        %v5143 = vadd.f32 %v5142, %v5072
        %v5144 = vadd.f32 %v5143, %v5075
        %v5145 = vadd.f32 %v5144, %v5080
        %v5146 = vadd.f32 %v5145, %v5083
        %v5147 = vadd.f32 %v5146, %v5088
        %v5148 = vadd.f32 %v5147, %v5091
        %v5149 = vadd.f32 %v5148, %v5096
        %v5150 = vadd.f32 %v5149, %v5099
        %v5151 = vadd.f32 %v5150, %v5104
        %v5152 = vadd.f32 %v5151, %v5107
        %v5153 = vadd.f32 %v5152, %v5112
        %v5154 = vadd.f32 %v5153, %v5115
        %v5155 = vadd.f32 %v5154, %v5120
        %v5156 = vadd.f32 %v5155, %v5123
        %v5157 = vrot.slane %v5156, 4
        %v5158 = vadd.f32 %v5156, %v5157
        %v5159 = vrot.slane %v5158, 2
        %v5160 = vadd.f32 %v5158, %v5159
        %v5161 = vrot.slane %v5160, 1
        %v5162 = vadd.f32 %v5160, %v5161
        %v5163 = vmul.f32 %v5000, %v5000
        %v5164 = vmul.f32 %v5003, %v5003
        %v5165 = vmul.f32 %v5008, %v5008
        %v5166 = vmul.f32 %v5011, %v5011
        %v5167 = vmul.f32 %v5016, %v5016
        %v5168 = vmul.f32 %v5019, %v5019
        %v5169 = vmul.f32 %v5024, %v5024
        %v5170 = vmul.f32 %v5027, %v5027
        %v5171 = vmul.f32 %v5032, %v5032
        %v5172 = vmul.f32 %v5035, %v5035
        %v5173 = vmul.f32 %v5040, %v5040
        %v5174 = vmul.f32 %v5043, %v5043
        %v5175 = vmul.f32 %v5048, %v5048
        %v5176 = vmul.f32 %v5051, %v5051
        %v5177 = vmul.f32 %v5056, %v5056
        %v5178 = vmul.f32 %v5059, %v5059
        %v5179 = vmul.f32 %v5064, %v5064
        %v5180 = vmul.f32 %v5067, %v5067
        %v5181 = vmul.f32 %v5072, %v5072
        %v5182 = vmul.f32 %v5075, %v5075
        %v5183 = vmul.f32 %v5080, %v5080
        %v5184 = vmul.f32 %v5083, %v5083
        %v5185 = vmul.f32 %v5088, %v5088
        %v5186 = vmul.f32 %v5091, %v5091
        %v5187 = vmul.f32 %v5096, %v5096
        %v5188 = vmul.f32 %v5099, %v5099
        %v5189 = vmul.f32 %v5104, %v5104
        %v5190 = vmul.f32 %v5107, %v5107
        %v5191 = vmul.f32 %v5112, %v5112
        %v5192 = vmul.f32 %v5115, %v5115
        %v5193 = vmul.f32 %v5120, %v5120
        %v5194 = vmul.f32 %v5123, %v5123
        %v5195 = vadd.f32 %v5163, %v5164
        %v5196 = vadd.f32 %v5195, %v5165
        %v5197 = vadd.f32 %v5196, %v5166
        %v5198 = vadd.f32 %v5197, %v5167
        %v5199 = vadd.f32 %v5198, %v5168
        %v5200 = vadd.f32 %v5199, %v5169
        %v5201 = vadd.f32 %v5200, %v5170
        %v5202 = vadd.f32 %v5201, %v5171
        %v5203 = vadd.f32 %v5202, %v5172
        %v5204 = vadd.f32 %v5203, %v5173
        %v5205 = vadd.f32 %v5204, %v5174
        %v5206 = vadd.f32 %v5205, %v5175
        %v5207 = vadd.f32 %v5206, %v5176
        %v5208 = vadd.f32 %v5207, %v5177
        %v5209 = vadd.f32 %v5208, %v5178
        %v5210 = vadd.f32 %v5209, %v5179
        %v5211 = vadd.f32 %v5210, %v5180
        %v5212 = vadd.f32 %v5211, %v5181
        %v5213 = vadd.f32 %v5212, %v5182
        %v5214 = vadd.f32 %v5213, %v5183
        %v5215 = vadd.f32 %v5214, %v5184
        %v5216 = vadd.f32 %v5215, %v5185
        %v5217 = vadd.f32 %v5216, %v5186
        %v5218 = vadd.f32 %v5217, %v5187
        %v5219 = vadd.f32 %v5218, %v5188
        %v5220 = vadd.f32 %v5219, %v5189
        %v5221 = vadd.f32 %v5220, %v5190
        %v5222 = vadd.f32 %v5221, %v5191
        %v5223 = vadd.f32 %v5222, %v5192
        %v5224 = vadd.f32 %v5223, %v5193
        %v5225 = vadd.f32 %v5224, %v5194
        %v5226 = vrot.slane %v5225, 4
        %v5227 = vadd.f32 %v5225, %v5226
        %v5228 = vrot.slane %v5227, 2
        %v5229 = vadd.f32 %v5227, %v5228
        %v5230 = vrot.slane %v5229, 1
        %v5231 = vadd.f32 %v5229, %v5230
        %5232 = vmatprep.subr.mxu0 0.0
        %5233 = vmatpush1.msra.mxu0 %v4541
        %5234 = vmatprep.subr.mxu0 0.0
        %5235 = vmatpush1.msra.mxu0 %v4542
        %5236 = vmatprep.subr.mxu0 0.0
        %5237 = vmatpush1.msra.mxu0 %v4543
        %5238 = vmatprep.subr.mxu0 0.0
        %5239 = vmatpush1.msra.mxu0 %v4544
        %5240 = vmatprep.subr.mxu0 0.0
        %5241 = vmatpush1.msra.mxu0 %v4545
        %5242 = vmatprep.subr.mxu0 0.0
        %5243 = vmatpush1.msra.mxu0 %v4546
        %5244 = vmatprep.subr.mxu0 0.0
        %5245 = vmatpush1.msra.mxu0 %v4547
        %5246 = vmatprep.subr.mxu0 0.0
        %5247 = vmatpush1.msra.mxu0 %v4548
        %5248 = vmatprep.subr.mxu0 0.0
        %5249 = vmatpush1.msra.mxu0 %v4549
        %5250 = vmatprep.subr.mxu0 0.0
        %5251 = vmatpush1.msra.mxu0 %v4550
        %5252 = vmatprep.subr.mxu0 0.0
        %5253 = vmatpush1.msra.mxu0 %v4551
        %5254 = vmatprep.subr.mxu0 0.0
        %5255 = vmatpush1.msra.mxu0 %v4552
        %5256 = vmatprep.subr.mxu0 0.0
        %5257 = vmatpush1.msra.mxu0 %v4553
        %5258 = vmatprep.subr.mxu0 0.0
        %5259 = vmatpush1.msra.mxu0 %v4554
        %5260 = vmatprep.subr.mxu0 0.0
        %5261 = vmatpush1.msra.mxu0 %v4555
        %5262 = vmatprep.subr.mxu0 0.0
        %5263 = vmatpush1.msra.mxu0 %v4556
        %5264 = vmatprep.subr.mxu0 0.0
        %5265 = vmatpush1.msra.mxu0 0.0
        %5266 = vmatprep.subr.mxu0 0.0
        %5267 = vmatpush1.msra.mxu0 0.0
        %5268 = vmatprep.subr.mxu0 0.0
        %5269 = vmatpush1.msra.mxu0 0.0
        %5270 = vmatprep.subr.mxu0 0.0
        %5271 = vmatpush1.msra.mxu0 0.0
        %5272 = vmatprep.subr.mxu0 0.0
        %5273 = vmatpush1.msra.mxu0 0.0
        %5274 = vmatprep.subr.mxu0 0.0
        %5275 = vmatpush1.msra.mxu0 0.0
        %5276 = vmatprep.subr.mxu0 0.0
        %5277 = vmatpush1.msra.mxu0 0.0
        %5278 = vmatprep.subr.mxu0 0.0
        %5279 = vmatpush1.msra.mxu0 0.0
        %5280 = vmatprep.subr.mxu0 0.0
        %5281 = vmatpush1.msra.mxu0 0.0
        %5282 = vmatprep.subr.mxu0 0.0
        %5283 = vmatpush1.msra.mxu0 0.0
        %5284 = vmatprep.subr.mxu0 0.0
        %5285 = vmatpush1.msra.mxu0 0.0
        %5286 = vmatprep.subr.mxu0 0.0
        %5287 = vmatpush1.msra.mxu0 0.0
        %5288 = vmatprep.subr.mxu0 0.0
        %5289 = vmatpush1.msra.mxu0 0.0
        %5290 = vmatprep.subr.mxu0 0.0
        %5291 = vmatpush1.msra.mxu0 0.0
        %5292 = vmatprep.subr.mxu0 0.0
        %5293 = vmatpush1.msra.mxu0 0.0
        %5294 = vmatprep.subr.mxu0 0.0
        %5295 = vmatpush1.msra.mxu0 0.0
        %5296 = vmatprep.mubr.f32.mxu0 0.0
        %5297 = vmatmul.mubr.f32.gmra.mrb[0].mxu0 %v5162
        %v5298 = vpop.f32.mrb[0].mxu0
        %v5299 = vadd.f32 0.0, %v5298
        %v5300 = vpop.f32.mrb[0].mxu0
        %5301 = vdwg.mxu0
        %v5302 = vmul.f32 %v5299, 0.00048828125
        %5303 = vmatprep.subr.mxu0 0.0
        %5304 = vmatpush1.msra.mxu0 %v4541
        %5305 = vmatprep.subr.mxu0 0.0
        %5306 = vmatpush1.msra.mxu0 %v4542
        %5307 = vmatprep.subr.mxu0 0.0
        %5308 = vmatpush1.msra.mxu0 %v4543
        %5309 = vmatprep.subr.mxu0 0.0
        %5310 = vmatpush1.msra.mxu0 %v4544
        %5311 = vmatprep.subr.mxu0 0.0
        %5312 = vmatpush1.msra.mxu0 %v4545
        %5313 = vmatprep.subr.mxu0 0.0
        %5314 = vmatpush1.msra.mxu0 %v4546
        %5315 = vmatprep.subr.mxu0 0.0
        %5316 = vmatpush1.msra.mxu0 %v4547
        %5317 = vmatprep.subr.mxu0 0.0
        %5318 = vmatpush1.msra.mxu0 %v4548
        %5319 = vmatprep.subr.mxu0 0.0
        %5320 = vmatpush1.msra.mxu0 %v4549
        %5321 = vmatprep.subr.mxu0 0.0
        %5322 = vmatpush1.msra.mxu0 %v4550
        %5323 = vmatprep.subr.mxu0 0.0
        %5324 = vmatpush1.msra.mxu0 %v4551
        %5325 = vmatprep.subr.mxu0 0.0
        %5326 = vmatpush1.msra.mxu0 %v4552
        %5327 = vmatprep.subr.mxu0 0.0
        %5328 = vmatpush1.msra.mxu0 %v4553
        %5329 = vmatprep.subr.mxu0 0.0
        %5330 = vmatpush1.msra.mxu0 %v4554
        %5331 = vmatprep.subr.mxu0 0.0
        %5332 = vmatpush1.msra.mxu0 %v4555
        %5333 = vmatprep.subr.mxu0 0.0
        %5334 = vmatpush1.msra.mxu0 %v4556
        %5335 = vmatprep.subr.mxu0 0.0
        %5336 = vmatpush1.msra.mxu0 0.0
        %5337 = vmatprep.subr.mxu0 0.0
        %5338 = vmatpush1.msra.mxu0 0.0
        %5339 = vmatprep.subr.mxu0 0.0
        %5340 = vmatpush1.msra.mxu0 0.0
        %5341 = vmatprep.subr.mxu0 0.0
        %5342 = vmatpush1.msra.mxu0 0.0
        %5343 = vmatprep.subr.mxu0 0.0
        %5344 = vmatpush1.msra.mxu0 0.0
        %5345 = vmatprep.subr.mxu0 0.0
        %5346 = vmatpush1.msra.mxu0 0.0
        %5347 = vmatprep.subr.mxu0 0.0
        %5348 = vmatpush1.msra.mxu0 0.0
        %5349 = vmatprep.subr.mxu0 0.0
        %5350 = vmatpush1.msra.mxu0 0.0
        %5351 = vmatprep.subr.mxu0 0.0
        %5352 = vmatpush1.msra.mxu0 0.0
        %5353 = vmatprep.subr.mxu0 0.0
        %5354 = vmatpush1.msra.mxu0 0.0
        %5355 = vmatprep.subr.mxu0 0.0
        %5356 = vmatpush1.msra.mxu0 0.0
        %5357 = vmatprep.subr.mxu0 0.0
        %5358 = vmatpush1.msra.mxu0 0.0
        %5359 = vmatprep.subr.mxu0 0.0
        %5360 = vmatpush1.msra.mxu0 0.0
        %5361 = vmatprep.subr.mxu0 0.0
        %5362 = vmatpush1.msra.mxu0 0.0
        %5363 = vmatprep.subr.mxu0 0.0
        %5364 = vmatpush1.msra.mxu0 0.0
        %5365 = vmatprep.subr.mxu0 0.0
        %5366 = vmatpush1.msra.mxu0 0.0
        %5367 = vmatprep.mubr.f32.mxu0 0.0
        %5368 = vmatmul.mubr.f32.gmra.mrb[0].mxu0 %v5231
        %v5369 = vpop.f32.mrb[0].mxu0
        %v5370 = vadd.f32 0.0, %v5369
        %v5371 = vpop.f32.mrb[0].mxu0
        %5372 = vdwg.mxu0
        %v5373 = vmul.f32 %v5370, 0.00048828125
        %v5374 = vmul.f32 %v5302, %v5302
        %v5375 = vsub.f32 %v5373, %v5374
        %v5376 = vlaneseq
        %v5377 = vshrl.u32 %v5376, 7
        %v5378 = vsub.s32 0, %v5377
        %v5379 = vrot.slane %v5302, %v5378
        %v5380 = vsub.f32 %v5000, %v5379
        %v5381 = vsub.f32 %v5003, %v5379
        %v5382 = vsub.f32 %v5008, %v5379
        %v5383 = vsub.f32 %v5011, %v5379
        %v5384 = vsub.f32 %v5016, %v5379
        %v5385 = vsub.f32 %v5019, %v5379
        %v5386 = vsub.f32 %v5024, %v5379
        %v5387 = vsub.f32 %v5027, %v5379
        %v5388 = vsub.f32 %v5032, %v5379
        %v5389 = vsub.f32 %v5035, %v5379
        %v5390 = vsub.f32 %v5040, %v5379
        %v5391 = vsub.f32 %v5043, %v5379
        %v5392 = vsub.f32 %v5048, %v5379
        %v5393 = vsub.f32 %v5051, %v5379
        %v5394 = vsub.f32 %v5056, %v5379
        %v5395 = vsub.f32 %v5059, %v5379
        %v5396 = vsub.f32 %v5064, %v5379
        %v5397 = vsub.f32 %v5067, %v5379
        %v5398 = vsub.f32 %v5072, %v5379
        %v5399 = vsub.f32 %v5075, %v5379
        %v5400 = vsub.f32 %v5080, %v5379
        %v5401 = vsub.f32 %v5083, %v5379
        %v5402 = vsub.f32 %v5088, %v5379
        %v5403 = vsub.f32 %v5091, %v5379
        %v5404 = vsub.f32 %v5096, %v5379
        %v5405 = vsub.f32 %v5099, %v5379
        %v5406 = vsub.f32 %v5104, %v5379
        %v5407 = vsub.f32 %v5107, %v5379
        %v5408 = vsub.f32 %v5112, %v5379
        %v5409 = vsub.f32 %v5115, %v5379
        %v5410 = vsub.f32 %v5120, %v5379
        %v5411 = vsub.f32 %v5123, %v5379
        %v5412 = vadd.f32 %v5375, 1e-05
        %v5413 = vrsqrt.pop %v5412
        %v5414 = vlaneseq
        %v5415 = vshrl.u32 %v5414, 7
        %v5416 = vsub.s32 0, %v5415
        %v5417 = vrot.slane %v5413, %v5416
        %v5418 = vmul.f32 %v5380, %v5417
        %v5419 = vmul.f32 %v5381, %v5417
        %v5420 = vmul.f32 %v5382, %v5417
        %v5421 = vmul.f32 %v5383, %v5417
        %v5422 = vmul.f32 %v5384, %v5417
        %v5423 = vmul.f32 %v5385, %v5417
        %v5424 = vmul.f32 %v5386, %v5417
        %v5425 = vmul.f32 %v5387, %v5417
        %v5426 = vmul.f32 %v5388, %v5417
        %v5427 = vmul.f32 %v5389, %v5417
        %v5428 = vmul.f32 %v5390, %v5417
        %v5429 = vmul.f32 %v5391, %v5417
        %v5430 = vmul.f32 %v5392, %v5417
        %v5431 = vmul.f32 %v5393, %v5417
        %v5432 = vmul.f32 %v5394, %v5417
        %v5433 = vmul.f32 %v5395, %v5417
        %v5434 = vmul.f32 %v5396, %v5417
        %v5435 = vmul.f32 %v5397, %v5417
        %v5436 = vmul.f32 %v5398, %v5417
        %v5437 = vmul.f32 %v5399, %v5417
        %v5438 = vmul.f32 %v5400, %v5417
        %v5439 = vmul.f32 %v5401, %v5417
        %v5440 = vmul.f32 %v5402, %v5417
        %v5441 = vmul.f32 %v5403, %v5417
        %v5442 = vmul.f32 %v5404, %v5417
        %v5443 = vmul.f32 %v5405, %v5417
        %v5444 = vmul.f32 %v5406, %v5417
        %v5445 = vmul.f32 %v5407, %v5417
        %v5446 = vmul.f32 %v5408, %v5417
        %v5447 = vmul.f32 %v5409, %v5417
        %v5448 = vmul.f32 %v5410, %v5417
        %v5449 = vmul.f32 %v5411, %v5417
        %v5450 = vld [vmem:[#allocation24] sm:$0x1]
        %v5452 = vlaneseq
        %v5453 = vshrl.u32 %v5452, 7
        %v5454 = vsub.s32 0, %v5453
        %v5455 = vrot.slane %v5450, %v5454
        %v5457 = vmul.f32 %v5418, %v5455
        %v5458 = vmul.f32 %v5419, %v5455
        %v5459 = vmul.f32 %v5420, %v5455
        %v5460 = vmul.f32 %v5421, %v5455
        %v5461 = vmul.f32 %v5422, %v5455
        %v5462 = vmul.f32 %v5423, %v5455
        %v5463 = vmul.f32 %v5424, %v5455
        %v5464 = vmul.f32 %v5425, %v5455
        %v5465 = vmul.f32 %v5426, %v5455
        %v5466 = vmul.f32 %v5427, %v5455
        %v5467 = vmul.f32 %v5428, %v5455
        %v5468 = vmul.f32 %v5429, %v5455
        %v5469 = vmul.f32 %v5430, %v5455
        %v5470 = vmul.f32 %v5431, %v5455
        %v5471 = vmul.f32 %v5432, %v5455
        %v5472 = vmul.f32 %v5433, %v5455
        %v5473 = vmul.f32 %v5434, %v5455
        %v5474 = vmul.f32 %v5435, %v5455
        %v5475 = vmul.f32 %v5436, %v5455
        %v5476 = vmul.f32 %v5437, %v5455
        %v5477 = vmul.f32 %v5438, %v5455
        %v5478 = vmul.f32 %v5439, %v5455
        %v5479 = vmul.f32 %v5440, %v5455
        %v5480 = vmul.f32 %v5441, %v5455
        %v5481 = vmul.f32 %v5442, %v5455
        %v5482 = vmul.f32 %v5443, %v5455
        %v5483 = vmul.f32 %v5444, %v5455
        %v5484 = vmul.f32 %v5445, %v5455
        %v5485 = vmul.f32 %v5446, %v5455
        %v5486 = vmul.f32 %v5447, %v5455
        %v5487 = vmul.f32 %v5448, %v5455
        %v5488 = vmul.f32 %v5449, %v5455
        %v5489 = vld [vmem:[#allocation25] sm:$0x1]
        %v5491 = vlaneseq
        %v5492 = vshrl.u32 %v5491, 7
        %v5493 = vsub.s32 0, %v5492
        %v5494 = vrot.slane %v5489, %v5493
        %v5496 = vadd.f32 %v5457, %v5494
        %v5497 = vadd.f32 %v5458, %v5494
        %v5498 = vadd.f32 %v5459, %v5494
        %v5499 = vadd.f32 %v5460, %v5494
        %v5500 = vadd.f32 %v5461, %v5494
        %v5501 = vadd.f32 %v5462, %v5494
        %v5502 = vadd.f32 %v5463, %v5494
        %v5503 = vadd.f32 %v5464, %v5494
        %v5504 = vadd.f32 %v5465, %v5494
        %v5505 = vadd.f32 %v5466, %v5494
        %v5506 = vadd.f32 %v5467, %v5494
        %v5507 = vadd.f32 %v5468, %v5494
        %v5508 = vadd.f32 %v5469, %v5494
        %v5509 = vadd.f32 %v5470, %v5494
        %v5510 = vadd.f32 %v5471, %v5494
        %v5511 = vadd.f32 %v5472, %v5494
        %v5512 = vadd.f32 %v5473, %v5494
        %v5513 = vadd.f32 %v5474, %v5494
        %v5514 = vadd.f32 %v5475, %v5494
        %v5515 = vadd.f32 %v5476, %v5494
        %v5516 = vadd.f32 %v5477, %v5494
        %v5517 = vadd.f32 %v5478, %v5494
        %v5518 = vadd.f32 %v5479, %v5494
        %v5519 = vadd.f32 %v5480, %v5494
        %v5520 = vadd.f32 %v5481, %v5494
        %v5521 = vadd.f32 %v5482, %v5494
        %v5522 = vadd.f32 %v5483, %v5494
        %v5523 = vadd.f32 %v5484, %v5494
        %v5524 = vadd.f32 %v5485, %v5494
        %v5525 = vadd.f32 %v5486, %v5494
        %v5526 = vadd.f32 %v5487, %v5494
        %v5527 = vadd.f32 %v5488, %v5494
        %v5528 = vadd.f32 %v4821, %v5496
        %v5529 = vadd.f32 %v4822, %v5497
        %v5530 = vadd.f32 %v4823, %v5498
        %v5531 = vadd.f32 %v4824, %v5499
        %v5532 = vadd.f32 %v4825, %v5500
        %v5533 = vadd.f32 %v4826, %v5501
        %v5534 = vadd.f32 %v4827, %v5502
        %v5535 = vadd.f32 %v4828, %v5503
        %v5536 = vadd.f32 %v4829, %v5504
        %v5537 = vadd.f32 %v4830, %v5505
        %v5538 = vadd.f32 %v4831, %v5506
        %v5539 = vadd.f32 %v4832, %v5507
        %v5540 = vadd.f32 %v4833, %v5508
        %v5541 = vadd.f32 %v4834, %v5509
        %v5542 = vadd.f32 %v4835, %v5510
        %v5543 = vadd.f32 %v4836, %v5511
        %v5544 = vadd.f32 %v4837, %v5512
        %v5545 = vadd.f32 %v4838, %v5513
        %v5546 = vadd.f32 %v4839, %v5514
        %v5547 = vadd.f32 %v4840, %v5515
        %v5548 = vadd.f32 %v4841, %v5516
        %v5549 = vadd.f32 %v4842, %v5517
        %v5550 = vadd.f32 %v4843, %v5518
        %v5551 = vadd.f32 %v4844, %v5519
        %v5552 = vadd.f32 %v4845, %v5520
        %v5553 = vadd.f32 %v4846, %v5521
        %v5554 = vadd.f32 %v4847, %v5522
        %v5555 = vadd.f32 %v4848, %v5523
        %v5556 = vadd.f32 %v4849, %v5524
        %v5557 = vadd.f32 %v4850, %v5525
        %v5558 = vadd.f32 %v4851, %v5526
        %v5559 = vadd.f32 %v4852, %v5527
        %v5560 = vmax.f32 %v5528, 0.0
        %v5561 = vmax.f32 %v5529, 0.0
        %v5562 = vmax.f32 %v5530, 0.0
        %v5563 = vmax.f32 %v5531, 0.0
        %v5564 = vmax.f32 %v5532, 0.0
        %v5565 = vmax.f32 %v5533, 0.0
        %v5566 = vmax.f32 %v5534, 0.0
        %v5567 = vmax.f32 %v5535, 0.0
        %v5568 = vmax.f32 %v5536, 0.0
        %v5569 = vmax.f32 %v5537, 0.0
        %v5570 = vmax.f32 %v5538, 0.0
        %v5571 = vmax.f32 %v5539, 0.0
        %v5572 = vmax.f32 %v5540, 0.0
        %v5573 = vmax.f32 %v5541, 0.0
        %v5574 = vmax.f32 %v5542, 0.0
        %v5575 = vmax.f32 %v5543, 0.0
        %v5576 = vmax.f32 %v5544, 0.0
        %v5577 = vmax.f32 %v5545, 0.0
        %v5578 = vmax.f32 %v5546, 0.0
        %v5579 = vmax.f32 %v5547, 0.0
        %v5580 = vmax.f32 %v5548, 0.0
        %v5581 = vmax.f32 %v5549, 0.0
        %v5582 = vmax.f32 %v5550, 0.0
        %v5583 = vmax.f32 %v5551, 0.0
        %v5584 = vmax.f32 %v5552, 0.0
        %v5585 = vmax.f32 %v5553, 0.0
        %v5586 = vmax.f32 %v5554, 0.0
        %v5587 = vmax.f32 %v5555, 0.0
        %v5588 = vmax.f32 %v5556, 0.0
        %v5589 = vmax.f32 %v5557, 0.0
        %v5590 = vmax.f32 %v5558, 0.0
        %v5591 = vmax.f32 %v5559, 0.0
        %5592 = vst [vmem:[%s766] sm:$0xff] %v5560
        %5593 = vst [vmem:[%s766 + $0x8] sm:$0xff] %v5561
        %5594 = vst [vmem:[%s766 + $0x10] sm:$0xff] %v5562
        %5595 = vst [vmem:[%s766 + $0x18] sm:$0xff] %v5563
        %5596 = vst [vmem:[%s766 + $0x20] sm:$0xff] %v5564
        %5597 = vst [vmem:[%s766 + $0x28] sm:$0xff] %v5565
        %5598 = vst [vmem:[%s766 + $0x30] sm:$0xff] %v5566
        %5599 = vst [vmem:[%s766 + $0x38] sm:$0xff] %v5567
        %5600 = vst [vmem:[%s766 + $0x40] sm:$0xff] %v5568
        %5601 = vst [vmem:[%s766 + $0x48] sm:$0xff] %v5569
        %5602 = vst [vmem:[%s766 + $0x50] sm:$0xff] %v5570
        %5603 = vst [vmem:[%s766 + $0x58] sm:$0xff] %v5571
        %5604 = vst [vmem:[%s766 + $0x60] sm:$0xff] %v5572
        %5605 = vst [vmem:[%s766 + $0x68] sm:$0xff] %v5573
        %5606 = vst [vmem:[%s766 + $0x70] sm:$0xff] %v5574
        %5607 = vst [vmem:[%s766 + $0x78] sm:$0xff] %v5575
        %5608 = vst [vmem:[%s766 + $0x80] sm:$0xff] %v5576
        %5609 = vst [vmem:[%s766 + $0x88] sm:$0xff] %v5577
        %5610 = vst [vmem:[%s766 + $0x90] sm:$0xff] %v5578
        %5611 = vst [vmem:[%s766 + $0x98] sm:$0xff] %v5579
        %5612 = vst [vmem:[%s766 + $0xa0] sm:$0xff] %v5580
        %5613 = vst [vmem:[%s766 + $0xa8] sm:$0xff] %v5581
        %5614 = vst [vmem:[%s766 + $0xb0] sm:$0xff] %v5582
        %5615 = vst [vmem:[%s766 + $0xb8] sm:$0xff] %v5583
        %5616 = vst [vmem:[%s766 + $0xc0] sm:$0xff] %v5584
        %5617 = vst [vmem:[%s766 + $0xc8] sm:$0xff] %v5585
        %5618 = vst [vmem:[%s766 + $0xd0] sm:$0xff] %v5586
        %5619 = vst [vmem:[%s766 + $0xd8] sm:$0xff] %v5587
        %5620 = vst [vmem:[%s766 + $0xe0] sm:$0xff] %v5588
        %5621 = vst [vmem:[%s766 + $0xe8] sm:$0xff] %v5589
        %5622 = vst [vmem:[%s766 + $0xf0] sm:$0xff] %v5590
        %5623 = vst [vmem:[%s766 + $0xf8] sm:$0xff] %v5591
        %s5624 = sand.u32 %s397, 1
        %s5625 = scalar_lea.sflag [#allocation6], %s5624
        %s5626 = sand.u32 %s397, 1
        %s5627 = smul.addr %s5626, 256
        %s5628 = scalar_lea.vmem [#allocation30], %s5627
        // Predicated region
        $region149: #{tpu_custom_call.1} parent=83 // pred_check
          %p5629 = pneg %p407
        $region150: #{tpu_custom_call.1} parent=83 // pred_check_branch
          %5631 = sbr.rel (%p5629) target = $region152
        $region151: #{tpu_custom_call.1} parent=83 // pred_region
          %s5633 = ssub.s32 4096, 4096
          %5634 = vsyncadd %s5625, %s5633
          %s5635 = smul.addr %s43, 32
          %s5636 = smul.addr %s5635, 128
          %s5637 = scalar_lea.hbm %s16, %s5636
          %s5638 = sshll.u32 %s5628, 4
          %s5639 = int_to_ptr.vmem [resolvable:$true] %s5638
          %5644 = dma.vmem_to_hbm [thread:$0]  %s5639, 4096, %s5637, %s5625, 128, 128, 8
        $region152: #{tpu_custom_call.1} parent=83 // pred_fallthru
          _
      $region84: #{tpu_custom_call.1} parent=5 // pred_fallthru
        _
      %p5645 = scmp.le.s32.totalorder 2, %s38
      // Predicated region
      $region153: #{tpu_custom_call.1} parent=5 // pred_check
        %p5646 = pneg %p5645
      $region154: #{tpu_custom_call.1} parent=5 // pred_check_branch
        %5648 = sbr.rel (%p5646) target = $region156
      $region155: #{tpu_custom_call.1} parent=5 // pred_region
        %s5649 = ssub.s32 %s38, 2
        // Predicated region
        $region157: #{tpu_custom_call.1} parent=155 // pred_check
          %p5650 = pneg %p413
        $region158: #{tpu_custom_call.1} parent=155 // pred_check_branch
          %5652 = sbr.rel (%p5650) target = $region160
        $region159: #{tpu_custom_call.1} parent=155 // pred_region
          %s5653 = sand.u32 %s398, 1
          %s5654 = scalar_lea.sflag [#allocation6], %s5653
          %s5655 = sand.u32 %s398, 1
          %s5656 = smul.addr %s5655, 256
          %s5657 = scalar_lea.vmem [#allocation30], %s5656
          %5658 = dma.done %s5654, 4096
        $region160: #{tpu_custom_call.1} parent=155 // pred_fallthru
          _
      $region156: #{tpu_custom_call.1} parent=5 // pred_fallthru
        _
    $region6: #{tpu_custom_call.1} parent=1 // loop_footer
      %s42 = sadd.s32 1, %s38
    $region7: #{tpu_custom_call.1} parent=1 // loop_footer_branch
      %37 = sbr.rel target = $region3
    $region8: #{tpu_custom_call.1} parent=1 // loop_exit
      _
    %5659 = vsyncpa [#allocation5], 1
    %s5660 = scalar_lea.sflag [#allocation5], 1
    %5661 = vsyncpa %s5660, 1
    %5662 = vsyncpa [#allocation8], 1
    %s5663 = scalar_lea.sflag [#allocation8], 1
    %5664 = vsyncpa %s5663, 1
    %5665 = vsyncpa [#allocation11], 1
    %5666 = vsyncpa [#allocation14], 1
    %5667 = vsyncpa [#allocation17], 1
    %5668 = vsyncpa [#allocation20], 1
    %5669 = vsyncpa [#allocation23], 1
    %5670 = vsyncpa [#allocation26], 1
    %5671 = vsyncpa [#allocation29], 1
    %5672 = vsyncpa [#allocation6], 1
    %s5673 = scalar_lea.sflag [#allocation6], 1
    %5674 = vsyncpa %s5673, 1

</llo_original>
